<compile_context>
chip_gen: v5e
topology: v5e:2x2
jax: 0.10.0
libtpu: 0.0.40
codegen_flags: <defaults>
</compile_context>

<pallas_src>
import functools

import jax
import jax.numpy as jnp
from jax import lax
from jax.experimental import pallas as pl
from jax.experimental.pallas import tpu as pltpu

EMB = 8        # embedding_dim
HIDDEN = 100   # hidden_size (logical)
VOCAB = 80     # input_length (num embeddings)
N_CLS = 80     # n_cls (logical)

H_PAD = 128    # hidden padded to one lane tile
N_PAD = 128    # logits padded to one lane tile
V_PAD = 128    # vocab padded to one lane tile (one-hot width)


# ---------------------------------------------------------------------------
# Kernel: whole forward pass (embedding + skewed 2-layer LSTM over T steps + fc)
# ---------------------------------------------------------------------------
def char_lstm_kernel(tok_ref,      # (T*Bp, 1) int32, time-major flattened
                     emb_w_ref,    # (V_PAD, 4*H_PAD) bf16  = embedding @ W_ih0
                     b0_ref,       # (1, 4*H_PAD) f32
                     w_blk_ref,    # (2*H_PAD, 8*H_PAD) bf16 = [[Whh0,Wih1],[0,Whh1]]
                     b1_ref,       # (1, 4*H_PAD) f32
                     w_fc_ref,     # (H_PAD, N_PAD) f32
                     b_fc_ref,     # (1, N_PAD) f32
                     out_ref,      # (Bp, N_PAD) f32
                     xg_ref,       # VMEM scratch (T*Bp, 4*H_PAD) f32
                     st_ref,       # VMEM scratch (Bp, 2*H_PAD) f32 = [h0 | h1]
                     *, seq_len, batch):
    tb = seq_len * batch
    H4 = 4 * H_PAD

    # Embedding lookup as a one-hot matmul against the precomputed
    # (embedding @ W_ih0), fused with the layer-0 bias: x-gate contributions for
    # ALL timesteps in one matmul, spilled to VMEM so only one (Bp,4H) slice is
    # live per loop step.
    onehot = (tok_ref[...] ==
              lax.broadcasted_iota(jnp.int32, (tb, V_PAD), 1)
              ).astype(jnp.bfloat16)                                  # (T*Bp, 128)
    xg_ref[...] = jnp.dot(onehot, emb_w_ref[...],
                          preferred_element_type=jnp.float32) + b0_ref[...]

    b1 = jnp.broadcast_to(b1_ref[...], (batch, H4))   # hoist once (no CSE in loop)

    def apply_gates(gates, c):
        # Gate order i, f, g, o; every slice starts on a lane-tile boundary.
        i = jax.nn.sigmoid(gates[:, 0 * H_PAD:1 * H_PAD])
        f = jax.nn.sigmoid(gates[:, 1 * H_PAD:2 * H_PAD])
        g = jnp.tanh(gates[:, 2 * H_PAD:3 * H_PAD])
        o = jax.nn.sigmoid(gates[:, 3 * H_PAD:4 * H_PAD])
        c_new = f * c + i * g
        return o * jnp.tanh(c_new), c_new

    zeros = jnp.zeros((batch, H_PAD), jnp.float32)
    c0, c1 = zeros, zeros
    h1 = zeros                              # f32 copy of layer-1 hidden (for fc)
    st_ref[...] = jnp.zeros((batch, 2 * H_PAD), jnp.float32)

    # Skewed, fully unrolled recurrence (static slices -> no dynamic indexing).
    # Iteration k: layer-0 step k and layer-1 step k-1 from ONE fused matmul.
    # NOTE: keeping the block weight MXU-resident (pltpu.matmul_push_rhs /
    # matmul_acc_lhs / matmul_pop) would remove the remaining per-step weight
    # streaming; bf16 weights are used instead to halve that traffic.
    for k in range(seq_len):
        xg_k = xg_ref[k * batch:(k + 1) * batch, :]               # (Bp, 4H) f32
        if k == 0:
            g0 = xg_k                                             # state is all 0
        else:
            rec = jnp.dot(st_ref[...].astype(jnp.bfloat16), w_blk_ref[...],
                          preferred_element_type=jnp.float32)     # (Bp, 8H)
            g0 = xg_k + rec[:, :H4]
            h1, c1 = apply_gates(rec[:, H4:] + b1, c1)            # layer-1 step k-1
            st_ref[:, H_PAD:] = h1
        h0, c0 = apply_gates(g0, c0)                              # layer-0 step k
        st_ref[:, :H_PAD] = h0

    # Drain: layer-1 step T-1 from [h0(T-1), h1(T-2)].
    g1 = jnp.dot(st_ref[...].astype(jnp.bfloat16), w_blk_ref[:, H4:],
                 preferred_element_type=jnp.float32) + b1
    h1, c1 = apply_gates(g1, c1)

    # output[-1] of the top layer -> fc (kept f32); lane-dense (Bp,128) store.
    out_ref[...] = (jnp.dot(h1, w_fc_ref[...],
                            preferred_element_type=jnp.float32) + b_fc_ref[...])


# ---------------------------------------------------------------------------
# Wrapper: pad to hardware tiles, fuse/cast weights, call kernel, slice back
# ---------------------------------------------------------------------------
def _pad_gate_cols(w):
    """(K, 4*HIDDEN) -> (K, 4*H_PAD), zero-padding each gate block separately."""
    k = w.shape[0]
    w4 = w.reshape(k, 4, HIDDEN)
    w4 = jnp.pad(w4, ((0, 0), (0, 0), (0, H_PAD - HIDDEN)))
    return w4.reshape(k, 4 * H_PAD)


def _pad_rows(w, rows):
    return jnp.pad(w, ((0, rows - w.shape[0]), (0, 0)))


def char_lstm_forward(x_tokens, p):
    """x_tokens: (B, T) int32 indices in [0, VOCAB). Returns (B, N_CLS) f32."""
    B, T = x_tokens.shape
    Bp = max(8, ((B + 7) // 8) * 8)   # pad batch to a multiple of 8 sublanes

    # Time-major flattened tokens; padded batch rows use token 0 (sliced off).
    tok = jnp.pad(x_tokens.astype(jnp.int32), ((0, Bp - B), (0, 0)))
    tok_tm = jnp.transpose(tok, (1, 0)).reshape(T * Bp, 1)

    # Parameter prep: pad to lane tiles, hoist parameter-only matmul, cast the
    # recurrence-path operands to bf16 once.
    emb_p   = _pad_rows(p["embedding"], V_PAD)                        # (128, 8)
    w_ih0_p = _pad_gate_cols(p["w_ih0"])                              # (8, 512)
    emb_w_p = (emb_p @ w_ih0_p).astype(jnp.bfloat16)                  # (128, 512)
    b0_p    = _pad_gate_cols(p["b0"])                                 # (1, 512)

    w_hh0_p = _pad_rows(_pad_gate_cols(p["w_hh0"]), H_PAD)            # (128, 512)
    w_ih1_p = _pad_rows(_pad_gate_cols(p["w_ih1"]), H_PAD)            # (128, 512)
    w_hh1_p = _pad_rows(_pad_gate_cols(p["w_hh1"]), H_PAD)            # (128, 512)
    w_blk = jnp.concatenate(
        [jnp.concatenate([w_hh0_p, w_ih1_p], axis=1),
         jnp.concatenate([jnp.zeros_like(w_hh0_p), w_hh1_p], axis=1)],
        axis=0).astype(jnp.bfloat16)                                  # (256, 1024)
    b1_p    = _pad_gate_cols(p["b1"])                                 # (1, 512)

    w_fc_p  = jnp.pad(p["w_fc"], ((0, H_PAD - HIDDEN), (0, N_PAD - N_CLS)))
    b_fc_p  = jnp.pad(p["b_fc"], ((0, 0), (0, N_PAD - N_CLS)))

    vmem = pl.BlockSpec(memory_space=pltpu.MemorySpace.VMEM)
    kernel = functools.partial(char_lstm_kernel, seq_len=T, batch=Bp)

    out_pad = pl.pallas_call(
        kernel,
        out_shape=jax.ShapeDtypeStruct((Bp, N_PAD), jnp.float32),
        in_specs=[vmem] * 7,
        out_specs=vmem,
        scratch_shapes=[pltpu.VMEM((T * Bp, 4 * H_PAD), jnp.float32),
                        pltpu.VMEM((Bp, 2 * H_PAD), jnp.float32)],
    )(tok_tm, emb_w_p, b0_p, w_blk, b1_p, w_fc_p, b_fc_p)

    return out_pad[:B, :N_CLS]


# ---------------------------------------------------------------------------
# Deterministic parameter init (shapes follow nn.Embedding / nn.LSTM / nn.Linear,
# with weight matrices stored transposed as (in_features, out_features))
# ---------------------------------------------------------------------------
def init_params(key):
    ks = jax.random.split(key, 12)
    s = 1.0 / jnp.sqrt(HIDDEN)

    def uni(k, shape):
        return jax.random.uniform(k, shape, jnp.float32, -s, s)

    return {
        "embedding": jax.random.normal(ks[0], (VOCAB, EMB), jnp.float32),
        "w_ih0": uni(ks[1], (EMB, 4 * HIDDEN)),
        "w_hh0": uni(ks[2], (HIDDEN, 4 * HIDDEN)),
        "b0": uni(ks[3], (1, 4 * HIDDEN)) + uni(ks[4], (1, 4 * HIDDEN)),  # b_ih+b_hh
        "w_ih1": uni(ks[5], (HIDDEN, 4 * HIDDEN)),
        "w_hh1": uni(ks[6], (HIDDEN, 4 * HIDDEN)),
        "b1": uni(ks[7], (1, 4 * HIDDEN)) + uni(ks[8], (1, 4 * HIDDEN)),
        "w_fc": uni(ks[9], (HIDDEN, N_CLS)),
        "b_fc": uni(ks[10], (1, N_CLS)),
    }


# ---------------------------------------------------------------------------
# Pure-JAX reference (unpadded f32, same math as the PyTorch module)
# ---------------------------------------------------------------------------
def reference_forward(x_tokens, p):
    emb = p["embedding"][x_tokens]
    xs = jnp.transpose(emb, (1, 0, 2))
    B = x_tokens.shape[0]

    def cell(x_t, h, c, w_ih, w_hh, b):
        gates = x_t @ w_ih + h @ w_hh + b
        i = jax.nn.sigmoid(gates[:, 0 * HIDDEN:1 * HIDDEN])
        f = jax.nn.sigmoid(gates[:, 1 * HIDDEN:2 * HIDDEN])
        g = jnp.tanh(gates[:, 2 * HIDDEN:3 * HIDDEN])
        o = jax.nn.sigmoid(gates[:, 3 * HIDDEN:4 * HIDDEN])
        c_new = f * c + i * g
        return o * jnp.tanh(c_new), c_new

    def step(carry, x_t):
        h0, c0, h1, c1 = carry
        h0, c0 = cell(x_t, h0, c0, p["w_ih0"], p["w_hh0"], p["b0"])
        h1, c1 = cell(h0, h1, c1, p["w_ih1"], p["w_hh1"], p["b1"])
        return (h0, c0, h1, c1), None

    init = tuple(jnp.zeros((B, HIDDEN), jnp.float32) for _ in range(4))
    (h0, c0, h1, c1), _ = lax.scan(step, init, xs)
    return h1 @ p["w_fc"] + p["b_fc"]


# ---------------------------------------------------------------------------
if __name__ == "__main__":
    key = jax.random.PRNGKey(0)
    k_par, k_tok = jax.random.split(key)

    params = init_params(k_par)

    B, T = 4, 8
    x_tokens = jax.random.randint(k_tok, (B, T), 0, VOCAB, dtype=jnp.int32)

    forward = jax.jit(char_lstm_forward)
    out = jax.block_until_ready(forward(x_tokens, params))
    ref = jax.block_until_ready(reference_forward(x_tokens, params))

    assert out.shape == (B, N_CLS)
    # bf16 MXU inputs on the 8-step recurrence -> deliberately relaxed tolerance
    # vs the f32 reference (per review guidance).
    assert jnp.allclose(out, ref, atol=1e-2, rtol=1e-2), "mismatch vs JAX reference"

    print("KERNEL_OK")
</pallas_src>

<mosaic_0001>
module attributes {stable_mosaic.version = 11 : i64} {
  func.func @char_lstm_kernel(%arg0: memref<64x1xi32, #tpu.memory_space<vmem>>, %arg1: memref<128x512xbf16, #tpu.memory_space<vmem>>, %arg2: memref<1x512xf32, #tpu.memory_space<vmem>>, %arg3: memref<256x1024xbf16, #tpu.memory_space<vmem>>, %arg4: memref<1x512xf32, #tpu.memory_space<vmem>>, %arg5: memref<128x128xf32, #tpu.memory_space<vmem>>, %arg6: memref<1x128xf32, #tpu.memory_space<vmem>>, %arg7: memref<8x128xf32, #tpu.memory_space<vmem>>, %arg8: memref<64x512xf32, #tpu.memory_space<vmem>>, %arg9: memref<8x256xf32, #tpu.memory_space<vmem>>) attributes {dimension_semantics = [], scalar_prefetch = 0 : i64, scratch_operands = 2 : i64, tpu.core_type = #tpu.core_type<tc>} {
    %c0 = arith.constant 0 : index
    %c0_0 = arith.constant 0 : index
    %0 = vector.load %arg0[%c0, %c0_0] : memref<64x1xi32, #tpu.memory_space<vmem>>, vector<64x1xi32>
    %1 = tpu.iota {dimensions = array<i32: 1>} : vector<64x128xi32>
    %2 = vector.broadcast %0 : vector<64x1xi32> to vector<64x128xi32>
    %3 = arith.cmpi eq, %2, %1 : vector<64x128xi32>
    %4 = arith.extui %3 : vector<64x128xi1> to vector<64x128xi32>
    %5 = arith.sitofp %4 : vector<64x128xi32> to vector<64x128xf32>
    %6 = arith.truncf %5 : vector<64x128xf32> to vector<64x128xbf16>
    %c0_1 = arith.constant 0 : index
    %c0_2 = arith.constant 0 : index
    %7 = vector.load %arg1[%c0_1, %c0_2] : memref<128x512xbf16, #tpu.memory_space<vmem>>, vector<128x512xbf16>
    %cst = arith.constant dense<0.000000e+00> : vector<64x512xf32>
    %8 = tpu.matmul %6, %7, %cst {dimension_numbers = #tpu.dot_dimension_numbers<[1], [0], [0], [1], [0, 0, 1, 1], [], []>} : vector<64x128xbf16>, vector<128x512xbf16>, vector<64x512xf32> -> vector<64x512xf32>
    %c0_3 = arith.constant 0 : index
    %c0_4 = arith.constant 0 : index
    %9 = vector.load %arg2[%c0_3, %c0_4] : memref<1x512xf32, #tpu.memory_space<vmem>>, vector<1x512xf32>
    %10 = vector.broadcast %9 : vector<1x512xf32> to vector<64x512xf32>
    %11 = arith.addf %8, %10 : vector<64x512xf32>
    %c0_5 = arith.constant 0 : index
    %c0_6 = arith.constant 0 : index
    %12 = vector.load %arg8[%c0_5, %c0_6] : memref<64x512xf32, #tpu.memory_space<vmem>>, vector<64x512xf32>
    tpu.vector_store %arg8[%c0_5, %c0_6], %11 {strides = array<i32>} : memref<64x512xf32, #tpu.memory_space<vmem>>, vector<64x512xf32>,
    %c0_7 = arith.constant 0 : index
    %c0_8 = arith.constant 0 : index
    %13 = vector.load %arg4[%c0_7, %c0_8] : memref<1x512xf32, #tpu.memory_space<vmem>>, vector<1x512xf32>
    %14 = vector.shape_cast %13 : vector<1x512xf32> to vector<1x512xf32>
    %15 = vector.broadcast %14 : vector<1x512xf32> to vector<8x512xf32>
    %cst_9 = arith.constant 0.000000e+00 : f32
    %16 = vector.broadcast %cst_9 : f32 to vector<8x128xf32>
    %cst_10 = arith.constant 0.000000e+00 : f32
    %17 = vector.broadcast %cst_10 : f32 to vector<8x256xf32>
    %c0_11 = arith.constant 0 : index
    %c0_12 = arith.constant 0 : index
    %18 = vector.load %arg9[%c0_11, %c0_12] : memref<8x256xf32, #tpu.memory_space<vmem>>, vector<8x256xf32>
    tpu.vector_store %arg9[%c0_11, %c0_12], %17 {strides = array<i32>} : memref<8x256xf32, #tpu.memory_space<vmem>>, vector<8x256xf32>,
    %c0_13 = arith.constant 0 : index
    %c0_14 = arith.constant 0 : index
    %19 = vector.load %arg8[%c0_13, %c0_14] : memref<64x512xf32, #tpu.memory_space<vmem>>, vector<8x512xf32>
    %20 = vector.extract_strided_slice %19 {offsets = [0, 0], sizes = [8, 128], strides = [1, 1]} : vector<8x512xf32> to vector<8x128xf32>
    %21 = arith.negf %20 : vector<8x128xf32>
    %22 = math.exp %21 : vector<8x128xf32>
    %cst_15 = arith.constant 1.000000e+00 : f32
    %23 = vector.broadcast %cst_15 : f32 to vector<8x128xf32>
    %24 = arith.addf %23, %22 : vector<8x128xf32>
    %25 = arith.divf %23, %24 : vector<8x128xf32>
    %26 = vector.extract_strided_slice %19 {offsets = [0, 128], sizes = [8, 128], strides = [1, 1]} : vector<8x512xf32> to vector<8x128xf32>
    %27 = arith.negf %26 : vector<8x128xf32>
    %28 = math.exp %27 : vector<8x128xf32>
    %cst_16 = arith.constant 1.000000e+00 : f32
    %29 = vector.broadcast %cst_16 : f32 to vector<8x128xf32>
    %30 = arith.addf %29, %28 : vector<8x128xf32>
    %31 = arith.divf %29, %30 : vector<8x128xf32>
    %32 = vector.extract_strided_slice %19 {offsets = [0, 256], sizes = [8, 128], strides = [1, 1]} : vector<8x512xf32> to vector<8x128xf32>
    %33 = math.tanh %32 : vector<8x128xf32>
    %34 = vector.extract_strided_slice %19 {offsets = [0, 384], sizes = [8, 128], strides = [1, 1]} : vector<8x512xf32> to vector<8x128xf32>
    %35 = arith.negf %34 : vector<8x128xf32>
    %36 = math.exp %35 : vector<8x128xf32>
    %cst_17 = arith.constant 1.000000e+00 : f32
    %37 = vector.broadcast %cst_17 : f32 to vector<8x128xf32>
    %38 = arith.addf %37, %36 : vector<8x128xf32>
    %39 = arith.divf %37, %38 : vector<8x128xf32>
    %40 = arith.mulf %31, %16 : vector<8x128xf32>
    %41 = arith.mulf %25, %33 : vector<8x128xf32>
    %42 = arith.addf %40, %41 : vector<8x128xf32>
    %43 = math.tanh %42 : vector<8x128xf32>
    %44 = arith.mulf %39, %43 : vector<8x128xf32>
    %c0_18 = arith.constant 0 : index
    %c0_19 = arith.constant 0 : index
    %45 = vector.load %arg9[%c0_18, %c0_19] : memref<8x256xf32, #tpu.memory_space<vmem>>, vector<8x128xf32>
    tpu.vector_store %arg9[%c0_18, %c0_19], %44 {strides = array<i32>} : memref<8x256xf32, #tpu.memory_space<vmem>>, vector<8x128xf32>,
    %c8 = arith.constant 8 : index
    %c0_20 = arith.constant 0 : index
    %46 = vector.load %arg8[%c8, %c0_20] : memref<64x512xf32, #tpu.memory_space<vmem>>, vector<8x512xf32>
    %c0_21 = arith.constant 0 : index
    %c0_22 = arith.constant 0 : index
    %47 = vector.load %arg9[%c0_21, %c0_22] : memref<8x256xf32, #tpu.memory_space<vmem>>, vector<8x256xf32>
    %48 = arith.truncf %47 : vector<8x256xf32> to vector<8x256xbf16>
    %c0_23 = arith.constant 0 : index
    %c0_24 = arith.constant 0 : index
    %49 = vector.load %arg3[%c0_23, %c0_24] : memref<256x1024xbf16, #tpu.memory_space<vmem>>, vector<256x1024xbf16>
    %cst_25 = arith.constant dense<0.000000e+00> : vector<8x1024xf32>
    %50 = tpu.matmul %48, %49, %cst_25 {dimension_numbers = #tpu.dot_dimension_numbers<[1], [0], [0], [1], [0, 0, 1, 1], [], []>} : vector<8x256xbf16>, vector<256x1024xbf16>, vector<8x1024xf32> -> vector<8x1024xf32>
    %51 = vector.extract_strided_slice %50 {offsets = [0, 0], sizes = [8, 512], strides = [1, 1]} : vector<8x1024xf32> to vector<8x512xf32>
    %52 = arith.addf %46, %51 : vector<8x512xf32>
    %53 = vector.extract_strided_slice %50 {offsets = [0, 512], sizes = [8, 512], strides = [1, 1]} : vector<8x1024xf32> to vector<8x512xf32>
    %54 = arith.addf %53, %15 : vector<8x512xf32>
    %55 = vector.extract_strided_slice %54 {offsets = [0, 0], sizes = [8, 128], strides = [1, 1]} : vector<8x512xf32> to vector<8x128xf32>
    %56 = arith.negf %55 : vector<8x128xf32>
    %57 = math.exp %56 : vector<8x128xf32>
    %cst_26 = arith.constant 1.000000e+00 : f32
    %58 = vector.broadcast %cst_26 : f32 to vector<8x128xf32>
    %59 = arith.addf %58, %57 : vector<8x128xf32>
    %60 = arith.divf %58, %59 : vector<8x128xf32>
    %61 = vector.extract_strided_slice %54 {offsets = [0, 128], sizes = [8, 128], strides = [1, 1]} : vector<8x512xf32> to vector<8x128xf32>
    %62 = arith.negf %61 : vector<8x128xf32>
    %63 = math.exp %62 : vector<8x128xf32>
    %cst_27 = arith.constant 1.000000e+00 : f32
    %64 = vector.broadcast %cst_27 : f32 to vector<8x128xf32>
    %65 = arith.addf %64, %63 : vector<8x128xf32>
    %66 = arith.divf %64, %65 : vector<8x128xf32>
    %67 = vector.extract_strided_slice %54 {offsets = [0, 256], sizes = [8, 128], strides = [1, 1]} : vector<8x512xf32> to vector<8x128xf32>
    %68 = math.tanh %67 : vector<8x128xf32>
    %69 = vector.extract_strided_slice %54 {offsets = [0, 384], sizes = [8, 128], strides = [1, 1]} : vector<8x512xf32> to vector<8x128xf32>
    %70 = arith.negf %69 : vector<8x128xf32>
    %71 = math.exp %70 : vector<8x128xf32>
    %cst_28 = arith.constant 1.000000e+00 : f32
    %72 = vector.broadcast %cst_28 : f32 to vector<8x128xf32>
    %73 = arith.addf %72, %71 : vector<8x128xf32>
    %74 = arith.divf %72, %73 : vector<8x128xf32>
    %75 = arith.mulf %66, %16 : vector<8x128xf32>
    %76 = arith.mulf %60, %68 : vector<8x128xf32>
    %77 = arith.addf %75, %76 : vector<8x128xf32>
    %78 = math.tanh %77 : vector<8x128xf32>
    %79 = arith.mulf %74, %78 : vector<8x128xf32>
    %c0_29 = arith.constant 0 : index
    %c128 = arith.constant 128 : index
    %80 = vector.load %arg9[%c0_29, %c128] : memref<8x256xf32, #tpu.memory_space<vmem>>, vector<8x128xf32>
    tpu.vector_store %arg9[%c0_29, %c128], %79 {strides = array<i32>} : memref<8x256xf32, #tpu.memory_space<vmem>>, vector<8x128xf32>,
    %81 = vector.extract_strided_slice %52 {offsets = [0, 0], sizes = [8, 128], strides = [1, 1]} : vector<8x512xf32> to vector<8x128xf32>
    %82 = arith.negf %81 : vector<8x128xf32>
    %83 = math.exp %82 : vector<8x128xf32>
    %cst_30 = arith.constant 1.000000e+00 : f32
    %84 = vector.broadcast %cst_30 : f32 to vector<8x128xf32>
    %85 = arith.addf %84, %83 : vector<8x128xf32>
    %86 = arith.divf %84, %85 : vector<8x128xf32>
    %87 = vector.extract_strided_slice %52 {offsets = [0, 128], sizes = [8, 128], strides = [1, 1]} : vector<8x512xf32> to vector<8x128xf32>
    %88 = arith.negf %87 : vector<8x128xf32>
    %89 = math.exp %88 : vector<8x128xf32>
    %cst_31 = arith.constant 1.000000e+00 : f32
    %90 = vector.broadcast %cst_31 : f32 to vector<8x128xf32>
    %91 = arith.addf %90, %89 : vector<8x128xf32>
    %92 = arith.divf %90, %91 : vector<8x128xf32>
    %93 = vector.extract_strided_slice %52 {offsets = [0, 256], sizes = [8, 128], strides = [1, 1]} : vector<8x512xf32> to vector<8x128xf32>
    %94 = math.tanh %93 : vector<8x128xf32>
    %95 = vector.extract_strided_slice %52 {offsets = [0, 384], sizes = [8, 128], strides = [1, 1]} : vector<8x512xf32> to vector<8x128xf32>
    %96 = arith.negf %95 : vector<8x128xf32>
    %97 = math.exp %96 : vector<8x128xf32>
    %cst_32 = arith.constant 1.000000e+00 : f32
    %98 = vector.broadcast %cst_32 : f32 to vector<8x128xf32>
    %99 = arith.addf %98, %97 : vector<8x128xf32>
    %100 = arith.divf %98, %99 : vector<8x128xf32>
    %101 = arith.mulf %92, %42 : vector<8x128xf32>
    %102 = arith.mulf %86, %94 : vector<8x128xf32>
    %103 = arith.addf %101, %102 : vector<8x128xf32>
    %104 = math.tanh %103 : vector<8x128xf32>
    %105 = arith.mulf %100, %104 : vector<8x128xf32>
    %c0_33 = arith.constant 0 : index
    %c0_34 = arith.constant 0 : index
    %106 = vector.load %arg9[%c0_33, %c0_34] : memref<8x256xf32, #tpu.memory_space<vmem>>, vector<8x128xf32>
    tpu.vector_store %arg9[%c0_33, %c0_34], %105 {strides = array<i32>} : memref<8x256xf32, #tpu.memory_space<vmem>>, vector<8x128xf32>,
    %c16 = arith.constant 16 : index
    %c0_35 = arith.constant 0 : index
    %107 = vector.load %arg8[%c16, %c0_35] : memref<64x512xf32, #tpu.memory_space<vmem>>, vector<8x512xf32>
    %c0_36 = arith.constant 0 : index
    %c0_37 = arith.constant 0 : index
    %108 = vector.load %arg9[%c0_36, %c0_37] : memref<8x256xf32, #tpu.memory_space<vmem>>, vector<8x256xf32>
    %109 = arith.truncf %108 : vector<8x256xf32> to vector<8x256xbf16>
    %c0_38 = arith.constant 0 : index
    %c0_39 = arith.constant 0 : index
    %110 = vector.load %arg3[%c0_38, %c0_39] : memref<256x1024xbf16, #tpu.memory_space<vmem>>, vector<256x1024xbf16>
    %cst_40 = arith.constant dense<0.000000e+00> : vector<8x1024xf32>
    %111 = tpu.matmul %109, %110, %cst_40 {dimension_numbers = #tpu.dot_dimension_numbers<[1], [0], [0], [1], [0, 0, 1, 1], [], []>} : vector<8x256xbf16>, vector<256x1024xbf16>, vector<8x1024xf32> -> vector<8x1024xf32>
    %112 = vector.extract_strided_slice %111 {offsets = [0, 0], sizes = [8, 512], strides = [1, 1]} : vector<8x1024xf32> to vector<8x512xf32>
    %113 = arith.addf %107, %112 : vector<8x512xf32>
    %114 = vector.extract_strided_slice %111 {offsets = [0, 512], sizes = [8, 512], strides = [1, 1]} : vector<8x1024xf32> to vector<8x512xf32>
    %115 = arith.addf %114, %15 : vector<8x512xf32>
    %116 = vector.extract_strided_slice %115 {offsets = [0, 0], sizes = [8, 128], strides = [1, 1]} : vector<8x512xf32> to vector<8x128xf32>
    %117 = arith.negf %116 : vector<8x128xf32>
    %118 = math.exp %117 : vector<8x128xf32>
    %cst_41 = arith.constant 1.000000e+00 : f32
    %119 = vector.broadcast %cst_41 : f32 to vector<8x128xf32>
    %120 = arith.addf %119, %118 : vector<8x128xf32>
    %121 = arith.divf %119, %120 : vector<8x128xf32>
    %122 = vector.extract_strided_slice %115 {offsets = [0, 128], sizes = [8, 128], strides = [1, 1]} : vector<8x512xf32> to vector<8x128xf32>
    %123 = arith.negf %122 : vector<8x128xf32>
    %124 = math.exp %123 : vector<8x128xf32>
    %cst_42 = arith.constant 1.000000e+00 : f32
    %125 = vector.broadcast %cst_42 : f32 to vector<8x128xf32>
    %126 = arith.addf %125, %124 : vector<8x128xf32>
    %127 = arith.divf %125, %126 : vector<8x128xf32>
    %128 = vector.extract_strided_slice %115 {offsets = [0, 256], sizes = [8, 128], strides = [1, 1]} : vector<8x512xf32> to vector<8x128xf32>
    %129 = math.tanh %128 : vector<8x128xf32>
    %130 = vector.extract_strided_slice %115 {offsets = [0, 384], sizes = [8, 128], strides = [1, 1]} : vector<8x512xf32> to vector<8x128xf32>
    %131 = arith.negf %130 : vector<8x128xf32>
    %132 = math.exp %131 : vector<8x128xf32>
    %cst_43 = arith.constant 1.000000e+00 : f32
    %133 = vector.broadcast %cst_43 : f32 to vector<8x128xf32>
    %134 = arith.addf %133, %132 : vector<8x128xf32>
    %135 = arith.divf %133, %134 : vector<8x128xf32>
    %136 = arith.mulf %127, %77 : vector<8x128xf32>
    %137 = arith.mulf %121, %129 : vector<8x128xf32>
    %138 = arith.addf %136, %137 : vector<8x128xf32>
    %139 = math.tanh %138 : vector<8x128xf32>
    %140 = arith.mulf %135, %139 : vector<8x128xf32>
    %c0_44 = arith.constant 0 : index
    %c128_45 = arith.constant 128 : index
    %141 = vector.load %arg9[%c0_44, %c128_45] : memref<8x256xf32, #tpu.memory_space<vmem>>, vector<8x128xf32>
    tpu.vector_store %arg9[%c0_44, %c128_45], %140 {strides = array<i32>} : memref<8x256xf32, #tpu.memory_space<vmem>>, vector<8x128xf32>,
    %142 = vector.extract_strided_slice %113 {offsets = [0, 0], sizes = [8, 128], strides = [1, 1]} : vector<8x512xf32> to vector<8x128xf32>
    %143 = arith.negf %142 : vector<8x128xf32>
    %144 = math.exp %143 : vector<8x128xf32>
    %cst_46 = arith.constant 1.000000e+00 : f32
    %145 = vector.broadcast %cst_46 : f32 to vector<8x128xf32>
    %146 = arith.addf %145, %144 : vector<8x128xf32>
    %147 = arith.divf %145, %146 : vector<8x128xf32>
    %148 = vector.extract_strided_slice %113 {offsets = [0, 128], sizes = [8, 128], strides = [1, 1]} : vector<8x512xf32> to vector<8x128xf32>
    %149 = arith.negf %148 : vector<8x128xf32>
    %150 = math.exp %149 : vector<8x128xf32>
    %cst_47 = arith.constant 1.000000e+00 : f32
    %151 = vector.broadcast %cst_47 : f32 to vector<8x128xf32>
    %152 = arith.addf %151, %150 : vector<8x128xf32>
    %153 = arith.divf %151, %152 : vector<8x128xf32>
    %154 = vector.extract_strided_slice %113 {offsets = [0, 256], sizes = [8, 128], strides = [1, 1]} : vector<8x512xf32> to vector<8x128xf32>
    %155 = math.tanh %154 : vector<8x128xf32>
    %156 = vector.extract_strided_slice %113 {offsets = [0, 384], sizes = [8, 128], strides = [1, 1]} : vector<8x512xf32> to vector<8x128xf32>
    %157 = arith.negf %156 : vector<8x128xf32>
    %158 = math.exp %157 : vector<8x128xf32>
    %cst_48 = arith.constant 1.000000e+00 : f32
    %159 = vector.broadcast %cst_48 : f32 to vector<8x128xf32>
    %160 = arith.addf %159, %158 : vector<8x128xf32>
    %161 = arith.divf %159, %160 : vector<8x128xf32>
    %162 = arith.mulf %153, %103 : vector<8x128xf32>
    %163 = arith.mulf %147, %155 : vector<8x128xf32>
    %164 = arith.addf %162, %163 : vector<8x128xf32>
    %165 = math.tanh %164 : vector<8x128xf32>
    %166 = arith.mulf %161, %165 : vector<8x128xf32>
    %c0_49 = arith.constant 0 : index
    %c0_50 = arith.constant 0 : index
    %167 = vector.load %arg9[%c0_49, %c0_50] : memref<8x256xf32, #tpu.memory_space<vmem>>, vector<8x128xf32>
    tpu.vector_store %arg9[%c0_49, %c0_50], %166 {strides = array<i32>} : memref<8x256xf32, #tpu.memory_space<vmem>>, vector<8x128xf32>,
    %c24 = arith.constant 24 : index
    %c0_51 = arith.constant 0 : index
    %168 = vector.load %arg8[%c24, %c0_51] : memref<64x512xf32, #tpu.memory_space<vmem>>, vector<8x512xf32>
    %c0_52 = arith.constant 0 : index
    %c0_53 = arith.constant 0 : index
    %169 = vector.load %arg9[%c0_52, %c0_53] : memref<8x256xf32, #tpu.memory_space<vmem>>, vector<8x256xf32>
    %170 = arith.truncf %169 : vector<8x256xf32> to vector<8x256xbf16>
    %c0_54 = arith.constant 0 : index
    %c0_55 = arith.constant 0 : index
    %171 = vector.load %arg3[%c0_54, %c0_55] : memref<256x1024xbf16, #tpu.memory_space<vmem>>, vector<256x1024xbf16>
    %cst_56 = arith.constant dense<0.000000e+00> : vector<8x1024xf32>
    %172 = tpu.matmul %170, %171, %cst_56 {dimension_numbers = #tpu.dot_dimension_numbers<[1], [0], [0], [1], [0, 0, 1, 1], [], []>} : vector<8x256xbf16>, vector<256x1024xbf16>, vector<8x1024xf32> -> vector<8x1024xf32>
    %173 = vector.extract_strided_slice %172 {offsets = [0, 0], sizes = [8, 512], strides = [1, 1]} : vector<8x1024xf32> to vector<8x512xf32>
    %174 = arith.addf %168, %173 : vector<8x512xf32>
    %175 = vector.extract_strided_slice %172 {offsets = [0, 512], sizes = [8, 512], strides = [1, 1]} : vector<8x1024xf32> to vector<8x512xf32>
    %176 = arith.addf %175, %15 : vector<8x512xf32>
    %177 = vector.extract_strided_slice %176 {offsets = [0, 0], sizes = [8, 128], strides = [1, 1]} : vector<8x512xf32> to vector<8x128xf32>
    %178 = arith.negf %177 : vector<8x128xf32>
    %179 = math.exp %178 : vector<8x128xf32>
    %cst_57 = arith.constant 1.000000e+00 : f32
    %180 = vector.broadcast %cst_57 : f32 to vector<8x128xf32>
    %181 = arith.addf %180, %179 : vector<8x128xf32>
    %182 = arith.divf %180, %181 : vector<8x128xf32>
    %183 = vector.extract_strided_slice %176 {offsets = [0, 128], sizes = [8, 128], strides = [1, 1]} : vector<8x512xf32> to vector<8x128xf32>
    %184 = arith.negf %183 : vector<8x128xf32>
    %185 = math.exp %184 : vector<8x128xf32>
    %cst_58 = arith.constant 1.000000e+00 : f32
    %186 = vector.broadcast %cst_58 : f32 to vector<8x128xf32>
    %187 = arith.addf %186, %185 : vector<8x128xf32>
    %188 = arith.divf %186, %187 : vector<8x128xf32>
    %189 = vector.extract_strided_slice %176 {offsets = [0, 256], sizes = [8, 128], strides = [1, 1]} : vector<8x512xf32> to vector<8x128xf32>
    %190 = math.tanh %189 : vector<8x128xf32>
    %191 = vector.extract_strided_slice %176 {offsets = [0, 384], sizes = [8, 128], strides = [1, 1]} : vector<8x512xf32> to vector<8x128xf32>
    %192 = arith.negf %191 : vector<8x128xf32>
    %193 = math.exp %192 : vector<8x128xf32>
    %cst_59 = arith.constant 1.000000e+00 : f32
    %194 = vector.broadcast %cst_59 : f32 to vector<8x128xf32>
    %195 = arith.addf %194, %193 : vector<8x128xf32>
    %196 = arith.divf %194, %195 : vector<8x128xf32>
    %197 = arith.mulf %188, %138 : vector<8x128xf32>
    %198 = arith.mulf %182, %190 : vector<8x128xf32>
    %199 = arith.addf %197, %198 : vector<8x128xf32>
    %200 = math.tanh %199 : vector<8x128xf32>
    %201 = arith.mulf %196, %200 : vector<8x128xf32>
    %c0_60 = arith.constant 0 : index
    %c128_61 = arith.constant 128 : index
    %202 = vector.load %arg9[%c0_60, %c128_61] : memref<8x256xf32, #tpu.memory_space<vmem>>, vector<8x128xf32>
    tpu.vector_store %arg9[%c0_60, %c128_61], %201 {strides = array<i32>} : memref<8x256xf32, #tpu.memory_space<vmem>>, vector<8x128xf32>,
    %203 = vector.extract_strided_slice %174 {offsets = [0, 0], sizes = [8, 128], strides = [1, 1]} : vector<8x512xf32> to vector<8x128xf32>
    %204 = arith.negf %203 : vector<8x128xf32>
    %205 = math.exp %204 : vector<8x128xf32>
    %cst_62 = arith.constant 1.000000e+00 : f32
    %206 = vector.broadcast %cst_62 : f32 to vector<8x128xf32>
    %207 = arith.addf %206, %205 : vector<8x128xf32>
    %208 = arith.divf %206, %207 : vector<8x128xf32>
    %209 = vector.extract_strided_slice %174 {offsets = [0, 128], sizes = [8, 128], strides = [1, 1]} : vector<8x512xf32> to vector<8x128xf32>
    %210 = arith.negf %209 : vector<8x128xf32>
    %211 = math.exp %210 : vector<8x128xf32>
    %cst_63 = arith.constant 1.000000e+00 : f32
    %212 = vector.broadcast %cst_63 : f32 to vector<8x128xf32>
    %213 = arith.addf %212, %211 : vector<8x128xf32>
    %214 = arith.divf %212, %213 : vector<8x128xf32>
    %215 = vector.extract_strided_slice %174 {offsets = [0, 256], sizes = [8, 128], strides = [1, 1]} : vector<8x512xf32> to vector<8x128xf32>
    %216 = math.tanh %215 : vector<8x128xf32>
    %217 = vector.extract_strided_slice %174 {offsets = [0, 384], sizes = [8, 128], strides = [1, 1]} : vector<8x512xf32> to vector<8x128xf32>
    %218 = arith.negf %217 : vector<8x128xf32>
    %219 = math.exp %218 : vector<8x128xf32>
    %cst_64 = arith.constant 1.000000e+00 : f32
    %220 = vector.broadcast %cst_64 : f32 to vector<8x128xf32>
    %221 = arith.addf %220, %219 : vector<8x128xf32>
    %222 = arith.divf %220, %221 : vector<8x128xf32>
    %223 = arith.mulf %214, %164 : vector<8x128xf32>
    %224 = arith.mulf %208, %216 : vector<8x128xf32>
    %225 = arith.addf %223, %224 : vector<8x128xf32>
    %226 = math.tanh %225 : vector<8x128xf32>
    %227 = arith.mulf %222, %226 : vector<8x128xf32>
    %c0_65 = arith.constant 0 : index
    %c0_66 = arith.constant 0 : index
    %228 = vector.load %arg9[%c0_65, %c0_66] : memref<8x256xf32, #tpu.memory_space<vmem>>, vector<8x128xf32>
    tpu.vector_store %arg9[%c0_65, %c0_66], %227 {strides = array<i32>} : memref<8x256xf32, #tpu.memory_space<vmem>>, vector<8x128xf32>,
    %c32 = arith.constant 32 : index
    %c0_67 = arith.constant 0 : index
    %229 = vector.load %arg8[%c32, %c0_67] : memref<64x512xf32, #tpu.memory_space<vmem>>, vector<8x512xf32>
    %c0_68 = arith.constant 0 : index
    %c0_69 = arith.constant 0 : index
    %230 = vector.load %arg9[%c0_68, %c0_69] : memref<8x256xf32, #tpu.memory_space<vmem>>, vector<8x256xf32>
    %231 = arith.truncf %230 : vector<8x256xf32> to vector<8x256xbf16>
    %c0_70 = arith.constant 0 : index
    %c0_71 = arith.constant 0 : index
    %232 = vector.load %arg3[%c0_70, %c0_71] : memref<256x1024xbf16, #tpu.memory_space<vmem>>, vector<256x1024xbf16>
    %cst_72 = arith.constant dense<0.000000e+00> : vector<8x1024xf32>
    %233 = tpu.matmul %231, %232, %cst_72 {dimension_numbers = #tpu.dot_dimension_numbers<[1], [0], [0], [1], [0, 0, 1, 1], [], []>} : vector<8x256xbf16>, vector<256x1024xbf16>, vector<8x1024xf32> -> vector<8x1024xf32>
    %234 = vector.extract_strided_slice %233 {offsets = [0, 0], sizes = [8, 512], strides = [1, 1]} : vector<8x1024xf32> to vector<8x512xf32>
    %235 = arith.addf %229, %234 : vector<8x512xf32>
    %236 = vector.extract_strided_slice %233 {offsets = [0, 512], sizes = [8, 512], strides = [1, 1]} : vector<8x1024xf32> to vector<8x512xf32>
    %237 = arith.addf %236, %15 : vector<8x512xf32>
    %238 = vector.extract_strided_slice %237 {offsets = [0, 0], sizes = [8, 128], strides = [1, 1]} : vector<8x512xf32> to vector<8x128xf32>
    %239 = arith.negf %238 : vector<8x128xf32>
    %240 = math.exp %239 : vector<8x128xf32>
    %cst_73 = arith.constant 1.000000e+00 : f32
    %241 = vector.broadcast %cst_73 : f32 to vector<8x128xf32>
    %242 = arith.addf %241, %240 : vector<8x128xf32>
    %243 = arith.divf %241, %242 : vector<8x128xf32>
    %244 = vector.extract_strided_slice %237 {offsets = [0, 128], sizes = [8, 128], strides = [1, 1]} : vector<8x512xf32> to vector<8x128xf32>
    %245 = arith.negf %244 : vector<8x128xf32>
    %246 = math.exp %245 : vector<8x128xf32>
    %cst_74 = arith.constant 1.000000e+00 : f32
    %247 = vector.broadcast %cst_74 : f32 to vector<8x128xf32>
    %248 = arith.addf %247, %246 : vector<8x128xf32>
    %249 = arith.divf %247, %248 : vector<8x128xf32>
    %250 = vector.extract_strided_slice %237 {offsets = [0, 256], sizes = [8, 128], strides = [1, 1]} : vector<8x512xf32> to vector<8x128xf32>
    %251 = math.tanh %250 : vector<8x128xf32>
    %252 = vector.extract_strided_slice %237 {offsets = [0, 384], sizes = [8, 128], strides = [1, 1]} : vector<8x512xf32> to vector<8x128xf32>
    %253 = arith.negf %252 : vector<8x128xf32>
    %254 = math.exp %253 : vector<8x128xf32>
    %cst_75 = arith.constant 1.000000e+00 : f32
    %255 = vector.broadcast %cst_75 : f32 to vector<8x128xf32>
    %256 = arith.addf %255, %254 : vector<8x128xf32>
    %257 = arith.divf %255, %256 : vector<8x128xf32>
    %258 = arith.mulf %249, %199 : vector<8x128xf32>
    %259 = arith.mulf %243, %251 : vector<8x128xf32>
    %260 = arith.addf %258, %259 : vector<8x128xf32>
    %261 = math.tanh %260 : vector<8x128xf32>
    %262 = arith.mulf %257, %261 : vector<8x128xf32>
    %c0_76 = arith.constant 0 : index
    %c128_77 = arith.constant 128 : index
    %263 = vector.load %arg9[%c0_76, %c128_77] : memref<8x256xf32, #tpu.memory_space<vmem>>, vector<8x128xf32>
    tpu.vector_store %arg9[%c0_76, %c128_77], %262 {strides = array<i32>} : memref<8x256xf32, #tpu.memory_space<vmem>>, vector<8x128xf32>,
    %264 = vector.extract_strided_slice %235 {offsets = [0, 0], sizes = [8, 128], strides = [1, 1]} : vector<8x512xf32> to vector<8x128xf32>
    %265 = arith.negf %264 : vector<8x128xf32>
    %266 = math.exp %265 : vector<8x128xf32>
    %cst_78 = arith.constant 1.000000e+00 : f32
    %267 = vector.broadcast %cst_78 : f32 to vector<8x128xf32>
    %268 = arith.addf %267, %266 : vector<8x128xf32>
    %269 = arith.divf %267, %268 : vector<8x128xf32>
    %270 = vector.extract_strided_slice %235 {offsets = [0, 128], sizes = [8, 128], strides = [1, 1]} : vector<8x512xf32> to vector<8x128xf32>
    %271 = arith.negf %270 : vector<8x128xf32>
    %272 = math.exp %271 : vector<8x128xf32>
    %cst_79 = arith.constant 1.000000e+00 : f32
    %273 = vector.broadcast %cst_79 : f32 to vector<8x128xf32>
    %274 = arith.addf %273, %272 : vector<8x128xf32>
    %275 = arith.divf %273, %274 : vector<8x128xf32>
    %276 = vector.extract_strided_slice %235 {offsets = [0, 256], sizes = [8, 128], strides = [1, 1]} : vector<8x512xf32> to vector<8x128xf32>
    %277 = math.tanh %276 : vector<8x128xf32>
    %278 = vector.extract_strided_slice %235 {offsets = [0, 384], sizes = [8, 128], strides = [1, 1]} : vector<8x512xf32> to vector<8x128xf32>
    %279 = arith.negf %278 : vector<8x128xf32>
    %280 = math.exp %279 : vector<8x128xf32>
    %cst_80 = arith.constant 1.000000e+00 : f32
    %281 = vector.broadcast %cst_80 : f32 to vector<8x128xf32>
    %282 = arith.addf %281, %280 : vector<8x128xf32>
    %283 = arith.divf %281, %282 : vector<8x128xf32>
    %284 = arith.mulf %275, %225 : vector<8x128xf32>
    %285 = arith.mulf %269, %277 : vector<8x128xf32>
    %286 = arith.addf %284, %285 : vector<8x128xf32>
    %287 = math.tanh %286 : vector<8x128xf32>
    %288 = arith.mulf %283, %287 : vector<8x128xf32>
    %c0_81 = arith.constant 0 : index
    %c0_82 = arith.constant 0 : index
    %289 = vector.load %arg9[%c0_81, %c0_82] : memref<8x256xf32, #tpu.memory_space<vmem>>, vector<8x128xf32>
    tpu.vector_store %arg9[%c0_81, %c0_82], %288 {strides = array<i32>} : memref<8x256xf32, #tpu.memory_space<vmem>>, vector<8x128xf32>,
    %c40 = arith.constant 40 : index
    %c0_83 = arith.constant 0 : index
    %290 = vector.load %arg8[%c40, %c0_83] : memref<64x512xf32, #tpu.memory_space<vmem>>, vector<8x512xf32>
    %c0_84 = arith.constant 0 : index
    %c0_85 = arith.constant 0 : index
    %291 = vector.load %arg9[%c0_84, %c0_85] : memref<8x256xf32, #tpu.memory_space<vmem>>, vector<8x256xf32>
    %292 = arith.truncf %291 : vector<8x256xf32> to vector<8x256xbf16>
    %c0_86 = arith.constant 0 : index
    %c0_87 = arith.constant 0 : index
    %293 = vector.load %arg3[%c0_86, %c0_87] : memref<256x1024xbf16, #tpu.memory_space<vmem>>, vector<256x1024xbf16>
    %cst_88 = arith.constant dense<0.000000e+00> : vector<8x1024xf32>
    %294 = tpu.matmul %292, %293, %cst_88 {dimension_numbers = #tpu.dot_dimension_numbers<[1], [0], [0], [1], [0, 0, 1, 1], [], []>} : vector<8x256xbf16>, vector<256x1024xbf16>, vector<8x1024xf32> -> vector<8x1024xf32>
    %295 = vector.extract_strided_slice %294 {offsets = [0, 0], sizes = [8, 512], strides = [1, 1]} : vector<8x1024xf32> to vector<8x512xf32>
    %296 = arith.addf %290, %295 : vector<8x512xf32>
    %297 = vector.extract_strided_slice %294 {offsets = [0, 512], sizes = [8, 512], strides = [1, 1]} : vector<8x1024xf32> to vector<8x512xf32>
    %298 = arith.addf %297, %15 : vector<8x512xf32>
    %299 = vector.extract_strided_slice %298 {offsets = [0, 0], sizes = [8, 128], strides = [1, 1]} : vector<8x512xf32> to vector<8x128xf32>
    %300 = arith.negf %299 : vector<8x128xf32>
    %301 = math.exp %300 : vector<8x128xf32>
    %cst_89 = arith.constant 1.000000e+00 : f32
    %302 = vector.broadcast %cst_89 : f32 to vector<8x128xf32>
    %303 = arith.addf %302, %301 : vector<8x128xf32>
    %304 = arith.divf %302, %303 : vector<8x128xf32>
    %305 = vector.extract_strided_slice %298 {offsets = [0, 128], sizes = [8, 128], strides = [1, 1]} : vector<8x512xf32> to vector<8x128xf32>
    %306 = arith.negf %305 : vector<8x128xf32>
    %307 = math.exp %306 : vector<8x128xf32>
    %cst_90 = arith.constant 1.000000e+00 : f32
    %308 = vector.broadcast %cst_90 : f32 to vector<8x128xf32>
    %309 = arith.addf %308, %307 : vector<8x128xf32>
    %310 = arith.divf %308, %309 : vector<8x128xf32>
    %311 = vector.extract_strided_slice %298 {offsets = [0, 256], sizes = [8, 128], strides = [1, 1]} : vector<8x512xf32> to vector<8x128xf32>
    %312 = math.tanh %311 : vector<8x128xf32>
    %313 = vector.extract_strided_slice %298 {offsets = [0, 384], sizes = [8, 128], strides = [1, 1]} : vector<8x512xf32> to vector<8x128xf32>
    %314 = arith.negf %313 : vector<8x128xf32>
    %315 = math.exp %314 : vector<8x128xf32>
    %cst_91 = arith.constant 1.000000e+00 : f32
    %316 = vector.broadcast %cst_91 : f32 to vector<8x128xf32>
    %317 = arith.addf %316, %315 : vector<8x128xf32>
    %318 = arith.divf %316, %317 : vector<8x128xf32>
    %319 = arith.mulf %310, %260 : vector<8x128xf32>
    %320 = arith.mulf %304, %312 : vector<8x128xf32>
    %321 = arith.addf %319, %320 : vector<8x128xf32>
    %322 = math.tanh %321 : vector<8x128xf32>
    %323 = arith.mulf %318, %322 : vector<8x128xf32>
    %c0_92 = arith.constant 0 : index
    %c128_93 = arith.constant 128 : index
    %324 = vector.load %arg9[%c0_92, %c128_93] : memref<8x256xf32, #tpu.memory_space<vmem>>, vector<8x128xf32>
    tpu.vector_store %arg9[%c0_92, %c128_93], %323 {strides = array<i32>} : memref<8x256xf32, #tpu.memory_space<vmem>>, vector<8x128xf32>,
    %325 = vector.extract_strided_slice %296 {offsets = [0, 0], sizes = [8, 128], strides = [1, 1]} : vector<8x512xf32> to vector<8x128xf32>
    %326 = arith.negf %325 : vector<8x128xf32>
    %327 = math.exp %326 : vector<8x128xf32>
    %cst_94 = arith.constant 1.000000e+00 : f32
    %328 = vector.broadcast %cst_94 : f32 to vector<8x128xf32>
    %329 = arith.addf %328, %327 : vector<8x128xf32>
    %330 = arith.divf %328, %329 : vector<8x128xf32>
    %331 = vector.extract_strided_slice %296 {offsets = [0, 128], sizes = [8, 128], strides = [1, 1]} : vector<8x512xf32> to vector<8x128xf32>
    %332 = arith.negf %331 : vector<8x128xf32>
    %333 = math.exp %332 : vector<8x128xf32>
    %cst_95 = arith.constant 1.000000e+00 : f32
    %334 = vector.broadcast %cst_95 : f32 to vector<8x128xf32>
    %335 = arith.addf %334, %333 : vector<8x128xf32>
    %336 = arith.divf %334, %335 : vector<8x128xf32>
    %337 = vector.extract_strided_slice %296 {offsets = [0, 256], sizes = [8, 128], strides = [1, 1]} : vector<8x512xf32> to vector<8x128xf32>
    %338 = math.tanh %337 : vector<8x128xf32>
    %339 = vector.extract_strided_slice %296 {offsets = [0, 384], sizes = [8, 128], strides = [1, 1]} : vector<8x512xf32> to vector<8x128xf32>
    %340 = arith.negf %339 : vector<8x128xf32>
    %341 = math.exp %340 : vector<8x128xf32>
    %cst_96 = arith.constant 1.000000e+00 : f32
    %342 = vector.broadcast %cst_96 : f32 to vector<8x128xf32>
    %343 = arith.addf %342, %341 : vector<8x128xf32>
    %344 = arith.divf %342, %343 : vector<8x128xf32>
    %345 = arith.mulf %336, %286 : vector<8x128xf32>
    %346 = arith.mulf %330, %338 : vector<8x128xf32>
    %347 = arith.addf %345, %346 : vector<8x128xf32>
    %348 = math.tanh %347 : vector<8x128xf32>
    %349 = arith.mulf %344, %348 : vector<8x128xf32>
    %c0_97 = arith.constant 0 : index
    %c0_98 = arith.constant 0 : index
    %350 = vector.load %arg9[%c0_97, %c0_98] : memref<8x256xf32, #tpu.memory_space<vmem>>, vector<8x128xf32>
    tpu.vector_store %arg9[%c0_97, %c0_98], %349 {strides = array<i32>} : memref<8x256xf32, #tpu.memory_space<vmem>>, vector<8x128xf32>,
    %c48 = arith.constant 48 : index
    %c0_99 = arith.constant 0 : index
    %351 = vector.load %arg8[%c48, %c0_99] : memref<64x512xf32, #tpu.memory_space<vmem>>, vector<8x512xf32>
    %c0_100 = arith.constant 0 : index
    %c0_101 = arith.constant 0 : index
    %352 = vector.load %arg9[%c0_100, %c0_101] : memref<8x256xf32, #tpu.memory_space<vmem>>, vector<8x256xf32>
    %353 = arith.truncf %352 : vector<8x256xf32> to vector<8x256xbf16>
    %c0_102 = arith.constant 0 : index
    %c0_103 = arith.constant 0 : index
    %354 = vector.load %arg3[%c0_102, %c0_103] : memref<256x1024xbf16, #tpu.memory_space<vmem>>, vector<256x1024xbf16>
    %cst_104 = arith.constant dense<0.000000e+00> : vector<8x1024xf32>
    %355 = tpu.matmul %353, %354, %cst_104 {dimension_numbers = #tpu.dot_dimension_numbers<[1], [0], [0], [1], [0, 0, 1, 1], [], []>} : vector<8x256xbf16>, vector<256x1024xbf16>, vector<8x1024xf32> -> vector<8x1024xf32>
    %356 = vector.extract_strided_slice %355 {offsets = [0, 0], sizes = [8, 512], strides = [1, 1]} : vector<8x1024xf32> to vector<8x512xf32>
    %357 = arith.addf %351, %356 : vector<8x512xf32>
    %358 = vector.extract_strided_slice %355 {offsets = [0, 512], sizes = [8, 512], strides = [1, 1]} : vector<8x1024xf32> to vector<8x512xf32>
    %359 = arith.addf %358, %15 : vector<8x512xf32>
    %360 = vector.extract_strided_slice %359 {offsets = [0, 0], sizes = [8, 128], strides = [1, 1]} : vector<8x512xf32> to vector<8x128xf32>
    %361 = arith.negf %360 : vector<8x128xf32>
    %362 = math.exp %361 : vector<8x128xf32>
    %cst_105 = arith.constant 1.000000e+00 : f32
    %363 = vector.broadcast %cst_105 : f32 to vector<8x128xf32>
    %364 = arith.addf %363, %362 : vector<8x128xf32>
    %365 = arith.divf %363, %364 : vector<8x128xf32>
    %366 = vector.extract_strided_slice %359 {offsets = [0, 128], sizes = [8, 128], strides = [1, 1]} : vector<8x512xf32> to vector<8x128xf32>
    %367 = arith.negf %366 : vector<8x128xf32>
    %368 = math.exp %367 : vector<8x128xf32>
    %cst_106 = arith.constant 1.000000e+00 : f32
    %369 = vector.broadcast %cst_106 : f32 to vector<8x128xf32>
    %370 = arith.addf %369, %368 : vector<8x128xf32>
    %371 = arith.divf %369, %370 : vector<8x128xf32>
    %372 = vector.extract_strided_slice %359 {offsets = [0, 256], sizes = [8, 128], strides = [1, 1]} : vector<8x512xf32> to vector<8x128xf32>
    %373 = math.tanh %372 : vector<8x128xf32>
    %374 = vector.extract_strided_slice %359 {offsets = [0, 384], sizes = [8, 128], strides = [1, 1]} : vector<8x512xf32> to vector<8x128xf32>
    %375 = arith.negf %374 : vector<8x128xf32>
    %376 = math.exp %375 : vector<8x128xf32>
    %cst_107 = arith.constant 1.000000e+00 : f32
    %377 = vector.broadcast %cst_107 : f32 to vector<8x128xf32>
    %378 = arith.addf %377, %376 : vector<8x128xf32>
    %379 = arith.divf %377, %378 : vector<8x128xf32>
    %380 = arith.mulf %371, %321 : vector<8x128xf32>
    %381 = arith.mulf %365, %373 : vector<8x128xf32>
    %382 = arith.addf %380, %381 : vector<8x128xf32>
    %383 = math.tanh %382 : vector<8x128xf32>
    %384 = arith.mulf %379, %383 : vector<8x128xf32>
    %c0_108 = arith.constant 0 : index
    %c128_109 = arith.constant 128 : index
    %385 = vector.load %arg9[%c0_108, %c128_109] : memref<8x256xf32, #tpu.memory_space<vmem>>, vector<8x128xf32>
    tpu.vector_store %arg9[%c0_108, %c128_109], %384 {strides = array<i32>} : memref<8x256xf32, #tpu.memory_space<vmem>>, vector<8x128xf32>,
    %386 = vector.extract_strided_slice %357 {offsets = [0, 0], sizes = [8, 128], strides = [1, 1]} : vector<8x512xf32> to vector<8x128xf32>
    %387 = arith.negf %386 : vector<8x128xf32>
    %388 = math.exp %387 : vector<8x128xf32>
    %cst_110 = arith.constant 1.000000e+00 : f32
    %389 = vector.broadcast %cst_110 : f32 to vector<8x128xf32>
    %390 = arith.addf %389, %388 : vector<8x128xf32>
    %391 = arith.divf %389, %390 : vector<8x128xf32>
    %392 = vector.extract_strided_slice %357 {offsets = [0, 128], sizes = [8, 128], strides = [1, 1]} : vector<8x512xf32> to vector<8x128xf32>
    %393 = arith.negf %392 : vector<8x128xf32>
    %394 = math.exp %393 : vector<8x128xf32>
    %cst_111 = arith.constant 1.000000e+00 : f32
    %395 = vector.broadcast %cst_111 : f32 to vector<8x128xf32>
    %396 = arith.addf %395, %394 : vector<8x128xf32>
    %397 = arith.divf %395, %396 : vector<8x128xf32>
    %398 = vector.extract_strided_slice %357 {offsets = [0, 256], sizes = [8, 128], strides = [1, 1]} : vector<8x512xf32> to vector<8x128xf32>
    %399 = math.tanh %398 : vector<8x128xf32>
    %400 = vector.extract_strided_slice %357 {offsets = [0, 384], sizes = [8, 128], strides = [1, 1]} : vector<8x512xf32> to vector<8x128xf32>
    %401 = arith.negf %400 : vector<8x128xf32>
    %402 = math.exp %401 : vector<8x128xf32>
    %cst_112 = arith.constant 1.000000e+00 : f32
    %403 = vector.broadcast %cst_112 : f32 to vector<8x128xf32>
    %404 = arith.addf %403, %402 : vector<8x128xf32>
    %405 = arith.divf %403, %404 : vector<8x128xf32>
    %406 = arith.mulf %397, %347 : vector<8x128xf32>
    %407 = arith.mulf %391, %399 : vector<8x128xf32>
    %408 = arith.addf %406, %407 : vector<8x128xf32>
    %409 = math.tanh %408 : vector<8x128xf32>
    %410 = arith.mulf %405, %409 : vector<8x128xf32>
    %c0_113 = arith.constant 0 : index
    %c0_114 = arith.constant 0 : index
    %411 = vector.load %arg9[%c0_113, %c0_114] : memref<8x256xf32, #tpu.memory_space<vmem>>, vector<8x128xf32>
    tpu.vector_store %arg9[%c0_113, %c0_114], %410 {strides = array<i32>} : memref<8x256xf32, #tpu.memory_space<vmem>>, vector<8x128xf32>,
    %c56 = arith.constant 56 : index
    %c0_115 = arith.constant 0 : index
    %412 = vector.load %arg8[%c56, %c0_115] : memref<64x512xf32, #tpu.memory_space<vmem>>, vector<8x512xf32>
    %c0_116 = arith.constant 0 : index
    %c0_117 = arith.constant 0 : index
    %413 = vector.load %arg9[%c0_116, %c0_117] : memref<8x256xf32, #tpu.memory_space<vmem>>, vector<8x256xf32>
    %414 = arith.truncf %413 : vector<8x256xf32> to vector<8x256xbf16>
    %c0_118 = arith.constant 0 : index
    %c0_119 = arith.constant 0 : index
    %415 = vector.load %arg3[%c0_118, %c0_119] : memref<256x1024xbf16, #tpu.memory_space<vmem>>, vector<256x1024xbf16>
    %cst_120 = arith.constant dense<0.000000e+00> : vector<8x1024xf32>
    %416 = tpu.matmul %414, %415, %cst_120 {dimension_numbers = #tpu.dot_dimension_numbers<[1], [0], [0], [1], [0, 0, 1, 1], [], []>} : vector<8x256xbf16>, vector<256x1024xbf16>, vector<8x1024xf32> -> vector<8x1024xf32>
    %417 = vector.extract_strided_slice %416 {offsets = [0, 0], sizes = [8, 512], strides = [1, 1]} : vector<8x1024xf32> to vector<8x512xf32>
    %418 = arith.addf %412, %417 : vector<8x512xf32>
    %419 = vector.extract_strided_slice %416 {offsets = [0, 512], sizes = [8, 512], strides = [1, 1]} : vector<8x1024xf32> to vector<8x512xf32>
    %420 = arith.addf %419, %15 : vector<8x512xf32>
    %421 = vector.extract_strided_slice %420 {offsets = [0, 0], sizes = [8, 128], strides = [1, 1]} : vector<8x512xf32> to vector<8x128xf32>
    %422 = arith.negf %421 : vector<8x128xf32>
    %423 = math.exp %422 : vector<8x128xf32>
    %cst_121 = arith.constant 1.000000e+00 : f32
    %424 = vector.broadcast %cst_121 : f32 to vector<8x128xf32>
    %425 = arith.addf %424, %423 : vector<8x128xf32>
    %426 = arith.divf %424, %425 : vector<8x128xf32>
    %427 = vector.extract_strided_slice %420 {offsets = [0, 128], sizes = [8, 128], strides = [1, 1]} : vector<8x512xf32> to vector<8x128xf32>
    %428 = arith.negf %427 : vector<8x128xf32>
    %429 = math.exp %428 : vector<8x128xf32>
    %cst_122 = arith.constant 1.000000e+00 : f32
    %430 = vector.broadcast %cst_122 : f32 to vector<8x128xf32>
    %431 = arith.addf %430, %429 : vector<8x128xf32>
    %432 = arith.divf %430, %431 : vector<8x128xf32>
    %433 = vector.extract_strided_slice %420 {offsets = [0, 256], sizes = [8, 128], strides = [1, 1]} : vector<8x512xf32> to vector<8x128xf32>
    %434 = math.tanh %433 : vector<8x128xf32>
    %435 = vector.extract_strided_slice %420 {offsets = [0, 384], sizes = [8, 128], strides = [1, 1]} : vector<8x512xf32> to vector<8x128xf32>
    %436 = arith.negf %435 : vector<8x128xf32>
    %437 = math.exp %436 : vector<8x128xf32>
    %cst_123 = arith.constant 1.000000e+00 : f32
    %438 = vector.broadcast %cst_123 : f32 to vector<8x128xf32>
    %439 = arith.addf %438, %437 : vector<8x128xf32>
    %440 = arith.divf %438, %439 : vector<8x128xf32>
    %441 = arith.mulf %432, %382 : vector<8x128xf32>
    %442 = arith.mulf %426, %434 : vector<8x128xf32>
    %443 = arith.addf %441, %442 : vector<8x128xf32>
    %444 = math.tanh %443 : vector<8x128xf32>
    %445 = arith.mulf %440, %444 : vector<8x128xf32>
    %c0_124 = arith.constant 0 : index
    %c128_125 = arith.constant 128 : index
    %446 = vector.load %arg9[%c0_124, %c128_125] : memref<8x256xf32, #tpu.memory_space<vmem>>, vector<8x128xf32>
    tpu.vector_store %arg9[%c0_124, %c128_125], %445 {strides = array<i32>} : memref<8x256xf32, #tpu.memory_space<vmem>>, vector<8x128xf32>,
    %447 = vector.extract_strided_slice %418 {offsets = [0, 0], sizes = [8, 128], strides = [1, 1]} : vector<8x512xf32> to vector<8x128xf32>
    %448 = arith.negf %447 : vector<8x128xf32>
    %449 = math.exp %448 : vector<8x128xf32>
    %cst_126 = arith.constant 1.000000e+00 : f32
    %450 = vector.broadcast %cst_126 : f32 to vector<8x128xf32>
    %451 = arith.addf %450, %449 : vector<8x128xf32>
    %452 = arith.divf %450, %451 : vector<8x128xf32>
    %453 = vector.extract_strided_slice %418 {offsets = [0, 128], sizes = [8, 128], strides = [1, 1]} : vector<8x512xf32> to vector<8x128xf32>
    %454 = arith.negf %453 : vector<8x128xf32>
    %455 = math.exp %454 : vector<8x128xf32>
    %cst_127 = arith.constant 1.000000e+00 : f32
    %456 = vector.broadcast %cst_127 : f32 to vector<8x128xf32>
    %457 = arith.addf %456, %455 : vector<8x128xf32>
    %458 = arith.divf %456, %457 : vector<8x128xf32>
    %459 = vector.extract_strided_slice %418 {offsets = [0, 256], sizes = [8, 128], strides = [1, 1]} : vector<8x512xf32> to vector<8x128xf32>
    %460 = math.tanh %459 : vector<8x128xf32>
    %461 = vector.extract_strided_slice %418 {offsets = [0, 384], sizes = [8, 128], strides = [1, 1]} : vector<8x512xf32> to vector<8x128xf32>
    %462 = arith.negf %461 : vector<8x128xf32>
    %463 = math.exp %462 : vector<8x128xf32>
    %cst_128 = arith.constant 1.000000e+00 : f32
    %464 = vector.broadcast %cst_128 : f32 to vector<8x128xf32>
    %465 = arith.addf %464, %463 : vector<8x128xf32>
    %466 = arith.divf %464, %465 : vector<8x128xf32>
    %467 = arith.mulf %458, %408 : vector<8x128xf32>
    %468 = arith.mulf %452, %460 : vector<8x128xf32>
    %469 = arith.addf %467, %468 : vector<8x128xf32>
    %470 = math.tanh %469 : vector<8x128xf32>
    %471 = arith.mulf %466, %470 : vector<8x128xf32>
    %c0_129 = arith.constant 0 : index
    %c0_130 = arith.constant 0 : index
    %472 = vector.load %arg9[%c0_129, %c0_130] : memref<8x256xf32, #tpu.memory_space<vmem>>, vector<8x128xf32>
    tpu.vector_store %arg9[%c0_129, %c0_130], %471 {strides = array<i32>} : memref<8x256xf32, #tpu.memory_space<vmem>>, vector<8x128xf32>,
    %c0_131 = arith.constant 0 : index
    %c0_132 = arith.constant 0 : index
    %473 = vector.load %arg9[%c0_131, %c0_132] : memref<8x256xf32, #tpu.memory_space<vmem>>, vector<8x256xf32>
    %474 = arith.truncf %473 : vector<8x256xf32> to vector<8x256xbf16>
    %c0_133 = arith.constant 0 : index
    %c512 = arith.constant 512 : index
    %475 = vector.load %arg3[%c0_133, %c512] : memref<256x1024xbf16, #tpu.memory_space<vmem>>, vector<256x512xbf16>
    %cst_134 = arith.constant dense<0.000000e+00> : vector<8x512xf32>
    %476 = tpu.matmul %474, %475, %cst_134 {dimension_numbers = #tpu.dot_dimension_numbers<[1], [0], [0], [1], [0, 0, 1, 1], [], []>} : vector<8x256xbf16>, vector<256x512xbf16>, vector<8x512xf32> -> vector<8x512xf32>
    %477 = arith.addf %476, %15 : vector<8x512xf32>
    %478 = vector.extract_strided_slice %477 {offsets = [0, 0], sizes = [8, 128], strides = [1, 1]} : vector<8x512xf32> to vector<8x128xf32>
    %479 = arith.negf %478 : vector<8x128xf32>
    %480 = math.exp %479 : vector<8x128xf32>
    %cst_135 = arith.constant 1.000000e+00 : f32
    %481 = vector.broadcast %cst_135 : f32 to vector<8x128xf32>
    %482 = arith.addf %481, %480 : vector<8x128xf32>
    %483 = arith.divf %481, %482 : vector<8x128xf32>
    %484 = vector.extract_strided_slice %477 {offsets = [0, 128], sizes = [8, 128], strides = [1, 1]} : vector<8x512xf32> to vector<8x128xf32>
    %485 = arith.negf %484 : vector<8x128xf32>
    %486 = math.exp %485 : vector<8x128xf32>
    %cst_136 = arith.constant 1.000000e+00 : f32
    %487 = vector.broadcast %cst_136 : f32 to vector<8x128xf32>
    %488 = arith.addf %487, %486 : vector<8x128xf32>
    %489 = arith.divf %487, %488 : vector<8x128xf32>
    %490 = vector.extract_strided_slice %477 {offsets = [0, 256], sizes = [8, 128], strides = [1, 1]} : vector<8x512xf32> to vector<8x128xf32>
    %491 = math.tanh %490 : vector<8x128xf32>
    %492 = vector.extract_strided_slice %477 {offsets = [0, 384], sizes = [8, 128], strides = [1, 1]} : vector<8x512xf32> to vector<8x128xf32>
    %493 = arith.negf %492 : vector<8x128xf32>
    %494 = math.exp %493 : vector<8x128xf32>
    %cst_137 = arith.constant 1.000000e+00 : f32
    %495 = vector.broadcast %cst_137 : f32 to vector<8x128xf32>
    %496 = arith.addf %495, %494 : vector<8x128xf32>
    %497 = arith.divf %495, %496 : vector<8x128xf32>
    %498 = arith.mulf %489, %443 : vector<8x128xf32>
    %499 = arith.mulf %483, %491 : vector<8x128xf32>
    %500 = arith.addf %498, %499 : vector<8x128xf32>
    %501 = math.tanh %500 : vector<8x128xf32>
    %502 = arith.mulf %497, %501 : vector<8x128xf32>
    %c0_138 = arith.constant 0 : index
    %c0_139 = arith.constant 0 : index
    %503 = vector.load %arg5[%c0_138, %c0_139] : memref<128x128xf32, #tpu.memory_space<vmem>>, vector<128x128xf32>
    %cst_140 = arith.constant dense<0.000000e+00> : vector<8x128xf32>
    %504 = tpu.matmul %502, %503, %cst_140 {dimension_numbers = #tpu.dot_dimension_numbers<[1], [0], [0], [1], [0, 0, 1, 1], [], []>} : vector<8x128xf32>, vector<128x128xf32>, vector<8x128xf32> -> vector<8x128xf32>
    %c0_141 = arith.constant 0 : index
    %c0_142 = arith.constant 0 : index
    %505 = vector.load %arg6[%c0_141, %c0_142] : memref<1x128xf32, #tpu.memory_space<vmem>>, vector<1x128xf32>
    %506 = vector.broadcast %505 : vector<1x128xf32> to vector<8x128xf32>
    %507 = arith.addf %504, %506 : vector<8x128xf32>
    %c0_143 = arith.constant 0 : index
    %c0_144 = arith.constant 0 : index
    %508 = vector.load %arg7[%c0_143, %c0_144] : memref<8x128xf32, #tpu.memory_space<vmem>>, vector<8x128xf32>
    tpu.vector_store %arg7[%c0_143, %c0_144], %507 {strides = array<i32>} : memref<8x128xf32, #tpu.memory_space<vmem>>, vector<8x128xf32>,
    return
  }
}

</mosaic_0001>

<llo_original>
// kernel: char_lstm_forward.1
$region0: #{char_lstm_forward.1}
  #allocation0 [shape = 'u32[]', space=smem, size = 0x4, offset = 0x4, fixed_abs, tag = 'smem constant byte address 0x4 - core index']
  #allocation1 [shape = 'u32[72,128]{1,0:T(1,128)}', space=vmem, size = 0x9000, scoped, tag = 'internal scratch']
  #allocation2 [shape = 'f32[64,512]{1,0:T(8,128)}', space=vmem, size = 0x20000, scoped, tag = 'scratch operand']
  #allocation3 [shape = 'f32[8,256]{1,0:T(8,128)}', space=vmem, size = 0x2000, scoped, tag = 'scratch operand']
  %s0 = inlined_call_operand.vmem [shape: s32[64,1], index: 0, kind: input, shape index: {}]
  %s1 = inlined_call_operand.vmem [shape: bf16[128,512], index: 1, kind: input, shape index: {}]
  %s2 = inlined_call_operand.vmem [shape: f32[1,512], index: 2, kind: input, shape index: {}]
  %s3 = inlined_call_operand.vmem [shape: bf16[256,1024], index: 3, kind: input, shape index: {}]
  %s4 = inlined_call_operand.vmem [shape: f32[1,512], index: 4, kind: input, shape index: {}]
  %s5 = inlined_call_operand.vmem [shape: f32[128,128], index: 5, kind: input, shape index: {}]
  %s6 = inlined_call_operand.vmem [shape: f32[1,128], index: 6, kind: input, shape index: {}]
  %s7 = inlined_call_operand.vmem [shape: f32[8,128], index: 7, kind: output, shape index: {}]
  %s8 = sld [smem:[#allocation0]]
  $region38: #{char_lstm_forward.1} parent=0
    _
  %s10 = ssub.s32 1, %s8
  %s11 = scalar_select 0, %s10, %s8
  // Predicated region
  $region2: #{char_lstm_forward.1} parent=0 // pred_check
    _
  $region3: #{char_lstm_forward.1} parent=0 // pred_check_branch
    %13 = sbr.rel (0) target = $region5
  $region4: #{char_lstm_forward.1} parent=0 // pred_region
    _
  $region5: #{char_lstm_forward.1} parent=0 // pred_fallthru
    _
  // Predicated region
  $region6: #{char_lstm_forward.1} parent=0 // pred_check
    _
  $region7: #{char_lstm_forward.1} parent=0 // pred_check_branch
    %15 = sbr.rel (0) target = $region9
  $region8: #{char_lstm_forward.1} parent=0 // pred_region
    _
  $region9: #{char_lstm_forward.1} parent=0 // pred_fallthru
    _
  // Predicated region
  $region10: #{char_lstm_forward.1} parent=0 // pred_check
    _
  $region11: #{char_lstm_forward.1} parent=0 // pred_check_branch
    %17 = sbr.rel (0) target = $region13
  $region12: #{char_lstm_forward.1} parent=0 // pred_region
    _
  $region13: #{char_lstm_forward.1} parent=0 // pred_fallthru
    _
  // Predicated region
  $region14: #{char_lstm_forward.1} parent=0 // pred_check
    _
  $region15: #{char_lstm_forward.1} parent=0 // pred_check_branch
    %19 = sbr.rel (0) target = $region17
  $region16: #{char_lstm_forward.1} parent=0 // pred_region
    _
  $region17: #{char_lstm_forward.1} parent=0 // pred_fallthru
    _
  // Predicated region
  $region18: #{char_lstm_forward.1} parent=0 // pred_check
    _
  $region19: #{char_lstm_forward.1} parent=0 // pred_check_branch
    %21 = sbr.rel (0) target = $region21
  $region20: #{char_lstm_forward.1} parent=0 // pred_region
    _
  $region21: #{char_lstm_forward.1} parent=0 // pred_fallthru
    _
  // Predicated region
  $region22: #{char_lstm_forward.1} parent=0 // pred_check
    _
  $region23: #{char_lstm_forward.1} parent=0 // pred_check_branch
    %23 = sbr.rel (0) target = $region25
  $region24: #{char_lstm_forward.1} parent=0 // pred_region
    _
  $region25: #{char_lstm_forward.1} parent=0 // pred_fallthru
    _
  // Predicated region
  $region26: #{char_lstm_forward.1} parent=0 // pred_check
    _
  $region27: #{char_lstm_forward.1} parent=0 // pred_check_branch
    %25 = sbr.rel (0) target = $region29
  $region28: #{char_lstm_forward.1} parent=0 // pred_region
    _
  $region29: #{char_lstm_forward.1} parent=0 // pred_fallthru
    _
  %v26 = vld [vmem:[%s0] sm:$0xff]
  %v27 = vld [vmem:[%s0 + $0x8] sm:$0xff]
  %v28 = vld [vmem:[%s0 + $0x10] sm:$0xff]
  %v29 = vld [vmem:[%s0 + $0x18] sm:$0xff]
  %v30 = vld [vmem:[%s0 + $0x20] sm:$0xff]
  %v31 = vld [vmem:[%s0 + $0x28] sm:$0xff]
  %v32 = vld [vmem:[%s0 + $0x30] sm:$0xff]
  %v33 = vld [vmem:[%s0 + $0x38] sm:$0xff]
  %v34 = vlaneseq
  %v35 = vand.u32 %v34, 127
  %36 = vset.pattern.permute.xlu0 0
  %37 = vperm.xlu0 %36, %v26
  %v38 = vpop.permute.xlu0 %37
  %39 = vset.pattern.permute.xlu0 0
  %40 = vperm.xlu0 %39, %v27
  %v41 = vpop.permute.xlu0 %40
  %42 = vset.pattern.permute.xlu0 0
  %43 = vperm.xlu0 %42, %v28
  %v44 = vpop.permute.xlu0 %43
  %45 = vset.pattern.permute.xlu0 0
  %46 = vperm.xlu0 %45, %v29
  %v47 = vpop.permute.xlu0 %46
  %48 = vset.pattern.permute.xlu0 0
  %49 = vperm.xlu0 %48, %v30
  %v50 = vpop.permute.xlu0 %49
  %51 = vset.pattern.permute.xlu0 0
  %52 = vperm.xlu0 %51, %v31
  %v53 = vpop.permute.xlu0 %52
  %54 = vset.pattern.permute.xlu0 0
  %55 = vperm.xlu0 %54, %v32
  %v56 = vpop.permute.xlu0 %55
  %57 = vset.pattern.permute.xlu0 0
  %58 = vperm.xlu0 %57, %v33
  %v59 = vpop.permute.xlu0 %58
  %vm60 = vcmp.eq.s32.totalorder %v38, %v35
  %vm61 = vcmp.eq.s32.totalorder %v41, %v35
  %vm62 = vcmp.eq.s32.totalorder %v44, %v35
  %vm63 = vcmp.eq.s32.totalorder %v47, %v35
  %vm64 = vcmp.eq.s32.totalorder %v50, %v35
  %vm65 = vcmp.eq.s32.totalorder %v53, %v35
  %vm66 = vcmp.eq.s32.totalorder %v56, %v35
  %vm67 = vcmp.eq.s32.totalorder %v59, %v35
  %v68 = vsel %vm60, 1, 0
  %v69 = vsel %vm61, 1, 0
  %v70 = vsel %vm62, 1, 0
  %v71 = vsel %vm63, 1, 0
  %v72 = vsel %vm64, 1, 0
  %v73 = vsel %vm65, 1, 0
  %v74 = vsel %vm66, 1, 0
  %v75 = vsel %vm67, 1, 0
  %v76 = vcvt.s32.f32 %v68
  %v77 = vcvt.s32.f32 %v69
  %v78 = vcvt.s32.f32 %v70
  %v79 = vcvt.s32.f32 %v71
  %v80 = vcvt.s32.f32 %v72
  %v81 = vcvt.s32.f32 %v73
  %v82 = vcvt.s32.f32 %v74
  %v83 = vcvt.s32.f32 %v75
  %v84 = vpack.c.bf16 %v77, %v76
  %v85 = vpack.c.bf16 %v79, %v78
  %v86 = vpack.c.bf16 %v81, %v80
  %v87 = vpack.c.bf16 %v83, %v82
  %v88 = vld [vmem:[%s1] sm:$0xff]
  %v89 = vld [vmem:[%s1 + $0x8] sm:$0xff]
  %v90 = vld [vmem:[%s1 + $0x10] sm:$0xff]
  %v91 = vld [vmem:[%s1 + $0x18] sm:$0xff]
  %v92 = vld [vmem:[%s1 + $0x20] sm:$0xff]
  %v93 = vld [vmem:[%s1 + $0x28] sm:$0xff]
  %v94 = vld [vmem:[%s1 + $0x30] sm:$0xff]
  %v95 = vld [vmem:[%s1 + $0x38] sm:$0xff]
  %v96 = vld [vmem:[%s1 + $0x40] sm:$0xff]
  %v97 = vld [vmem:[%s1 + $0x48] sm:$0xff]
  %v98 = vld [vmem:[%s1 + $0x50] sm:$0xff]
  %v99 = vld [vmem:[%s1 + $0x58] sm:$0xff]
  %v100 = vld [vmem:[%s1 + $0x60] sm:$0xff]
  %v101 = vld [vmem:[%s1 + $0x68] sm:$0xff]
  %v102 = vld [vmem:[%s1 + $0x70] sm:$0xff]
  %v103 = vld [vmem:[%s1 + $0x78] sm:$0xff]
  %v104 = vld [vmem:[%s1 + $0x80] sm:$0xff]
  %v105 = vld [vmem:[%s1 + $0x88] sm:$0xff]
  %v106 = vld [vmem:[%s1 + $0x90] sm:$0xff]
  %v107 = vld [vmem:[%s1 + $0x98] sm:$0xff]
  %v108 = vld [vmem:[%s1 + $0xa0] sm:$0xff]
  %v109 = vld [vmem:[%s1 + $0xa8] sm:$0xff]
  %v110 = vld [vmem:[%s1 + $0xb0] sm:$0xff]
  %v111 = vld [vmem:[%s1 + $0xb8] sm:$0xff]
  %v112 = vld [vmem:[%s1 + $0xc0] sm:$0xff]
  %v113 = vld [vmem:[%s1 + $0xc8] sm:$0xff]
  %v114 = vld [vmem:[%s1 + $0xd0] sm:$0xff]
  %v115 = vld [vmem:[%s1 + $0xd8] sm:$0xff]
  %v116 = vld [vmem:[%s1 + $0xe0] sm:$0xff]
  %v117 = vld [vmem:[%s1 + $0xe8] sm:$0xff]
  %v118 = vld [vmem:[%s1 + $0xf0] sm:$0xff]
  %v119 = vld [vmem:[%s1 + $0xf8] sm:$0xff]
  %v120 = vld [vmem:[%s2] sm:$0xf]
  %v122 = vperm.slane %v120, 0
  %v123 = vperm.slane %v120, 1
  %v124 = vperm.slane %v120, 2
  %v125 = vperm.slane %v120, 3
  %v162 = vunpack.c.l.b16 %v88
  %v163 = vunpack.c.h.b16 %v88
  %v164 = vunpack.c.l.b16 %v89
  %v165 = vunpack.c.h.b16 %v89
  %v166 = vunpack.c.l.b16 %v90
  %v167 = vunpack.c.h.b16 %v90
  %v168 = vunpack.c.l.b16 %v91
  %v169 = vunpack.c.h.b16 %v91
  %v170 = vunpack.c.l.b16 %v92
  %v171 = vunpack.c.h.b16 %v92
  %v172 = vunpack.c.l.b16 %v93
  %v173 = vunpack.c.h.b16 %v93
  %v174 = vunpack.c.l.b16 %v94
  %v175 = vunpack.c.h.b16 %v94
  %v176 = vunpack.c.l.b16 %v95
  %v177 = vunpack.c.h.b16 %v95
  %v178 = vunpack.c.l.b16 %v96
  %v179 = vunpack.c.h.b16 %v96
  %v180 = vunpack.c.l.b16 %v97
  %v181 = vunpack.c.h.b16 %v97
  %v182 = vunpack.c.l.b16 %v98
  %v183 = vunpack.c.h.b16 %v98
  %v184 = vunpack.c.l.b16 %v99
  %v185 = vunpack.c.h.b16 %v99
  %v186 = vunpack.c.l.b16 %v100
  %v187 = vunpack.c.h.b16 %v100
  %v188 = vunpack.c.l.b16 %v101
  %v189 = vunpack.c.h.b16 %v101
  %v190 = vunpack.c.l.b16 %v102
  %v191 = vunpack.c.h.b16 %v102
  %v192 = vunpack.c.l.b16 %v103
  %v193 = vunpack.c.h.b16 %v103
  %v194 = vunpack.c.l.b16 %v104
  %v195 = vunpack.c.h.b16 %v104
  %v196 = vunpack.c.l.b16 %v105
  %v197 = vunpack.c.h.b16 %v105
  %v198 = vunpack.c.l.b16 %v106
  %v199 = vunpack.c.h.b16 %v106
  %v200 = vunpack.c.l.b16 %v107
  %v201 = vunpack.c.h.b16 %v107
  %v202 = vunpack.c.l.b16 %v108
  %v203 = vunpack.c.h.b16 %v108
  %v204 = vunpack.c.l.b16 %v109
  %v205 = vunpack.c.h.b16 %v109
  %v206 = vunpack.c.l.b16 %v110
  %v207 = vunpack.c.h.b16 %v110
  %v208 = vunpack.c.l.b16 %v111
  %v209 = vunpack.c.h.b16 %v111
  %v210 = vunpack.c.l.b16 %v112
  %v211 = vunpack.c.h.b16 %v112
  %v212 = vunpack.c.l.b16 %v113
  %v213 = vunpack.c.h.b16 %v113
  %v214 = vunpack.c.l.b16 %v114
  %v215 = vunpack.c.h.b16 %v114
  %v216 = vunpack.c.l.b16 %v115
  %v217 = vunpack.c.h.b16 %v115
  %v218 = vunpack.c.l.b16 %v116
  %v219 = vunpack.c.h.b16 %v116
  %v220 = vunpack.c.l.b16 %v117
  %v221 = vunpack.c.h.b16 %v117
  %v222 = vunpack.c.l.b16 %v118
  %v223 = vunpack.c.h.b16 %v118
  %v224 = vunpack.c.l.b16 %v119
  %v225 = vunpack.c.h.b16 %v119
  %v226 = vpack.c.b16 %v166, %v162
  %v227 = vpack.c.b16 %v167, %v163
  %v228 = vpack.c.b16 %v168, %v164
  %v229 = vpack.c.b16 %v169, %v165
  %v230 = vpack.c.b16 %v174, %v170
  %v231 = vpack.c.b16 %v175, %v171
  %v232 = vpack.c.b16 %v176, %v172
  %v233 = vpack.c.b16 %v177, %v173
  %v234 = vpack.c.b16 %v182, %v178
  %v235 = vpack.c.b16 %v183, %v179
  %v236 = vpack.c.b16 %v184, %v180
  %v237 = vpack.c.b16 %v185, %v181
  %v238 = vpack.c.b16 %v190, %v186
  %v239 = vpack.c.b16 %v191, %v187
  %v240 = vpack.c.b16 %v192, %v188
  %v241 = vpack.c.b16 %v193, %v189
  %v242 = vpack.c.b16 %v198, %v194
  %v243 = vpack.c.b16 %v199, %v195
  %v244 = vpack.c.b16 %v200, %v196
  %v245 = vpack.c.b16 %v201, %v197
  %v246 = vpack.c.b16 %v206, %v202
  %v247 = vpack.c.b16 %v207, %v203
  %v248 = vpack.c.b16 %v208, %v204
  %v249 = vpack.c.b16 %v209, %v205
  %v250 = vpack.c.b16 %v214, %v210
  %v251 = vpack.c.b16 %v215, %v211
  %v252 = vpack.c.b16 %v216, %v212
  %v253 = vpack.c.b16 %v217, %v213
  %v254 = vpack.c.b16 %v222, %v218
  %v255 = vpack.c.b16 %v223, %v219
  %v256 = vpack.c.b16 %v224, %v220
  %v257 = vpack.c.b16 %v225, %v221
  %290 = vmatpush.bf16.msra.mxu0 %v254
  %291 = vmatpush.bf16.msra.mxu0 %v250
  %292 = vmatpush.bf16.msra.mxu0 %v246
  %293 = vmatpush.bf16.msra.mxu0 %v242
  %294 = vmatpush.bf16.msra.mxu0 %v238
  %295 = vmatpush.bf16.msra.mxu0 %v234
  %296 = vmatpush.bf16.msra.mxu0 %v230
  %297 = vmatpush.bf16.msra.mxu0 %v226
  %298 = vmatmul.bf16.gmra.mxu0 %v84
  %v299 = vpop.f32.mrf.mxu0
  %v300 = vadd.f32 %v122, %v299
  %v301 = vpop.f32.mrf.mxu0
  %v302 = vadd.f32 %v122, %v301
  %303 = vmatmul.bf16.gmra.mxu0 %v85
  %v304 = vpop.f32.mrf.mxu0
  %v305 = vadd.f32 %v122, %v304
  %v306 = vpop.f32.mrf.mxu0
  %v307 = vadd.f32 %v122, %v306
  %308 = vmatmul.bf16.gmra.mxu0 %v86
  %v309 = vpop.f32.mrf.mxu0
  %v310 = vadd.f32 %v122, %v309
  %v311 = vpop.f32.mrf.mxu0
  %v312 = vadd.f32 %v122, %v311
  %313 = vmatmul.bf16.gmra.mxu0 %v87
  %v314 = vpop.f32.mrf.mxu0
  %v315 = vadd.f32 %v122, %v314
  %v316 = vpop.f32.mrf.mxu0
  %v317 = vadd.f32 %v122, %v316
  %318 = vdwg.mxu0
  %319 = vmatpush.bf16.msra.mxu0 %v255
  %320 = vmatpush.bf16.msra.mxu0 %v251
  %321 = vmatpush.bf16.msra.mxu0 %v247
  %322 = vmatpush.bf16.msra.mxu0 %v243
  %323 = vmatpush.bf16.msra.mxu0 %v239
  %324 = vmatpush.bf16.msra.mxu0 %v235
  %325 = vmatpush.bf16.msra.mxu0 %v231
  %326 = vmatpush.bf16.msra.mxu0 %v227
  %327 = vmatmul.bf16.gmra.mxu0 %v84
  %v328 = vpop.f32.mrf.mxu0
  %v329 = vadd.f32 %v123, %v328
  %v330 = vpop.f32.mrf.mxu0
  %v331 = vadd.f32 %v123, %v330
  %332 = vmatmul.bf16.gmra.mxu0 %v85
  %v333 = vpop.f32.mrf.mxu0
  %v334 = vadd.f32 %v123, %v333
  %v335 = vpop.f32.mrf.mxu0
  %v336 = vadd.f32 %v123, %v335
  %337 = vmatmul.bf16.gmra.mxu0 %v86
  %v338 = vpop.f32.mrf.mxu0
  %v339 = vadd.f32 %v123, %v338
  %v340 = vpop.f32.mrf.mxu0
  %v341 = vadd.f32 %v123, %v340
  %342 = vmatmul.bf16.gmra.mxu0 %v87
  %v343 = vpop.f32.mrf.mxu0
  %v344 = vadd.f32 %v123, %v343
  %v345 = vpop.f32.mrf.mxu0
  %v346 = vadd.f32 %v123, %v345
  %347 = vdwg.mxu0
  %348 = vmatpush.bf16.msra.mxu0 %v256
  %349 = vmatpush.bf16.msra.mxu0 %v252
  %350 = vmatpush.bf16.msra.mxu0 %v248
  %351 = vmatpush.bf16.msra.mxu0 %v244
  %352 = vmatpush.bf16.msra.mxu0 %v240
  %353 = vmatpush.bf16.msra.mxu0 %v236
  %354 = vmatpush.bf16.msra.mxu0 %v232
  %355 = vmatpush.bf16.msra.mxu0 %v228
  %356 = vmatmul.bf16.gmra.mxu0 %v84
  %v357 = vpop.f32.mrf.mxu0
  %v358 = vadd.f32 %v124, %v357
  %v359 = vpop.f32.mrf.mxu0
  %v360 = vadd.f32 %v124, %v359
  %361 = vmatmul.bf16.gmra.mxu0 %v85
  %v362 = vpop.f32.mrf.mxu0
  %v363 = vadd.f32 %v124, %v362
  %v364 = vpop.f32.mrf.mxu0
  %v365 = vadd.f32 %v124, %v364
  %366 = vmatmul.bf16.gmra.mxu0 %v86
  %v367 = vpop.f32.mrf.mxu0
  %v368 = vadd.f32 %v124, %v367
  %v369 = vpop.f32.mrf.mxu0
  %v370 = vadd.f32 %v124, %v369
  %371 = vmatmul.bf16.gmra.mxu0 %v87
  %v372 = vpop.f32.mrf.mxu0
  %v373 = vadd.f32 %v124, %v372
  %v374 = vpop.f32.mrf.mxu0
  %v375 = vadd.f32 %v124, %v374
  %376 = vdwg.mxu0
  %377 = vmatpush.bf16.msra.mxu0 %v257
  %378 = vmatpush.bf16.msra.mxu0 %v253
  %379 = vmatpush.bf16.msra.mxu0 %v249
  %380 = vmatpush.bf16.msra.mxu0 %v245
  %381 = vmatpush.bf16.msra.mxu0 %v241
  %382 = vmatpush.bf16.msra.mxu0 %v237
  %383 = vmatpush.bf16.msra.mxu0 %v233
  %384 = vmatpush.bf16.msra.mxu0 %v229
  %385 = vmatmul.bf16.gmra.mxu0 %v84
  %v386 = vpop.f32.mrf.mxu0
  %v387 = vadd.f32 %v125, %v386
  %v388 = vpop.f32.mrf.mxu0
  %v389 = vadd.f32 %v125, %v388
  %390 = vmatmul.bf16.gmra.mxu0 %v85
  %v391 = vpop.f32.mrf.mxu0
  %v392 = vadd.f32 %v125, %v391
  %v393 = vpop.f32.mrf.mxu0
  %v394 = vadd.f32 %v125, %v393
  %395 = vmatmul.bf16.gmra.mxu0 %v86
  %v396 = vpop.f32.mrf.mxu0
  %v397 = vadd.f32 %v125, %v396
  %v398 = vpop.f32.mrf.mxu0
  %v399 = vadd.f32 %v125, %v398
  %400 = vmatmul.bf16.gmra.mxu0 %v87
  %v401 = vpop.f32.mrf.mxu0
  %v402 = vadd.f32 %v125, %v401
  %v403 = vpop.f32.mrf.mxu0
  %v404 = vadd.f32 %v125, %v403
  %405 = vdwg.mxu0
  %406 = vst [vmem:[#allocation2] sm:$0xff] %v300
  %407 = vst [vmem:[#allocation2 + $0x8] sm:$0xff] %v329
  %408 = vst [vmem:[#allocation2 + $0x10] sm:$0xff] %v358
  %409 = vst [vmem:[#allocation2 + $0x18] sm:$0xff] %v387
  %410 = vst [vmem:[#allocation2 + $0x20] sm:$0xff] %v302
  %411 = vst [vmem:[#allocation2 + $0x28] sm:$0xff] %v331
  %412 = vst [vmem:[#allocation2 + $0x30] sm:$0xff] %v360
  %413 = vst [vmem:[#allocation2 + $0x38] sm:$0xff] %v389
  %414 = vst [vmem:[#allocation2 + $0x40] sm:$0xff] %v305
  %415 = vst [vmem:[#allocation2 + $0x48] sm:$0xff] %v334
  %416 = vst [vmem:[#allocation2 + $0x50] sm:$0xff] %v363
  %417 = vst [vmem:[#allocation2 + $0x58] sm:$0xff] %v392
  %418 = vst [vmem:[#allocation2 + $0x60] sm:$0xff] %v307
  %419 = vst [vmem:[#allocation2 + $0x68] sm:$0xff] %v336
  %420 = vst [vmem:[#allocation2 + $0x70] sm:$0xff] %v365
  %421 = vst [vmem:[#allocation2 + $0x78] sm:$0xff] %v394
  %422 = vst [vmem:[#allocation2 + $0x80] sm:$0xff] %v310
  %423 = vst [vmem:[#allocation2 + $0x88] sm:$0xff] %v339
  %424 = vst [vmem:[#allocation2 + $0x90] sm:$0xff] %v368
  %425 = vst [vmem:[#allocation2 + $0x98] sm:$0xff] %v397
  %426 = vst [vmem:[#allocation2 + $0xa0] sm:$0xff] %v312
  %427 = vst [vmem:[#allocation2 + $0xa8] sm:$0xff] %v341
  %428 = vst [vmem:[#allocation2 + $0xb0] sm:$0xff] %v370
  %429 = vst [vmem:[#allocation2 + $0xb8] sm:$0xff] %v399
  %430 = vst [vmem:[#allocation2 + $0xc0] sm:$0xff] %v315
  %431 = vst [vmem:[#allocation2 + $0xc8] sm:$0xff] %v344
  %432 = vst [vmem:[#allocation2 + $0xd0] sm:$0xff] %v373
  %433 = vst [vmem:[#allocation2 + $0xd8] sm:$0xff] %v402
  %434 = vst [vmem:[#allocation2 + $0xe0] sm:$0xff] %v317
  %435 = vst [vmem:[#allocation2 + $0xe8] sm:$0xff] %v346
  %436 = vst [vmem:[#allocation2 + $0xf0] sm:$0xff] %v375
  %437 = vst [vmem:[#allocation2 + $0xf8] sm:$0xff] %v404
  %v438 = vld [vmem:[%s4] sm:$0xf]
  %v440 = vperm.slane %v438, 0
  %v441 = vperm.slane %v438, 1
  %v442 = vperm.slane %v438, 2
  %v443 = vperm.slane %v438, 3
  %448 = vst [vmem:[#allocation3] sm:$0xff] 0.0
  %449 = vst [vmem:[#allocation3 + $0x8] sm:$0xff] 0.0
  %v450 = vld [vmem:[#allocation2] sm:$0xff]
  %v451 = vld [vmem:[#allocation2 + $0x8] sm:$0xff]
  %v452 = vld [vmem:[#allocation2 + $0x10] sm:$0xff]
  %v453 = vld [vmem:[#allocation2 + $0x18] sm:$0xff]
  %v454 = vxor.u32 %v450, 2147483648
  %v455 = vmul.f32 %v454, 1.442695
  %v456 = vpow.pop %v455
  %v457 = vadd.f32 %v456, 1.0
  %v458 = vrcp.pop %v457
  %v459 = vmul.f32 %v457, %v458
  %v460 = vsub.f32 1.0, %v459
  %v461 = vmul.f32 %v458, %v460
  %v462 = vadd.f32 %v458, %v461
  %vm463 = vweird.f32 %v457
  %vm464 = vweird.f32 %v458
  %vm465 = vmor %vm463, %vm464
  %v466 = vsel %vm465, %v458, %v462
  %v467 = vand.u32 2147483647, %v457
  %vm468 = vcmp.eq.f32.partialorder %v467, 8.507059e+37
  %v469 = vand.u32 %v457, 2147483648
  %v470 = vor.u32 1.1754944e-38, %v469
  %v471 = vsel %vm468, %v470, %v466
  %v472 = vmul.f32 1.0, %v471
  %v473 = vxor.u32 %v451, 2147483648
  %v474 = vmul.f32 %v473, 1.442695
  %v475 = vpow.pop %v474
  %v476 = vadd.f32 %v475, 1.0
  %v477 = vrcp.pop %v476
  %v478 = vmul.f32 %v476, %v477
  %v479 = vsub.f32 1.0, %v478
  %v480 = vmul.f32 %v477, %v479
  %v481 = vadd.f32 %v477, %v480
  %vm482 = vweird.f32 %v476
  %vm483 = vweird.f32 %v477
  %vm484 = vmor %vm482, %vm483
  %v485 = vsel %vm484, %v477, %v481
  %v486 = vand.u32 2147483647, %v476
  %vm487 = vcmp.eq.f32.partialorder %v486, 8.507059e+37
  %v488 = vand.u32 %v476, 2147483648
  %v489 = vor.u32 1.1754944e-38, %v488
  %v490 = vsel %vm487, %v489, %v485
  %v491 = vmul.f32 1.0, %v490
  %v492 = vtanh.pop %v452
  %v493 = vxor.u32 %v453, 2147483648
  %v494 = vmul.f32 %v493, 1.442695
  %v495 = vpow.pop %v494
  %v496 = vadd.f32 %v495, 1.0
  %v497 = vrcp.pop %v496
  %v498 = vmul.f32 %v496, %v497
  %v499 = vsub.f32 1.0, %v498
  %v500 = vmul.f32 %v497, %v499
  %v501 = vadd.f32 %v497, %v500
  %vm502 = vweird.f32 %v496
  %vm503 = vweird.f32 %v497
  %vm504 = vmor %vm502, %vm503
  %v505 = vsel %vm504, %v497, %v501
  %v506 = vand.u32 2147483647, %v496
  %vm507 = vcmp.eq.f32.partialorder %v506, 8.507059e+37
  %v508 = vand.u32 %v496, 2147483648
  %v509 = vor.u32 1.1754944e-38, %v508
  %v510 = vsel %vm507, %v509, %v505
  %v511 = vmul.f32 1.0, %v510
  %v512 = vmul.f32 %v491, 0.0
  %v513 = vmul.f32 %v472, %v492
  %v514 = vadd.f32 %v512, %v513
  %v515 = vtanh.pop %v514
  %v516 = vmul.f32 %v511, %v515
  %517 = vst [vmem:[#allocation3] sm:$0xff] %v516
  %v518 = vld [vmem:[#allocation2 + $0x20] sm:$0xff]
  %v519 = vld [vmem:[#allocation2 + $0x28] sm:$0xff]
  %v520 = vld [vmem:[#allocation2 + $0x30] sm:$0xff]
  %v521 = vld [vmem:[#allocation2 + $0x38] sm:$0xff]
  %v522 = vld [vmem:[#allocation3] sm:$0xff]
  %v523 = vld [vmem:[#allocation3 + $0x8] sm:$0xff]
  %v524 = vpack.c.bf16 %v522, %v522
  %v525 = vpack.c.bf16 %v523, %v523
  %v526 = vld [vmem:[%s3] sm:$0xff]
  %v527 = vld [vmem:[%s3 + $0x8] sm:$0xff]
  %v528 = vld [vmem:[%s3 + $0x10] sm:$0xff]
  %v529 = vld [vmem:[%s3 + $0x18] sm:$0xff]
  %v530 = vld [vmem:[%s3 + $0x20] sm:$0xff]
  %v531 = vld [vmem:[%s3 + $0x28] sm:$0xff]
  %v532 = vld [vmem:[%s3 + $0x30] sm:$0xff]
  %v533 = vld [vmem:[%s3 + $0x38] sm:$0xff]
  %v534 = vld [vmem:[%s3 + $0x40] sm:$0xff]
  %v535 = vld [vmem:[%s3 + $0x48] sm:$0xff]
  %v536 = vld [vmem:[%s3 + $0x50] sm:$0xff]
  %v537 = vld [vmem:[%s3 + $0x58] sm:$0xff]
  %v538 = vld [vmem:[%s3 + $0x60] sm:$0xff]
  %v539 = vld [vmem:[%s3 + $0x68] sm:$0xff]
  %v540 = vld [vmem:[%s3 + $0x70] sm:$0xff]
  %v541 = vld [vmem:[%s3 + $0x78] sm:$0xff]
  %v542 = vld [vmem:[%s3 + $0x80] sm:$0xff]
  %v543 = vld [vmem:[%s3 + $0x88] sm:$0xff]
  %v544 = vld [vmem:[%s3 + $0x90] sm:$0xff]
  %v545 = vld [vmem:[%s3 + $0x98] sm:$0xff]
  %v546 = vld [vmem:[%s3 + $0xa0] sm:$0xff]
  %v547 = vld [vmem:[%s3 + $0xa8] sm:$0xff]
  %v548 = vld [vmem:[%s3 + $0xb0] sm:$0xff]
  %v549 = vld [vmem:[%s3 + $0xb8] sm:$0xff]
  %v550 = vld [vmem:[%s3 + $0xc0] sm:$0xff]
  %v551 = vld [vmem:[%s3 + $0xc8] sm:$0xff]
  %v552 = vld [vmem:[%s3 + $0xd0] sm:$0xff]
  %v553 = vld [vmem:[%s3 + $0xd8] sm:$0xff]
  %v554 = vld [vmem:[%s3 + $0xe0] sm:$0xff]
  %v555 = vld [vmem:[%s3 + $0xe8] sm:$0xff]
  %v556 = vld [vmem:[%s3 + $0xf0] sm:$0xff]
  %v557 = vld [vmem:[%s3 + $0xf8] sm:$0xff]
  %v558 = vld [vmem:[%s3 + $0x100] sm:$0xff]
  %v559 = vld [vmem:[%s3 + $0x108] sm:$0xff]
  %v560 = vld [vmem:[%s3 + $0x110] sm:$0xff]
  %v561 = vld [vmem:[%s3 + $0x118] sm:$0xff]
  %v562 = vld [vmem:[%s3 + $0x120] sm:$0xff]
  %v563 = vld [vmem:[%s3 + $0x128] sm:$0xff]
  %v564 = vld [vmem:[%s3 + $0x130] sm:$0xff]
  %v565 = vld [vmem:[%s3 + $0x138] sm:$0xff]
  %v566 = vld [vmem:[%s3 + $0x140] sm:$0xff]
  %v567 = vld [vmem:[%s3 + $0x148] sm:$0xff]
  %v568 = vld [vmem:[%s3 + $0x150] sm:$0xff]
  %v569 = vld [vmem:[%s3 + $0x158] sm:$0xff]
  %v570 = vld [vmem:[%s3 + $0x160] sm:$0xff]
  %v571 = vld [vmem:[%s3 + $0x168] sm:$0xff]
  %v572 = vld [vmem:[%s3 + $0x170] sm:$0xff]
  %v573 = vld [vmem:[%s3 + $0x178] sm:$0xff]
  %v574 = vld [vmem:[%s3 + $0x180] sm:$0xff]
  %v575 = vld [vmem:[%s3 + $0x188] sm:$0xff]
  %v576 = vld [vmem:[%s3 + $0x190] sm:$0xff]
  %v577 = vld [vmem:[%s3 + $0x198] sm:$0xff]
  %v578 = vld [vmem:[%s3 + $0x1a0] sm:$0xff]
  %v579 = vld [vmem:[%s3 + $0x1a8] sm:$0xff]
  %v580 = vld [vmem:[%s3 + $0x1b0] sm:$0xff]
  %v581 = vld [vmem:[%s3 + $0x1b8] sm:$0xff]
  %v582 = vld [vmem:[%s3 + $0x1c0] sm:$0xff]
  %v583 = vld [vmem:[%s3 + $0x1c8] sm:$0xff]
  %v584 = vld [vmem:[%s3 + $0x1d0] sm:$0xff]
  %v585 = vld [vmem:[%s3 + $0x1d8] sm:$0xff]
  %v586 = vld [vmem:[%s3 + $0x1e0] sm:$0xff]
  %v587 = vld [vmem:[%s3 + $0x1e8] sm:$0xff]
  %v588 = vld [vmem:[%s3 + $0x1f0] sm:$0xff]
  %v589 = vld [vmem:[%s3 + $0x1f8] sm:$0xff]
  %v590 = vld [vmem:[%s3 + $0x200] sm:$0xff]
  %v591 = vld [vmem:[%s3 + $0x208] sm:$0xff]
  %v592 = vld [vmem:[%s3 + $0x210] sm:$0xff]
  %v593 = vld [vmem:[%s3 + $0x218] sm:$0xff]
  %v594 = vld [vmem:[%s3 + $0x220] sm:$0xff]
  %v595 = vld [vmem:[%s3 + $0x228] sm:$0xff]
  %v596 = vld [vmem:[%s3 + $0x230] sm:$0xff]
  %v597 = vld [vmem:[%s3 + $0x238] sm:$0xff]
  %v598 = vld [vmem:[%s3 + $0x240] sm:$0xff]
  %v599 = vld [vmem:[%s3 + $0x248] sm:$0xff]
  %v600 = vld [vmem:[%s3 + $0x250] sm:$0xff]
  %v601 = vld [vmem:[%s3 + $0x258] sm:$0xff]
  %v602 = vld [vmem:[%s3 + $0x260] sm:$0xff]
  %v603 = vld [vmem:[%s3 + $0x268] sm:$0xff]
  %v604 = vld [vmem:[%s3 + $0x270] sm:$0xff]
  %v605 = vld [vmem:[%s3 + $0x278] sm:$0xff]
  %v606 = vld [vmem:[%s3 + $0x280] sm:$0xff]
  %v607 = vld [vmem:[%s3 + $0x288] sm:$0xff]
  %v608 = vld [vmem:[%s3 + $0x290] sm:$0xff]
  %v609 = vld [vmem:[%s3 + $0x298] sm:$0xff]
  %v610 = vld [vmem:[%s3 + $0x2a0] sm:$0xff]
  %v611 = vld [vmem:[%s3 + $0x2a8] sm:$0xff]
  %v612 = vld [vmem:[%s3 + $0x2b0] sm:$0xff]
  %v613 = vld [vmem:[%s3 + $0x2b8] sm:$0xff]
  %v614 = vld [vmem:[%s3 + $0x2c0] sm:$0xff]
  %v615 = vld [vmem:[%s3 + $0x2c8] sm:$0xff]
  %v616 = vld [vmem:[%s3 + $0x2d0] sm:$0xff]
  %v617 = vld [vmem:[%s3 + $0x2d8] sm:$0xff]
  %v618 = vld [vmem:[%s3 + $0x2e0] sm:$0xff]
  %v619 = vld [vmem:[%s3 + $0x2e8] sm:$0xff]
  %v620 = vld [vmem:[%s3 + $0x2f0] sm:$0xff]
  %v621 = vld [vmem:[%s3 + $0x2f8] sm:$0xff]
  %v622 = vld [vmem:[%s3 + $0x300] sm:$0xff]
  %v623 = vld [vmem:[%s3 + $0x308] sm:$0xff]
  %v624 = vld [vmem:[%s3 + $0x310] sm:$0xff]
  %v625 = vld [vmem:[%s3 + $0x318] sm:$0xff]
  %v626 = vld [vmem:[%s3 + $0x320] sm:$0xff]
  %v627 = vld [vmem:[%s3 + $0x328] sm:$0xff]
  %v628 = vld [vmem:[%s3 + $0x330] sm:$0xff]
  %v629 = vld [vmem:[%s3 + $0x338] sm:$0xff]
  %v630 = vld [vmem:[%s3 + $0x340] sm:$0xff]
  %v631 = vld [vmem:[%s3 + $0x348] sm:$0xff]
  %v632 = vld [vmem:[%s3 + $0x350] sm:$0xff]
  %v633 = vld [vmem:[%s3 + $0x358] sm:$0xff]
  %v634 = vld [vmem:[%s3 + $0x360] sm:$0xff]
  %v635 = vld [vmem:[%s3 + $0x368] sm:$0xff]
  %v636 = vld [vmem:[%s3 + $0x370] sm:$0xff]
  %v637 = vld [vmem:[%s3 + $0x378] sm:$0xff]
  %v638 = vld [vmem:[%s3 + $0x380] sm:$0xff]
  %v639 = vld [vmem:[%s3 + $0x388] sm:$0xff]
  %v640 = vld [vmem:[%s3 + $0x390] sm:$0xff]
  %v641 = vld [vmem:[%s3 + $0x398] sm:$0xff]
  %v642 = vld [vmem:[%s3 + $0x3a0] sm:$0xff]
  %v643 = vld [vmem:[%s3 + $0x3a8] sm:$0xff]
  %v644 = vld [vmem:[%s3 + $0x3b0] sm:$0xff]
  %v645 = vld [vmem:[%s3 + $0x3b8] sm:$0xff]
  %v646 = vld [vmem:[%s3 + $0x3c0] sm:$0xff]
  %v647 = vld [vmem:[%s3 + $0x3c8] sm:$0xff]
  %v648 = vld [vmem:[%s3 + $0x3d0] sm:$0xff]
  %v649 = vld [vmem:[%s3 + $0x3d8] sm:$0xff]
  %v650 = vld [vmem:[%s3 + $0x3e0] sm:$0xff]
  %v651 = vld [vmem:[%s3 + $0x3e8] sm:$0xff]
  %v652 = vld [vmem:[%s3 + $0x3f0] sm:$0xff]
  %v653 = vld [vmem:[%s3 + $0x3f8] sm:$0xff]
  %v782 = vunpack.c.l.b16 %v526
  %v783 = vunpack.c.h.b16 %v526
  %v784 = vunpack.c.l.b16 %v527
  %v785 = vunpack.c.h.b16 %v527
  %v786 = vunpack.c.l.b16 %v528
  %v787 = vunpack.c.h.b16 %v528
  %v788 = vunpack.c.l.b16 %v529
  %v789 = vunpack.c.h.b16 %v529
  %v790 = vunpack.c.l.b16 %v530
  %v791 = vunpack.c.h.b16 %v530
  %v792 = vunpack.c.l.b16 %v531
  %v793 = vunpack.c.h.b16 %v531
  %v794 = vunpack.c.l.b16 %v532
  %v795 = vunpack.c.h.b16 %v532
  %v796 = vunpack.c.l.b16 %v533
  %v797 = vunpack.c.h.b16 %v533
  %v798 = vunpack.c.l.b16 %v534
  %v799 = vunpack.c.h.b16 %v534
  %v800 = vunpack.c.l.b16 %v535
  %v801 = vunpack.c.h.b16 %v535
  %v802 = vunpack.c.l.b16 %v536
  %v803 = vunpack.c.h.b16 %v536
  %v804 = vunpack.c.l.b16 %v537
  %v805 = vunpack.c.h.b16 %v537
  %v806 = vunpack.c.l.b16 %v538
  %v807 = vunpack.c.h.b16 %v538
  %v808 = vunpack.c.l.b16 %v539
  %v809 = vunpack.c.h.b16 %v539
  %v810 = vunpack.c.l.b16 %v540
  %v811 = vunpack.c.h.b16 %v540
  %v812 = vunpack.c.l.b16 %v541
  %v813 = vunpack.c.h.b16 %v541
  %v814 = vunpack.c.l.b16 %v542
  %v815 = vunpack.c.h.b16 %v542
  %v816 = vunpack.c.l.b16 %v543
  %v817 = vunpack.c.h.b16 %v543
  %v818 = vunpack.c.l.b16 %v544
  %v819 = vunpack.c.h.b16 %v544
  %v820 = vunpack.c.l.b16 %v545
  %v821 = vunpack.c.h.b16 %v545
  %v822 = vunpack.c.l.b16 %v546
  %v823 = vunpack.c.h.b16 %v546
  %v824 = vunpack.c.l.b16 %v547
  %v825 = vunpack.c.h.b16 %v547
  %v826 = vunpack.c.l.b16 %v548
  %v827 = vunpack.c.h.b16 %v548
  %v828 = vunpack.c.l.b16 %v549
  %v829 = vunpack.c.h.b16 %v549
  %v830 = vunpack.c.l.b16 %v550
  %v831 = vunpack.c.h.b16 %v550
  %v832 = vunpack.c.l.b16 %v551
  %v833 = vunpack.c.h.b16 %v551
  %v834 = vunpack.c.l.b16 %v552
  %v835 = vunpack.c.h.b16 %v552
  %v836 = vunpack.c.l.b16 %v553
  %v837 = vunpack.c.h.b16 %v553
  %v838 = vunpack.c.l.b16 %v554
  %v839 = vunpack.c.h.b16 %v554
  %v840 = vunpack.c.l.b16 %v555
  %v841 = vunpack.c.h.b16 %v555
  %v842 = vunpack.c.l.b16 %v556
  %v843 = vunpack.c.h.b16 %v556
  %v844 = vunpack.c.l.b16 %v557
  %v845 = vunpack.c.h.b16 %v557
  %v846 = vunpack.c.l.b16 %v558
  %v847 = vunpack.c.h.b16 %v558
  %v848 = vunpack.c.l.b16 %v559
  %v849 = vunpack.c.h.b16 %v559
  %v850 = vunpack.c.l.b16 %v560
  %v851 = vunpack.c.h.b16 %v560
  %v852 = vunpack.c.l.b16 %v561
  %v853 = vunpack.c.h.b16 %v561
  %v854 = vunpack.c.l.b16 %v562
  %v855 = vunpack.c.h.b16 %v562
  %v856 = vunpack.c.l.b16 %v563
  %v857 = vunpack.c.h.b16 %v563
  %v858 = vunpack.c.l.b16 %v564
  %v859 = vunpack.c.h.b16 %v564
  %v860 = vunpack.c.l.b16 %v565
  %v861 = vunpack.c.h.b16 %v565
  %v862 = vunpack.c.l.b16 %v566
  %v863 = vunpack.c.h.b16 %v566
  %v864 = vunpack.c.l.b16 %v567
  %v865 = vunpack.c.h.b16 %v567
  %v866 = vunpack.c.l.b16 %v568
  %v867 = vunpack.c.h.b16 %v568
  %v868 = vunpack.c.l.b16 %v569
  %v869 = vunpack.c.h.b16 %v569
  %v870 = vunpack.c.l.b16 %v570
  %v871 = vunpack.c.h.b16 %v570
  %v872 = vunpack.c.l.b16 %v571
  %v873 = vunpack.c.h.b16 %v571
  %v874 = vunpack.c.l.b16 %v572
  %v875 = vunpack.c.h.b16 %v572
  %v876 = vunpack.c.l.b16 %v573
  %v877 = vunpack.c.h.b16 %v573
  %v878 = vunpack.c.l.b16 %v574
  %v879 = vunpack.c.h.b16 %v574
  %v880 = vunpack.c.l.b16 %v575
  %v881 = vunpack.c.h.b16 %v575
  %v882 = vunpack.c.l.b16 %v576
  %v883 = vunpack.c.h.b16 %v576
  %v884 = vunpack.c.l.b16 %v577
  %v885 = vunpack.c.h.b16 %v577
  %v886 = vunpack.c.l.b16 %v578
  %v887 = vunpack.c.h.b16 %v578
  %v888 = vunpack.c.l.b16 %v579
  %v889 = vunpack.c.h.b16 %v579
  %v890 = vunpack.c.l.b16 %v580
  %v891 = vunpack.c.h.b16 %v580
  %v892 = vunpack.c.l.b16 %v581
  %v893 = vunpack.c.h.b16 %v581
  %v894 = vunpack.c.l.b16 %v582
  %v895 = vunpack.c.h.b16 %v582
  %v896 = vunpack.c.l.b16 %v583
  %v897 = vunpack.c.h.b16 %v583
  %v898 = vunpack.c.l.b16 %v584
  %v899 = vunpack.c.h.b16 %v584
  %v900 = vunpack.c.l.b16 %v585
  %v901 = vunpack.c.h.b16 %v585
  %v902 = vunpack.c.l.b16 %v586
  %v903 = vunpack.c.h.b16 %v586
  %v904 = vunpack.c.l.b16 %v587
  %v905 = vunpack.c.h.b16 %v587
  %v906 = vunpack.c.l.b16 %v588
  %v907 = vunpack.c.h.b16 %v588
  %v908 = vunpack.c.l.b16 %v589
  %v909 = vunpack.c.h.b16 %v589
  %v910 = vunpack.c.l.b16 %v590
  %v911 = vunpack.c.h.b16 %v590
  %v912 = vunpack.c.l.b16 %v591
  %v913 = vunpack.c.h.b16 %v591
  %v914 = vunpack.c.l.b16 %v592
  %v915 = vunpack.c.h.b16 %v592
  %v916 = vunpack.c.l.b16 %v593
  %v917 = vunpack.c.h.b16 %v593
  %v918 = vunpack.c.l.b16 %v594
  %v919 = vunpack.c.h.b16 %v594
  %v920 = vunpack.c.l.b16 %v595
  %v921 = vunpack.c.h.b16 %v595
  %v922 = vunpack.c.l.b16 %v596
  %v923 = vunpack.c.h.b16 %v596
  %v924 = vunpack.c.l.b16 %v597
  %v925 = vunpack.c.h.b16 %v597
  %v926 = vunpack.c.l.b16 %v598
  %v927 = vunpack.c.h.b16 %v598
  %v928 = vunpack.c.l.b16 %v599
  %v929 = vunpack.c.h.b16 %v599
  %v930 = vunpack.c.l.b16 %v600
  %v931 = vunpack.c.h.b16 %v600
  %v932 = vunpack.c.l.b16 %v601
  %v933 = vunpack.c.h.b16 %v601
  %v934 = vunpack.c.l.b16 %v602
  %v935 = vunpack.c.h.b16 %v602
  %v936 = vunpack.c.l.b16 %v603
  %v937 = vunpack.c.h.b16 %v603
  %v938 = vunpack.c.l.b16 %v604
  %v939 = vunpack.c.h.b16 %v604
  %v940 = vunpack.c.l.b16 %v605
  %v941 = vunpack.c.h.b16 %v605
  %v942 = vunpack.c.l.b16 %v606
  %v943 = vunpack.c.h.b16 %v606
  %v944 = vunpack.c.l.b16 %v607
  %v945 = vunpack.c.h.b16 %v607
  %v946 = vunpack.c.l.b16 %v608
  %v947 = vunpack.c.h.b16 %v608
  %v948 = vunpack.c.l.b16 %v609
  %v949 = vunpack.c.h.b16 %v609
  %v950 = vunpack.c.l.b16 %v610
  %v951 = vunpack.c.h.b16 %v610
  %v952 = vunpack.c.l.b16 %v611
  %v953 = vunpack.c.h.b16 %v611
  %v954 = vunpack.c.l.b16 %v612
  %v955 = vunpack.c.h.b16 %v612
  %v956 = vunpack.c.l.b16 %v613
  %v957 = vunpack.c.h.b16 %v613
  %v958 = vunpack.c.l.b16 %v614
  %v959 = vunpack.c.h.b16 %v614
  %v960 = vunpack.c.l.b16 %v615
  %v961 = vunpack.c.h.b16 %v615
  %v962 = vunpack.c.l.b16 %v616
  %v963 = vunpack.c.h.b16 %v616
  %v964 = vunpack.c.l.b16 %v617
  %v965 = vunpack.c.h.b16 %v617
  %v966 = vunpack.c.l.b16 %v618
  %v967 = vunpack.c.h.b16 %v618
  %v968 = vunpack.c.l.b16 %v619
  %v969 = vunpack.c.h.b16 %v619
  %v970 = vunpack.c.l.b16 %v620
  %v971 = vunpack.c.h.b16 %v620
  %v972 = vunpack.c.l.b16 %v621
  %v973 = vunpack.c.h.b16 %v621
  %v974 = vunpack.c.l.b16 %v622
  %v975 = vunpack.c.h.b16 %v622
  %v976 = vunpack.c.l.b16 %v623
  %v977 = vunpack.c.h.b16 %v623
  %v978 = vunpack.c.l.b16 %v624
  %v979 = vunpack.c.h.b16 %v624
  %v980 = vunpack.c.l.b16 %v625
  %v981 = vunpack.c.h.b16 %v625
  %v982 = vunpack.c.l.b16 %v626
  %v983 = vunpack.c.h.b16 %v626
  %v984 = vunpack.c.l.b16 %v627
  %v985 = vunpack.c.h.b16 %v627
  %v986 = vunpack.c.l.b16 %v628
  %v987 = vunpack.c.h.b16 %v628
  %v988 = vunpack.c.l.b16 %v629
  %v989 = vunpack.c.h.b16 %v629
  %v990 = vunpack.c.l.b16 %v630
  %v991 = vunpack.c.h.b16 %v630
  %v992 = vunpack.c.l.b16 %v631
  %v993 = vunpack.c.h.b16 %v631
  %v994 = vunpack.c.l.b16 %v632
  %v995 = vunpack.c.h.b16 %v632
  %v996 = vunpack.c.l.b16 %v633
  %v997 = vunpack.c.h.b16 %v633
  %v998 = vunpack.c.l.b16 %v634
  %v999 = vunpack.c.h.b16 %v634
  %v1000 = vunpack.c.l.b16 %v635
  %v1001 = vunpack.c.h.b16 %v635
  %v1002 = vunpack.c.l.b16 %v636
  %v1003 = vunpack.c.h.b16 %v636
  %v1004 = vunpack.c.l.b16 %v637
  %v1005 = vunpack.c.h.b16 %v637
  %v1006 = vunpack.c.l.b16 %v638
  %v1007 = vunpack.c.h.b16 %v638
  %v1008 = vunpack.c.l.b16 %v639
  %v1009 = vunpack.c.h.b16 %v639
  %v1010 = vunpack.c.l.b16 %v640
  %v1011 = vunpack.c.h.b16 %v640
  %v1012 = vunpack.c.l.b16 %v641
  %v1013 = vunpack.c.h.b16 %v641
  %v1014 = vunpack.c.l.b16 %v642
  %v1015 = vunpack.c.h.b16 %v642
  %v1016 = vunpack.c.l.b16 %v643
  %v1017 = vunpack.c.h.b16 %v643
  %v1018 = vunpack.c.l.b16 %v644
  %v1019 = vunpack.c.h.b16 %v644
  %v1020 = vunpack.c.l.b16 %v645
  %v1021 = vunpack.c.h.b16 %v645
  %v1022 = vunpack.c.l.b16 %v646
  %v1023 = vunpack.c.h.b16 %v646
  %v1024 = vunpack.c.l.b16 %v647
  %v1025 = vunpack.c.h.b16 %v647
  %v1026 = vunpack.c.l.b16 %v648
  %v1027 = vunpack.c.h.b16 %v648
  %v1028 = vunpack.c.l.b16 %v649
  %v1029 = vunpack.c.h.b16 %v649
  %v1030 = vunpack.c.l.b16 %v650
  %v1031 = vunpack.c.h.b16 %v650
  %v1032 = vunpack.c.l.b16 %v651
  %v1033 = vunpack.c.h.b16 %v651
  %v1034 = vunpack.c.l.b16 %v652
  %v1035 = vunpack.c.h.b16 %v652
  %v1036 = vunpack.c.l.b16 %v653
  %v1037 = vunpack.c.h.b16 %v653
  %v1038 = vpack.c.b16 %v790, %v782
  %v1039 = vpack.c.b16 %v791, %v783
  %v1040 = vpack.c.b16 %v792, %v784
  %v1041 = vpack.c.b16 %v793, %v785
  %v1042 = vpack.c.b16 %v794, %v786
  %v1043 = vpack.c.b16 %v795, %v787
  %v1044 = vpack.c.b16 %v796, %v788
  %v1045 = vpack.c.b16 %v797, %v789
  %v1046 = vpack.c.b16 %v806, %v798
  %v1047 = vpack.c.b16 %v807, %v799
  %v1048 = vpack.c.b16 %v808, %v800
  %v1049 = vpack.c.b16 %v809, %v801
  %v1050 = vpack.c.b16 %v810, %v802
  %v1051 = vpack.c.b16 %v811, %v803
  %v1052 = vpack.c.b16 %v812, %v804
  %v1053 = vpack.c.b16 %v813, %v805
  %v1054 = vpack.c.b16 %v822, %v814
  %v1055 = vpack.c.b16 %v823, %v815
  %v1056 = vpack.c.b16 %v824, %v816
  %v1057 = vpack.c.b16 %v825, %v817
  %v1058 = vpack.c.b16 %v826, %v818
  %v1059 = vpack.c.b16 %v827, %v819
  %v1060 = vpack.c.b16 %v828, %v820
  %v1061 = vpack.c.b16 %v829, %v821
  %v1062 = vpack.c.b16 %v838, %v830
  %v1063 = vpack.c.b16 %v839, %v831
  %v1064 = vpack.c.b16 %v840, %v832
  %v1065 = vpack.c.b16 %v841, %v833
  %v1066 = vpack.c.b16 %v842, %v834
  %v1067 = vpack.c.b16 %v843, %v835
  %v1068 = vpack.c.b16 %v844, %v836
  %v1069 = vpack.c.b16 %v845, %v837
  %v1070 = vpack.c.b16 %v854, %v846
  %v1071 = vpack.c.b16 %v855, %v847
  %v1072 = vpack.c.b16 %v856, %v848
  %v1073 = vpack.c.b16 %v857, %v849
  %v1074 = vpack.c.b16 %v858, %v850
  %v1075 = vpack.c.b16 %v859, %v851
  %v1076 = vpack.c.b16 %v860, %v852
  %v1077 = vpack.c.b16 %v861, %v853
  %v1078 = vpack.c.b16 %v870, %v862
  %v1079 = vpack.c.b16 %v871, %v863
  %v1080 = vpack.c.b16 %v872, %v864
  %v1081 = vpack.c.b16 %v873, %v865
  %v1082 = vpack.c.b16 %v874, %v866
  %v1083 = vpack.c.b16 %v875, %v867
  %v1084 = vpack.c.b16 %v876, %v868
  %v1085 = vpack.c.b16 %v877, %v869
  %v1086 = vpack.c.b16 %v886, %v878
  %v1087 = vpack.c.b16 %v887, %v879
  %v1088 = vpack.c.b16 %v888, %v880
  %v1089 = vpack.c.b16 %v889, %v881
  %v1090 = vpack.c.b16 %v890, %v882
  %v1091 = vpack.c.b16 %v891, %v883
  %v1092 = vpack.c.b16 %v892, %v884
  %v1093 = vpack.c.b16 %v893, %v885
  %v1094 = vpack.c.b16 %v902, %v894
  %v1095 = vpack.c.b16 %v903, %v895
  %v1096 = vpack.c.b16 %v904, %v896
  %v1097 = vpack.c.b16 %v905, %v897
  %v1098 = vpack.c.b16 %v906, %v898
  %v1099 = vpack.c.b16 %v907, %v899
  %v1100 = vpack.c.b16 %v908, %v900
  %v1101 = vpack.c.b16 %v909, %v901
  %v1102 = vpack.c.b16 %v918, %v910
  %v1103 = vpack.c.b16 %v919, %v911
  %v1104 = vpack.c.b16 %v920, %v912
  %v1105 = vpack.c.b16 %v921, %v913
  %v1106 = vpack.c.b16 %v922, %v914
  %v1107 = vpack.c.b16 %v923, %v915
  %v1108 = vpack.c.b16 %v924, %v916
  %v1109 = vpack.c.b16 %v925, %v917
  %v1110 = vpack.c.b16 %v934, %v926
  %v1111 = vpack.c.b16 %v935, %v927
  %v1112 = vpack.c.b16 %v936, %v928
  %v1113 = vpack.c.b16 %v937, %v929
  %v1114 = vpack.c.b16 %v938, %v930
  %v1115 = vpack.c.b16 %v939, %v931
  %v1116 = vpack.c.b16 %v940, %v932
  %v1117 = vpack.c.b16 %v941, %v933
  %v1118 = vpack.c.b16 %v950, %v942
  %v1119 = vpack.c.b16 %v951, %v943
  %v1120 = vpack.c.b16 %v952, %v944
  %v1121 = vpack.c.b16 %v953, %v945
  %v1122 = vpack.c.b16 %v954, %v946
  %v1123 = vpack.c.b16 %v955, %v947
  %v1124 = vpack.c.b16 %v956, %v948
  %v1125 = vpack.c.b16 %v957, %v949
  %v1126 = vpack.c.b16 %v966, %v958
  %v1127 = vpack.c.b16 %v967, %v959
  %v1128 = vpack.c.b16 %v968, %v960
  %v1129 = vpack.c.b16 %v969, %v961
  %v1130 = vpack.c.b16 %v970, %v962
  %v1131 = vpack.c.b16 %v971, %v963
  %v1132 = vpack.c.b16 %v972, %v964
  %v1133 = vpack.c.b16 %v973, %v965
  %v1134 = vpack.c.b16 %v982, %v974
  %v1135 = vpack.c.b16 %v983, %v975
  %v1136 = vpack.c.b16 %v984, %v976
  %v1137 = vpack.c.b16 %v985, %v977
  %v1138 = vpack.c.b16 %v986, %v978
  %v1139 = vpack.c.b16 %v987, %v979
  %v1140 = vpack.c.b16 %v988, %v980
  %v1141 = vpack.c.b16 %v989, %v981
  %v1142 = vpack.c.b16 %v998, %v990
  %v1143 = vpack.c.b16 %v999, %v991
  %v1144 = vpack.c.b16 %v1000, %v992
  %v1145 = vpack.c.b16 %v1001, %v993
  %v1146 = vpack.c.b16 %v1002, %v994
  %v1147 = vpack.c.b16 %v1003, %v995
  %v1148 = vpack.c.b16 %v1004, %v996
  %v1149 = vpack.c.b16 %v1005, %v997
  %v1150 = vpack.c.b16 %v1014, %v1006
  %v1151 = vpack.c.b16 %v1015, %v1007
  %v1152 = vpack.c.b16 %v1016, %v1008
  %v1153 = vpack.c.b16 %v1017, %v1009
  %v1154 = vpack.c.b16 %v1018, %v1010
  %v1155 = vpack.c.b16 %v1019, %v1011
  %v1156 = vpack.c.b16 %v1020, %v1012
  %v1157 = vpack.c.b16 %v1021, %v1013
  %v1158 = vpack.c.b16 %v1030, %v1022
  %v1159 = vpack.c.b16 %v1031, %v1023
  %v1160 = vpack.c.b16 %v1032, %v1024
  %v1161 = vpack.c.b16 %v1033, %v1025
  %v1162 = vpack.c.b16 %v1034, %v1026
  %v1163 = vpack.c.b16 %v1035, %v1027
  %v1164 = vpack.c.b16 %v1036, %v1028
  %v1165 = vpack.c.b16 %v1037, %v1029
  %1294 = vmatpush.bf16.msra.mxu0 %v1094
  %1295 = vmatpush.bf16.msra.mxu0 %v1086
  %1296 = vmatpush.bf16.msra.mxu0 %v1078
  %1297 = vmatpush.bf16.msra.mxu0 %v1070
  %1298 = vmatpush.bf16.msra.mxu0 %v1062
  %1299 = vmatpush.bf16.msra.mxu0 %v1054
  %1300 = vmatpush.bf16.msra.mxu0 %v1046
  %1301 = vmatpush.bf16.msra.mxu0 %v1038
  %1302 = vmatmul.bf16.gmra.mxu0 %v524
  %v1303 = vpop.f32.mrf.mxu0
  %v1304 = vadd.f32 0.0, %v1303
  %v1305 = vpop.f32.mrf.mxu0
  %1306 = vdwg.mxu0
  %1307 = vmatpush.bf16.msra.mxu0 %v1158
  %1308 = vmatpush.bf16.msra.mxu0 %v1150
  %1309 = vmatpush.bf16.msra.mxu0 %v1142
  %1310 = vmatpush.bf16.msra.mxu0 %v1134
  %1311 = vmatpush.bf16.msra.mxu0 %v1126
  %1312 = vmatpush.bf16.msra.mxu0 %v1118
  %1313 = vmatpush.bf16.msra.mxu0 %v1110
  %1314 = vmatpush.bf16.msra.mxu0 %v1102
  %1315 = vmatmul.bf16.gmra.mxu0 %v525
  %v1316 = vpop.f32.mrf.mxu0
  %v1317 = vadd.f32 %v1304, %v1316
  %v1318 = vpop.f32.mrf.mxu0
  %1319 = vdwg.mxu0
  %1320 = vmatpush.bf16.msra.mxu0 %v1095
  %1321 = vmatpush.bf16.msra.mxu0 %v1087
  %1322 = vmatpush.bf16.msra.mxu0 %v1079
  %1323 = vmatpush.bf16.msra.mxu0 %v1071
  %1324 = vmatpush.bf16.msra.mxu0 %v1063
  %1325 = vmatpush.bf16.msra.mxu0 %v1055
  %1326 = vmatpush.bf16.msra.mxu0 %v1047
  %1327 = vmatpush.bf16.msra.mxu0 %v1039
  %1328 = vmatmul.bf16.gmra.mxu0 %v524
  %v1329 = vpop.f32.mrf.mxu0
  %v1330 = vadd.f32 0.0, %v1329
  %v1331 = vpop.f32.mrf.mxu0
  %1332 = vdwg.mxu0
  %1333 = vmatpush.bf16.msra.mxu0 %v1159
  %1334 = vmatpush.bf16.msra.mxu0 %v1151
  %1335 = vmatpush.bf16.msra.mxu0 %v1143
  %1336 = vmatpush.bf16.msra.mxu0 %v1135
  %1337 = vmatpush.bf16.msra.mxu0 %v1127
  %1338 = vmatpush.bf16.msra.mxu0 %v1119
  %1339 = vmatpush.bf16.msra.mxu0 %v1111
  %1340 = vmatpush.bf16.msra.mxu0 %v1103
  %1341 = vmatmul.bf16.gmra.mxu0 %v525
  %v1342 = vpop.f32.mrf.mxu0
  %v1343 = vadd.f32 %v1330, %v1342
  %v1344 = vpop.f32.mrf.mxu0
  %1345 = vdwg.mxu0
  %1346 = vmatpush.bf16.msra.mxu0 %v1096
  %1347 = vmatpush.bf16.msra.mxu0 %v1088
  %1348 = vmatpush.bf16.msra.mxu0 %v1080
  %1349 = vmatpush.bf16.msra.mxu0 %v1072
  %1350 = vmatpush.bf16.msra.mxu0 %v1064
  %1351 = vmatpush.bf16.msra.mxu0 %v1056
  %1352 = vmatpush.bf16.msra.mxu0 %v1048
  %1353 = vmatpush.bf16.msra.mxu0 %v1040
  %1354 = vmatmul.bf16.gmra.mxu0 %v524
  %v1355 = vpop.f32.mrf.mxu0
  %v1356 = vadd.f32 0.0, %v1355
  %v1357 = vpop.f32.mrf.mxu0
  %1358 = vdwg.mxu0
  %1359 = vmatpush.bf16.msra.mxu0 %v1160
  %1360 = vmatpush.bf16.msra.mxu0 %v1152
  %1361 = vmatpush.bf16.msra.mxu0 %v1144
  %1362 = vmatpush.bf16.msra.mxu0 %v1136
  %1363 = vmatpush.bf16.msra.mxu0 %v1128
  %1364 = vmatpush.bf16.msra.mxu0 %v1120
  %1365 = vmatpush.bf16.msra.mxu0 %v1112
  %1366 = vmatpush.bf16.msra.mxu0 %v1104
  %1367 = vmatmul.bf16.gmra.mxu0 %v525
  %v1368 = vpop.f32.mrf.mxu0
  %v1369 = vadd.f32 %v1356, %v1368
  %v1370 = vpop.f32.mrf.mxu0
  %1371 = vdwg.mxu0
  %1372 = vmatpush.bf16.msra.mxu0 %v1097
  %1373 = vmatpush.bf16.msra.mxu0 %v1089
  %1374 = vmatpush.bf16.msra.mxu0 %v1081
  %1375 = vmatpush.bf16.msra.mxu0 %v1073
  %1376 = vmatpush.bf16.msra.mxu0 %v1065
  %1377 = vmatpush.bf16.msra.mxu0 %v1057
  %1378 = vmatpush.bf16.msra.mxu0 %v1049
  %1379 = vmatpush.bf16.msra.mxu0 %v1041
  %1380 = vmatmul.bf16.gmra.mxu0 %v524
  %v1381 = vpop.f32.mrf.mxu0
  %v1382 = vadd.f32 0.0, %v1381
  %v1383 = vpop.f32.mrf.mxu0
  %1384 = vdwg.mxu0
  %1385 = vmatpush.bf16.msra.mxu0 %v1161
  %1386 = vmatpush.bf16.msra.mxu0 %v1153
  %1387 = vmatpush.bf16.msra.mxu0 %v1145
  %1388 = vmatpush.bf16.msra.mxu0 %v1137
  %1389 = vmatpush.bf16.msra.mxu0 %v1129
  %1390 = vmatpush.bf16.msra.mxu0 %v1121
  %1391 = vmatpush.bf16.msra.mxu0 %v1113
  %1392 = vmatpush.bf16.msra.mxu0 %v1105
  %1393 = vmatmul.bf16.gmra.mxu0 %v525
  %v1394 = vpop.f32.mrf.mxu0
  %v1395 = vadd.f32 %v1382, %v1394
  %v1396 = vpop.f32.mrf.mxu0
  %1397 = vdwg.mxu0
  %1398 = vmatpush.bf16.msra.mxu0 %v1098
  %1399 = vmatpush.bf16.msra.mxu0 %v1090
  %1400 = vmatpush.bf16.msra.mxu0 %v1082
  %1401 = vmatpush.bf16.msra.mxu0 %v1074
  %1402 = vmatpush.bf16.msra.mxu0 %v1066
  %1403 = vmatpush.bf16.msra.mxu0 %v1058
  %1404 = vmatpush.bf16.msra.mxu0 %v1050
  %1405 = vmatpush.bf16.msra.mxu0 %v1042
  %1406 = vmatmul.bf16.gmra.mxu0 %v524
  %v1407 = vpop.f32.mrf.mxu0
  %v1408 = vadd.f32 0.0, %v1407
  %v1409 = vpop.f32.mrf.mxu0
  %1410 = vdwg.mxu0
  %1411 = vmatpush.bf16.msra.mxu0 %v1162
  %1412 = vmatpush.bf16.msra.mxu0 %v1154
  %1413 = vmatpush.bf16.msra.mxu0 %v1146
  %1414 = vmatpush.bf16.msra.mxu0 %v1138
  %1415 = vmatpush.bf16.msra.mxu0 %v1130
  %1416 = vmatpush.bf16.msra.mxu0 %v1122
  %1417 = vmatpush.bf16.msra.mxu0 %v1114
  %1418 = vmatpush.bf16.msra.mxu0 %v1106
  %1419 = vmatmul.bf16.gmra.mxu0 %v525
  %v1420 = vpop.f32.mrf.mxu0
  %v1421 = vadd.f32 %v1408, %v1420
  %v1422 = vpop.f32.mrf.mxu0
  %1423 = vdwg.mxu0
  %1424 = vmatpush.bf16.msra.mxu0 %v1099
  %1425 = vmatpush.bf16.msra.mxu0 %v1091
  %1426 = vmatpush.bf16.msra.mxu0 %v1083
  %1427 = vmatpush.bf16.msra.mxu0 %v1075
  %1428 = vmatpush.bf16.msra.mxu0 %v1067
  %1429 = vmatpush.bf16.msra.mxu0 %v1059
  %1430 = vmatpush.bf16.msra.mxu0 %v1051
  %1431 = vmatpush.bf16.msra.mxu0 %v1043
  %1432 = vmatmul.bf16.gmra.mxu0 %v524
  %v1433 = vpop.f32.mrf.mxu0
  %v1434 = vadd.f32 0.0, %v1433
  %v1435 = vpop.f32.mrf.mxu0
  %1436 = vdwg.mxu0
  %1437 = vmatpush.bf16.msra.mxu0 %v1163
  %1438 = vmatpush.bf16.msra.mxu0 %v1155
  %1439 = vmatpush.bf16.msra.mxu0 %v1147
  %1440 = vmatpush.bf16.msra.mxu0 %v1139
  %1441 = vmatpush.bf16.msra.mxu0 %v1131
  %1442 = vmatpush.bf16.msra.mxu0 %v1123
  %1443 = vmatpush.bf16.msra.mxu0 %v1115
  %1444 = vmatpush.bf16.msra.mxu0 %v1107
  %1445 = vmatmul.bf16.gmra.mxu0 %v525
  %v1446 = vpop.f32.mrf.mxu0
  %v1447 = vadd.f32 %v1434, %v1446
  %v1448 = vpop.f32.mrf.mxu0
  %1449 = vdwg.mxu0
  %1450 = vmatpush.bf16.msra.mxu0 %v1100
  %1451 = vmatpush.bf16.msra.mxu0 %v1092
  %1452 = vmatpush.bf16.msra.mxu0 %v1084
  %1453 = vmatpush.bf16.msra.mxu0 %v1076
  %1454 = vmatpush.bf16.msra.mxu0 %v1068
  %1455 = vmatpush.bf16.msra.mxu0 %v1060
  %1456 = vmatpush.bf16.msra.mxu0 %v1052
  %1457 = vmatpush.bf16.msra.mxu0 %v1044
  %1458 = vmatmul.bf16.gmra.mxu0 %v524
  %v1459 = vpop.f32.mrf.mxu0
  %v1460 = vadd.f32 0.0, %v1459
  %v1461 = vpop.f32.mrf.mxu0
  %1462 = vdwg.mxu0
  %1463 = vmatpush.bf16.msra.mxu0 %v1164
  %1464 = vmatpush.bf16.msra.mxu0 %v1156
  %1465 = vmatpush.bf16.msra.mxu0 %v1148
  %1466 = vmatpush.bf16.msra.mxu0 %v1140
  %1467 = vmatpush.bf16.msra.mxu0 %v1132
  %1468 = vmatpush.bf16.msra.mxu0 %v1124
  %1469 = vmatpush.bf16.msra.mxu0 %v1116
  %1470 = vmatpush.bf16.msra.mxu0 %v1108
  %1471 = vmatmul.bf16.gmra.mxu0 %v525
  %v1472 = vpop.f32.mrf.mxu0
  %v1473 = vadd.f32 %v1460, %v1472
  %v1474 = vpop.f32.mrf.mxu0
  %1475 = vdwg.mxu0
  %1476 = vmatpush.bf16.msra.mxu0 %v1101
  %1477 = vmatpush.bf16.msra.mxu0 %v1093
  %1478 = vmatpush.bf16.msra.mxu0 %v1085
  %1479 = vmatpush.bf16.msra.mxu0 %v1077
  %1480 = vmatpush.bf16.msra.mxu0 %v1069
  %1481 = vmatpush.bf16.msra.mxu0 %v1061
  %1482 = vmatpush.bf16.msra.mxu0 %v1053
  %1483 = vmatpush.bf16.msra.mxu0 %v1045
  %1484 = vmatmul.bf16.gmra.mxu0 %v524
  %v1485 = vpop.f32.mrf.mxu0
  %v1486 = vadd.f32 0.0, %v1485
  %v1487 = vpop.f32.mrf.mxu0
  %1488 = vdwg.mxu0
  %1489 = vmatpush.bf16.msra.mxu0 %v1165
  %1490 = vmatpush.bf16.msra.mxu0 %v1157
  %1491 = vmatpush.bf16.msra.mxu0 %v1149
  %1492 = vmatpush.bf16.msra.mxu0 %v1141
  %1493 = vmatpush.bf16.msra.mxu0 %v1133
  %1494 = vmatpush.bf16.msra.mxu0 %v1125
  %1495 = vmatpush.bf16.msra.mxu0 %v1117
  %1496 = vmatpush.bf16.msra.mxu0 %v1109
  %1497 = vmatmul.bf16.gmra.mxu0 %v525
  %v1498 = vpop.f32.mrf.mxu0
  %v1499 = vadd.f32 %v1486, %v1498
  %v1500 = vpop.f32.mrf.mxu0
  %1501 = vdwg.mxu0
  %v1502 = vadd.f32 %v518, %v1317
  %v1503 = vadd.f32 %v519, %v1343
  %v1504 = vadd.f32 %v520, %v1369
  %v1505 = vadd.f32 %v521, %v1395
  %v1506 = vadd.f32 %v1421, %v440
  %v1507 = vadd.f32 %v1447, %v441
  %v1508 = vadd.f32 %v1473, %v442
  %v1509 = vadd.f32 %v1499, %v443
  %v1510 = vxor.u32 %v1506, 2147483648
  %v1511 = vmul.f32 %v1510, 1.442695
  %v1512 = vpow.pop %v1511
  %v1513 = vadd.f32 %v1512, 1.0
  %v1514 = vrcp.pop %v1513
  %v1515 = vmul.f32 %v1513, %v1514
  %v1516 = vsub.f32 1.0, %v1515
  %v1517 = vmul.f32 %v1514, %v1516
  %v1518 = vadd.f32 %v1514, %v1517
  %vm1519 = vweird.f32 %v1513
  %vm1520 = vweird.f32 %v1514
  %vm1521 = vmor %vm1519, %vm1520
  %v1522 = vsel %vm1521, %v1514, %v1518
  %v1523 = vand.u32 2147483647, %v1513
  %vm1524 = vcmp.eq.f32.partialorder %v1523, 8.507059e+37
  %v1525 = vand.u32 %v1513, 2147483648
  %v1526 = vor.u32 1.1754944e-38, %v1525
  %v1527 = vsel %vm1524, %v1526, %v1522
  %v1528 = vmul.f32 1.0, %v1527
  %v1529 = vxor.u32 %v1507, 2147483648
  %v1530 = vmul.f32 %v1529, 1.442695
  %v1531 = vpow.pop %v1530
  %v1532 = vadd.f32 %v1531, 1.0
  %v1533 = vrcp.pop %v1532
  %v1534 = vmul.f32 %v1532, %v1533
  %v1535 = vsub.f32 1.0, %v1534
  %v1536 = vmul.f32 %v1533, %v1535
  %v1537 = vadd.f32 %v1533, %v1536
  %vm1538 = vweird.f32 %v1532
  %vm1539 = vweird.f32 %v1533
  %vm1540 = vmor %vm1538, %vm1539
  %v1541 = vsel %vm1540, %v1533, %v1537
  %v1542 = vand.u32 2147483647, %v1532
  %vm1543 = vcmp.eq.f32.partialorder %v1542, 8.507059e+37
  %v1544 = vand.u32 %v1532, 2147483648
  %v1545 = vor.u32 1.1754944e-38, %v1544
  %v1546 = vsel %vm1543, %v1545, %v1541
  %v1547 = vmul.f32 1.0, %v1546
  %v1548 = vtanh.pop %v1508
  %v1549 = vxor.u32 %v1509, 2147483648
  %v1550 = vmul.f32 %v1549, 1.442695
  %v1551 = vpow.pop %v1550
  %v1552 = vadd.f32 %v1551, 1.0
  %v1553 = vrcp.pop %v1552
  %v1554 = vmul.f32 %v1552, %v1553
  %v1555 = vsub.f32 1.0, %v1554
  %v1556 = vmul.f32 %v1553, %v1555
  %v1557 = vadd.f32 %v1553, %v1556
  %vm1558 = vweird.f32 %v1552
  %vm1559 = vweird.f32 %v1553
  %vm1560 = vmor %vm1558, %vm1559
  %v1561 = vsel %vm1560, %v1553, %v1557
  %v1562 = vand.u32 2147483647, %v1552
  %vm1563 = vcmp.eq.f32.partialorder %v1562, 8.507059e+37
  %v1564 = vand.u32 %v1552, 2147483648
  %v1565 = vor.u32 1.1754944e-38, %v1564
  %v1566 = vsel %vm1563, %v1565, %v1561
  %v1567 = vmul.f32 1.0, %v1566
  %v1568 = vmul.f32 %v1547, 0.0
  %v1569 = vmul.f32 %v1528, %v1548
  %v1570 = vadd.f32 %v1568, %v1569
  %v1571 = vtanh.pop %v1570
  %v1572 = vmul.f32 %v1567, %v1571
  %1573 = vst [vmem:[#allocation3 + $0x8] sm:$0xff] %v1572
  %v1574 = vxor.u32 %v1502, 2147483648
  %v1575 = vmul.f32 %v1574, 1.442695
  %v1576 = vpow.pop %v1575
  %v1577 = vadd.f32 %v1576, 1.0
  %v1578 = vrcp.pop %v1577
  %v1579 = vmul.f32 %v1577, %v1578
  %v1580 = vsub.f32 1.0, %v1579
  %v1581 = vmul.f32 %v1578, %v1580
  %v1582 = vadd.f32 %v1578, %v1581
  %vm1583 = vweird.f32 %v1577
  %vm1584 = vweird.f32 %v1578
  %vm1585 = vmor %vm1583, %vm1584
  %v1586 = vsel %vm1585, %v1578, %v1582
  %v1587 = vand.u32 2147483647, %v1577
  %vm1588 = vcmp.eq.f32.partialorder %v1587, 8.507059e+37
  %v1589 = vand.u32 %v1577, 2147483648
  %v1590 = vor.u32 1.1754944e-38, %v1589
  %v1591 = vsel %vm1588, %v1590, %v1586
  %v1592 = vmul.f32 1.0, %v1591
  %v1593 = vxor.u32 %v1503, 2147483648
  %v1594 = vmul.f32 %v1593, 1.442695
  %v1595 = vpow.pop %v1594
  %v1596 = vadd.f32 %v1595, 1.0
  %v1597 = vrcp.pop %v1596
  %v1598 = vmul.f32 %v1596, %v1597
  %v1599 = vsub.f32 1.0, %v1598
  %v1600 = vmul.f32 %v1597, %v1599
  %v1601 = vadd.f32 %v1597, %v1600
  %vm1602 = vweird.f32 %v1596
  %vm1603 = vweird.f32 %v1597
  %vm1604 = vmor %vm1602, %vm1603
  %v1605 = vsel %vm1604, %v1597, %v1601
  %v1606 = vand.u32 2147483647, %v1596
  %vm1607 = vcmp.eq.f32.partialorder %v1606, 8.507059e+37
  %v1608 = vand.u32 %v1596, 2147483648
  %v1609 = vor.u32 1.1754944e-38, %v1608
  %v1610 = vsel %vm1607, %v1609, %v1605
  %v1611 = vmul.f32 1.0, %v1610
  %v1612 = vtanh.pop %v1504
  %v1613 = vxor.u32 %v1505, 2147483648
  %v1614 = vmul.f32 %v1613, 1.442695
  %v1615 = vpow.pop %v1614
  %v1616 = vadd.f32 %v1615, 1.0
  %v1617 = vrcp.pop %v1616
  %v1618 = vmul.f32 %v1616, %v1617
  %v1619 = vsub.f32 1.0, %v1618
  %v1620 = vmul.f32 %v1617, %v1619
  %v1621 = vadd.f32 %v1617, %v1620
  %vm1622 = vweird.f32 %v1616
  %vm1623 = vweird.f32 %v1617
  %vm1624 = vmor %vm1622, %vm1623
  %v1625 = vsel %vm1624, %v1617, %v1621
  %v1626 = vand.u32 2147483647, %v1616
  %vm1627 = vcmp.eq.f32.partialorder %v1626, 8.507059e+37
  %v1628 = vand.u32 %v1616, 2147483648
  %v1629 = vor.u32 1.1754944e-38, %v1628
  %v1630 = vsel %vm1627, %v1629, %v1625
  %v1631 = vmul.f32 1.0, %v1630
  %v1632 = vmul.f32 %v1611, %v514
  %v1633 = vmul.f32 %v1592, %v1612
  %v1634 = vadd.f32 %v1632, %v1633
  %v1635 = vtanh.pop %v1634
  %v1636 = vmul.f32 %v1631, %v1635
  %1637 = vst [vmem:[#allocation3] sm:$0xff] %v1636
  %v1638 = vld [vmem:[#allocation2 + $0x40] sm:$0xff]
  %v1639 = vld [vmem:[#allocation2 + $0x48] sm:$0xff]
  %v1640 = vld [vmem:[#allocation2 + $0x50] sm:$0xff]
  %v1641 = vld [vmem:[#allocation2 + $0x58] sm:$0xff]
  %v1642 = vld [vmem:[#allocation3] sm:$0xff]
  %v1643 = vld [vmem:[#allocation3 + $0x8] sm:$0xff]
  %v1644 = vpack.c.bf16 %v1642, %v1642
  %v1645 = vpack.c.bf16 %v1643, %v1643
  %v1646 = vld [vmem:[%s3] sm:$0xff]
  %v1647 = vld [vmem:[%s3 + $0x8] sm:$0xff]
  %v1648 = vld [vmem:[%s3 + $0x10] sm:$0xff]
  %v1649 = vld [vmem:[%s3 + $0x18] sm:$0xff]
  %v1650 = vld [vmem:[%s3 + $0x20] sm:$0xff]
  %v1651 = vld [vmem:[%s3 + $0x28] sm:$0xff]
  %v1652 = vld [vmem:[%s3 + $0x30] sm:$0xff]
  %v1653 = vld [vmem:[%s3 + $0x38] sm:$0xff]
  %v1654 = vld [vmem:[%s3 + $0x40] sm:$0xff]
  %v1655 = vld [vmem:[%s3 + $0x48] sm:$0xff]
  %v1656 = vld [vmem:[%s3 + $0x50] sm:$0xff]
  %v1657 = vld [vmem:[%s3 + $0x58] sm:$0xff]
  %v1658 = vld [vmem:[%s3 + $0x60] sm:$0xff]
  %v1659 = vld [vmem:[%s3 + $0x68] sm:$0xff]
  %v1660 = vld [vmem:[%s3 + $0x70] sm:$0xff]
  %v1661 = vld [vmem:[%s3 + $0x78] sm:$0xff]
  %v1662 = vld [vmem:[%s3 + $0x80] sm:$0xff]
  %v1663 = vld [vmem:[%s3 + $0x88] sm:$0xff]
  %v1664 = vld [vmem:[%s3 + $0x90] sm:$0xff]
  %v1665 = vld [vmem:[%s3 + $0x98] sm:$0xff]
  %v1666 = vld [vmem:[%s3 + $0xa0] sm:$0xff]
  %v1667 = vld [vmem:[%s3 + $0xa8] sm:$0xff]
  %v1668 = vld [vmem:[%s3 + $0xb0] sm:$0xff]
  %v1669 = vld [vmem:[%s3 + $0xb8] sm:$0xff]
  %v1670 = vld [vmem:[%s3 + $0xc0] sm:$0xff]
  %v1671 = vld [vmem:[%s3 + $0xc8] sm:$0xff]
  %v1672 = vld [vmem:[%s3 + $0xd0] sm:$0xff]
  %v1673 = vld [vmem:[%s3 + $0xd8] sm:$0xff]
  %v1674 = vld [vmem:[%s3 + $0xe0] sm:$0xff]
  %v1675 = vld [vmem:[%s3 + $0xe8] sm:$0xff]
  %v1676 = vld [vmem:[%s3 + $0xf0] sm:$0xff]
  %v1677 = vld [vmem:[%s3 + $0xf8] sm:$0xff]
  %v1678 = vld [vmem:[%s3 + $0x100] sm:$0xff]
  %v1679 = vld [vmem:[%s3 + $0x108] sm:$0xff]
  %v1680 = vld [vmem:[%s3 + $0x110] sm:$0xff]
  %v1681 = vld [vmem:[%s3 + $0x118] sm:$0xff]
  %v1682 = vld [vmem:[%s3 + $0x120] sm:$0xff]
  %v1683 = vld [vmem:[%s3 + $0x128] sm:$0xff]
  %v1684 = vld [vmem:[%s3 + $0x130] sm:$0xff]
  %v1685 = vld [vmem:[%s3 + $0x138] sm:$0xff]
  %v1686 = vld [vmem:[%s3 + $0x140] sm:$0xff]
  %v1687 = vld [vmem:[%s3 + $0x148] sm:$0xff]
  %v1688 = vld [vmem:[%s3 + $0x150] sm:$0xff]
  %v1689 = vld [vmem:[%s3 + $0x158] sm:$0xff]
  %v1690 = vld [vmem:[%s3 + $0x160] sm:$0xff]
  %v1691 = vld [vmem:[%s3 + $0x168] sm:$0xff]
  %v1692 = vld [vmem:[%s3 + $0x170] sm:$0xff]
  %v1693 = vld [vmem:[%s3 + $0x178] sm:$0xff]
  %v1694 = vld [vmem:[%s3 + $0x180] sm:$0xff]
  %v1695 = vld [vmem:[%s3 + $0x188] sm:$0xff]
  %v1696 = vld [vmem:[%s3 + $0x190] sm:$0xff]
  %v1697 = vld [vmem:[%s3 + $0x198] sm:$0xff]
  %v1698 = vld [vmem:[%s3 + $0x1a0] sm:$0xff]
  %v1699 = vld [vmem:[%s3 + $0x1a8] sm:$0xff]
  %v1700 = vld [vmem:[%s3 + $0x1b0] sm:$0xff]
  %v1701 = vld [vmem:[%s3 + $0x1b8] sm:$0xff]
  %v1702 = vld [vmem:[%s3 + $0x1c0] sm:$0xff]
  %v1703 = vld [vmem:[%s3 + $0x1c8] sm:$0xff]
  %v1704 = vld [vmem:[%s3 + $0x1d0] sm:$0xff]
  %v1705 = vld [vmem:[%s3 + $0x1d8] sm:$0xff]
  %v1706 = vld [vmem:[%s3 + $0x1e0] sm:$0xff]
  %v1707 = vld [vmem:[%s3 + $0x1e8] sm:$0xff]
  %v1708 = vld [vmem:[%s3 + $0x1f0] sm:$0xff]
  %v1709 = vld [vmem:[%s3 + $0x1f8] sm:$0xff]
  %v1710 = vld [vmem:[%s3 + $0x200] sm:$0xff]
  %v1711 = vld [vmem:[%s3 + $0x208] sm:$0xff]
  %v1712 = vld [vmem:[%s3 + $0x210] sm:$0xff]
  %v1713 = vld [vmem:[%s3 + $0x218] sm:$0xff]
  %v1714 = vld [vmem:[%s3 + $0x220] sm:$0xff]
  %v1715 = vld [vmem:[%s3 + $0x228] sm:$0xff]
  %v1716 = vld [vmem:[%s3 + $0x230] sm:$0xff]
  %v1717 = vld [vmem:[%s3 + $0x238] sm:$0xff]
  %v1718 = vld [vmem:[%s3 + $0x240] sm:$0xff]
  %v1719 = vld [vmem:[%s3 + $0x248] sm:$0xff]
  %v1720 = vld [vmem:[%s3 + $0x250] sm:$0xff]
  %v1721 = vld [vmem:[%s3 + $0x258] sm:$0xff]
  %v1722 = vld [vmem:[%s3 + $0x260] sm:$0xff]
  %v1723 = vld [vmem:[%s3 + $0x268] sm:$0xff]
  %v1724 = vld [vmem:[%s3 + $0x270] sm:$0xff]
  %v1725 = vld [vmem:[%s3 + $0x278] sm:$0xff]
  %v1726 = vld [vmem:[%s3 + $0x280] sm:$0xff]
  %v1727 = vld [vmem:[%s3 + $0x288] sm:$0xff]
  %v1728 = vld [vmem:[%s3 + $0x290] sm:$0xff]
  %v1729 = vld [vmem:[%s3 + $0x298] sm:$0xff]
  %v1730 = vld [vmem:[%s3 + $0x2a0] sm:$0xff]
  %v1731 = vld [vmem:[%s3 + $0x2a8] sm:$0xff]
  %v1732 = vld [vmem:[%s3 + $0x2b0] sm:$0xff]
  %v1733 = vld [vmem:[%s3 + $0x2b8] sm:$0xff]
  %v1734 = vld [vmem:[%s3 + $0x2c0] sm:$0xff]
  %v1735 = vld [vmem:[%s3 + $0x2c8] sm:$0xff]
  %v1736 = vld [vmem:[%s3 + $0x2d0] sm:$0xff]
  %v1737 = vld [vmem:[%s3 + $0x2d8] sm:$0xff]
  %v1738 = vld [vmem:[%s3 + $0x2e0] sm:$0xff]
  %v1739 = vld [vmem:[%s3 + $0x2e8] sm:$0xff]
  %v1740 = vld [vmem:[%s3 + $0x2f0] sm:$0xff]
  %v1741 = vld [vmem:[%s3 + $0x2f8] sm:$0xff]
  %v1742 = vld [vmem:[%s3 + $0x300] sm:$0xff]
  %v1743 = vld [vmem:[%s3 + $0x308] sm:$0xff]
  %v1744 = vld [vmem:[%s3 + $0x310] sm:$0xff]
  %v1745 = vld [vmem:[%s3 + $0x318] sm:$0xff]
  %v1746 = vld [vmem:[%s3 + $0x320] sm:$0xff]
  %v1747 = vld [vmem:[%s3 + $0x328] sm:$0xff]
  %v1748 = vld [vmem:[%s3 + $0x330] sm:$0xff]
  %v1749 = vld [vmem:[%s3 + $0x338] sm:$0xff]
  %v1750 = vld [vmem:[%s3 + $0x340] sm:$0xff]
  %v1751 = vld [vmem:[%s3 + $0x348] sm:$0xff]
  %v1752 = vld [vmem:[%s3 + $0x350] sm:$0xff]
  %v1753 = vld [vmem:[%s3 + $0x358] sm:$0xff]
  %v1754 = vld [vmem:[%s3 + $0x360] sm:$0xff]
  %v1755 = vld [vmem:[%s3 + $0x368] sm:$0xff]
  %v1756 = vld [vmem:[%s3 + $0x370] sm:$0xff]
  %v1757 = vld [vmem:[%s3 + $0x378] sm:$0xff]
  %v1758 = vld [vmem:[%s3 + $0x380] sm:$0xff]
  %v1759 = vld [vmem:[%s3 + $0x388] sm:$0xff]
  %v1760 = vld [vmem:[%s3 + $0x390] sm:$0xff]
  %v1761 = vld [vmem:[%s3 + $0x398] sm:$0xff]
  %v1762 = vld [vmem:[%s3 + $0x3a0] sm:$0xff]
  %v1763 = vld [vmem:[%s3 + $0x3a8] sm:$0xff]
  %v1764 = vld [vmem:[%s3 + $0x3b0] sm:$0xff]
  %v1765 = vld [vmem:[%s3 + $0x3b8] sm:$0xff]
  %v1766 = vld [vmem:[%s3 + $0x3c0] sm:$0xff]
  %v1767 = vld [vmem:[%s3 + $0x3c8] sm:$0xff]
  %v1768 = vld [vmem:[%s3 + $0x3d0] sm:$0xff]
  %v1769 = vld [vmem:[%s3 + $0x3d8] sm:$0xff]
  %v1770 = vld [vmem:[%s3 + $0x3e0] sm:$0xff]
  %v1771 = vld [vmem:[%s3 + $0x3e8] sm:$0xff]
  %v1772 = vld [vmem:[%s3 + $0x3f0] sm:$0xff]
  %v1773 = vld [vmem:[%s3 + $0x3f8] sm:$0xff]
  %v1902 = vunpack.c.l.b16 %v1646
  %v1903 = vunpack.c.h.b16 %v1646
  %v1904 = vunpack.c.l.b16 %v1647
  %v1905 = vunpack.c.h.b16 %v1647
  %v1906 = vunpack.c.l.b16 %v1648
  %v1907 = vunpack.c.h.b16 %v1648
  %v1908 = vunpack.c.l.b16 %v1649
  %v1909 = vunpack.c.h.b16 %v1649
  %v1910 = vunpack.c.l.b16 %v1650
  %v1911 = vunpack.c.h.b16 %v1650
  %v1912 = vunpack.c.l.b16 %v1651
  %v1913 = vunpack.c.h.b16 %v1651
  %v1914 = vunpack.c.l.b16 %v1652
  %v1915 = vunpack.c.h.b16 %v1652
  %v1916 = vunpack.c.l.b16 %v1653
  %v1917 = vunpack.c.h.b16 %v1653
  %v1918 = vunpack.c.l.b16 %v1654
  %v1919 = vunpack.c.h.b16 %v1654
  %v1920 = vunpack.c.l.b16 %v1655
  %v1921 = vunpack.c.h.b16 %v1655
  %v1922 = vunpack.c.l.b16 %v1656
  %v1923 = vunpack.c.h.b16 %v1656
  %v1924 = vunpack.c.l.b16 %v1657
  %v1925 = vunpack.c.h.b16 %v1657
  %v1926 = vunpack.c.l.b16 %v1658
  %v1927 = vunpack.c.h.b16 %v1658
  %v1928 = vunpack.c.l.b16 %v1659
  %v1929 = vunpack.c.h.b16 %v1659
  %v1930 = vunpack.c.l.b16 %v1660
  %v1931 = vunpack.c.h.b16 %v1660
  %v1932 = vunpack.c.l.b16 %v1661
  %v1933 = vunpack.c.h.b16 %v1661
  %v1934 = vunpack.c.l.b16 %v1662
  %v1935 = vunpack.c.h.b16 %v1662
  %v1936 = vunpack.c.l.b16 %v1663
  %v1937 = vunpack.c.h.b16 %v1663
  %v1938 = vunpack.c.l.b16 %v1664
  %v1939 = vunpack.c.h.b16 %v1664
  %v1940 = vunpack.c.l.b16 %v1665
  %v1941 = vunpack.c.h.b16 %v1665
  %v1942 = vunpack.c.l.b16 %v1666
  %v1943 = vunpack.c.h.b16 %v1666
  %v1944 = vunpack.c.l.b16 %v1667
  %v1945 = vunpack.c.h.b16 %v1667
  %v1946 = vunpack.c.l.b16 %v1668
  %v1947 = vunpack.c.h.b16 %v1668
  %v1948 = vunpack.c.l.b16 %v1669
  %v1949 = vunpack.c.h.b16 %v1669
  %v1950 = vunpack.c.l.b16 %v1670
  %v1951 = vunpack.c.h.b16 %v1670
  %v1952 = vunpack.c.l.b16 %v1671
  %v1953 = vunpack.c.h.b16 %v1671
  %v1954 = vunpack.c.l.b16 %v1672
  %v1955 = vunpack.c.h.b16 %v1672
  %v1956 = vunpack.c.l.b16 %v1673
  %v1957 = vunpack.c.h.b16 %v1673
  %v1958 = vunpack.c.l.b16 %v1674
  %v1959 = vunpack.c.h.b16 %v1674
  %v1960 = vunpack.c.l.b16 %v1675
  %v1961 = vunpack.c.h.b16 %v1675
  %v1962 = vunpack.c.l.b16 %v1676
  %v1963 = vunpack.c.h.b16 %v1676
  %v1964 = vunpack.c.l.b16 %v1677
  %v1965 = vunpack.c.h.b16 %v1677
  %v1966 = vunpack.c.l.b16 %v1678
  %v1967 = vunpack.c.h.b16 %v1678
  %v1968 = vunpack.c.l.b16 %v1679
  %v1969 = vunpack.c.h.b16 %v1679
  %v1970 = vunpack.c.l.b16 %v1680
  %v1971 = vunpack.c.h.b16 %v1680
  %v1972 = vunpack.c.l.b16 %v1681
  %v1973 = vunpack.c.h.b16 %v1681
  %v1974 = vunpack.c.l.b16 %v1682
  %v1975 = vunpack.c.h.b16 %v1682
  %v1976 = vunpack.c.l.b16 %v1683
  %v1977 = vunpack.c.h.b16 %v1683
  %v1978 = vunpack.c.l.b16 %v1684
  %v1979 = vunpack.c.h.b16 %v1684
  %v1980 = vunpack.c.l.b16 %v1685
  %v1981 = vunpack.c.h.b16 %v1685
  %v1982 = vunpack.c.l.b16 %v1686
  %v1983 = vunpack.c.h.b16 %v1686
  %v1984 = vunpack.c.l.b16 %v1687
  %v1985 = vunpack.c.h.b16 %v1687
  %v1986 = vunpack.c.l.b16 %v1688
  %v1987 = vunpack.c.h.b16 %v1688
  %v1988 = vunpack.c.l.b16 %v1689
  %v1989 = vunpack.c.h.b16 %v1689
  %v1990 = vunpack.c.l.b16 %v1690
  %v1991 = vunpack.c.h.b16 %v1690
  %v1992 = vunpack.c.l.b16 %v1691
  %v1993 = vunpack.c.h.b16 %v1691
  %v1994 = vunpack.c.l.b16 %v1692
  %v1995 = vunpack.c.h.b16 %v1692
  %v1996 = vunpack.c.l.b16 %v1693
  %v1997 = vunpack.c.h.b16 %v1693
  %v1998 = vunpack.c.l.b16 %v1694
  %v1999 = vunpack.c.h.b16 %v1694
  %v2000 = vunpack.c.l.b16 %v1695
  %v2001 = vunpack.c.h.b16 %v1695
  %v2002 = vunpack.c.l.b16 %v1696
  %v2003 = vunpack.c.h.b16 %v1696
  %v2004 = vunpack.c.l.b16 %v1697
  %v2005 = vunpack.c.h.b16 %v1697
  %v2006 = vunpack.c.l.b16 %v1698
  %v2007 = vunpack.c.h.b16 %v1698
  %v2008 = vunpack.c.l.b16 %v1699
  %v2009 = vunpack.c.h.b16 %v1699
  %v2010 = vunpack.c.l.b16 %v1700
  %v2011 = vunpack.c.h.b16 %v1700
  %v2012 = vunpack.c.l.b16 %v1701
  %v2013 = vunpack.c.h.b16 %v1701
  %v2014 = vunpack.c.l.b16 %v1702
  %v2015 = vunpack.c.h.b16 %v1702
  %v2016 = vunpack.c.l.b16 %v1703
  %v2017 = vunpack.c.h.b16 %v1703
  %v2018 = vunpack.c.l.b16 %v1704
  %v2019 = vunpack.c.h.b16 %v1704
  %v2020 = vunpack.c.l.b16 %v1705
  %v2021 = vunpack.c.h.b16 %v1705
  %v2022 = vunpack.c.l.b16 %v1706
  %v2023 = vunpack.c.h.b16 %v1706
  %v2024 = vunpack.c.l.b16 %v1707
  %v2025 = vunpack.c.h.b16 %v1707
  %v2026 = vunpack.c.l.b16 %v1708
  %v2027 = vunpack.c.h.b16 %v1708
  %v2028 = vunpack.c.l.b16 %v1709
  %v2029 = vunpack.c.h.b16 %v1709
  %v2030 = vunpack.c.l.b16 %v1710
  %v2031 = vunpack.c.h.b16 %v1710
  %v2032 = vunpack.c.l.b16 %v1711
  %v2033 = vunpack.c.h.b16 %v1711
  %v2034 = vunpack.c.l.b16 %v1712
  %v2035 = vunpack.c.h.b16 %v1712
  %v2036 = vunpack.c.l.b16 %v1713
  %v2037 = vunpack.c.h.b16 %v1713
  %v2038 = vunpack.c.l.b16 %v1714
  %v2039 = vunpack.c.h.b16 %v1714
  %v2040 = vunpack.c.l.b16 %v1715
  %v2041 = vunpack.c.h.b16 %v1715
  %v2042 = vunpack.c.l.b16 %v1716
  %v2043 = vunpack.c.h.b16 %v1716
  %v2044 = vunpack.c.l.b16 %v1717
  %v2045 = vunpack.c.h.b16 %v1717
  %v2046 = vunpack.c.l.b16 %v1718
  %v2047 = vunpack.c.h.b16 %v1718
  %v2048 = vunpack.c.l.b16 %v1719
  %v2049 = vunpack.c.h.b16 %v1719
  %v2050 = vunpack.c.l.b16 %v1720
  %v2051 = vunpack.c.h.b16 %v1720
  %v2052 = vunpack.c.l.b16 %v1721
  %v2053 = vunpack.c.h.b16 %v1721
  %v2054 = vunpack.c.l.b16 %v1722
  %v2055 = vunpack.c.h.b16 %v1722
  %v2056 = vunpack.c.l.b16 %v1723
  %v2057 = vunpack.c.h.b16 %v1723
  %v2058 = vunpack.c.l.b16 %v1724
  %v2059 = vunpack.c.h.b16 %v1724
  %v2060 = vunpack.c.l.b16 %v1725
  %v2061 = vunpack.c.h.b16 %v1725
  %v2062 = vunpack.c.l.b16 %v1726
  %v2063 = vunpack.c.h.b16 %v1726
  %v2064 = vunpack.c.l.b16 %v1727
  %v2065 = vunpack.c.h.b16 %v1727
  %v2066 = vunpack.c.l.b16 %v1728
  %v2067 = vunpack.c.h.b16 %v1728
  %v2068 = vunpack.c.l.b16 %v1729
  %v2069 = vunpack.c.h.b16 %v1729
  %v2070 = vunpack.c.l.b16 %v1730
  %v2071 = vunpack.c.h.b16 %v1730
  %v2072 = vunpack.c.l.b16 %v1731
  %v2073 = vunpack.c.h.b16 %v1731
  %v2074 = vunpack.c.l.b16 %v1732
  %v2075 = vunpack.c.h.b16 %v1732
  %v2076 = vunpack.c.l.b16 %v1733
  %v2077 = vunpack.c.h.b16 %v1733
  %v2078 = vunpack.c.l.b16 %v1734
  %v2079 = vunpack.c.h.b16 %v1734
  %v2080 = vunpack.c.l.b16 %v1735
  %v2081 = vunpack.c.h.b16 %v1735
  %v2082 = vunpack.c.l.b16 %v1736
  %v2083 = vunpack.c.h.b16 %v1736
  %v2084 = vunpack.c.l.b16 %v1737
  %v2085 = vunpack.c.h.b16 %v1737
  %v2086 = vunpack.c.l.b16 %v1738
  %v2087 = vunpack.c.h.b16 %v1738
  %v2088 = vunpack.c.l.b16 %v1739
  %v2089 = vunpack.c.h.b16 %v1739
  %v2090 = vunpack.c.l.b16 %v1740
  %v2091 = vunpack.c.h.b16 %v1740
  %v2092 = vunpack.c.l.b16 %v1741
  %v2093 = vunpack.c.h.b16 %v1741
  %v2094 = vunpack.c.l.b16 %v1742
  %v2095 = vunpack.c.h.b16 %v1742
  %v2096 = vunpack.c.l.b16 %v1743
  %v2097 = vunpack.c.h.b16 %v1743
  %v2098 = vunpack.c.l.b16 %v1744
  %v2099 = vunpack.c.h.b16 %v1744
  %v2100 = vunpack.c.l.b16 %v1745
  %v2101 = vunpack.c.h.b16 %v1745
  %v2102 = vunpack.c.l.b16 %v1746
  %v2103 = vunpack.c.h.b16 %v1746
  %v2104 = vunpack.c.l.b16 %v1747
  %v2105 = vunpack.c.h.b16 %v1747
  %v2106 = vunpack.c.l.b16 %v1748
  %v2107 = vunpack.c.h.b16 %v1748
  %v2108 = vunpack.c.l.b16 %v1749
  %v2109 = vunpack.c.h.b16 %v1749
  %v2110 = vunpack.c.l.b16 %v1750
  %v2111 = vunpack.c.h.b16 %v1750
  %v2112 = vunpack.c.l.b16 %v1751
  %v2113 = vunpack.c.h.b16 %v1751
  %v2114 = vunpack.c.l.b16 %v1752
  %v2115 = vunpack.c.h.b16 %v1752
  %v2116 = vunpack.c.l.b16 %v1753
  %v2117 = vunpack.c.h.b16 %v1753
  %v2118 = vunpack.c.l.b16 %v1754
  %v2119 = vunpack.c.h.b16 %v1754
  %v2120 = vunpack.c.l.b16 %v1755
  %v2121 = vunpack.c.h.b16 %v1755
  %v2122 = vunpack.c.l.b16 %v1756
  %v2123 = vunpack.c.h.b16 %v1756
  %v2124 = vunpack.c.l.b16 %v1757
  %v2125 = vunpack.c.h.b16 %v1757
  %v2126 = vunpack.c.l.b16 %v1758
  %v2127 = vunpack.c.h.b16 %v1758
  %v2128 = vunpack.c.l.b16 %v1759
  %v2129 = vunpack.c.h.b16 %v1759
  %v2130 = vunpack.c.l.b16 %v1760
  %v2131 = vunpack.c.h.b16 %v1760
  %v2132 = vunpack.c.l.b16 %v1761
  %v2133 = vunpack.c.h.b16 %v1761
  %v2134 = vunpack.c.l.b16 %v1762
  %v2135 = vunpack.c.h.b16 %v1762
  %v2136 = vunpack.c.l.b16 %v1763
  %v2137 = vunpack.c.h.b16 %v1763
  %v2138 = vunpack.c.l.b16 %v1764
  %v2139 = vunpack.c.h.b16 %v1764
  %v2140 = vunpack.c.l.b16 %v1765
  %v2141 = vunpack.c.h.b16 %v1765
  %v2142 = vunpack.c.l.b16 %v1766
  %v2143 = vunpack.c.h.b16 %v1766
  %v2144 = vunpack.c.l.b16 %v1767
  %v2145 = vunpack.c.h.b16 %v1767
  %v2146 = vunpack.c.l.b16 %v1768
  %v2147 = vunpack.c.h.b16 %v1768
  %v2148 = vunpack.c.l.b16 %v1769
  %v2149 = vunpack.c.h.b16 %v1769
  %v2150 = vunpack.c.l.b16 %v1770
  %v2151 = vunpack.c.h.b16 %v1770
  %v2152 = vunpack.c.l.b16 %v1771
  %v2153 = vunpack.c.h.b16 %v1771
  %v2154 = vunpack.c.l.b16 %v1772
  %v2155 = vunpack.c.h.b16 %v1772
  %v2156 = vunpack.c.l.b16 %v1773
  %v2157 = vunpack.c.h.b16 %v1773
  %v2158 = vpack.c.b16 %v1910, %v1902
  %v2159 = vpack.c.b16 %v1911, %v1903
  %v2160 = vpack.c.b16 %v1912, %v1904
  %v2161 = vpack.c.b16 %v1913, %v1905
  %v2162 = vpack.c.b16 %v1914, %v1906
  %v2163 = vpack.c.b16 %v1915, %v1907
  %v2164 = vpack.c.b16 %v1916, %v1908
  %v2165 = vpack.c.b16 %v1917, %v1909
  %v2166 = vpack.c.b16 %v1926, %v1918
  %v2167 = vpack.c.b16 %v1927, %v1919
  %v2168 = vpack.c.b16 %v1928, %v1920
  %v2169 = vpack.c.b16 %v1929, %v1921
  %v2170 = vpack.c.b16 %v1930, %v1922
  %v2171 = vpack.c.b16 %v1931, %v1923
  %v2172 = vpack.c.b16 %v1932, %v1924
  %v2173 = vpack.c.b16 %v1933, %v1925
  %v2174 = vpack.c.b16 %v1942, %v1934
  %v2175 = vpack.c.b16 %v1943, %v1935
  %v2176 = vpack.c.b16 %v1944, %v1936
  %v2177 = vpack.c.b16 %v1945, %v1937
  %v2178 = vpack.c.b16 %v1946, %v1938
  %v2179 = vpack.c.b16 %v1947, %v1939
  %v2180 = vpack.c.b16 %v1948, %v1940
  %v2181 = vpack.c.b16 %v1949, %v1941
  %v2182 = vpack.c.b16 %v1958, %v1950
  %v2183 = vpack.c.b16 %v1959, %v1951
  %v2184 = vpack.c.b16 %v1960, %v1952
  %v2185 = vpack.c.b16 %v1961, %v1953
  %v2186 = vpack.c.b16 %v1962, %v1954
  %v2187 = vpack.c.b16 %v1963, %v1955
  %v2188 = vpack.c.b16 %v1964, %v1956
  %v2189 = vpack.c.b16 %v1965, %v1957
  %v2190 = vpack.c.b16 %v1974, %v1966
  %v2191 = vpack.c.b16 %v1975, %v1967
  %v2192 = vpack.c.b16 %v1976, %v1968
  %v2193 = vpack.c.b16 %v1977, %v1969
  %v2194 = vpack.c.b16 %v1978, %v1970
  %v2195 = vpack.c.b16 %v1979, %v1971
  %v2196 = vpack.c.b16 %v1980, %v1972
  %v2197 = vpack.c.b16 %v1981, %v1973
  %v2198 = vpack.c.b16 %v1990, %v1982
  %v2199 = vpack.c.b16 %v1991, %v1983
  %v2200 = vpack.c.b16 %v1992, %v1984
  %v2201 = vpack.c.b16 %v1993, %v1985
  %v2202 = vpack.c.b16 %v1994, %v1986
  %v2203 = vpack.c.b16 %v1995, %v1987
  %v2204 = vpack.c.b16 %v1996, %v1988
  %v2205 = vpack.c.b16 %v1997, %v1989
  %v2206 = vpack.c.b16 %v2006, %v1998
  %v2207 = vpack.c.b16 %v2007, %v1999
  %v2208 = vpack.c.b16 %v2008, %v2000
  %v2209 = vpack.c.b16 %v2009, %v2001
  %v2210 = vpack.c.b16 %v2010, %v2002
  %v2211 = vpack.c.b16 %v2011, %v2003
  %v2212 = vpack.c.b16 %v2012, %v2004
  %v2213 = vpack.c.b16 %v2013, %v2005
  %v2214 = vpack.c.b16 %v2022, %v2014
  %v2215 = vpack.c.b16 %v2023, %v2015
  %v2216 = vpack.c.b16 %v2024, %v2016
  %v2217 = vpack.c.b16 %v2025, %v2017
  %v2218 = vpack.c.b16 %v2026, %v2018
  %v2219 = vpack.c.b16 %v2027, %v2019
  %v2220 = vpack.c.b16 %v2028, %v2020
  %v2221 = vpack.c.b16 %v2029, %v2021
  %v2222 = vpack.c.b16 %v2038, %v2030
  %v2223 = vpack.c.b16 %v2039, %v2031
  %v2224 = vpack.c.b16 %v2040, %v2032
  %v2225 = vpack.c.b16 %v2041, %v2033
  %v2226 = vpack.c.b16 %v2042, %v2034
  %v2227 = vpack.c.b16 %v2043, %v2035
  %v2228 = vpack.c.b16 %v2044, %v2036
  %v2229 = vpack.c.b16 %v2045, %v2037
  %v2230 = vpack.c.b16 %v2054, %v2046
  %v2231 = vpack.c.b16 %v2055, %v2047
  %v2232 = vpack.c.b16 %v2056, %v2048
  %v2233 = vpack.c.b16 %v2057, %v2049
  %v2234 = vpack.c.b16 %v2058, %v2050
  %v2235 = vpack.c.b16 %v2059, %v2051
  %v2236 = vpack.c.b16 %v2060, %v2052
  %v2237 = vpack.c.b16 %v2061, %v2053
  %v2238 = vpack.c.b16 %v2070, %v2062
  %v2239 = vpack.c.b16 %v2071, %v2063
  %v2240 = vpack.c.b16 %v2072, %v2064
  %v2241 = vpack.c.b16 %v2073, %v2065
  %v2242 = vpack.c.b16 %v2074, %v2066
  %v2243 = vpack.c.b16 %v2075, %v2067
  %v2244 = vpack.c.b16 %v2076, %v2068
  %v2245 = vpack.c.b16 %v2077, %v2069
  %v2246 = vpack.c.b16 %v2086, %v2078
  %v2247 = vpack.c.b16 %v2087, %v2079
  %v2248 = vpack.c.b16 %v2088, %v2080
  %v2249 = vpack.c.b16 %v2089, %v2081
  %v2250 = vpack.c.b16 %v2090, %v2082
  %v2251 = vpack.c.b16 %v2091, %v2083
  %v2252 = vpack.c.b16 %v2092, %v2084
  %v2253 = vpack.c.b16 %v2093, %v2085
  %v2254 = vpack.c.b16 %v2102, %v2094
  %v2255 = vpack.c.b16 %v2103, %v2095
  %v2256 = vpack.c.b16 %v2104, %v2096
  %v2257 = vpack.c.b16 %v2105, %v2097
  %v2258 = vpack.c.b16 %v2106, %v2098
  %v2259 = vpack.c.b16 %v2107, %v2099
  %v2260 = vpack.c.b16 %v2108, %v2100
  %v2261 = vpack.c.b16 %v2109, %v2101
  %v2262 = vpack.c.b16 %v2118, %v2110
  %v2263 = vpack.c.b16 %v2119, %v2111
  %v2264 = vpack.c.b16 %v2120, %v2112
  %v2265 = vpack.c.b16 %v2121, %v2113
  %v2266 = vpack.c.b16 %v2122, %v2114
  %v2267 = vpack.c.b16 %v2123, %v2115
  %v2268 = vpack.c.b16 %v2124, %v2116
  %v2269 = vpack.c.b16 %v2125, %v2117
  %v2270 = vpack.c.b16 %v2134, %v2126
  %v2271 = vpack.c.b16 %v2135, %v2127
  %v2272 = vpack.c.b16 %v2136, %v2128
  %v2273 = vpack.c.b16 %v2137, %v2129
  %v2274 = vpack.c.b16 %v2138, %v2130
  %v2275 = vpack.c.b16 %v2139, %v2131
  %v2276 = vpack.c.b16 %v2140, %v2132
  %v2277 = vpack.c.b16 %v2141, %v2133
  %v2278 = vpack.c.b16 %v2150, %v2142
  %v2279 = vpack.c.b16 %v2151, %v2143
  %v2280 = vpack.c.b16 %v2152, %v2144
  %v2281 = vpack.c.b16 %v2153, %v2145
  %v2282 = vpack.c.b16 %v2154, %v2146
  %v2283 = vpack.c.b16 %v2155, %v2147
  %v2284 = vpack.c.b16 %v2156, %v2148
  %v2285 = vpack.c.b16 %v2157, %v2149
  %2414 = vmatpush.bf16.msra.mxu0 %v2214
  %2415 = vmatpush.bf16.msra.mxu0 %v2206
  %2416 = vmatpush.bf16.msra.mxu0 %v2198
  %2417 = vmatpush.bf16.msra.mxu0 %v2190
  %2418 = vmatpush.bf16.msra.mxu0 %v2182
  %2419 = vmatpush.bf16.msra.mxu0 %v2174
  %2420 = vmatpush.bf16.msra.mxu0 %v2166
  %2421 = vmatpush.bf16.msra.mxu0 %v2158
  %2422 = vmatmul.bf16.gmra.mxu0 %v1644
  %v2423 = vpop.f32.mrf.mxu0
  %v2424 = vadd.f32 0.0, %v2423
  %v2425 = vpop.f32.mrf.mxu0
  %2426 = vdwg.mxu0
  %2427 = vmatpush.bf16.msra.mxu0 %v2278
  %2428 = vmatpush.bf16.msra.mxu0 %v2270
  %2429 = vmatpush.bf16.msra.mxu0 %v2262
  %2430 = vmatpush.bf16.msra.mxu0 %v2254
  %2431 = vmatpush.bf16.msra.mxu0 %v2246
  %2432 = vmatpush.bf16.msra.mxu0 %v2238
  %2433 = vmatpush.bf16.msra.mxu0 %v2230
  %2434 = vmatpush.bf16.msra.mxu0 %v2222
  %2435 = vmatmul.bf16.gmra.mxu0 %v1645
  %v2436 = vpop.f32.mrf.mxu0
  %v2437 = vadd.f32 %v2424, %v2436
  %v2438 = vpop.f32.mrf.mxu0
  %2439 = vdwg.mxu0
  %2440 = vmatpush.bf16.msra.mxu0 %v2215
  %2441 = vmatpush.bf16.msra.mxu0 %v2207
  %2442 = vmatpush.bf16.msra.mxu0 %v2199
  %2443 = vmatpush.bf16.msra.mxu0 %v2191
  %2444 = vmatpush.bf16.msra.mxu0 %v2183
  %2445 = vmatpush.bf16.msra.mxu0 %v2175
  %2446 = vmatpush.bf16.msra.mxu0 %v2167
  %2447 = vmatpush.bf16.msra.mxu0 %v2159
  %2448 = vmatmul.bf16.gmra.mxu0 %v1644
  %v2449 = vpop.f32.mrf.mxu0
  %v2450 = vadd.f32 0.0, %v2449
  %v2451 = vpop.f32.mrf.mxu0
  %2452 = vdwg.mxu0
  %2453 = vmatpush.bf16.msra.mxu0 %v2279
  %2454 = vmatpush.bf16.msra.mxu0 %v2271
  %2455 = vmatpush.bf16.msra.mxu0 %v2263
  %2456 = vmatpush.bf16.msra.mxu0 %v2255
  %2457 = vmatpush.bf16.msra.mxu0 %v2247
  %2458 = vmatpush.bf16.msra.mxu0 %v2239
  %2459 = vmatpush.bf16.msra.mxu0 %v2231
  %2460 = vmatpush.bf16.msra.mxu0 %v2223
  %2461 = vmatmul.bf16.gmra.mxu0 %v1645
  %v2462 = vpop.f32.mrf.mxu0
  %v2463 = vadd.f32 %v2450, %v2462
  %v2464 = vpop.f32.mrf.mxu0
  %2465 = vdwg.mxu0
  %2466 = vmatpush.bf16.msra.mxu0 %v2216
  %2467 = vmatpush.bf16.msra.mxu0 %v2208
  %2468 = vmatpush.bf16.msra.mxu0 %v2200
  %2469 = vmatpush.bf16.msra.mxu0 %v2192
  %2470 = vmatpush.bf16.msra.mxu0 %v2184
  %2471 = vmatpush.bf16.msra.mxu0 %v2176
  %2472 = vmatpush.bf16.msra.mxu0 %v2168
  %2473 = vmatpush.bf16.msra.mxu0 %v2160
  %2474 = vmatmul.bf16.gmra.mxu0 %v1644
  %v2475 = vpop.f32.mrf.mxu0
  %v2476 = vadd.f32 0.0, %v2475
  %v2477 = vpop.f32.mrf.mxu0
  %2478 = vdwg.mxu0
  %2479 = vmatpush.bf16.msra.mxu0 %v2280
  %2480 = vmatpush.bf16.msra.mxu0 %v2272
  %2481 = vmatpush.bf16.msra.mxu0 %v2264
  %2482 = vmatpush.bf16.msra.mxu0 %v2256
  %2483 = vmatpush.bf16.msra.mxu0 %v2248
  %2484 = vmatpush.bf16.msra.mxu0 %v2240
  %2485 = vmatpush.bf16.msra.mxu0 %v2232
  %2486 = vmatpush.bf16.msra.mxu0 %v2224
  %2487 = vmatmul.bf16.gmra.mxu0 %v1645
  %v2488 = vpop.f32.mrf.mxu0
  %v2489 = vadd.f32 %v2476, %v2488
  %v2490 = vpop.f32.mrf.mxu0
  %2491 = vdwg.mxu0
  %2492 = vmatpush.bf16.msra.mxu0 %v2217
  %2493 = vmatpush.bf16.msra.mxu0 %v2209
  %2494 = vmatpush.bf16.msra.mxu0 %v2201
  %2495 = vmatpush.bf16.msra.mxu0 %v2193
  %2496 = vmatpush.bf16.msra.mxu0 %v2185
  %2497 = vmatpush.bf16.msra.mxu0 %v2177
  %2498 = vmatpush.bf16.msra.mxu0 %v2169
  %2499 = vmatpush.bf16.msra.mxu0 %v2161
  %2500 = vmatmul.bf16.gmra.mxu0 %v1644
  %v2501 = vpop.f32.mrf.mxu0
  %v2502 = vadd.f32 0.0, %v2501
  %v2503 = vpop.f32.mrf.mxu0
  %2504 = vdwg.mxu0
  %2505 = vmatpush.bf16.msra.mxu0 %v2281
  %2506 = vmatpush.bf16.msra.mxu0 %v2273
  %2507 = vmatpush.bf16.msra.mxu0 %v2265
  %2508 = vmatpush.bf16.msra.mxu0 %v2257
  %2509 = vmatpush.bf16.msra.mxu0 %v2249
  %2510 = vmatpush.bf16.msra.mxu0 %v2241
  %2511 = vmatpush.bf16.msra.mxu0 %v2233
  %2512 = vmatpush.bf16.msra.mxu0 %v2225
  %2513 = vmatmul.bf16.gmra.mxu0 %v1645
  %v2514 = vpop.f32.mrf.mxu0
  %v2515 = vadd.f32 %v2502, %v2514
  %v2516 = vpop.f32.mrf.mxu0
  %2517 = vdwg.mxu0
  %2518 = vmatpush.bf16.msra.mxu0 %v2218
  %2519 = vmatpush.bf16.msra.mxu0 %v2210
  %2520 = vmatpush.bf16.msra.mxu0 %v2202
  %2521 = vmatpush.bf16.msra.mxu0 %v2194
  %2522 = vmatpush.bf16.msra.mxu0 %v2186
  %2523 = vmatpush.bf16.msra.mxu0 %v2178
  %2524 = vmatpush.bf16.msra.mxu0 %v2170
  %2525 = vmatpush.bf16.msra.mxu0 %v2162
  %2526 = vmatmul.bf16.gmra.mxu0 %v1644
  %v2527 = vpop.f32.mrf.mxu0
  %v2528 = vadd.f32 0.0, %v2527
  %v2529 = vpop.f32.mrf.mxu0
  %2530 = vdwg.mxu0
  %2531 = vmatpush.bf16.msra.mxu0 %v2282
  %2532 = vmatpush.bf16.msra.mxu0 %v2274
  %2533 = vmatpush.bf16.msra.mxu0 %v2266
  %2534 = vmatpush.bf16.msra.mxu0 %v2258
  %2535 = vmatpush.bf16.msra.mxu0 %v2250
  %2536 = vmatpush.bf16.msra.mxu0 %v2242
  %2537 = vmatpush.bf16.msra.mxu0 %v2234
  %2538 = vmatpush.bf16.msra.mxu0 %v2226
  %2539 = vmatmul.bf16.gmra.mxu0 %v1645
  %v2540 = vpop.f32.mrf.mxu0
  %v2541 = vadd.f32 %v2528, %v2540
  %v2542 = vpop.f32.mrf.mxu0
  %2543 = vdwg.mxu0
  %2544 = vmatpush.bf16.msra.mxu0 %v2219
  %2545 = vmatpush.bf16.msra.mxu0 %v2211
  %2546 = vmatpush.bf16.msra.mxu0 %v2203
  %2547 = vmatpush.bf16.msra.mxu0 %v2195
  %2548 = vmatpush.bf16.msra.mxu0 %v2187
  %2549 = vmatpush.bf16.msra.mxu0 %v2179
  %2550 = vmatpush.bf16.msra.mxu0 %v2171
  %2551 = vmatpush.bf16.msra.mxu0 %v2163
  %2552 = vmatmul.bf16.gmra.mxu0 %v1644
  %v2553 = vpop.f32.mrf.mxu0
  %v2554 = vadd.f32 0.0, %v2553
  %v2555 = vpop.f32.mrf.mxu0
  %2556 = vdwg.mxu0
  %2557 = vmatpush.bf16.msra.mxu0 %v2283
  %2558 = vmatpush.bf16.msra.mxu0 %v2275
  %2559 = vmatpush.bf16.msra.mxu0 %v2267
  %2560 = vmatpush.bf16.msra.mxu0 %v2259
  %2561 = vmatpush.bf16.msra.mxu0 %v2251
  %2562 = vmatpush.bf16.msra.mxu0 %v2243
  %2563 = vmatpush.bf16.msra.mxu0 %v2235
  %2564 = vmatpush.bf16.msra.mxu0 %v2227
  %2565 = vmatmul.bf16.gmra.mxu0 %v1645
  %v2566 = vpop.f32.mrf.mxu0
  %v2567 = vadd.f32 %v2554, %v2566
  %v2568 = vpop.f32.mrf.mxu0
  %2569 = vdwg.mxu0
  %2570 = vmatpush.bf16.msra.mxu0 %v2220
  %2571 = vmatpush.bf16.msra.mxu0 %v2212
  %2572 = vmatpush.bf16.msra.mxu0 %v2204
  %2573 = vmatpush.bf16.msra.mxu0 %v2196
  %2574 = vmatpush.bf16.msra.mxu0 %v2188
  %2575 = vmatpush.bf16.msra.mxu0 %v2180
  %2576 = vmatpush.bf16.msra.mxu0 %v2172
  %2577 = vmatpush.bf16.msra.mxu0 %v2164
  %2578 = vmatmul.bf16.gmra.mxu0 %v1644
  %v2579 = vpop.f32.mrf.mxu0
  %v2580 = vadd.f32 0.0, %v2579
  %v2581 = vpop.f32.mrf.mxu0
  %2582 = vdwg.mxu0
  %2583 = vmatpush.bf16.msra.mxu0 %v2284
  %2584 = vmatpush.bf16.msra.mxu0 %v2276
  %2585 = vmatpush.bf16.msra.mxu0 %v2268
  %2586 = vmatpush.bf16.msra.mxu0 %v2260
  %2587 = vmatpush.bf16.msra.mxu0 %v2252
  %2588 = vmatpush.bf16.msra.mxu0 %v2244
  %2589 = vmatpush.bf16.msra.mxu0 %v2236
  %2590 = vmatpush.bf16.msra.mxu0 %v2228
  %2591 = vmatmul.bf16.gmra.mxu0 %v1645
  %v2592 = vpop.f32.mrf.mxu0
  %v2593 = vadd.f32 %v2580, %v2592
  %v2594 = vpop.f32.mrf.mxu0
  %2595 = vdwg.mxu0
  %2596 = vmatpush.bf16.msra.mxu0 %v2221
  %2597 = vmatpush.bf16.msra.mxu0 %v2213
  %2598 = vmatpush.bf16.msra.mxu0 %v2205
  %2599 = vmatpush.bf16.msra.mxu0 %v2197
  %2600 = vmatpush.bf16.msra.mxu0 %v2189
  %2601 = vmatpush.bf16.msra.mxu0 %v2181
  %2602 = vmatpush.bf16.msra.mxu0 %v2173
  %2603 = vmatpush.bf16.msra.mxu0 %v2165
  %2604 = vmatmul.bf16.gmra.mxu0 %v1644
  %v2605 = vpop.f32.mrf.mxu0
  %v2606 = vadd.f32 0.0, %v2605
  %v2607 = vpop.f32.mrf.mxu0
  %2608 = vdwg.mxu0
  %2609 = vmatpush.bf16.msra.mxu0 %v2285
  %2610 = vmatpush.bf16.msra.mxu0 %v2277
  %2611 = vmatpush.bf16.msra.mxu0 %v2269
  %2612 = vmatpush.bf16.msra.mxu0 %v2261
  %2613 = vmatpush.bf16.msra.mxu0 %v2253
  %2614 = vmatpush.bf16.msra.mxu0 %v2245
  %2615 = vmatpush.bf16.msra.mxu0 %v2237
  %2616 = vmatpush.bf16.msra.mxu0 %v2229
  %2617 = vmatmul.bf16.gmra.mxu0 %v1645
  %v2618 = vpop.f32.mrf.mxu0
  %v2619 = vadd.f32 %v2606, %v2618
  %v2620 = vpop.f32.mrf.mxu0
  %2621 = vdwg.mxu0
  %v2622 = vadd.f32 %v1638, %v2437
  %v2623 = vadd.f32 %v1639, %v2463
  %v2624 = vadd.f32 %v1640, %v2489
  %v2625 = vadd.f32 %v1641, %v2515
  %v2626 = vadd.f32 %v2541, %v440
  %v2627 = vadd.f32 %v2567, %v441
  %v2628 = vadd.f32 %v2593, %v442
  %v2629 = vadd.f32 %v2619, %v443
  %v2630 = vxor.u32 %v2626, 2147483648
  %v2631 = vmul.f32 %v2630, 1.442695
  %v2632 = vpow.pop %v2631
  %v2633 = vadd.f32 %v2632, 1.0
  %v2634 = vrcp.pop %v2633
  %v2635 = vmul.f32 %v2633, %v2634
  %v2636 = vsub.f32 1.0, %v2635
  %v2637 = vmul.f32 %v2634, %v2636
  %v2638 = vadd.f32 %v2634, %v2637
  %vm2639 = vweird.f32 %v2633
  %vm2640 = vweird.f32 %v2634
  %vm2641 = vmor %vm2639, %vm2640
  %v2642 = vsel %vm2641, %v2634, %v2638
  %v2643 = vand.u32 2147483647, %v2633
  %vm2644 = vcmp.eq.f32.partialorder %v2643, 8.507059e+37
  %v2645 = vand.u32 %v2633, 2147483648
  %v2646 = vor.u32 1.1754944e-38, %v2645
  %v2647 = vsel %vm2644, %v2646, %v2642
  %v2648 = vmul.f32 1.0, %v2647
  %v2649 = vxor.u32 %v2627, 2147483648
  %v2650 = vmul.f32 %v2649, 1.442695
  %v2651 = vpow.pop %v2650
  %v2652 = vadd.f32 %v2651, 1.0
  %v2653 = vrcp.pop %v2652
  %v2654 = vmul.f32 %v2652, %v2653
  %v2655 = vsub.f32 1.0, %v2654
  %v2656 = vmul.f32 %v2653, %v2655
  %v2657 = vadd.f32 %v2653, %v2656
  %vm2658 = vweird.f32 %v2652
  %vm2659 = vweird.f32 %v2653
  %vm2660 = vmor %vm2658, %vm2659
  %v2661 = vsel %vm2660, %v2653, %v2657
  %v2662 = vand.u32 2147483647, %v2652
  %vm2663 = vcmp.eq.f32.partialorder %v2662, 8.507059e+37
  %v2664 = vand.u32 %v2652, 2147483648
  %v2665 = vor.u32 1.1754944e-38, %v2664
  %v2666 = vsel %vm2663, %v2665, %v2661
  %v2667 = vmul.f32 1.0, %v2666
  %v2668 = vtanh.pop %v2628
  %v2669 = vxor.u32 %v2629, 2147483648
  %v2670 = vmul.f32 %v2669, 1.442695
  %v2671 = vpow.pop %v2670
  %v2672 = vadd.f32 %v2671, 1.0
  %v2673 = vrcp.pop %v2672
  %v2674 = vmul.f32 %v2672, %v2673
  %v2675 = vsub.f32 1.0, %v2674
  %v2676 = vmul.f32 %v2673, %v2675
  %v2677 = vadd.f32 %v2673, %v2676
  %vm2678 = vweird.f32 %v2672
  %vm2679 = vweird.f32 %v2673
  %vm2680 = vmor %vm2678, %vm2679
  %v2681 = vsel %vm2680, %v2673, %v2677
  %v2682 = vand.u32 2147483647, %v2672
  %vm2683 = vcmp.eq.f32.partialorder %v2682, 8.507059e+37
  %v2684 = vand.u32 %v2672, 2147483648
  %v2685 = vor.u32 1.1754944e-38, %v2684
  %v2686 = vsel %vm2683, %v2685, %v2681
  %v2687 = vmul.f32 1.0, %v2686
  %v2688 = vmul.f32 %v2667, %v1570
  %v2689 = vmul.f32 %v2648, %v2668
  %v2690 = vadd.f32 %v2688, %v2689
  %v2691 = vtanh.pop %v2690
  %v2692 = vmul.f32 %v2687, %v2691
  %2693 = vst [vmem:[#allocation3 + $0x8] sm:$0xff] %v2692
  %v2694 = vxor.u32 %v2622, 2147483648
  %v2695 = vmul.f32 %v2694, 1.442695
  %v2696 = vpow.pop %v2695
  %v2697 = vadd.f32 %v2696, 1.0
  %v2698 = vrcp.pop %v2697
  %v2699 = vmul.f32 %v2697, %v2698
  %v2700 = vsub.f32 1.0, %v2699
  %v2701 = vmul.f32 %v2698, %v2700
  %v2702 = vadd.f32 %v2698, %v2701
  %vm2703 = vweird.f32 %v2697
  %vm2704 = vweird.f32 %v2698
  %vm2705 = vmor %vm2703, %vm2704
  %v2706 = vsel %vm2705, %v2698, %v2702
  %v2707 = vand.u32 2147483647, %v2697
  %vm2708 = vcmp.eq.f32.partialorder %v2707, 8.507059e+37
  %v2709 = vand.u32 %v2697, 2147483648
  %v2710 = vor.u32 1.1754944e-38, %v2709
  %v2711 = vsel %vm2708, %v2710, %v2706
  %v2712 = vmul.f32 1.0, %v2711
  %v2713 = vxor.u32 %v2623, 2147483648
  %v2714 = vmul.f32 %v2713, 1.442695
  %v2715 = vpow.pop %v2714
  %v2716 = vadd.f32 %v2715, 1.0
  %v2717 = vrcp.pop %v2716
  %v2718 = vmul.f32 %v2716, %v2717
  %v2719 = vsub.f32 1.0, %v2718
  %v2720 = vmul.f32 %v2717, %v2719
  %v2721 = vadd.f32 %v2717, %v2720
  %vm2722 = vweird.f32 %v2716
  %vm2723 = vweird.f32 %v2717
  %vm2724 = vmor %vm2722, %vm2723
  %v2725 = vsel %vm2724, %v2717, %v2721
  %v2726 = vand.u32 2147483647, %v2716
  %vm2727 = vcmp.eq.f32.partialorder %v2726, 8.507059e+37
  %v2728 = vand.u32 %v2716, 2147483648
  %v2729 = vor.u32 1.1754944e-38, %v2728
  %v2730 = vsel %vm2727, %v2729, %v2725
  %v2731 = vmul.f32 1.0, %v2730
  %v2732 = vtanh.pop %v2624
  %v2733 = vxor.u32 %v2625, 2147483648
  %v2734 = vmul.f32 %v2733, 1.442695
  %v2735 = vpow.pop %v2734
  %v2736 = vadd.f32 %v2735, 1.0
  %v2737 = vrcp.pop %v2736
  %v2738 = vmul.f32 %v2736, %v2737
  %v2739 = vsub.f32 1.0, %v2738
  %v2740 = vmul.f32 %v2737, %v2739
  %v2741 = vadd.f32 %v2737, %v2740
  %vm2742 = vweird.f32 %v2736
  %vm2743 = vweird.f32 %v2737
  %vm2744 = vmor %vm2742, %vm2743
  %v2745 = vsel %vm2744, %v2737, %v2741
  %v2746 = vand.u32 2147483647, %v2736
  %vm2747 = vcmp.eq.f32.partialorder %v2746, 8.507059e+37
  %v2748 = vand.u32 %v2736, 2147483648
  %v2749 = vor.u32 1.1754944e-38, %v2748
  %v2750 = vsel %vm2747, %v2749, %v2745
  %v2751 = vmul.f32 1.0, %v2750
  %v2752 = vmul.f32 %v2731, %v1634
  %v2753 = vmul.f32 %v2712, %v2732
  %v2754 = vadd.f32 %v2752, %v2753
  %v2755 = vtanh.pop %v2754
  %v2756 = vmul.f32 %v2751, %v2755
  %2757 = vst [vmem:[#allocation3] sm:$0xff] %v2756
  %v2758 = vld [vmem:[#allocation2 + $0x60] sm:$0xff]
  %v2759 = vld [vmem:[#allocation2 + $0x68] sm:$0xff]
  %v2760 = vld [vmem:[#allocation2 + $0x70] sm:$0xff]
  %v2761 = vld [vmem:[#allocation2 + $0x78] sm:$0xff]
  %v2762 = vld [vmem:[#allocation3] sm:$0xff]
  %v2763 = vld [vmem:[#allocation3 + $0x8] sm:$0xff]
  %v2764 = vpack.c.bf16 %v2762, %v2762
  %v2765 = vpack.c.bf16 %v2763, %v2763
  %v2766 = vld [vmem:[%s3] sm:$0xff]
  %v2767 = vld [vmem:[%s3 + $0x8] sm:$0xff]
  %v2768 = vld [vmem:[%s3 + $0x10] sm:$0xff]
  %v2769 = vld [vmem:[%s3 + $0x18] sm:$0xff]
  %v2770 = vld [vmem:[%s3 + $0x20] sm:$0xff]
  %v2771 = vld [vmem:[%s3 + $0x28] sm:$0xff]
  %v2772 = vld [vmem:[%s3 + $0x30] sm:$0xff]
  %v2773 = vld [vmem:[%s3 + $0x38] sm:$0xff]
  %v2774 = vld [vmem:[%s3 + $0x40] sm:$0xff]
  %v2775 = vld [vmem:[%s3 + $0x48] sm:$0xff]
  %v2776 = vld [vmem:[%s3 + $0x50] sm:$0xff]
  %v2777 = vld [vmem:[%s3 + $0x58] sm:$0xff]
  %v2778 = vld [vmem:[%s3 + $0x60] sm:$0xff]
  %v2779 = vld [vmem:[%s3 + $0x68] sm:$0xff]
  %v2780 = vld [vmem:[%s3 + $0x70] sm:$0xff]
  %v2781 = vld [vmem:[%s3 + $0x78] sm:$0xff]
  %v2782 = vld [vmem:[%s3 + $0x80] sm:$0xff]
  %v2783 = vld [vmem:[%s3 + $0x88] sm:$0xff]
  %v2784 = vld [vmem:[%s3 + $0x90] sm:$0xff]
  %v2785 = vld [vmem:[%s3 + $0x98] sm:$0xff]
  %v2786 = vld [vmem:[%s3 + $0xa0] sm:$0xff]
  %v2787 = vld [vmem:[%s3 + $0xa8] sm:$0xff]
  %v2788 = vld [vmem:[%s3 + $0xb0] sm:$0xff]
  %v2789 = vld [vmem:[%s3 + $0xb8] sm:$0xff]
  %v2790 = vld [vmem:[%s3 + $0xc0] sm:$0xff]
  %v2791 = vld [vmem:[%s3 + $0xc8] sm:$0xff]
  %v2792 = vld [vmem:[%s3 + $0xd0] sm:$0xff]
  %v2793 = vld [vmem:[%s3 + $0xd8] sm:$0xff]
  %v2794 = vld [vmem:[%s3 + $0xe0] sm:$0xff]
  %v2795 = vld [vmem:[%s3 + $0xe8] sm:$0xff]
  %v2796 = vld [vmem:[%s3 + $0xf0] sm:$0xff]
  %v2797 = vld [vmem:[%s3 + $0xf8] sm:$0xff]
  %v2798 = vld [vmem:[%s3 + $0x100] sm:$0xff]
  %v2799 = vld [vmem:[%s3 + $0x108] sm:$0xff]
  %v2800 = vld [vmem:[%s3 + $0x110] sm:$0xff]
  %v2801 = vld [vmem:[%s3 + $0x118] sm:$0xff]
  %v2802 = vld [vmem:[%s3 + $0x120] sm:$0xff]
  %v2803 = vld [vmem:[%s3 + $0x128] sm:$0xff]
  %v2804 = vld [vmem:[%s3 + $0x130] sm:$0xff]
  %v2805 = vld [vmem:[%s3 + $0x138] sm:$0xff]
  %v2806 = vld [vmem:[%s3 + $0x140] sm:$0xff]
  %v2807 = vld [vmem:[%s3 + $0x148] sm:$0xff]
  %v2808 = vld [vmem:[%s3 + $0x150] sm:$0xff]
  %v2809 = vld [vmem:[%s3 + $0x158] sm:$0xff]
  %v2810 = vld [vmem:[%s3 + $0x160] sm:$0xff]
  %v2811 = vld [vmem:[%s3 + $0x168] sm:$0xff]
  %v2812 = vld [vmem:[%s3 + $0x170] sm:$0xff]
  %v2813 = vld [vmem:[%s3 + $0x178] sm:$0xff]
  %v2814 = vld [vmem:[%s3 + $0x180] sm:$0xff]
  %v2815 = vld [vmem:[%s3 + $0x188] sm:$0xff]
  %v2816 = vld [vmem:[%s3 + $0x190] sm:$0xff]
  %v2817 = vld [vmem:[%s3 + $0x198] sm:$0xff]
  %v2818 = vld [vmem:[%s3 + $0x1a0] sm:$0xff]
  %v2819 = vld [vmem:[%s3 + $0x1a8] sm:$0xff]
  %v2820 = vld [vmem:[%s3 + $0x1b0] sm:$0xff]
  %v2821 = vld [vmem:[%s3 + $0x1b8] sm:$0xff]
  %v2822 = vld [vmem:[%s3 + $0x1c0] sm:$0xff]
  %v2823 = vld [vmem:[%s3 + $0x1c8] sm:$0xff]
  %v2824 = vld [vmem:[%s3 + $0x1d0] sm:$0xff]
  %v2825 = vld [vmem:[%s3 + $0x1d8] sm:$0xff]
  %v2826 = vld [vmem:[%s3 + $0x1e0] sm:$0xff]
  %v2827 = vld [vmem:[%s3 + $0x1e8] sm:$0xff]
  %v2828 = vld [vmem:[%s3 + $0x1f0] sm:$0xff]
  %v2829 = vld [vmem:[%s3 + $0x1f8] sm:$0xff]
  %v2830 = vld [vmem:[%s3 + $0x200] sm:$0xff]
  %v2831 = vld [vmem:[%s3 + $0x208] sm:$0xff]
  %v2832 = vld [vmem:[%s3 + $0x210] sm:$0xff]
  %v2833 = vld [vmem:[%s3 + $0x218] sm:$0xff]
  %v2834 = vld [vmem:[%s3 + $0x220] sm:$0xff]
  %v2835 = vld [vmem:[%s3 + $0x228] sm:$0xff]
  %v2836 = vld [vmem:[%s3 + $0x230] sm:$0xff]
  %v2837 = vld [vmem:[%s3 + $0x238] sm:$0xff]
  %v2838 = vld [vmem:[%s3 + $0x240] sm:$0xff]
  %v2839 = vld [vmem:[%s3 + $0x248] sm:$0xff]
  %v2840 = vld [vmem:[%s3 + $0x250] sm:$0xff]
  %v2841 = vld [vmem:[%s3 + $0x258] sm:$0xff]
  %v2842 = vld [vmem:[%s3 + $0x260] sm:$0xff]
  %v2843 = vld [vmem:[%s3 + $0x268] sm:$0xff]
  %v2844 = vld [vmem:[%s3 + $0x270] sm:$0xff]
  %v2845 = vld [vmem:[%s3 + $0x278] sm:$0xff]
  %v2846 = vld [vmem:[%s3 + $0x280] sm:$0xff]
  %v2847 = vld [vmem:[%s3 + $0x288] sm:$0xff]
  %v2848 = vld [vmem:[%s3 + $0x290] sm:$0xff]
  %v2849 = vld [vmem:[%s3 + $0x298] sm:$0xff]
  %v2850 = vld [vmem:[%s3 + $0x2a0] sm:$0xff]
  %v2851 = vld [vmem:[%s3 + $0x2a8] sm:$0xff]
  %v2852 = vld [vmem:[%s3 + $0x2b0] sm:$0xff]
  %v2853 = vld [vmem:[%s3 + $0x2b8] sm:$0xff]
  %v2854 = vld [vmem:[%s3 + $0x2c0] sm:$0xff]
  %v2855 = vld [vmem:[%s3 + $0x2c8] sm:$0xff]
  %v2856 = vld [vmem:[%s3 + $0x2d0] sm:$0xff]
  %v2857 = vld [vmem:[%s3 + $0x2d8] sm:$0xff]
  %v2858 = vld [vmem:[%s3 + $0x2e0] sm:$0xff]
  %v2859 = vld [vmem:[%s3 + $0x2e8] sm:$0xff]
  %v2860 = vld [vmem:[%s3 + $0x2f0] sm:$0xff]
  %v2861 = vld [vmem:[%s3 + $0x2f8] sm:$0xff]
  %v2862 = vld [vmem:[%s3 + $0x300] sm:$0xff]
  %v2863 = vld [vmem:[%s3 + $0x308] sm:$0xff]
  %v2864 = vld [vmem:[%s3 + $0x310] sm:$0xff]
  %v2865 = vld [vmem:[%s3 + $0x318] sm:$0xff]
  %v2866 = vld [vmem:[%s3 + $0x320] sm:$0xff]
  %v2867 = vld [vmem:[%s3 + $0x328] sm:$0xff]
  %v2868 = vld [vmem:[%s3 + $0x330] sm:$0xff]
  %v2869 = vld [vmem:[%s3 + $0x338] sm:$0xff]
  %v2870 = vld [vmem:[%s3 + $0x340] sm:$0xff]
  %v2871 = vld [vmem:[%s3 + $0x348] sm:$0xff]
  %v2872 = vld [vmem:[%s3 + $0x350] sm:$0xff]
  %v2873 = vld [vmem:[%s3 + $0x358] sm:$0xff]
  %v2874 = vld [vmem:[%s3 + $0x360] sm:$0xff]
  %v2875 = vld [vmem:[%s3 + $0x368] sm:$0xff]
  %v2876 = vld [vmem:[%s3 + $0x370] sm:$0xff]
  %v2877 = vld [vmem:[%s3 + $0x378] sm:$0xff]
  %v2878 = vld [vmem:[%s3 + $0x380] sm:$0xff]
  %v2879 = vld [vmem:[%s3 + $0x388] sm:$0xff]
  %v2880 = vld [vmem:[%s3 + $0x390] sm:$0xff]
  %v2881 = vld [vmem:[%s3 + $0x398] sm:$0xff]
  %v2882 = vld [vmem:[%s3 + $0x3a0] sm:$0xff]
  %v2883 = vld [vmem:[%s3 + $0x3a8] sm:$0xff]
  %v2884 = vld [vmem:[%s3 + $0x3b0] sm:$0xff]
  %v2885 = vld [vmem:[%s3 + $0x3b8] sm:$0xff]
  %v2886 = vld [vmem:[%s3 + $0x3c0] sm:$0xff]
  %v2887 = vld [vmem:[%s3 + $0x3c8] sm:$0xff]
  %v2888 = vld [vmem:[%s3 + $0x3d0] sm:$0xff]
  %v2889 = vld [vmem:[%s3 + $0x3d8] sm:$0xff]
  %v2890 = vld [vmem:[%s3 + $0x3e0] sm:$0xff]
  %v2891 = vld [vmem:[%s3 + $0x3e8] sm:$0xff]
  %v2892 = vld [vmem:[%s3 + $0x3f0] sm:$0xff]
  %v2893 = vld [vmem:[%s3 + $0x3f8] sm:$0xff]
  %v3022 = vunpack.c.l.b16 %v2766
  %v3023 = vunpack.c.h.b16 %v2766
  %v3024 = vunpack.c.l.b16 %v2767
  %v3025 = vunpack.c.h.b16 %v2767
  %v3026 = vunpack.c.l.b16 %v2768
  %v3027 = vunpack.c.h.b16 %v2768
  %v3028 = vunpack.c.l.b16 %v2769
  %v3029 = vunpack.c.h.b16 %v2769
  %v3030 = vunpack.c.l.b16 %v2770
  %v3031 = vunpack.c.h.b16 %v2770
  %v3032 = vunpack.c.l.b16 %v2771
  %v3033 = vunpack.c.h.b16 %v2771
  %v3034 = vunpack.c.l.b16 %v2772
  %v3035 = vunpack.c.h.b16 %v2772
  %v3036 = vunpack.c.l.b16 %v2773
  %v3037 = vunpack.c.h.b16 %v2773
  %v3038 = vunpack.c.l.b16 %v2774
  %v3039 = vunpack.c.h.b16 %v2774
  %v3040 = vunpack.c.l.b16 %v2775
  %v3041 = vunpack.c.h.b16 %v2775
  %v3042 = vunpack.c.l.b16 %v2776
  %v3043 = vunpack.c.h.b16 %v2776
  %v3044 = vunpack.c.l.b16 %v2777
  %v3045 = vunpack.c.h.b16 %v2777
  %v3046 = vunpack.c.l.b16 %v2778
  %v3047 = vunpack.c.h.b16 %v2778
  %v3048 = vunpack.c.l.b16 %v2779
  %v3049 = vunpack.c.h.b16 %v2779
  %v3050 = vunpack.c.l.b16 %v2780
  %v3051 = vunpack.c.h.b16 %v2780
  %v3052 = vunpack.c.l.b16 %v2781
  %v3053 = vunpack.c.h.b16 %v2781
  %v3054 = vunpack.c.l.b16 %v2782
  %v3055 = vunpack.c.h.b16 %v2782
  %v3056 = vunpack.c.l.b16 %v2783
  %v3057 = vunpack.c.h.b16 %v2783
  %v3058 = vunpack.c.l.b16 %v2784
  %v3059 = vunpack.c.h.b16 %v2784
  %v3060 = vunpack.c.l.b16 %v2785
  %v3061 = vunpack.c.h.b16 %v2785
  %v3062 = vunpack.c.l.b16 %v2786
  %v3063 = vunpack.c.h.b16 %v2786
  %v3064 = vunpack.c.l.b16 %v2787
  %v3065 = vunpack.c.h.b16 %v2787
  %v3066 = vunpack.c.l.b16 %v2788
  %v3067 = vunpack.c.h.b16 %v2788
  %v3068 = vunpack.c.l.b16 %v2789
  %v3069 = vunpack.c.h.b16 %v2789
  %v3070 = vunpack.c.l.b16 %v2790
  %v3071 = vunpack.c.h.b16 %v2790
  %v3072 = vunpack.c.l.b16 %v2791
  %v3073 = vunpack.c.h.b16 %v2791
  %v3074 = vunpack.c.l.b16 %v2792
  %v3075 = vunpack.c.h.b16 %v2792
  %v3076 = vunpack.c.l.b16 %v2793
  %v3077 = vunpack.c.h.b16 %v2793
  %v3078 = vunpack.c.l.b16 %v2794
  %v3079 = vunpack.c.h.b16 %v2794
  %v3080 = vunpack.c.l.b16 %v2795
  %v3081 = vunpack.c.h.b16 %v2795
  %v3082 = vunpack.c.l.b16 %v2796
  %v3083 = vunpack.c.h.b16 %v2796
  %v3084 = vunpack.c.l.b16 %v2797
  %v3085 = vunpack.c.h.b16 %v2797
  %v3086 = vunpack.c.l.b16 %v2798
  %v3087 = vunpack.c.h.b16 %v2798
  %v3088 = vunpack.c.l.b16 %v2799
  %v3089 = vunpack.c.h.b16 %v2799
  %v3090 = vunpack.c.l.b16 %v2800
  %v3091 = vunpack.c.h.b16 %v2800
  %v3092 = vunpack.c.l.b16 %v2801
  %v3093 = vunpack.c.h.b16 %v2801
  %v3094 = vunpack.c.l.b16 %v2802
  %v3095 = vunpack.c.h.b16 %v2802
  %v3096 = vunpack.c.l.b16 %v2803
  %v3097 = vunpack.c.h.b16 %v2803
  %v3098 = vunpack.c.l.b16 %v2804
  %v3099 = vunpack.c.h.b16 %v2804
  %v3100 = vunpack.c.l.b16 %v2805
  %v3101 = vunpack.c.h.b16 %v2805
  %v3102 = vunpack.c.l.b16 %v2806
  %v3103 = vunpack.c.h.b16 %v2806
  %v3104 = vunpack.c.l.b16 %v2807
  %v3105 = vunpack.c.h.b16 %v2807
  %v3106 = vunpack.c.l.b16 %v2808
  %v3107 = vunpack.c.h.b16 %v2808
  %v3108 = vunpack.c.l.b16 %v2809
  %v3109 = vunpack.c.h.b16 %v2809
  %v3110 = vunpack.c.l.b16 %v2810
  %v3111 = vunpack.c.h.b16 %v2810
  %v3112 = vunpack.c.l.b16 %v2811
  %v3113 = vunpack.c.h.b16 %v2811
  %v3114 = vunpack.c.l.b16 %v2812
  %v3115 = vunpack.c.h.b16 %v2812
  %v3116 = vunpack.c.l.b16 %v2813
  %v3117 = vunpack.c.h.b16 %v2813
  %v3118 = vunpack.c.l.b16 %v2814
  %v3119 = vunpack.c.h.b16 %v2814
  %v3120 = vunpack.c.l.b16 %v2815
  %v3121 = vunpack.c.h.b16 %v2815
  %v3122 = vunpack.c.l.b16 %v2816
  %v3123 = vunpack.c.h.b16 %v2816
  %v3124 = vunpack.c.l.b16 %v2817
  %v3125 = vunpack.c.h.b16 %v2817
  %v3126 = vunpack.c.l.b16 %v2818
  %v3127 = vunpack.c.h.b16 %v2818
  %v3128 = vunpack.c.l.b16 %v2819
  %v3129 = vunpack.c.h.b16 %v2819
  %v3130 = vunpack.c.l.b16 %v2820
  %v3131 = vunpack.c.h.b16 %v2820
  %v3132 = vunpack.c.l.b16 %v2821
  %v3133 = vunpack.c.h.b16 %v2821
  %v3134 = vunpack.c.l.b16 %v2822
  %v3135 = vunpack.c.h.b16 %v2822
  %v3136 = vunpack.c.l.b16 %v2823
  %v3137 = vunpack.c.h.b16 %v2823
  %v3138 = vunpack.c.l.b16 %v2824
  %v3139 = vunpack.c.h.b16 %v2824
  %v3140 = vunpack.c.l.b16 %v2825
  %v3141 = vunpack.c.h.b16 %v2825
  %v3142 = vunpack.c.l.b16 %v2826
  %v3143 = vunpack.c.h.b16 %v2826
  %v3144 = vunpack.c.l.b16 %v2827
  %v3145 = vunpack.c.h.b16 %v2827
  %v3146 = vunpack.c.l.b16 %v2828
  %v3147 = vunpack.c.h.b16 %v2828
  %v3148 = vunpack.c.l.b16 %v2829
  %v3149 = vunpack.c.h.b16 %v2829
  %v3150 = vunpack.c.l.b16 %v2830
  %v3151 = vunpack.c.h.b16 %v2830
  %v3152 = vunpack.c.l.b16 %v2831
  %v3153 = vunpack.c.h.b16 %v2831
  %v3154 = vunpack.c.l.b16 %v2832
  %v3155 = vunpack.c.h.b16 %v2832
  %v3156 = vunpack.c.l.b16 %v2833
  %v3157 = vunpack.c.h.b16 %v2833
  %v3158 = vunpack.c.l.b16 %v2834
  %v3159 = vunpack.c.h.b16 %v2834
  %v3160 = vunpack.c.l.b16 %v2835
  %v3161 = vunpack.c.h.b16 %v2835
  %v3162 = vunpack.c.l.b16 %v2836
  %v3163 = vunpack.c.h.b16 %v2836
  %v3164 = vunpack.c.l.b16 %v2837
  %v3165 = vunpack.c.h.b16 %v2837
  %v3166 = vunpack.c.l.b16 %v2838
  %v3167 = vunpack.c.h.b16 %v2838
  %v3168 = vunpack.c.l.b16 %v2839
  %v3169 = vunpack.c.h.b16 %v2839
  %v3170 = vunpack.c.l.b16 %v2840
  %v3171 = vunpack.c.h.b16 %v2840
  %v3172 = vunpack.c.l.b16 %v2841
  %v3173 = vunpack.c.h.b16 %v2841
  %v3174 = vunpack.c.l.b16 %v2842
  %v3175 = vunpack.c.h.b16 %v2842
  %v3176 = vunpack.c.l.b16 %v2843
  %v3177 = vunpack.c.h.b16 %v2843
  %v3178 = vunpack.c.l.b16 %v2844
  %v3179 = vunpack.c.h.b16 %v2844
  %v3180 = vunpack.c.l.b16 %v2845
  %v3181 = vunpack.c.h.b16 %v2845
  %v3182 = vunpack.c.l.b16 %v2846
  %v3183 = vunpack.c.h.b16 %v2846
  %v3184 = vunpack.c.l.b16 %v2847
  %v3185 = vunpack.c.h.b16 %v2847
  %v3186 = vunpack.c.l.b16 %v2848
  %v3187 = vunpack.c.h.b16 %v2848
  %v3188 = vunpack.c.l.b16 %v2849
  %v3189 = vunpack.c.h.b16 %v2849
  %v3190 = vunpack.c.l.b16 %v2850
  %v3191 = vunpack.c.h.b16 %v2850
  %v3192 = vunpack.c.l.b16 %v2851
  %v3193 = vunpack.c.h.b16 %v2851
  %v3194 = vunpack.c.l.b16 %v2852
  %v3195 = vunpack.c.h.b16 %v2852
  %v3196 = vunpack.c.l.b16 %v2853
  %v3197 = vunpack.c.h.b16 %v2853
  %v3198 = vunpack.c.l.b16 %v2854
  %v3199 = vunpack.c.h.b16 %v2854
  %v3200 = vunpack.c.l.b16 %v2855
  %v3201 = vunpack.c.h.b16 %v2855
  %v3202 = vunpack.c.l.b16 %v2856
  %v3203 = vunpack.c.h.b16 %v2856
  %v3204 = vunpack.c.l.b16 %v2857
  %v3205 = vunpack.c.h.b16 %v2857
  %v3206 = vunpack.c.l.b16 %v2858
  %v3207 = vunpack.c.h.b16 %v2858
  %v3208 = vunpack.c.l.b16 %v2859
  %v3209 = vunpack.c.h.b16 %v2859
  %v3210 = vunpack.c.l.b16 %v2860
  %v3211 = vunpack.c.h.b16 %v2860
  %v3212 = vunpack.c.l.b16 %v2861
  %v3213 = vunpack.c.h.b16 %v2861
  %v3214 = vunpack.c.l.b16 %v2862
  %v3215 = vunpack.c.h.b16 %v2862
  %v3216 = vunpack.c.l.b16 %v2863
  %v3217 = vunpack.c.h.b16 %v2863
  %v3218 = vunpack.c.l.b16 %v2864
  %v3219 = vunpack.c.h.b16 %v2864
  %v3220 = vunpack.c.l.b16 %v2865
  %v3221 = vunpack.c.h.b16 %v2865
  %v3222 = vunpack.c.l.b16 %v2866
  %v3223 = vunpack.c.h.b16 %v2866
  %v3224 = vunpack.c.l.b16 %v2867
  %v3225 = vunpack.c.h.b16 %v2867
  %v3226 = vunpack.c.l.b16 %v2868
  %v3227 = vunpack.c.h.b16 %v2868
  %v3228 = vunpack.c.l.b16 %v2869
  %v3229 = vunpack.c.h.b16 %v2869
  %v3230 = vunpack.c.l.b16 %v2870
  %v3231 = vunpack.c.h.b16 %v2870
  %v3232 = vunpack.c.l.b16 %v2871
  %v3233 = vunpack.c.h.b16 %v2871
  %v3234 = vunpack.c.l.b16 %v2872
  %v3235 = vunpack.c.h.b16 %v2872
  %v3236 = vunpack.c.l.b16 %v2873
  %v3237 = vunpack.c.h.b16 %v2873
  %v3238 = vunpack.c.l.b16 %v2874
  %v3239 = vunpack.c.h.b16 %v2874
  %v3240 = vunpack.c.l.b16 %v2875
  %v3241 = vunpack.c.h.b16 %v2875
  %v3242 = vunpack.c.l.b16 %v2876
  %v3243 = vunpack.c.h.b16 %v2876
  %v3244 = vunpack.c.l.b16 %v2877
  %v3245 = vunpack.c.h.b16 %v2877
  %v3246 = vunpack.c.l.b16 %v2878
  %v3247 = vunpack.c.h.b16 %v2878
  %v3248 = vunpack.c.l.b16 %v2879
  %v3249 = vunpack.c.h.b16 %v2879
  %v3250 = vunpack.c.l.b16 %v2880
  %v3251 = vunpack.c.h.b16 %v2880
  %v3252 = vunpack.c.l.b16 %v2881
  %v3253 = vunpack.c.h.b16 %v2881
  %v3254 = vunpack.c.l.b16 %v2882
  %v3255 = vunpack.c.h.b16 %v2882
  %v3256 = vunpack.c.l.b16 %v2883
  %v3257 = vunpack.c.h.b16 %v2883
  %v3258 = vunpack.c.l.b16 %v2884
  %v3259 = vunpack.c.h.b16 %v2884
  %v3260 = vunpack.c.l.b16 %v2885
  %v3261 = vunpack.c.h.b16 %v2885
  %v3262 = vunpack.c.l.b16 %v2886
  %v3263 = vunpack.c.h.b16 %v2886
  %v3264 = vunpack.c.l.b16 %v2887
  %v3265 = vunpack.c.h.b16 %v2887
  %v3266 = vunpack.c.l.b16 %v2888
  %v3267 = vunpack.c.h.b16 %v2888
  %v3268 = vunpack.c.l.b16 %v2889
  %v3269 = vunpack.c.h.b16 %v2889
  %v3270 = vunpack.c.l.b16 %v2890
  %v3271 = vunpack.c.h.b16 %v2890
  %v3272 = vunpack.c.l.b16 %v2891
  %v3273 = vunpack.c.h.b16 %v2891
  %v3274 = vunpack.c.l.b16 %v2892
  %v3275 = vunpack.c.h.b16 %v2892
  %v3276 = vunpack.c.l.b16 %v2893
  %v3277 = vunpack.c.h.b16 %v2893
  %v3278 = vpack.c.b16 %v3030, %v3022
  %v3279 = vpack.c.b16 %v3031, %v3023
  %v3280 = vpack.c.b16 %v3032, %v3024
  %v3281 = vpack.c.b16 %v3033, %v3025
  %v3282 = vpack.c.b16 %v3034, %v3026
  %v3283 = vpack.c.b16 %v3035, %v3027
  %v3284 = vpack.c.b16 %v3036, %v3028
  %v3285 = vpack.c.b16 %v3037, %v3029
  %v3286 = vpack.c.b16 %v3046, %v3038
  %v3287 = vpack.c.b16 %v3047, %v3039
  %v3288 = vpack.c.b16 %v3048, %v3040
  %v3289 = vpack.c.b16 %v3049, %v3041
  %v3290 = vpack.c.b16 %v3050, %v3042
  %v3291 = vpack.c.b16 %v3051, %v3043
  %v3292 = vpack.c.b16 %v3052, %v3044
  %v3293 = vpack.c.b16 %v3053, %v3045
  %v3294 = vpack.c.b16 %v3062, %v3054
  %v3295 = vpack.c.b16 %v3063, %v3055
  %v3296 = vpack.c.b16 %v3064, %v3056
  %v3297 = vpack.c.b16 %v3065, %v3057
  %v3298 = vpack.c.b16 %v3066, %v3058
  %v3299 = vpack.c.b16 %v3067, %v3059
  %v3300 = vpack.c.b16 %v3068, %v3060
  %v3301 = vpack.c.b16 %v3069, %v3061
  %v3302 = vpack.c.b16 %v3078, %v3070
  %v3303 = vpack.c.b16 %v3079, %v3071
  %v3304 = vpack.c.b16 %v3080, %v3072
  %v3305 = vpack.c.b16 %v3081, %v3073
  %v3306 = vpack.c.b16 %v3082, %v3074
  %v3307 = vpack.c.b16 %v3083, %v3075
  %v3308 = vpack.c.b16 %v3084, %v3076
  %v3309 = vpack.c.b16 %v3085, %v3077
  %v3310 = vpack.c.b16 %v3094, %v3086
  %v3311 = vpack.c.b16 %v3095, %v3087
  %v3312 = vpack.c.b16 %v3096, %v3088
  %v3313 = vpack.c.b16 %v3097, %v3089
  %v3314 = vpack.c.b16 %v3098, %v3090
  %v3315 = vpack.c.b16 %v3099, %v3091
  %v3316 = vpack.c.b16 %v3100, %v3092
  %v3317 = vpack.c.b16 %v3101, %v3093
  %v3318 = vpack.c.b16 %v3110, %v3102
  %v3319 = vpack.c.b16 %v3111, %v3103
  %v3320 = vpack.c.b16 %v3112, %v3104
  %v3321 = vpack.c.b16 %v3113, %v3105
  %v3322 = vpack.c.b16 %v3114, %v3106
  %v3323 = vpack.c.b16 %v3115, %v3107
  %v3324 = vpack.c.b16 %v3116, %v3108
  %v3325 = vpack.c.b16 %v3117, %v3109
  %v3326 = vpack.c.b16 %v3126, %v3118
  %v3327 = vpack.c.b16 %v3127, %v3119
  %v3328 = vpack.c.b16 %v3128, %v3120
  %v3329 = vpack.c.b16 %v3129, %v3121
  %v3330 = vpack.c.b16 %v3130, %v3122
  %v3331 = vpack.c.b16 %v3131, %v3123
  %v3332 = vpack.c.b16 %v3132, %v3124
  %v3333 = vpack.c.b16 %v3133, %v3125
  %v3334 = vpack.c.b16 %v3142, %v3134
  %v3335 = vpack.c.b16 %v3143, %v3135
  %v3336 = vpack.c.b16 %v3144, %v3136
  %v3337 = vpack.c.b16 %v3145, %v3137
  %v3338 = vpack.c.b16 %v3146, %v3138
  %v3339 = vpack.c.b16 %v3147, %v3139
  %v3340 = vpack.c.b16 %v3148, %v3140
  %v3341 = vpack.c.b16 %v3149, %v3141
  %v3342 = vpack.c.b16 %v3158, %v3150
  %v3343 = vpack.c.b16 %v3159, %v3151
  %v3344 = vpack.c.b16 %v3160, %v3152
  %v3345 = vpack.c.b16 %v3161, %v3153
  %v3346 = vpack.c.b16 %v3162, %v3154
  %v3347 = vpack.c.b16 %v3163, %v3155
  %v3348 = vpack.c.b16 %v3164, %v3156
  %v3349 = vpack.c.b16 %v3165, %v3157
  %v3350 = vpack.c.b16 %v3174, %v3166
  %v3351 = vpack.c.b16 %v3175, %v3167
  %v3352 = vpack.c.b16 %v3176, %v3168
  %v3353 = vpack.c.b16 %v3177, %v3169
  %v3354 = vpack.c.b16 %v3178, %v3170
  %v3355 = vpack.c.b16 %v3179, %v3171
  %v3356 = vpack.c.b16 %v3180, %v3172
  %v3357 = vpack.c.b16 %v3181, %v3173
  %v3358 = vpack.c.b16 %v3190, %v3182
  %v3359 = vpack.c.b16 %v3191, %v3183
  %v3360 = vpack.c.b16 %v3192, %v3184
  %v3361 = vpack.c.b16 %v3193, %v3185
  %v3362 = vpack.c.b16 %v3194, %v3186
  %v3363 = vpack.c.b16 %v3195, %v3187
  %v3364 = vpack.c.b16 %v3196, %v3188
  %v3365 = vpack.c.b16 %v3197, %v3189
  %v3366 = vpack.c.b16 %v3206, %v3198
  %v3367 = vpack.c.b16 %v3207, %v3199
  %v3368 = vpack.c.b16 %v3208, %v3200
  %v3369 = vpack.c.b16 %v3209, %v3201
  %v3370 = vpack.c.b16 %v3210, %v3202
  %v3371 = vpack.c.b16 %v3211, %v3203
  %v3372 = vpack.c.b16 %v3212, %v3204
  %v3373 = vpack.c.b16 %v3213, %v3205
  %v3374 = vpack.c.b16 %v3222, %v3214
  %v3375 = vpack.c.b16 %v3223, %v3215
  %v3376 = vpack.c.b16 %v3224, %v3216
  %v3377 = vpack.c.b16 %v3225, %v3217
  %v3378 = vpack.c.b16 %v3226, %v3218
  %v3379 = vpack.c.b16 %v3227, %v3219
  %v3380 = vpack.c.b16 %v3228, %v3220
  %v3381 = vpack.c.b16 %v3229, %v3221
  %v3382 = vpack.c.b16 %v3238, %v3230
  %v3383 = vpack.c.b16 %v3239, %v3231
  %v3384 = vpack.c.b16 %v3240, %v3232
  %v3385 = vpack.c.b16 %v3241, %v3233
  %v3386 = vpack.c.b16 %v3242, %v3234
  %v3387 = vpack.c.b16 %v3243, %v3235
  %v3388 = vpack.c.b16 %v3244, %v3236
  %v3389 = vpack.c.b16 %v3245, %v3237
  %v3390 = vpack.c.b16 %v3254, %v3246
  %v3391 = vpack.c.b16 %v3255, %v3247
  %v3392 = vpack.c.b16 %v3256, %v3248
  %v3393 = vpack.c.b16 %v3257, %v3249
  %v3394 = vpack.c.b16 %v3258, %v3250
  %v3395 = vpack.c.b16 %v3259, %v3251
  %v3396 = vpack.c.b16 %v3260, %v3252
  %v3397 = vpack.c.b16 %v3261, %v3253
  %v3398 = vpack.c.b16 %v3270, %v3262
  %v3399 = vpack.c.b16 %v3271, %v3263
  %v3400 = vpack.c.b16 %v3272, %v3264
  %v3401 = vpack.c.b16 %v3273, %v3265
  %v3402 = vpack.c.b16 %v3274, %v3266
  %v3403 = vpack.c.b16 %v3275, %v3267
  %v3404 = vpack.c.b16 %v3276, %v3268
  %v3405 = vpack.c.b16 %v3277, %v3269
  %3534 = vmatpush.bf16.msra.mxu0 %v3334
  %3535 = vmatpush.bf16.msra.mxu0 %v3326
  %3536 = vmatpush.bf16.msra.mxu0 %v3318
  %3537 = vmatpush.bf16.msra.mxu0 %v3310
  %3538 = vmatpush.bf16.msra.mxu0 %v3302
  %3539 = vmatpush.bf16.msra.mxu0 %v3294
  %3540 = vmatpush.bf16.msra.mxu0 %v3286
  %3541 = vmatpush.bf16.msra.mxu0 %v3278
  %3542 = vmatmul.bf16.gmra.mxu0 %v2764
  %v3543 = vpop.f32.mrf.mxu0
  %v3544 = vadd.f32 0.0, %v3543
  %v3545 = vpop.f32.mrf.mxu0
  %3546 = vdwg.mxu0
  %3547 = vmatpush.bf16.msra.mxu0 %v3398
  %3548 = vmatpush.bf16.msra.mxu0 %v3390
  %3549 = vmatpush.bf16.msra.mxu0 %v3382
  %3550 = vmatpush.bf16.msra.mxu0 %v3374
  %3551 = vmatpush.bf16.msra.mxu0 %v3366
  %3552 = vmatpush.bf16.msra.mxu0 %v3358
  %3553 = vmatpush.bf16.msra.mxu0 %v3350
  %3554 = vmatpush.bf16.msra.mxu0 %v3342
  %3555 = vmatmul.bf16.gmra.mxu0 %v2765
  %v3556 = vpop.f32.mrf.mxu0
  %v3557 = vadd.f32 %v3544, %v3556
  %v3558 = vpop.f32.mrf.mxu0
  %3559 = vdwg.mxu0
  %3560 = vmatpush.bf16.msra.mxu0 %v3335
  %3561 = vmatpush.bf16.msra.mxu0 %v3327
  %3562 = vmatpush.bf16.msra.mxu0 %v3319
  %3563 = vmatpush.bf16.msra.mxu0 %v3311
  %3564 = vmatpush.bf16.msra.mxu0 %v3303
  %3565 = vmatpush.bf16.msra.mxu0 %v3295
  %3566 = vmatpush.bf16.msra.mxu0 %v3287
  %3567 = vmatpush.bf16.msra.mxu0 %v3279
  %3568 = vmatmul.bf16.gmra.mxu0 %v2764
  %v3569 = vpop.f32.mrf.mxu0
  %v3570 = vadd.f32 0.0, %v3569
  %v3571 = vpop.f32.mrf.mxu0
  %3572 = vdwg.mxu0
  %3573 = vmatpush.bf16.msra.mxu0 %v3399
  %3574 = vmatpush.bf16.msra.mxu0 %v3391
  %3575 = vmatpush.bf16.msra.mxu0 %v3383
  %3576 = vmatpush.bf16.msra.mxu0 %v3375
  %3577 = vmatpush.bf16.msra.mxu0 %v3367
  %3578 = vmatpush.bf16.msra.mxu0 %v3359
  %3579 = vmatpush.bf16.msra.mxu0 %v3351
  %3580 = vmatpush.bf16.msra.mxu0 %v3343
  %3581 = vmatmul.bf16.gmra.mxu0 %v2765
  %v3582 = vpop.f32.mrf.mxu0
  %v3583 = vadd.f32 %v3570, %v3582
  %v3584 = vpop.f32.mrf.mxu0
  %3585 = vdwg.mxu0
  %3586 = vmatpush.bf16.msra.mxu0 %v3336
  %3587 = vmatpush.bf16.msra.mxu0 %v3328
  %3588 = vmatpush.bf16.msra.mxu0 %v3320
  %3589 = vmatpush.bf16.msra.mxu0 %v3312
  %3590 = vmatpush.bf16.msra.mxu0 %v3304
  %3591 = vmatpush.bf16.msra.mxu0 %v3296
  %3592 = vmatpush.bf16.msra.mxu0 %v3288
  %3593 = vmatpush.bf16.msra.mxu0 %v3280
  %3594 = vmatmul.bf16.gmra.mxu0 %v2764
  %v3595 = vpop.f32.mrf.mxu0
  %v3596 = vadd.f32 0.0, %v3595
  %v3597 = vpop.f32.mrf.mxu0
  %3598 = vdwg.mxu0
  %3599 = vmatpush.bf16.msra.mxu0 %v3400
  %3600 = vmatpush.bf16.msra.mxu0 %v3392
  %3601 = vmatpush.bf16.msra.mxu0 %v3384
  %3602 = vmatpush.bf16.msra.mxu0 %v3376
  %3603 = vmatpush.bf16.msra.mxu0 %v3368
  %3604 = vmatpush.bf16.msra.mxu0 %v3360
  %3605 = vmatpush.bf16.msra.mxu0 %v3352
  %3606 = vmatpush.bf16.msra.mxu0 %v3344
  %3607 = vmatmul.bf16.gmra.mxu0 %v2765
  %v3608 = vpop.f32.mrf.mxu0
  %v3609 = vadd.f32 %v3596, %v3608
  %v3610 = vpop.f32.mrf.mxu0
  %3611 = vdwg.mxu0
  %3612 = vmatpush.bf16.msra.mxu0 %v3337
  %3613 = vmatpush.bf16.msra.mxu0 %v3329
  %3614 = vmatpush.bf16.msra.mxu0 %v3321
  %3615 = vmatpush.bf16.msra.mxu0 %v3313
  %3616 = vmatpush.bf16.msra.mxu0 %v3305
  %3617 = vmatpush.bf16.msra.mxu0 %v3297
  %3618 = vmatpush.bf16.msra.mxu0 %v3289
  %3619 = vmatpush.bf16.msra.mxu0 %v3281
  %3620 = vmatmul.bf16.gmra.mxu0 %v2764
  %v3621 = vpop.f32.mrf.mxu0
  %v3622 = vadd.f32 0.0, %v3621
  %v3623 = vpop.f32.mrf.mxu0
  %3624 = vdwg.mxu0
  %3625 = vmatpush.bf16.msra.mxu0 %v3401
  %3626 = vmatpush.bf16.msra.mxu0 %v3393
  %3627 = vmatpush.bf16.msra.mxu0 %v3385
  %3628 = vmatpush.bf16.msra.mxu0 %v3377
  %3629 = vmatpush.bf16.msra.mxu0 %v3369
  %3630 = vmatpush.bf16.msra.mxu0 %v3361
  %3631 = vmatpush.bf16.msra.mxu0 %v3353
  %3632 = vmatpush.bf16.msra.mxu0 %v3345
  %3633 = vmatmul.bf16.gmra.mxu0 %v2765
  %v3634 = vpop.f32.mrf.mxu0
  %v3635 = vadd.f32 %v3622, %v3634
  %v3636 = vpop.f32.mrf.mxu0
  %3637 = vdwg.mxu0
  %3638 = vmatpush.bf16.msra.mxu0 %v3338
  %3639 = vmatpush.bf16.msra.mxu0 %v3330
  %3640 = vmatpush.bf16.msra.mxu0 %v3322
  %3641 = vmatpush.bf16.msra.mxu0 %v3314
  %3642 = vmatpush.bf16.msra.mxu0 %v3306
  %3643 = vmatpush.bf16.msra.mxu0 %v3298
  %3644 = vmatpush.bf16.msra.mxu0 %v3290
  %3645 = vmatpush.bf16.msra.mxu0 %v3282
  %3646 = vmatmul.bf16.gmra.mxu0 %v2764
  %v3647 = vpop.f32.mrf.mxu0
  %v3648 = vadd.f32 0.0, %v3647
  %v3649 = vpop.f32.mrf.mxu0
  %3650 = vdwg.mxu0
  %3651 = vmatpush.bf16.msra.mxu0 %v3402
  %3652 = vmatpush.bf16.msra.mxu0 %v3394
  %3653 = vmatpush.bf16.msra.mxu0 %v3386
  %3654 = vmatpush.bf16.msra.mxu0 %v3378
  %3655 = vmatpush.bf16.msra.mxu0 %v3370
  %3656 = vmatpush.bf16.msra.mxu0 %v3362
  %3657 = vmatpush.bf16.msra.mxu0 %v3354
  %3658 = vmatpush.bf16.msra.mxu0 %v3346
  %3659 = vmatmul.bf16.gmra.mxu0 %v2765
  %v3660 = vpop.f32.mrf.mxu0
  %v3661 = vadd.f32 %v3648, %v3660
  %v3662 = vpop.f32.mrf.mxu0
  %3663 = vdwg.mxu0
  %3664 = vmatpush.bf16.msra.mxu0 %v3339
  %3665 = vmatpush.bf16.msra.mxu0 %v3331
  %3666 = vmatpush.bf16.msra.mxu0 %v3323
  %3667 = vmatpush.bf16.msra.mxu0 %v3315
  %3668 = vmatpush.bf16.msra.mxu0 %v3307
  %3669 = vmatpush.bf16.msra.mxu0 %v3299
  %3670 = vmatpush.bf16.msra.mxu0 %v3291
  %3671 = vmatpush.bf16.msra.mxu0 %v3283
  %3672 = vmatmul.bf16.gmra.mxu0 %v2764
  %v3673 = vpop.f32.mrf.mxu0
  %v3674 = vadd.f32 0.0, %v3673
  %v3675 = vpop.f32.mrf.mxu0
  %3676 = vdwg.mxu0
  %3677 = vmatpush.bf16.msra.mxu0 %v3403
  %3678 = vmatpush.bf16.msra.mxu0 %v3395
  %3679 = vmatpush.bf16.msra.mxu0 %v3387
  %3680 = vmatpush.bf16.msra.mxu0 %v3379
  %3681 = vmatpush.bf16.msra.mxu0 %v3371
  %3682 = vmatpush.bf16.msra.mxu0 %v3363
  %3683 = vmatpush.bf16.msra.mxu0 %v3355
  %3684 = vmatpush.bf16.msra.mxu0 %v3347
  %3685 = vmatmul.bf16.gmra.mxu0 %v2765
  %v3686 = vpop.f32.mrf.mxu0
  %v3687 = vadd.f32 %v3674, %v3686
  %v3688 = vpop.f32.mrf.mxu0
  %3689 = vdwg.mxu0
  %3690 = vmatpush.bf16.msra.mxu0 %v3340
  %3691 = vmatpush.bf16.msra.mxu0 %v3332
  %3692 = vmatpush.bf16.msra.mxu0 %v3324
  %3693 = vmatpush.bf16.msra.mxu0 %v3316
  %3694 = vmatpush.bf16.msra.mxu0 %v3308
  %3695 = vmatpush.bf16.msra.mxu0 %v3300
  %3696 = vmatpush.bf16.msra.mxu0 %v3292
  %3697 = vmatpush.bf16.msra.mxu0 %v3284
  %3698 = vmatmul.bf16.gmra.mxu0 %v2764
  %v3699 = vpop.f32.mrf.mxu0
  %v3700 = vadd.f32 0.0, %v3699
  %v3701 = vpop.f32.mrf.mxu0
  %3702 = vdwg.mxu0
  %3703 = vmatpush.bf16.msra.mxu0 %v3404
  %3704 = vmatpush.bf16.msra.mxu0 %v3396
  %3705 = vmatpush.bf16.msra.mxu0 %v3388
  %3706 = vmatpush.bf16.msra.mxu0 %v3380
  %3707 = vmatpush.bf16.msra.mxu0 %v3372
  %3708 = vmatpush.bf16.msra.mxu0 %v3364
  %3709 = vmatpush.bf16.msra.mxu0 %v3356
  %3710 = vmatpush.bf16.msra.mxu0 %v3348
  %3711 = vmatmul.bf16.gmra.mxu0 %v2765
  %v3712 = vpop.f32.mrf.mxu0
  %v3713 = vadd.f32 %v3700, %v3712
  %v3714 = vpop.f32.mrf.mxu0
  %3715 = vdwg.mxu0
  %3716 = vmatpush.bf16.msra.mxu0 %v3341
  %3717 = vmatpush.bf16.msra.mxu0 %v3333
  %3718 = vmatpush.bf16.msra.mxu0 %v3325
  %3719 = vmatpush.bf16.msra.mxu0 %v3317
  %3720 = vmatpush.bf16.msra.mxu0 %v3309
  %3721 = vmatpush.bf16.msra.mxu0 %v3301
  %3722 = vmatpush.bf16.msra.mxu0 %v3293
  %3723 = vmatpush.bf16.msra.mxu0 %v3285
  %3724 = vmatmul.bf16.gmra.mxu0 %v2764
  %v3725 = vpop.f32.mrf.mxu0
  %v3726 = vadd.f32 0.0, %v3725
  %v3727 = vpop.f32.mrf.mxu0
  %3728 = vdwg.mxu0
  %3729 = vmatpush.bf16.msra.mxu0 %v3405
  %3730 = vmatpush.bf16.msra.mxu0 %v3397
  %3731 = vmatpush.bf16.msra.mxu0 %v3389
  %3732 = vmatpush.bf16.msra.mxu0 %v3381
  %3733 = vmatpush.bf16.msra.mxu0 %v3373
  %3734 = vmatpush.bf16.msra.mxu0 %v3365
  %3735 = vmatpush.bf16.msra.mxu0 %v3357
  %3736 = vmatpush.bf16.msra.mxu0 %v3349
  %3737 = vmatmul.bf16.gmra.mxu0 %v2765
  %v3738 = vpop.f32.mrf.mxu0
  %v3739 = vadd.f32 %v3726, %v3738
  %v3740 = vpop.f32.mrf.mxu0
  %3741 = vdwg.mxu0
  %v3742 = vadd.f32 %v2758, %v3557
  %v3743 = vadd.f32 %v2759, %v3583
  %v3744 = vadd.f32 %v2760, %v3609
  %v3745 = vadd.f32 %v2761, %v3635
  %v3746 = vadd.f32 %v3661, %v440
  %v3747 = vadd.f32 %v3687, %v441
  %v3748 = vadd.f32 %v3713, %v442
  %v3749 = vadd.f32 %v3739, %v443
  %v3750 = vxor.u32 %v3746, 2147483648
  %v3751 = vmul.f32 %v3750, 1.442695
  %v3752 = vpow.pop %v3751
  %v3753 = vadd.f32 %v3752, 1.0
  %v3754 = vrcp.pop %v3753
  %v3755 = vmul.f32 %v3753, %v3754
  %v3756 = vsub.f32 1.0, %v3755
  %v3757 = vmul.f32 %v3754, %v3756
  %v3758 = vadd.f32 %v3754, %v3757
  %vm3759 = vweird.f32 %v3753
  %vm3760 = vweird.f32 %v3754
  %vm3761 = vmor %vm3759, %vm3760
  %v3762 = vsel %vm3761, %v3754, %v3758
  %v3763 = vand.u32 2147483647, %v3753
  %vm3764 = vcmp.eq.f32.partialorder %v3763, 8.507059e+37
  %v3765 = vand.u32 %v3753, 2147483648
  %v3766 = vor.u32 1.1754944e-38, %v3765
  %v3767 = vsel %vm3764, %v3766, %v3762
  %v3768 = vmul.f32 1.0, %v3767
  %v3769 = vxor.u32 %v3747, 2147483648
  %v3770 = vmul.f32 %v3769, 1.442695
  %v3771 = vpow.pop %v3770
  %v3772 = vadd.f32 %v3771, 1.0
  %v3773 = vrcp.pop %v3772
  %v3774 = vmul.f32 %v3772, %v3773
  %v3775 = vsub.f32 1.0, %v3774
  %v3776 = vmul.f32 %v3773, %v3775
  %v3777 = vadd.f32 %v3773, %v3776
  %vm3778 = vweird.f32 %v3772
  %vm3779 = vweird.f32 %v3773
  %vm3780 = vmor %vm3778, %vm3779
  %v3781 = vsel %vm3780, %v3773, %v3777
  %v3782 = vand.u32 2147483647, %v3772
  %vm3783 = vcmp.eq.f32.partialorder %v3782, 8.507059e+37
  %v3784 = vand.u32 %v3772, 2147483648
  %v3785 = vor.u32 1.1754944e-38, %v3784
  %v3786 = vsel %vm3783, %v3785, %v3781
  %v3787 = vmul.f32 1.0, %v3786
  %v3788 = vtanh.pop %v3748
  %v3789 = vxor.u32 %v3749, 2147483648
  %v3790 = vmul.f32 %v3789, 1.442695
  %v3791 = vpow.pop %v3790
  %v3792 = vadd.f32 %v3791, 1.0
  %v3793 = vrcp.pop %v3792
  %v3794 = vmul.f32 %v3792, %v3793
  %v3795 = vsub.f32 1.0, %v3794
  %v3796 = vmul.f32 %v3793, %v3795
  %v3797 = vadd.f32 %v3793, %v3796
  %vm3798 = vweird.f32 %v3792
  %vm3799 = vweird.f32 %v3793
  %vm3800 = vmor %vm3798, %vm3799
  %v3801 = vsel %vm3800, %v3793, %v3797
  %v3802 = vand.u32 2147483647, %v3792
  %vm3803 = vcmp.eq.f32.partialorder %v3802, 8.507059e+37
  %v3804 = vand.u32 %v3792, 2147483648
  %v3805 = vor.u32 1.1754944e-38, %v3804
  %v3806 = vsel %vm3803, %v3805, %v3801
  %v3807 = vmul.f32 1.0, %v3806
  %v3808 = vmul.f32 %v3787, %v2690
  %v3809 = vmul.f32 %v3768, %v3788
  %v3810 = vadd.f32 %v3808, %v3809
  %v3811 = vtanh.pop %v3810
  %v3812 = vmul.f32 %v3807, %v3811
  %3813 = vst [vmem:[#allocation3 + $0x8] sm:$0xff] %v3812
  %v3814 = vxor.u32 %v3742, 2147483648
  %v3815 = vmul.f32 %v3814, 1.442695
  %v3816 = vpow.pop %v3815
  %v3817 = vadd.f32 %v3816, 1.0
  %v3818 = vrcp.pop %v3817
  %v3819 = vmul.f32 %v3817, %v3818
  %v3820 = vsub.f32 1.0, %v3819
  %v3821 = vmul.f32 %v3818, %v3820
  %v3822 = vadd.f32 %v3818, %v3821
  %vm3823 = vweird.f32 %v3817
  %vm3824 = vweird.f32 %v3818
  %vm3825 = vmor %vm3823, %vm3824
  %v3826 = vsel %vm3825, %v3818, %v3822
  %v3827 = vand.u32 2147483647, %v3817
  %vm3828 = vcmp.eq.f32.partialorder %v3827, 8.507059e+37
  %v3829 = vand.u32 %v3817, 2147483648
  %v3830 = vor.u32 1.1754944e-38, %v3829
  %v3831 = vsel %vm3828, %v3830, %v3826
  %v3832 = vmul.f32 1.0, %v3831
  %v3833 = vxor.u32 %v3743, 2147483648
  %v3834 = vmul.f32 %v3833, 1.442695
  %v3835 = vpow.pop %v3834
  %v3836 = vadd.f32 %v3835, 1.0
  %v3837 = vrcp.pop %v3836
  %v3838 = vmul.f32 %v3836, %v3837
  %v3839 = vsub.f32 1.0, %v3838
  %v3840 = vmul.f32 %v3837, %v3839
  %v3841 = vadd.f32 %v3837, %v3840
  %vm3842 = vweird.f32 %v3836
  %vm3843 = vweird.f32 %v3837
  %vm3844 = vmor %vm3842, %vm3843
  %v3845 = vsel %vm3844, %v3837, %v3841
  %v3846 = vand.u32 2147483647, %v3836
  %vm3847 = vcmp.eq.f32.partialorder %v3846, 8.507059e+37
  %v3848 = vand.u32 %v3836, 2147483648
  %v3849 = vor.u32 1.1754944e-38, %v3848
  %v3850 = vsel %vm3847, %v3849, %v3845
  %v3851 = vmul.f32 1.0, %v3850
  %v3852 = vtanh.pop %v3744
  %v3853 = vxor.u32 %v3745, 2147483648
  %v3854 = vmul.f32 %v3853, 1.442695
  %v3855 = vpow.pop %v3854
  %v3856 = vadd.f32 %v3855, 1.0
  %v3857 = vrcp.pop %v3856
  %v3858 = vmul.f32 %v3856, %v3857
  %v3859 = vsub.f32 1.0, %v3858
  %v3860 = vmul.f32 %v3857, %v3859
  %v3861 = vadd.f32 %v3857, %v3860
  %vm3862 = vweird.f32 %v3856
  %vm3863 = vweird.f32 %v3857
  %vm3864 = vmor %vm3862, %vm3863
  %v3865 = vsel %vm3864, %v3857, %v3861
  %v3866 = vand.u32 2147483647, %v3856
  %vm3867 = vcmp.eq.f32.partialorder %v3866, 8.507059e+37
  %v3868 = vand.u32 %v3856, 2147483648
  %v3869 = vor.u32 1.1754944e-38, %v3868
  %v3870 = vsel %vm3867, %v3869, %v3865
  %v3871 = vmul.f32 1.0, %v3870
  %v3872 = vmul.f32 %v3851, %v2754
  %v3873 = vmul.f32 %v3832, %v3852
  %v3874 = vadd.f32 %v3872, %v3873
  %v3875 = vtanh.pop %v3874
  %v3876 = vmul.f32 %v3871, %v3875
  %3877 = vst [vmem:[#allocation3] sm:$0xff] %v3876
  %v3878 = vld [vmem:[#allocation2 + $0x80] sm:$0xff]
  %v3879 = vld [vmem:[#allocation2 + $0x88] sm:$0xff]
  %v3880 = vld [vmem:[#allocation2 + $0x90] sm:$0xff]
  %v3881 = vld [vmem:[#allocation2 + $0x98] sm:$0xff]
  %v3882 = vld [vmem:[#allocation3] sm:$0xff]
  %v3883 = vld [vmem:[#allocation3 + $0x8] sm:$0xff]
  %v3884 = vpack.c.bf16 %v3882, %v3882
  %v3885 = vpack.c.bf16 %v3883, %v3883
  %v3886 = vld [vmem:[%s3] sm:$0xff]
  %v3887 = vld [vmem:[%s3 + $0x8] sm:$0xff]
  %v3888 = vld [vmem:[%s3 + $0x10] sm:$0xff]
  %v3889 = vld [vmem:[%s3 + $0x18] sm:$0xff]
  %v3890 = vld [vmem:[%s3 + $0x20] sm:$0xff]
  %v3891 = vld [vmem:[%s3 + $0x28] sm:$0xff]
  %v3892 = vld [vmem:[%s3 + $0x30] sm:$0xff]
  %v3893 = vld [vmem:[%s3 + $0x38] sm:$0xff]
  %v3894 = vld [vmem:[%s3 + $0x40] sm:$0xff]
  %v3895 = vld [vmem:[%s3 + $0x48] sm:$0xff]
  %v3896 = vld [vmem:[%s3 + $0x50] sm:$0xff]
  %v3897 = vld [vmem:[%s3 + $0x58] sm:$0xff]
  %v3898 = vld [vmem:[%s3 + $0x60] sm:$0xff]
  %v3899 = vld [vmem:[%s3 + $0x68] sm:$0xff]
  %v3900 = vld [vmem:[%s3 + $0x70] sm:$0xff]
  %v3901 = vld [vmem:[%s3 + $0x78] sm:$0xff]
  %v3902 = vld [vmem:[%s3 + $0x80] sm:$0xff]
  %v3903 = vld [vmem:[%s3 + $0x88] sm:$0xff]
  %v3904 = vld [vmem:[%s3 + $0x90] sm:$0xff]
  %v3905 = vld [vmem:[%s3 + $0x98] sm:$0xff]
  %v3906 = vld [vmem:[%s3 + $0xa0] sm:$0xff]
  %v3907 = vld [vmem:[%s3 + $0xa8] sm:$0xff]
  %v3908 = vld [vmem:[%s3 + $0xb0] sm:$0xff]
  %v3909 = vld [vmem:[%s3 + $0xb8] sm:$0xff]
  %v3910 = vld [vmem:[%s3 + $0xc0] sm:$0xff]
  %v3911 = vld [vmem:[%s3 + $0xc8] sm:$0xff]
  %v3912 = vld [vmem:[%s3 + $0xd0] sm:$0xff]
  %v3913 = vld [vmem:[%s3 + $0xd8] sm:$0xff]
  %v3914 = vld [vmem:[%s3 + $0xe0] sm:$0xff]
  %v3915 = vld [vmem:[%s3 + $0xe8] sm:$0xff]
  %v3916 = vld [vmem:[%s3 + $0xf0] sm:$0xff]
  %v3917 = vld [vmem:[%s3 + $0xf8] sm:$0xff]
  %v3918 = vld [vmem:[%s3 + $0x100] sm:$0xff]
  %v3919 = vld [vmem:[%s3 + $0x108] sm:$0xff]
  %v3920 = vld [vmem:[%s3 + $0x110] sm:$0xff]
  %v3921 = vld [vmem:[%s3 + $0x118] sm:$0xff]
  %v3922 = vld [vmem:[%s3 + $0x120] sm:$0xff]
  %v3923 = vld [vmem:[%s3 + $0x128] sm:$0xff]
  %v3924 = vld [vmem:[%s3 + $0x130] sm:$0xff]
  %v3925 = vld [vmem:[%s3 + $0x138] sm:$0xff]
  %v3926 = vld [vmem:[%s3 + $0x140] sm:$0xff]
  %v3927 = vld [vmem:[%s3 + $0x148] sm:$0xff]
  %v3928 = vld [vmem:[%s3 + $0x150] sm:$0xff]
  %v3929 = vld [vmem:[%s3 + $0x158] sm:$0xff]
  %v3930 = vld [vmem:[%s3 + $0x160] sm:$0xff]
  %v3931 = vld [vmem:[%s3 + $0x168] sm:$0xff]
  %v3932 = vld [vmem:[%s3 + $0x170] sm:$0xff]
  %v3933 = vld [vmem:[%s3 + $0x178] sm:$0xff]
  %v3934 = vld [vmem:[%s3 + $0x180] sm:$0xff]
  %v3935 = vld [vmem:[%s3 + $0x188] sm:$0xff]
  %v3936 = vld [vmem:[%s3 + $0x190] sm:$0xff]
  %v3937 = vld [vmem:[%s3 + $0x198] sm:$0xff]
  %v3938 = vld [vmem:[%s3 + $0x1a0] sm:$0xff]
  %v3939 = vld [vmem:[%s3 + $0x1a8] sm:$0xff]
  %v3940 = vld [vmem:[%s3 + $0x1b0] sm:$0xff]
  %v3941 = vld [vmem:[%s3 + $0x1b8] sm:$0xff]
  %v3942 = vld [vmem:[%s3 + $0x1c0] sm:$0xff]
  %v3943 = vld [vmem:[%s3 + $0x1c8] sm:$0xff]
  %v3944 = vld [vmem:[%s3 + $0x1d0] sm:$0xff]
  %v3945 = vld [vmem:[%s3 + $0x1d8] sm:$0xff]
  %v3946 = vld [vmem:[%s3 + $0x1e0] sm:$0xff]
  %v3947 = vld [vmem:[%s3 + $0x1e8] sm:$0xff]
  %v3948 = vld [vmem:[%s3 + $0x1f0] sm:$0xff]
  %v3949 = vld [vmem:[%s3 + $0x1f8] sm:$0xff]
  %v3950 = vld [vmem:[%s3 + $0x200] sm:$0xff]
  %v3951 = vld [vmem:[%s3 + $0x208] sm:$0xff]
  %v3952 = vld [vmem:[%s3 + $0x210] sm:$0xff]
  %v3953 = vld [vmem:[%s3 + $0x218] sm:$0xff]
  %v3954 = vld [vmem:[%s3 + $0x220] sm:$0xff]
  %v3955 = vld [vmem:[%s3 + $0x228] sm:$0xff]
  %v3956 = vld [vmem:[%s3 + $0x230] sm:$0xff]
  %v3957 = vld [vmem:[%s3 + $0x238] sm:$0xff]
  %v3958 = vld [vmem:[%s3 + $0x240] sm:$0xff]
  %v3959 = vld [vmem:[%s3 + $0x248] sm:$0xff]
  %v3960 = vld [vmem:[%s3 + $0x250] sm:$0xff]
  %v3961 = vld [vmem:[%s3 + $0x258] sm:$0xff]
  %v3962 = vld [vmem:[%s3 + $0x260] sm:$0xff]
  %v3963 = vld [vmem:[%s3 + $0x268] sm:$0xff]
  %v3964 = vld [vmem:[%s3 + $0x270] sm:$0xff]
  %v3965 = vld [vmem:[%s3 + $0x278] sm:$0xff]
  %v3966 = vld [vmem:[%s3 + $0x280] sm:$0xff]
  %v3967 = vld [vmem:[%s3 + $0x288] sm:$0xff]
  %v3968 = vld [vmem:[%s3 + $0x290] sm:$0xff]
  %v3969 = vld [vmem:[%s3 + $0x298] sm:$0xff]
  %v3970 = vld [vmem:[%s3 + $0x2a0] sm:$0xff]
  %v3971 = vld [vmem:[%s3 + $0x2a8] sm:$0xff]
  %v3972 = vld [vmem:[%s3 + $0x2b0] sm:$0xff]
  %v3973 = vld [vmem:[%s3 + $0x2b8] sm:$0xff]
  %v3974 = vld [vmem:[%s3 + $0x2c0] sm:$0xff]
  %v3975 = vld [vmem:[%s3 + $0x2c8] sm:$0xff]
  %v3976 = vld [vmem:[%s3 + $0x2d0] sm:$0xff]
  %v3977 = vld [vmem:[%s3 + $0x2d8] sm:$0xff]
  %v3978 = vld [vmem:[%s3 + $0x2e0] sm:$0xff]
  %v3979 = vld [vmem:[%s3 + $0x2e8] sm:$0xff]
  %v3980 = vld [vmem:[%s3 + $0x2f0] sm:$0xff]
  %v3981 = vld [vmem:[%s3 + $0x2f8] sm:$0xff]
  %v3982 = vld [vmem:[%s3 + $0x300] sm:$0xff]
  %v3983 = vld [vmem:[%s3 + $0x308] sm:$0xff]
  %v3984 = vld [vmem:[%s3 + $0x310] sm:$0xff]
  %v3985 = vld [vmem:[%s3 + $0x318] sm:$0xff]
  %v3986 = vld [vmem:[%s3 + $0x320] sm:$0xff]
  %v3987 = vld [vmem:[%s3 + $0x328] sm:$0xff]
  %v3988 = vld [vmem:[%s3 + $0x330] sm:$0xff]
  %v3989 = vld [vmem:[%s3 + $0x338] sm:$0xff]
  %v3990 = vld [vmem:[%s3 + $0x340] sm:$0xff]
  %v3991 = vld [vmem:[%s3 + $0x348] sm:$0xff]
  %v3992 = vld [vmem:[%s3 + $0x350] sm:$0xff]
  %v3993 = vld [vmem:[%s3 + $0x358] sm:$0xff]
  %v3994 = vld [vmem:[%s3 + $0x360] sm:$0xff]
  %v3995 = vld [vmem:[%s3 + $0x368] sm:$0xff]
  %v3996 = vld [vmem:[%s3 + $0x370] sm:$0xff]
  %v3997 = vld [vmem:[%s3 + $0x378] sm:$0xff]
  %v3998 = vld [vmem:[%s3 + $0x380] sm:$0xff]
  %v3999 = vld [vmem:[%s3 + $0x388] sm:$0xff]
  %v4000 = vld [vmem:[%s3 + $0x390] sm:$0xff]
  %v4001 = vld [vmem:[%s3 + $0x398] sm:$0xff]
  %v4002 = vld [vmem:[%s3 + $0x3a0] sm:$0xff]
  %v4003 = vld [vmem:[%s3 + $0x3a8] sm:$0xff]
  %v4004 = vld [vmem:[%s3 + $0x3b0] sm:$0xff]
  %v4005 = vld [vmem:[%s3 + $0x3b8] sm:$0xff]
  %v4006 = vld [vmem:[%s3 + $0x3c0] sm:$0xff]
  %v4007 = vld [vmem:[%s3 + $0x3c8] sm:$0xff]
  %v4008 = vld [vmem:[%s3 + $0x3d0] sm:$0xff]
  %v4009 = vld [vmem:[%s3 + $0x3d8] sm:$0xff]
  %v4010 = vld [vmem:[%s3 + $0x3e0] sm:$0xff]
  %v4011 = vld [vmem:[%s3 + $0x3e8] sm:$0xff]
  %v4012 = vld [vmem:[%s3 + $0x3f0] sm:$0xff]
  %v4013 = vld [vmem:[%s3 + $0x3f8] sm:$0xff]
  %v4142 = vunpack.c.l.b16 %v3886
  %v4143 = vunpack.c.h.b16 %v3886
  %v4144 = vunpack.c.l.b16 %v3887
  %v4145 = vunpack.c.h.b16 %v3887
  %v4146 = vunpack.c.l.b16 %v3888
  %v4147 = vunpack.c.h.b16 %v3888
  %v4148 = vunpack.c.l.b16 %v3889
  %v4149 = vunpack.c.h.b16 %v3889
  %v4150 = vunpack.c.l.b16 %v3890
  %v4151 = vunpack.c.h.b16 %v3890
  %v4152 = vunpack.c.l.b16 %v3891
  %v4153 = vunpack.c.h.b16 %v3891
  %v4154 = vunpack.c.l.b16 %v3892
  %v4155 = vunpack.c.h.b16 %v3892
  %v4156 = vunpack.c.l.b16 %v3893
  %v4157 = vunpack.c.h.b16 %v3893
  %v4158 = vunpack.c.l.b16 %v3894
  %v4159 = vunpack.c.h.b16 %v3894
  %v4160 = vunpack.c.l.b16 %v3895
  %v4161 = vunpack.c.h.b16 %v3895
  %v4162 = vunpack.c.l.b16 %v3896
  %v4163 = vunpack.c.h.b16 %v3896
  %v4164 = vunpack.c.l.b16 %v3897
  %v4165 = vunpack.c.h.b16 %v3897
  %v4166 = vunpack.c.l.b16 %v3898
  %v4167 = vunpack.c.h.b16 %v3898
  %v4168 = vunpack.c.l.b16 %v3899
  %v4169 = vunpack.c.h.b16 %v3899
  %v4170 = vunpack.c.l.b16 %v3900
  %v4171 = vunpack.c.h.b16 %v3900
  %v4172 = vunpack.c.l.b16 %v3901
  %v4173 = vunpack.c.h.b16 %v3901
  %v4174 = vunpack.c.l.b16 %v3902
  %v4175 = vunpack.c.h.b16 %v3902
  %v4176 = vunpack.c.l.b16 %v3903
  %v4177 = vunpack.c.h.b16 %v3903
  %v4178 = vunpack.c.l.b16 %v3904
  %v4179 = vunpack.c.h.b16 %v3904
  %v4180 = vunpack.c.l.b16 %v3905
  %v4181 = vunpack.c.h.b16 %v3905
  %v4182 = vunpack.c.l.b16 %v3906
  %v4183 = vunpack.c.h.b16 %v3906
  %v4184 = vunpack.c.l.b16 %v3907
  %v4185 = vunpack.c.h.b16 %v3907
  %v4186 = vunpack.c.l.b16 %v3908
  %v4187 = vunpack.c.h.b16 %v3908
  %v4188 = vunpack.c.l.b16 %v3909
  %v4189 = vunpack.c.h.b16 %v3909
  %v4190 = vunpack.c.l.b16 %v3910
  %v4191 = vunpack.c.h.b16 %v3910
  %v4192 = vunpack.c.l.b16 %v3911
  %v4193 = vunpack.c.h.b16 %v3911
  %v4194 = vunpack.c.l.b16 %v3912
  %v4195 = vunpack.c.h.b16 %v3912
  %v4196 = vunpack.c.l.b16 %v3913
  %v4197 = vunpack.c.h.b16 %v3913
  %v4198 = vunpack.c.l.b16 %v3914
  %v4199 = vunpack.c.h.b16 %v3914
  %v4200 = vunpack.c.l.b16 %v3915
  %v4201 = vunpack.c.h.b16 %v3915
  %v4202 = vunpack.c.l.b16 %v3916
  %v4203 = vunpack.c.h.b16 %v3916
  %v4204 = vunpack.c.l.b16 %v3917
  %v4205 = vunpack.c.h.b16 %v3917
  %v4206 = vunpack.c.l.b16 %v3918
  %v4207 = vunpack.c.h.b16 %v3918
  %v4208 = vunpack.c.l.b16 %v3919
  %v4209 = vunpack.c.h.b16 %v3919
  %v4210 = vunpack.c.l.b16 %v3920
  %v4211 = vunpack.c.h.b16 %v3920
  %v4212 = vunpack.c.l.b16 %v3921
  %v4213 = vunpack.c.h.b16 %v3921
  %v4214 = vunpack.c.l.b16 %v3922
  %v4215 = vunpack.c.h.b16 %v3922
  %v4216 = vunpack.c.l.b16 %v3923
  %v4217 = vunpack.c.h.b16 %v3923
  %v4218 = vunpack.c.l.b16 %v3924
  %v4219 = vunpack.c.h.b16 %v3924
  %v4220 = vunpack.c.l.b16 %v3925
  %v4221 = vunpack.c.h.b16 %v3925
  %v4222 = vunpack.c.l.b16 %v3926
  %v4223 = vunpack.c.h.b16 %v3926
  %v4224 = vunpack.c.l.b16 %v3927
  %v4225 = vunpack.c.h.b16 %v3927
  %v4226 = vunpack.c.l.b16 %v3928
  %v4227 = vunpack.c.h.b16 %v3928
  %v4228 = vunpack.c.l.b16 %v3929
  %v4229 = vunpack.c.h.b16 %v3929
  %v4230 = vunpack.c.l.b16 %v3930
  %v4231 = vunpack.c.h.b16 %v3930
  %v4232 = vunpack.c.l.b16 %v3931
  %v4233 = vunpack.c.h.b16 %v3931
  %v4234 = vunpack.c.l.b16 %v3932
  %v4235 = vunpack.c.h.b16 %v3932
  %v4236 = vunpack.c.l.b16 %v3933
  %v4237 = vunpack.c.h.b16 %v3933
  %v4238 = vunpack.c.l.b16 %v3934
  %v4239 = vunpack.c.h.b16 %v3934
  %v4240 = vunpack.c.l.b16 %v3935
  %v4241 = vunpack.c.h.b16 %v3935
  %v4242 = vunpack.c.l.b16 %v3936
  %v4243 = vunpack.c.h.b16 %v3936
  %v4244 = vunpack.c.l.b16 %v3937
  %v4245 = vunpack.c.h.b16 %v3937
  %v4246 = vunpack.c.l.b16 %v3938
  %v4247 = vunpack.c.h.b16 %v3938
  %v4248 = vunpack.c.l.b16 %v3939
  %v4249 = vunpack.c.h.b16 %v3939
  %v4250 = vunpack.c.l.b16 %v3940
  %v4251 = vunpack.c.h.b16 %v3940
  %v4252 = vunpack.c.l.b16 %v3941
  %v4253 = vunpack.c.h.b16 %v3941
  %v4254 = vunpack.c.l.b16 %v3942
  %v4255 = vunpack.c.h.b16 %v3942
  %v4256 = vunpack.c.l.b16 %v3943
  %v4257 = vunpack.c.h.b16 %v3943
  %v4258 = vunpack.c.l.b16 %v3944
  %v4259 = vunpack.c.h.b16 %v3944
  %v4260 = vunpack.c.l.b16 %v3945
  %v4261 = vunpack.c.h.b16 %v3945
  %v4262 = vunpack.c.l.b16 %v3946
  %v4263 = vunpack.c.h.b16 %v3946
  %v4264 = vunpack.c.l.b16 %v3947
  %v4265 = vunpack.c.h.b16 %v3947
  %v4266 = vunpack.c.l.b16 %v3948
  %v4267 = vunpack.c.h.b16 %v3948
  %v4268 = vunpack.c.l.b16 %v3949
  %v4269 = vunpack.c.h.b16 %v3949
  %v4270 = vunpack.c.l.b16 %v3950
  %v4271 = vunpack.c.h.b16 %v3950
  %v4272 = vunpack.c.l.b16 %v3951
  %v4273 = vunpack.c.h.b16 %v3951
  %v4274 = vunpack.c.l.b16 %v3952
  %v4275 = vunpack.c.h.b16 %v3952
  %v4276 = vunpack.c.l.b16 %v3953
  %v4277 = vunpack.c.h.b16 %v3953
  %v4278 = vunpack.c.l.b16 %v3954
  %v4279 = vunpack.c.h.b16 %v3954
  %v4280 = vunpack.c.l.b16 %v3955
  %v4281 = vunpack.c.h.b16 %v3955
  %v4282 = vunpack.c.l.b16 %v3956
  %v4283 = vunpack.c.h.b16 %v3956
  %v4284 = vunpack.c.l.b16 %v3957
  %v4285 = vunpack.c.h.b16 %v3957
  %v4286 = vunpack.c.l.b16 %v3958
  %v4287 = vunpack.c.h.b16 %v3958
  %v4288 = vunpack.c.l.b16 %v3959
  %v4289 = vunpack.c.h.b16 %v3959
  %v4290 = vunpack.c.l.b16 %v3960
  %v4291 = vunpack.c.h.b16 %v3960
  %v4292 = vunpack.c.l.b16 %v3961
  %v4293 = vunpack.c.h.b16 %v3961
  %v4294 = vunpack.c.l.b16 %v3962
  %v4295 = vunpack.c.h.b16 %v3962
  %v4296 = vunpack.c.l.b16 %v3963
  %v4297 = vunpack.c.h.b16 %v3963
  %v4298 = vunpack.c.l.b16 %v3964
  %v4299 = vunpack.c.h.b16 %v3964
  %v4300 = vunpack.c.l.b16 %v3965
  %v4301 = vunpack.c.h.b16 %v3965
  %v4302 = vunpack.c.l.b16 %v3966
  %v4303 = vunpack.c.h.b16 %v3966
  %v4304 = vunpack.c.l.b16 %v3967
  %v4305 = vunpack.c.h.b16 %v3967
  %v4306 = vunpack.c.l.b16 %v3968
  %v4307 = vunpack.c.h.b16 %v3968
  %v4308 = vunpack.c.l.b16 %v3969
  %v4309 = vunpack.c.h.b16 %v3969
  %v4310 = vunpack.c.l.b16 %v3970
  %v4311 = vunpack.c.h.b16 %v3970
  %v4312 = vunpack.c.l.b16 %v3971
  %v4313 = vunpack.c.h.b16 %v3971
  %v4314 = vunpack.c.l.b16 %v3972
  %v4315 = vunpack.c.h.b16 %v3972
  %v4316 = vunpack.c.l.b16 %v3973
  %v4317 = vunpack.c.h.b16 %v3973
  %v4318 = vunpack.c.l.b16 %v3974
  %v4319 = vunpack.c.h.b16 %v3974
  %v4320 = vunpack.c.l.b16 %v3975
  %v4321 = vunpack.c.h.b16 %v3975
  %v4322 = vunpack.c.l.b16 %v3976
  %v4323 = vunpack.c.h.b16 %v3976
  %v4324 = vunpack.c.l.b16 %v3977
  %v4325 = vunpack.c.h.b16 %v3977
  %v4326 = vunpack.c.l.b16 %v3978
  %v4327 = vunpack.c.h.b16 %v3978
  %v4328 = vunpack.c.l.b16 %v3979
  %v4329 = vunpack.c.h.b16 %v3979
  %v4330 = vunpack.c.l.b16 %v3980
  %v4331 = vunpack.c.h.b16 %v3980
  %v4332 = vunpack.c.l.b16 %v3981
  %v4333 = vunpack.c.h.b16 %v3981
  %v4334 = vunpack.c.l.b16 %v3982
  %v4335 = vunpack.c.h.b16 %v3982
  %v4336 = vunpack.c.l.b16 %v3983
  %v4337 = vunpack.c.h.b16 %v3983
  %v4338 = vunpack.c.l.b16 %v3984
  %v4339 = vunpack.c.h.b16 %v3984
  %v4340 = vunpack.c.l.b16 %v3985
  %v4341 = vunpack.c.h.b16 %v3985
  %v4342 = vunpack.c.l.b16 %v3986
  %v4343 = vunpack.c.h.b16 %v3986
  %v4344 = vunpack.c.l.b16 %v3987
  %v4345 = vunpack.c.h.b16 %v3987
  %v4346 = vunpack.c.l.b16 %v3988
  %v4347 = vunpack.c.h.b16 %v3988
  %v4348 = vunpack.c.l.b16 %v3989
  %v4349 = vunpack.c.h.b16 %v3989
  %v4350 = vunpack.c.l.b16 %v3990
  %v4351 = vunpack.c.h.b16 %v3990
  %v4352 = vunpack.c.l.b16 %v3991
  %v4353 = vunpack.c.h.b16 %v3991
  %v4354 = vunpack.c.l.b16 %v3992
  %v4355 = vunpack.c.h.b16 %v3992
  %v4356 = vunpack.c.l.b16 %v3993
  %v4357 = vunpack.c.h.b16 %v3993
  %v4358 = vunpack.c.l.b16 %v3994
  %v4359 = vunpack.c.h.b16 %v3994
  %v4360 = vunpack.c.l.b16 %v3995
  %v4361 = vunpack.c.h.b16 %v3995
  %v4362 = vunpack.c.l.b16 %v3996
  %v4363 = vunpack.c.h.b16 %v3996
  %v4364 = vunpack.c.l.b16 %v3997
  %v4365 = vunpack.c.h.b16 %v3997
  %v4366 = vunpack.c.l.b16 %v3998
  %v4367 = vunpack.c.h.b16 %v3998
  %v4368 = vunpack.c.l.b16 %v3999
  %v4369 = vunpack.c.h.b16 %v3999
  %v4370 = vunpack.c.l.b16 %v4000
  %v4371 = vunpack.c.h.b16 %v4000
  %v4372 = vunpack.c.l.b16 %v4001
  %v4373 = vunpack.c.h.b16 %v4001
  %v4374 = vunpack.c.l.b16 %v4002
  %v4375 = vunpack.c.h.b16 %v4002
  %v4376 = vunpack.c.l.b16 %v4003
  %v4377 = vunpack.c.h.b16 %v4003
  %v4378 = vunpack.c.l.b16 %v4004
  %v4379 = vunpack.c.h.b16 %v4004
  %v4380 = vunpack.c.l.b16 %v4005
  %v4381 = vunpack.c.h.b16 %v4005
  %v4382 = vunpack.c.l.b16 %v4006
  %v4383 = vunpack.c.h.b16 %v4006
  %v4384 = vunpack.c.l.b16 %v4007
  %v4385 = vunpack.c.h.b16 %v4007
  %v4386 = vunpack.c.l.b16 %v4008
  %v4387 = vunpack.c.h.b16 %v4008
  %v4388 = vunpack.c.l.b16 %v4009
  %v4389 = vunpack.c.h.b16 %v4009
  %v4390 = vunpack.c.l.b16 %v4010
  %v4391 = vunpack.c.h.b16 %v4010
  %v4392 = vunpack.c.l.b16 %v4011
  %v4393 = vunpack.c.h.b16 %v4011
  %v4394 = vunpack.c.l.b16 %v4012
  %v4395 = vunpack.c.h.b16 %v4012
  %v4396 = vunpack.c.l.b16 %v4013
  %v4397 = vunpack.c.h.b16 %v4013
  %v4398 = vpack.c.b16 %v4150, %v4142
  %v4399 = vpack.c.b16 %v4151, %v4143
  %v4400 = vpack.c.b16 %v4152, %v4144
  %v4401 = vpack.c.b16 %v4153, %v4145
  %v4402 = vpack.c.b16 %v4154, %v4146
  %v4403 = vpack.c.b16 %v4155, %v4147
  %v4404 = vpack.c.b16 %v4156, %v4148
  %v4405 = vpack.c.b16 %v4157, %v4149
  %v4406 = vpack.c.b16 %v4166, %v4158
  %v4407 = vpack.c.b16 %v4167, %v4159
  %v4408 = vpack.c.b16 %v4168, %v4160
  %v4409 = vpack.c.b16 %v4169, %v4161
  %v4410 = vpack.c.b16 %v4170, %v4162
  %v4411 = vpack.c.b16 %v4171, %v4163
  %v4412 = vpack.c.b16 %v4172, %v4164
  %v4413 = vpack.c.b16 %v4173, %v4165
  %v4414 = vpack.c.b16 %v4182, %v4174
  %v4415 = vpack.c.b16 %v4183, %v4175
  %v4416 = vpack.c.b16 %v4184, %v4176
  %v4417 = vpack.c.b16 %v4185, %v4177
  %v4418 = vpack.c.b16 %v4186, %v4178
  %v4419 = vpack.c.b16 %v4187, %v4179
  %v4420 = vpack.c.b16 %v4188, %v4180
  %v4421 = vpack.c.b16 %v4189, %v4181
  %v4422 = vpack.c.b16 %v4198, %v4190
  %v4423 = vpack.c.b16 %v4199, %v4191
  %v4424 = vpack.c.b16 %v4200, %v4192
  %v4425 = vpack.c.b16 %v4201, %v4193
  %v4426 = vpack.c.b16 %v4202, %v4194
  %v4427 = vpack.c.b16 %v4203, %v4195
  %v4428 = vpack.c.b16 %v4204, %v4196
  %v4429 = vpack.c.b16 %v4205, %v4197
  %v4430 = vpack.c.b16 %v4214, %v4206
  %v4431 = vpack.c.b16 %v4215, %v4207
  %v4432 = vpack.c.b16 %v4216, %v4208
  %v4433 = vpack.c.b16 %v4217, %v4209
  %v4434 = vpack.c.b16 %v4218, %v4210
  %v4435 = vpack.c.b16 %v4219, %v4211
  %v4436 = vpack.c.b16 %v4220, %v4212
  %v4437 = vpack.c.b16 %v4221, %v4213
  %v4438 = vpack.c.b16 %v4230, %v4222
  %v4439 = vpack.c.b16 %v4231, %v4223
  %v4440 = vpack.c.b16 %v4232, %v4224
  %v4441 = vpack.c.b16 %v4233, %v4225
  %v4442 = vpack.c.b16 %v4234, %v4226
  %v4443 = vpack.c.b16 %v4235, %v4227
  %v4444 = vpack.c.b16 %v4236, %v4228
  %v4445 = vpack.c.b16 %v4237, %v4229
  %v4446 = vpack.c.b16 %v4246, %v4238
  %v4447 = vpack.c.b16 %v4247, %v4239
  %v4448 = vpack.c.b16 %v4248, %v4240
  %v4449 = vpack.c.b16 %v4249, %v4241
  %v4450 = vpack.c.b16 %v4250, %v4242
  %v4451 = vpack.c.b16 %v4251, %v4243
  %v4452 = vpack.c.b16 %v4252, %v4244
  %v4453 = vpack.c.b16 %v4253, %v4245
  %v4454 = vpack.c.b16 %v4262, %v4254
  %v4455 = vpack.c.b16 %v4263, %v4255
  %v4456 = vpack.c.b16 %v4264, %v4256
  %v4457 = vpack.c.b16 %v4265, %v4257
  %v4458 = vpack.c.b16 %v4266, %v4258
  %v4459 = vpack.c.b16 %v4267, %v4259
  %v4460 = vpack.c.b16 %v4268, %v4260
  %v4461 = vpack.c.b16 %v4269, %v4261
  %v4462 = vpack.c.b16 %v4278, %v4270
  %v4463 = vpack.c.b16 %v4279, %v4271
  %v4464 = vpack.c.b16 %v4280, %v4272
  %v4465 = vpack.c.b16 %v4281, %v4273
  %v4466 = vpack.c.b16 %v4282, %v4274
  %v4467 = vpack.c.b16 %v4283, %v4275
  %v4468 = vpack.c.b16 %v4284, %v4276
  %v4469 = vpack.c.b16 %v4285, %v4277
  %v4470 = vpack.c.b16 %v4294, %v4286
  %v4471 = vpack.c.b16 %v4295, %v4287
  %v4472 = vpack.c.b16 %v4296, %v4288
  %v4473 = vpack.c.b16 %v4297, %v4289
  %v4474 = vpack.c.b16 %v4298, %v4290
  %v4475 = vpack.c.b16 %v4299, %v4291
  %v4476 = vpack.c.b16 %v4300, %v4292
  %v4477 = vpack.c.b16 %v4301, %v4293
  %v4478 = vpack.c.b16 %v4310, %v4302
  %v4479 = vpack.c.b16 %v4311, %v4303
  %v4480 = vpack.c.b16 %v4312, %v4304
  %v4481 = vpack.c.b16 %v4313, %v4305
  %v4482 = vpack.c.b16 %v4314, %v4306
  %v4483 = vpack.c.b16 %v4315, %v4307
  %v4484 = vpack.c.b16 %v4316, %v4308
  %v4485 = vpack.c.b16 %v4317, %v4309
  %v4486 = vpack.c.b16 %v4326, %v4318
  %v4487 = vpack.c.b16 %v4327, %v4319
  %v4488 = vpack.c.b16 %v4328, %v4320
  %v4489 = vpack.c.b16 %v4329, %v4321
  %v4490 = vpack.c.b16 %v4330, %v4322
  %v4491 = vpack.c.b16 %v4331, %v4323
  %v4492 = vpack.c.b16 %v4332, %v4324
  %v4493 = vpack.c.b16 %v4333, %v4325
  %v4494 = vpack.c.b16 %v4342, %v4334
  %v4495 = vpack.c.b16 %v4343, %v4335
  %v4496 = vpack.c.b16 %v4344, %v4336
  %v4497 = vpack.c.b16 %v4345, %v4337
  %v4498 = vpack.c.b16 %v4346, %v4338
  %v4499 = vpack.c.b16 %v4347, %v4339
  %v4500 = vpack.c.b16 %v4348, %v4340
  %v4501 = vpack.c.b16 %v4349, %v4341
  %v4502 = vpack.c.b16 %v4358, %v4350
  %v4503 = vpack.c.b16 %v4359, %v4351
  %v4504 = vpack.c.b16 %v4360, %v4352
  %v4505 = vpack.c.b16 %v4361, %v4353
  %v4506 = vpack.c.b16 %v4362, %v4354
  %v4507 = vpack.c.b16 %v4363, %v4355
  %v4508 = vpack.c.b16 %v4364, %v4356
  %v4509 = vpack.c.b16 %v4365, %v4357
  %v4510 = vpack.c.b16 %v4374, %v4366
  %v4511 = vpack.c.b16 %v4375, %v4367
  %v4512 = vpack.c.b16 %v4376, %v4368
  %v4513 = vpack.c.b16 %v4377, %v4369
  %v4514 = vpack.c.b16 %v4378, %v4370
  %v4515 = vpack.c.b16 %v4379, %v4371
  %v4516 = vpack.c.b16 %v4380, %v4372
  %v4517 = vpack.c.b16 %v4381, %v4373
  %v4518 = vpack.c.b16 %v4390, %v4382
  %v4519 = vpack.c.b16 %v4391, %v4383
  %v4520 = vpack.c.b16 %v4392, %v4384
  %v4521 = vpack.c.b16 %v4393, %v4385
  %v4522 = vpack.c.b16 %v4394, %v4386
  %v4523 = vpack.c.b16 %v4395, %v4387
  %v4524 = vpack.c.b16 %v4396, %v4388
  %v4525 = vpack.c.b16 %v4397, %v4389
  %4654 = vmatpush.bf16.msra.mxu0 %v4454
  %4655 = vmatpush.bf16.msra.mxu0 %v4446
  %4656 = vmatpush.bf16.msra.mxu0 %v4438
  %4657 = vmatpush.bf16.msra.mxu0 %v4430
  %4658 = vmatpush.bf16.msra.mxu0 %v4422
  %4659 = vmatpush.bf16.msra.mxu0 %v4414
  %4660 = vmatpush.bf16.msra.mxu0 %v4406
  %4661 = vmatpush.bf16.msra.mxu0 %v4398
  %4662 = vmatmul.bf16.gmra.mxu0 %v3884
  %v4663 = vpop.f32.mrf.mxu0
  %v4664 = vadd.f32 0.0, %v4663
  %v4665 = vpop.f32.mrf.mxu0
  %4666 = vdwg.mxu0
  %4667 = vmatpush.bf16.msra.mxu0 %v4518
  %4668 = vmatpush.bf16.msra.mxu0 %v4510
  %4669 = vmatpush.bf16.msra.mxu0 %v4502
  %4670 = vmatpush.bf16.msra.mxu0 %v4494
  %4671 = vmatpush.bf16.msra.mxu0 %v4486
  %4672 = vmatpush.bf16.msra.mxu0 %v4478
  %4673 = vmatpush.bf16.msra.mxu0 %v4470
  %4674 = vmatpush.bf16.msra.mxu0 %v4462
  %4675 = vmatmul.bf16.gmra.mxu0 %v3885
  %v4676 = vpop.f32.mrf.mxu0
  %v4677 = vadd.f32 %v4664, %v4676
  %v4678 = vpop.f32.mrf.mxu0
  %4679 = vdwg.mxu0
  %4680 = vmatpush.bf16.msra.mxu0 %v4455
  %4681 = vmatpush.bf16.msra.mxu0 %v4447
  %4682 = vmatpush.bf16.msra.mxu0 %v4439
  %4683 = vmatpush.bf16.msra.mxu0 %v4431
  %4684 = vmatpush.bf16.msra.mxu0 %v4423
  %4685 = vmatpush.bf16.msra.mxu0 %v4415
  %4686 = vmatpush.bf16.msra.mxu0 %v4407
  %4687 = vmatpush.bf16.msra.mxu0 %v4399
  %4688 = vmatmul.bf16.gmra.mxu0 %v3884
  %v4689 = vpop.f32.mrf.mxu0
  %v4690 = vadd.f32 0.0, %v4689
  %v4691 = vpop.f32.mrf.mxu0
  %4692 = vdwg.mxu0
  %4693 = vmatpush.bf16.msra.mxu0 %v4519
  %4694 = vmatpush.bf16.msra.mxu0 %v4511
  %4695 = vmatpush.bf16.msra.mxu0 %v4503
  %4696 = vmatpush.bf16.msra.mxu0 %v4495
  %4697 = vmatpush.bf16.msra.mxu0 %v4487
  %4698 = vmatpush.bf16.msra.mxu0 %v4479
  %4699 = vmatpush.bf16.msra.mxu0 %v4471
  %4700 = vmatpush.bf16.msra.mxu0 %v4463
  %4701 = vmatmul.bf16.gmra.mxu0 %v3885
  %v4702 = vpop.f32.mrf.mxu0
  %v4703 = vadd.f32 %v4690, %v4702
  %v4704 = vpop.f32.mrf.mxu0
  %4705 = vdwg.mxu0
  %4706 = vmatpush.bf16.msra.mxu0 %v4456
  %4707 = vmatpush.bf16.msra.mxu0 %v4448
  %4708 = vmatpush.bf16.msra.mxu0 %v4440
  %4709 = vmatpush.bf16.msra.mxu0 %v4432
  %4710 = vmatpush.bf16.msra.mxu0 %v4424
  %4711 = vmatpush.bf16.msra.mxu0 %v4416
  %4712 = vmatpush.bf16.msra.mxu0 %v4408
  %4713 = vmatpush.bf16.msra.mxu0 %v4400
  %4714 = vmatmul.bf16.gmra.mxu0 %v3884
  %v4715 = vpop.f32.mrf.mxu0
  %v4716 = vadd.f32 0.0, %v4715
  %v4717 = vpop.f32.mrf.mxu0
  %4718 = vdwg.mxu0
  %4719 = vmatpush.bf16.msra.mxu0 %v4520
  %4720 = vmatpush.bf16.msra.mxu0 %v4512
  %4721 = vmatpush.bf16.msra.mxu0 %v4504
  %4722 = vmatpush.bf16.msra.mxu0 %v4496
  %4723 = vmatpush.bf16.msra.mxu0 %v4488
  %4724 = vmatpush.bf16.msra.mxu0 %v4480
  %4725 = vmatpush.bf16.msra.mxu0 %v4472
  %4726 = vmatpush.bf16.msra.mxu0 %v4464
  %4727 = vmatmul.bf16.gmra.mxu0 %v3885
  %v4728 = vpop.f32.mrf.mxu0
  %v4729 = vadd.f32 %v4716, %v4728
  %v4730 = vpop.f32.mrf.mxu0
  %4731 = vdwg.mxu0
  %4732 = vmatpush.bf16.msra.mxu0 %v4457
  %4733 = vmatpush.bf16.msra.mxu0 %v4449
  %4734 = vmatpush.bf16.msra.mxu0 %v4441
  %4735 = vmatpush.bf16.msra.mxu0 %v4433
  %4736 = vmatpush.bf16.msra.mxu0 %v4425
  %4737 = vmatpush.bf16.msra.mxu0 %v4417
  %4738 = vmatpush.bf16.msra.mxu0 %v4409
  %4739 = vmatpush.bf16.msra.mxu0 %v4401
  %4740 = vmatmul.bf16.gmra.mxu0 %v3884
  %v4741 = vpop.f32.mrf.mxu0
  %v4742 = vadd.f32 0.0, %v4741
  %v4743 = vpop.f32.mrf.mxu0
  %4744 = vdwg.mxu0
  %4745 = vmatpush.bf16.msra.mxu0 %v4521
  %4746 = vmatpush.bf16.msra.mxu0 %v4513
  %4747 = vmatpush.bf16.msra.mxu0 %v4505
  %4748 = vmatpush.bf16.msra.mxu0 %v4497
  %4749 = vmatpush.bf16.msra.mxu0 %v4489
  %4750 = vmatpush.bf16.msra.mxu0 %v4481
  %4751 = vmatpush.bf16.msra.mxu0 %v4473
  %4752 = vmatpush.bf16.msra.mxu0 %v4465
  %4753 = vmatmul.bf16.gmra.mxu0 %v3885
  %v4754 = vpop.f32.mrf.mxu0
  %v4755 = vadd.f32 %v4742, %v4754
  %v4756 = vpop.f32.mrf.mxu0
  %4757 = vdwg.mxu0
  %4758 = vmatpush.bf16.msra.mxu0 %v4458
  %4759 = vmatpush.bf16.msra.mxu0 %v4450
  %4760 = vmatpush.bf16.msra.mxu0 %v4442
  %4761 = vmatpush.bf16.msra.mxu0 %v4434
  %4762 = vmatpush.bf16.msra.mxu0 %v4426
  %4763 = vmatpush.bf16.msra.mxu0 %v4418
  %4764 = vmatpush.bf16.msra.mxu0 %v4410
  %4765 = vmatpush.bf16.msra.mxu0 %v4402
  %4766 = vmatmul.bf16.gmra.mxu0 %v3884
  %v4767 = vpop.f32.mrf.mxu0
  %v4768 = vadd.f32 0.0, %v4767
  %v4769 = vpop.f32.mrf.mxu0
  %4770 = vdwg.mxu0
  %4771 = vmatpush.bf16.msra.mxu0 %v4522
  %4772 = vmatpush.bf16.msra.mxu0 %v4514
  %4773 = vmatpush.bf16.msra.mxu0 %v4506
  %4774 = vmatpush.bf16.msra.mxu0 %v4498
  %4775 = vmatpush.bf16.msra.mxu0 %v4490
  %4776 = vmatpush.bf16.msra.mxu0 %v4482
  %4777 = vmatpush.bf16.msra.mxu0 %v4474
  %4778 = vmatpush.bf16.msra.mxu0 %v4466
  %4779 = vmatmul.bf16.gmra.mxu0 %v3885
  %v4780 = vpop.f32.mrf.mxu0
  %v4781 = vadd.f32 %v4768, %v4780
  %v4782 = vpop.f32.mrf.mxu0
  %4783 = vdwg.mxu0
  %4784 = vmatpush.bf16.msra.mxu0 %v4459
  %4785 = vmatpush.bf16.msra.mxu0 %v4451
  %4786 = vmatpush.bf16.msra.mxu0 %v4443
  %4787 = vmatpush.bf16.msra.mxu0 %v4435
  %4788 = vmatpush.bf16.msra.mxu0 %v4427
  %4789 = vmatpush.bf16.msra.mxu0 %v4419
  %4790 = vmatpush.bf16.msra.mxu0 %v4411
  %4791 = vmatpush.bf16.msra.mxu0 %v4403
  %4792 = vmatmul.bf16.gmra.mxu0 %v3884
  %v4793 = vpop.f32.mrf.mxu0
  %v4794 = vadd.f32 0.0, %v4793
  %v4795 = vpop.f32.mrf.mxu0
  %4796 = vdwg.mxu0
  %4797 = vmatpush.bf16.msra.mxu0 %v4523
  %4798 = vmatpush.bf16.msra.mxu0 %v4515
  %4799 = vmatpush.bf16.msra.mxu0 %v4507
  %4800 = vmatpush.bf16.msra.mxu0 %v4499
  %4801 = vmatpush.bf16.msra.mxu0 %v4491
  %4802 = vmatpush.bf16.msra.mxu0 %v4483
  %4803 = vmatpush.bf16.msra.mxu0 %v4475
  %4804 = vmatpush.bf16.msra.mxu0 %v4467
  %4805 = vmatmul.bf16.gmra.mxu0 %v3885
  %v4806 = vpop.f32.mrf.mxu0
  %v4807 = vadd.f32 %v4794, %v4806
  %v4808 = vpop.f32.mrf.mxu0
  %4809 = vdwg.mxu0
  %4810 = vmatpush.bf16.msra.mxu0 %v4460
  %4811 = vmatpush.bf16.msra.mxu0 %v4452
  %4812 = vmatpush.bf16.msra.mxu0 %v4444
  %4813 = vmatpush.bf16.msra.mxu0 %v4436
  %4814 = vmatpush.bf16.msra.mxu0 %v4428
  %4815 = vmatpush.bf16.msra.mxu0 %v4420
  %4816 = vmatpush.bf16.msra.mxu0 %v4412
  %4817 = vmatpush.bf16.msra.mxu0 %v4404
  %4818 = vmatmul.bf16.gmra.mxu0 %v3884
  %v4819 = vpop.f32.mrf.mxu0
  %v4820 = vadd.f32 0.0, %v4819
  %v4821 = vpop.f32.mrf.mxu0
  %4822 = vdwg.mxu0
  %4823 = vmatpush.bf16.msra.mxu0 %v4524
  %4824 = vmatpush.bf16.msra.mxu0 %v4516
  %4825 = vmatpush.bf16.msra.mxu0 %v4508
  %4826 = vmatpush.bf16.msra.mxu0 %v4500
  %4827 = vmatpush.bf16.msra.mxu0 %v4492
  %4828 = vmatpush.bf16.msra.mxu0 %v4484
  %4829 = vmatpush.bf16.msra.mxu0 %v4476
  %4830 = vmatpush.bf16.msra.mxu0 %v4468
  %4831 = vmatmul.bf16.gmra.mxu0 %v3885
  %v4832 = vpop.f32.mrf.mxu0
  %v4833 = vadd.f32 %v4820, %v4832
  %v4834 = vpop.f32.mrf.mxu0
  %4835 = vdwg.mxu0
  %4836 = vmatpush.bf16.msra.mxu0 %v4461
  %4837 = vmatpush.bf16.msra.mxu0 %v4453
  %4838 = vmatpush.bf16.msra.mxu0 %v4445
  %4839 = vmatpush.bf16.msra.mxu0 %v4437
  %4840 = vmatpush.bf16.msra.mxu0 %v4429
  %4841 = vmatpush.bf16.msra.mxu0 %v4421
  %4842 = vmatpush.bf16.msra.mxu0 %v4413
  %4843 = vmatpush.bf16.msra.mxu0 %v4405
  %4844 = vmatmul.bf16.gmra.mxu0 %v3884
  %v4845 = vpop.f32.mrf.mxu0
  %v4846 = vadd.f32 0.0, %v4845
  %v4847 = vpop.f32.mrf.mxu0
  %4848 = vdwg.mxu0
  %4849 = vmatpush.bf16.msra.mxu0 %v4525
  %4850 = vmatpush.bf16.msra.mxu0 %v4517
  %4851 = vmatpush.bf16.msra.mxu0 %v4509
  %4852 = vmatpush.bf16.msra.mxu0 %v4501
  %4853 = vmatpush.bf16.msra.mxu0 %v4493
  %4854 = vmatpush.bf16.msra.mxu0 %v4485
  %4855 = vmatpush.bf16.msra.mxu0 %v4477
  %4856 = vmatpush.bf16.msra.mxu0 %v4469
  %4857 = vmatmul.bf16.gmra.mxu0 %v3885
  %v4858 = vpop.f32.mrf.mxu0
  %v4859 = vadd.f32 %v4846, %v4858
  %v4860 = vpop.f32.mrf.mxu0
  %4861 = vdwg.mxu0
  %v4862 = vadd.f32 %v3878, %v4677
  %v4863 = vadd.f32 %v3879, %v4703
  %v4864 = vadd.f32 %v3880, %v4729
  %v4865 = vadd.f32 %v3881, %v4755
  %v4866 = vadd.f32 %v4781, %v440
  %v4867 = vadd.f32 %v4807, %v441
  %v4868 = vadd.f32 %v4833, %v442
  %v4869 = vadd.f32 %v4859, %v443
  %v4870 = vxor.u32 %v4866, 2147483648
  %v4871 = vmul.f32 %v4870, 1.442695
  %v4872 = vpow.pop %v4871
  %v4873 = vadd.f32 %v4872, 1.0
  %v4874 = vrcp.pop %v4873
  %v4875 = vmul.f32 %v4873, %v4874
  %v4876 = vsub.f32 1.0, %v4875
  %v4877 = vmul.f32 %v4874, %v4876
  %v4878 = vadd.f32 %v4874, %v4877
  %vm4879 = vweird.f32 %v4873
  %vm4880 = vweird.f32 %v4874
  %vm4881 = vmor %vm4879, %vm4880
  %v4882 = vsel %vm4881, %v4874, %v4878
  %v4883 = vand.u32 2147483647, %v4873
  %vm4884 = vcmp.eq.f32.partialorder %v4883, 8.507059e+37
  %v4885 = vand.u32 %v4873, 2147483648
  %v4886 = vor.u32 1.1754944e-38, %v4885
  %v4887 = vsel %vm4884, %v4886, %v4882
  %v4888 = vmul.f32 1.0, %v4887
  %v4889 = vxor.u32 %v4867, 2147483648
  %v4890 = vmul.f32 %v4889, 1.442695
  %v4891 = vpow.pop %v4890
  %v4892 = vadd.f32 %v4891, 1.0
  %v4893 = vrcp.pop %v4892
  %v4894 = vmul.f32 %v4892, %v4893
  %v4895 = vsub.f32 1.0, %v4894
  %v4896 = vmul.f32 %v4893, %v4895
  %v4897 = vadd.f32 %v4893, %v4896
  %vm4898 = vweird.f32 %v4892
  %vm4899 = vweird.f32 %v4893
  %vm4900 = vmor %vm4898, %vm4899
  %v4901 = vsel %vm4900, %v4893, %v4897
  %v4902 = vand.u32 2147483647, %v4892
  %vm4903 = vcmp.eq.f32.partialorder %v4902, 8.507059e+37
  %v4904 = vand.u32 %v4892, 2147483648
  %v4905 = vor.u32 1.1754944e-38, %v4904
  %v4906 = vsel %vm4903, %v4905, %v4901
  %v4907 = vmul.f32 1.0, %v4906
  %v4908 = vtanh.pop %v4868
  %v4909 = vxor.u32 %v4869, 2147483648
  %v4910 = vmul.f32 %v4909, 1.442695
  %v4911 = vpow.pop %v4910
  %v4912 = vadd.f32 %v4911, 1.0
  %v4913 = vrcp.pop %v4912
  %v4914 = vmul.f32 %v4912, %v4913
  %v4915 = vsub.f32 1.0, %v4914
  %v4916 = vmul.f32 %v4913, %v4915
  %v4917 = vadd.f32 %v4913, %v4916
  %vm4918 = vweird.f32 %v4912
  %vm4919 = vweird.f32 %v4913
  %vm4920 = vmor %vm4918, %vm4919
  %v4921 = vsel %vm4920, %v4913, %v4917
  %v4922 = vand.u32 2147483647, %v4912
  %vm4923 = vcmp.eq.f32.partialorder %v4922, 8.507059e+37
  %v4924 = vand.u32 %v4912, 2147483648
  %v4925 = vor.u32 1.1754944e-38, %v4924
  %v4926 = vsel %vm4923, %v4925, %v4921
  %v4927 = vmul.f32 1.0, %v4926
  %v4928 = vmul.f32 %v4907, %v3810
  %v4929 = vmul.f32 %v4888, %v4908
  %v4930 = vadd.f32 %v4928, %v4929
  %v4931 = vtanh.pop %v4930
  %v4932 = vmul.f32 %v4927, %v4931
  %4933 = vst [vmem:[#allocation3 + $0x8] sm:$0xff] %v4932
  %v4934 = vxor.u32 %v4862, 2147483648
  %v4935 = vmul.f32 %v4934, 1.442695
  %v4936 = vpow.pop %v4935
  %v4937 = vadd.f32 %v4936, 1.0
  %v4938 = vrcp.pop %v4937
  %v4939 = vmul.f32 %v4937, %v4938
  %v4940 = vsub.f32 1.0, %v4939
  %v4941 = vmul.f32 %v4938, %v4940
  %v4942 = vadd.f32 %v4938, %v4941
  %vm4943 = vweird.f32 %v4937
  %vm4944 = vweird.f32 %v4938
  %vm4945 = vmor %vm4943, %vm4944
  %v4946 = vsel %vm4945, %v4938, %v4942
  %v4947 = vand.u32 2147483647, %v4937
  %vm4948 = vcmp.eq.f32.partialorder %v4947, 8.507059e+37
  %v4949 = vand.u32 %v4937, 2147483648
  %v4950 = vor.u32 1.1754944e-38, %v4949
  %v4951 = vsel %vm4948, %v4950, %v4946
  %v4952 = vmul.f32 1.0, %v4951
  %v4953 = vxor.u32 %v4863, 2147483648
  %v4954 = vmul.f32 %v4953, 1.442695
  %v4955 = vpow.pop %v4954
  %v4956 = vadd.f32 %v4955, 1.0
  %v4957 = vrcp.pop %v4956
  %v4958 = vmul.f32 %v4956, %v4957
  %v4959 = vsub.f32 1.0, %v4958
  %v4960 = vmul.f32 %v4957, %v4959
  %v4961 = vadd.f32 %v4957, %v4960
  %vm4962 = vweird.f32 %v4956
  %vm4963 = vweird.f32 %v4957
  %vm4964 = vmor %vm4962, %vm4963
  %v4965 = vsel %vm4964, %v4957, %v4961
  %v4966 = vand.u32 2147483647, %v4956
  %vm4967 = vcmp.eq.f32.partialorder %v4966, 8.507059e+37
  %v4968 = vand.u32 %v4956, 2147483648
  %v4969 = vor.u32 1.1754944e-38, %v4968
  %v4970 = vsel %vm4967, %v4969, %v4965
  %v4971 = vmul.f32 1.0, %v4970
  %v4972 = vtanh.pop %v4864
  %v4973 = vxor.u32 %v4865, 2147483648
  %v4974 = vmul.f32 %v4973, 1.442695
  %v4975 = vpow.pop %v4974
  %v4976 = vadd.f32 %v4975, 1.0
  %v4977 = vrcp.pop %v4976
  %v4978 = vmul.f32 %v4976, %v4977
  %v4979 = vsub.f32 1.0, %v4978
  %v4980 = vmul.f32 %v4977, %v4979
  %v4981 = vadd.f32 %v4977, %v4980
  %vm4982 = vweird.f32 %v4976
  %vm4983 = vweird.f32 %v4977
  %vm4984 = vmor %vm4982, %vm4983
  %v4985 = vsel %vm4984, %v4977, %v4981
  %v4986 = vand.u32 2147483647, %v4976
  %vm4987 = vcmp.eq.f32.partialorder %v4986, 8.507059e+37
  %v4988 = vand.u32 %v4976, 2147483648
  %v4989 = vor.u32 1.1754944e-38, %v4988
  %v4990 = vsel %vm4987, %v4989, %v4985
  %v4991 = vmul.f32 1.0, %v4990
  %v4992 = vmul.f32 %v4971, %v3874
  %v4993 = vmul.f32 %v4952, %v4972
  %v4994 = vadd.f32 %v4992, %v4993
  %v4995 = vtanh.pop %v4994
  %v4996 = vmul.f32 %v4991, %v4995
  %4997 = vst [vmem:[#allocation3] sm:$0xff] %v4996
  %v4998 = vld [vmem:[#allocation2 + $0xa0] sm:$0xff]
  %v4999 = vld [vmem:[#allocation2 + $0xa8] sm:$0xff]
  %v5000 = vld [vmem:[#allocation2 + $0xb0] sm:$0xff]
  %v5001 = vld [vmem:[#allocation2 + $0xb8] sm:$0xff]
  %v5002 = vld [vmem:[#allocation3] sm:$0xff]
  %v5003 = vld [vmem:[#allocation3 + $0x8] sm:$0xff]
  %v5004 = vpack.c.bf16 %v5002, %v5002
  %v5005 = vpack.c.bf16 %v5003, %v5003
  %v5006 = vld [vmem:[%s3] sm:$0xff]
  %v5007 = vld [vmem:[%s3 + $0x8] sm:$0xff]
  %v5008 = vld [vmem:[%s3 + $0x10] sm:$0xff]
  %v5009 = vld [vmem:[%s3 + $0x18] sm:$0xff]
  %v5010 = vld [vmem:[%s3 + $0x20] sm:$0xff]
  %v5011 = vld [vmem:[%s3 + $0x28] sm:$0xff]
  %v5012 = vld [vmem:[%s3 + $0x30] sm:$0xff]
  %v5013 = vld [vmem:[%s3 + $0x38] sm:$0xff]
  %v5014 = vld [vmem:[%s3 + $0x40] sm:$0xff]
  %v5015 = vld [vmem:[%s3 + $0x48] sm:$0xff]
  %v5016 = vld [vmem:[%s3 + $0x50] sm:$0xff]
  %v5017 = vld [vmem:[%s3 + $0x58] sm:$0xff]
  %v5018 = vld [vmem:[%s3 + $0x60] sm:$0xff]
  %v5019 = vld [vmem:[%s3 + $0x68] sm:$0xff]
  %v5020 = vld [vmem:[%s3 + $0x70] sm:$0xff]
  %v5021 = vld [vmem:[%s3 + $0x78] sm:$0xff]
  %v5022 = vld [vmem:[%s3 + $0x80] sm:$0xff]
  %v5023 = vld [vmem:[%s3 + $0x88] sm:$0xff]
  %v5024 = vld [vmem:[%s3 + $0x90] sm:$0xff]
  %v5025 = vld [vmem:[%s3 + $0x98] sm:$0xff]
  %v5026 = vld [vmem:[%s3 + $0xa0] sm:$0xff]
  %v5027 = vld [vmem:[%s3 + $0xa8] sm:$0xff]
  %v5028 = vld [vmem:[%s3 + $0xb0] sm:$0xff]
  %v5029 = vld [vmem:[%s3 + $0xb8] sm:$0xff]
  %v5030 = vld [vmem:[%s3 + $0xc0] sm:$0xff]
  %v5031 = vld [vmem:[%s3 + $0xc8] sm:$0xff]
  %v5032 = vld [vmem:[%s3 + $0xd0] sm:$0xff]
  %v5033 = vld [vmem:[%s3 + $0xd8] sm:$0xff]
  %v5034 = vld [vmem:[%s3 + $0xe0] sm:$0xff]
  %v5035 = vld [vmem:[%s3 + $0xe8] sm:$0xff]
  %v5036 = vld [vmem:[%s3 + $0xf0] sm:$0xff]
  %v5037 = vld [vmem:[%s3 + $0xf8] sm:$0xff]
  %v5038 = vld [vmem:[%s3 + $0x100] sm:$0xff]
  %v5039 = vld [vmem:[%s3 + $0x108] sm:$0xff]
  %v5040 = vld [vmem:[%s3 + $0x110] sm:$0xff]
  %v5041 = vld [vmem:[%s3 + $0x118] sm:$0xff]
  %v5042 = vld [vmem:[%s3 + $0x120] sm:$0xff]
  %v5043 = vld [vmem:[%s3 + $0x128] sm:$0xff]
  %v5044 = vld [vmem:[%s3 + $0x130] sm:$0xff]
  %v5045 = vld [vmem:[%s3 + $0x138] sm:$0xff]
  %v5046 = vld [vmem:[%s3 + $0x140] sm:$0xff]
  %v5047 = vld [vmem:[%s3 + $0x148] sm:$0xff]
  %v5048 = vld [vmem:[%s3 + $0x150] sm:$0xff]
  %v5049 = vld [vmem:[%s3 + $0x158] sm:$0xff]
  %v5050 = vld [vmem:[%s3 + $0x160] sm:$0xff]
  %v5051 = vld [vmem:[%s3 + $0x168] sm:$0xff]
  %v5052 = vld [vmem:[%s3 + $0x170] sm:$0xff]
  %v5053 = vld [vmem:[%s3 + $0x178] sm:$0xff]
  %v5054 = vld [vmem:[%s3 + $0x180] sm:$0xff]
  %v5055 = vld [vmem:[%s3 + $0x188] sm:$0xff]
  %v5056 = vld [vmem:[%s3 + $0x190] sm:$0xff]
  %v5057 = vld [vmem:[%s3 + $0x198] sm:$0xff]
  %v5058 = vld [vmem:[%s3 + $0x1a0] sm:$0xff]
  %v5059 = vld [vmem:[%s3 + $0x1a8] sm:$0xff]
  %v5060 = vld [vmem:[%s3 + $0x1b0] sm:$0xff]
  %v5061 = vld [vmem:[%s3 + $0x1b8] sm:$0xff]
  %v5062 = vld [vmem:[%s3 + $0x1c0] sm:$0xff]
  %v5063 = vld [vmem:[%s3 + $0x1c8] sm:$0xff]
  %v5064 = vld [vmem:[%s3 + $0x1d0] sm:$0xff]
  %v5065 = vld [vmem:[%s3 + $0x1d8] sm:$0xff]
  %v5066 = vld [vmem:[%s3 + $0x1e0] sm:$0xff]
  %v5067 = vld [vmem:[%s3 + $0x1e8] sm:$0xff]
  %v5068 = vld [vmem:[%s3 + $0x1f0] sm:$0xff]
  %v5069 = vld [vmem:[%s3 + $0x1f8] sm:$0xff]
  %v5070 = vld [vmem:[%s3 + $0x200] sm:$0xff]
  %v5071 = vld [vmem:[%s3 + $0x208] sm:$0xff]
  %v5072 = vld [vmem:[%s3 + $0x210] sm:$0xff]
  %v5073 = vld [vmem:[%s3 + $0x218] sm:$0xff]
  %v5074 = vld [vmem:[%s3 + $0x220] sm:$0xff]
  %v5075 = vld [vmem:[%s3 + $0x228] sm:$0xff]
  %v5076 = vld [vmem:[%s3 + $0x230] sm:$0xff]
  %v5077 = vld [vmem:[%s3 + $0x238] sm:$0xff]
  %v5078 = vld [vmem:[%s3 + $0x240] sm:$0xff]
  %v5079 = vld [vmem:[%s3 + $0x248] sm:$0xff]
  %v5080 = vld [vmem:[%s3 + $0x250] sm:$0xff]
  %v5081 = vld [vmem:[%s3 + $0x258] sm:$0xff]
  %v5082 = vld [vmem:[%s3 + $0x260] sm:$0xff]
  %v5083 = vld [vmem:[%s3 + $0x268] sm:$0xff]
  %v5084 = vld [vmem:[%s3 + $0x270] sm:$0xff]
  %v5085 = vld [vmem:[%s3 + $0x278] sm:$0xff]
  %v5086 = vld [vmem:[%s3 + $0x280] sm:$0xff]
  %v5087 = vld [vmem:[%s3 + $0x288] sm:$0xff]
  %v5088 = vld [vmem:[%s3 + $0x290] sm:$0xff]
  %v5089 = vld [vmem:[%s3 + $0x298] sm:$0xff]
  %v5090 = vld [vmem:[%s3 + $0x2a0] sm:$0xff]
  %v5091 = vld [vmem:[%s3 + $0x2a8] sm:$0xff]
  %v5092 = vld [vmem:[%s3 + $0x2b0] sm:$0xff]
  %v5093 = vld [vmem:[%s3 + $0x2b8] sm:$0xff]
  %v5094 = vld [vmem:[%s3 + $0x2c0] sm:$0xff]
  %v5095 = vld [vmem:[%s3 + $0x2c8] sm:$0xff]
  %v5096 = vld [vmem:[%s3 + $0x2d0] sm:$0xff]
  %v5097 = vld [vmem:[%s3 + $0x2d8] sm:$0xff]
  %v5098 = vld [vmem:[%s3 + $0x2e0] sm:$0xff]
  %v5099 = vld [vmem:[%s3 + $0x2e8] sm:$0xff]
  %v5100 = vld [vmem:[%s3 + $0x2f0] sm:$0xff]
  %v5101 = vld [vmem:[%s3 + $0x2f8] sm:$0xff]
  %v5102 = vld [vmem:[%s3 + $0x300] sm:$0xff]
  %v5103 = vld [vmem:[%s3 + $0x308] sm:$0xff]
  %v5104 = vld [vmem:[%s3 + $0x310] sm:$0xff]
  %v5105 = vld [vmem:[%s3 + $0x318] sm:$0xff]
  %v5106 = vld [vmem:[%s3 + $0x320] sm:$0xff]
  %v5107 = vld [vmem:[%s3 + $0x328] sm:$0xff]
  %v5108 = vld [vmem:[%s3 + $0x330] sm:$0xff]
  %v5109 = vld [vmem:[%s3 + $0x338] sm:$0xff]
  %v5110 = vld [vmem:[%s3 + $0x340] sm:$0xff]
  %v5111 = vld [vmem:[%s3 + $0x348] sm:$0xff]
  %v5112 = vld [vmem:[%s3 + $0x350] sm:$0xff]
  %v5113 = vld [vmem:[%s3 + $0x358] sm:$0xff]
  %v5114 = vld [vmem:[%s3 + $0x360] sm:$0xff]
  %v5115 = vld [vmem:[%s3 + $0x368] sm:$0xff]
  %v5116 = vld [vmem:[%s3 + $0x370] sm:$0xff]
  %v5117 = vld [vmem:[%s3 + $0x378] sm:$0xff]
  %v5118 = vld [vmem:[%s3 + $0x380] sm:$0xff]
  %v5119 = vld [vmem:[%s3 + $0x388] sm:$0xff]
  %v5120 = vld [vmem:[%s3 + $0x390] sm:$0xff]
  %v5121 = vld [vmem:[%s3 + $0x398] sm:$0xff]
  %v5122 = vld [vmem:[%s3 + $0x3a0] sm:$0xff]
  %v5123 = vld [vmem:[%s3 + $0x3a8] sm:$0xff]
  %v5124 = vld [vmem:[%s3 + $0x3b0] sm:$0xff]
  %v5125 = vld [vmem:[%s3 + $0x3b8] sm:$0xff]
  %v5126 = vld [vmem:[%s3 + $0x3c0] sm:$0xff]
  %v5127 = vld [vmem:[%s3 + $0x3c8] sm:$0xff]
  %v5128 = vld [vmem:[%s3 + $0x3d0] sm:$0xff]
  %v5129 = vld [vmem:[%s3 + $0x3d8] sm:$0xff]
  %v5130 = vld [vmem:[%s3 + $0x3e0] sm:$0xff]
  %v5131 = vld [vmem:[%s3 + $0x3e8] sm:$0xff]
  %v5132 = vld [vmem:[%s3 + $0x3f0] sm:$0xff]
  %v5133 = vld [vmem:[%s3 + $0x3f8] sm:$0xff]
  %v5262 = vunpack.c.l.b16 %v5006
  %v5263 = vunpack.c.h.b16 %v5006
  %v5264 = vunpack.c.l.b16 %v5007
  %v5265 = vunpack.c.h.b16 %v5007
  %v5266 = vunpack.c.l.b16 %v5008
  %v5267 = vunpack.c.h.b16 %v5008
  %v5268 = vunpack.c.l.b16 %v5009
  %v5269 = vunpack.c.h.b16 %v5009
  %v5270 = vunpack.c.l.b16 %v5010
  %v5271 = vunpack.c.h.b16 %v5010
  %v5272 = vunpack.c.l.b16 %v5011
  %v5273 = vunpack.c.h.b16 %v5011
  %v5274 = vunpack.c.l.b16 %v5012
  %v5275 = vunpack.c.h.b16 %v5012
  %v5276 = vunpack.c.l.b16 %v5013
  %v5277 = vunpack.c.h.b16 %v5013
  %v5278 = vunpack.c.l.b16 %v5014
  %v5279 = vunpack.c.h.b16 %v5014
  %v5280 = vunpack.c.l.b16 %v5015
  %v5281 = vunpack.c.h.b16 %v5015
  %v5282 = vunpack.c.l.b16 %v5016
  %v5283 = vunpack.c.h.b16 %v5016
  %v5284 = vunpack.c.l.b16 %v5017
  %v5285 = vunpack.c.h.b16 %v5017
  %v5286 = vunpack.c.l.b16 %v5018
  %v5287 = vunpack.c.h.b16 %v5018
  %v5288 = vunpack.c.l.b16 %v5019
  %v5289 = vunpack.c.h.b16 %v5019
  %v5290 = vunpack.c.l.b16 %v5020
  %v5291 = vunpack.c.h.b16 %v5020
  %v5292 = vunpack.c.l.b16 %v5021
  %v5293 = vunpack.c.h.b16 %v5021
  %v5294 = vunpack.c.l.b16 %v5022
  %v5295 = vunpack.c.h.b16 %v5022
  %v5296 = vunpack.c.l.b16 %v5023
  %v5297 = vunpack.c.h.b16 %v5023
  %v5298 = vunpack.c.l.b16 %v5024
  %v5299 = vunpack.c.h.b16 %v5024
  %v5300 = vunpack.c.l.b16 %v5025
  %v5301 = vunpack.c.h.b16 %v5025
  %v5302 = vunpack.c.l.b16 %v5026
  %v5303 = vunpack.c.h.b16 %v5026
  %v5304 = vunpack.c.l.b16 %v5027
  %v5305 = vunpack.c.h.b16 %v5027
  %v5306 = vunpack.c.l.b16 %v5028
  %v5307 = vunpack.c.h.b16 %v5028
  %v5308 = vunpack.c.l.b16 %v5029
  %v5309 = vunpack.c.h.b16 %v5029
  %v5310 = vunpack.c.l.b16 %v5030
  %v5311 = vunpack.c.h.b16 %v5030
  %v5312 = vunpack.c.l.b16 %v5031
  %v5313 = vunpack.c.h.b16 %v5031
  %v5314 = vunpack.c.l.b16 %v5032
  %v5315 = vunpack.c.h.b16 %v5032
  %v5316 = vunpack.c.l.b16 %v5033
  %v5317 = vunpack.c.h.b16 %v5033
  %v5318 = vunpack.c.l.b16 %v5034
  %v5319 = vunpack.c.h.b16 %v5034
  %v5320 = vunpack.c.l.b16 %v5035
  %v5321 = vunpack.c.h.b16 %v5035
  %v5322 = vunpack.c.l.b16 %v5036
  %v5323 = vunpack.c.h.b16 %v5036
  %v5324 = vunpack.c.l.b16 %v5037
  %v5325 = vunpack.c.h.b16 %v5037
  %v5326 = vunpack.c.l.b16 %v5038
  %v5327 = vunpack.c.h.b16 %v5038
  %v5328 = vunpack.c.l.b16 %v5039
  %v5329 = vunpack.c.h.b16 %v5039
  %v5330 = vunpack.c.l.b16 %v5040
  %v5331 = vunpack.c.h.b16 %v5040
  %v5332 = vunpack.c.l.b16 %v5041
  %v5333 = vunpack.c.h.b16 %v5041
  %v5334 = vunpack.c.l.b16 %v5042
  %v5335 = vunpack.c.h.b16 %v5042
  %v5336 = vunpack.c.l.b16 %v5043
  %v5337 = vunpack.c.h.b16 %v5043
  %v5338 = vunpack.c.l.b16 %v5044
  %v5339 = vunpack.c.h.b16 %v5044
  %v5340 = vunpack.c.l.b16 %v5045
  %v5341 = vunpack.c.h.b16 %v5045
  %v5342 = vunpack.c.l.b16 %v5046
  %v5343 = vunpack.c.h.b16 %v5046
  %v5344 = vunpack.c.l.b16 %v5047
  %v5345 = vunpack.c.h.b16 %v5047
  %v5346 = vunpack.c.l.b16 %v5048
  %v5347 = vunpack.c.h.b16 %v5048
  %v5348 = vunpack.c.l.b16 %v5049
  %v5349 = vunpack.c.h.b16 %v5049
  %v5350 = vunpack.c.l.b16 %v5050
  %v5351 = vunpack.c.h.b16 %v5050
  %v5352 = vunpack.c.l.b16 %v5051
  %v5353 = vunpack.c.h.b16 %v5051
  %v5354 = vunpack.c.l.b16 %v5052
  %v5355 = vunpack.c.h.b16 %v5052
  %v5356 = vunpack.c.l.b16 %v5053
  %v5357 = vunpack.c.h.b16 %v5053
  %v5358 = vunpack.c.l.b16 %v5054
  %v5359 = vunpack.c.h.b16 %v5054
  %v5360 = vunpack.c.l.b16 %v5055
  %v5361 = vunpack.c.h.b16 %v5055
  %v5362 = vunpack.c.l.b16 %v5056
  %v5363 = vunpack.c.h.b16 %v5056
  %v5364 = vunpack.c.l.b16 %v5057
  %v5365 = vunpack.c.h.b16 %v5057
  %v5366 = vunpack.c.l.b16 %v5058
  %v5367 = vunpack.c.h.b16 %v5058
  %v5368 = vunpack.c.l.b16 %v5059
  %v5369 = vunpack.c.h.b16 %v5059
  %v5370 = vunpack.c.l.b16 %v5060
  %v5371 = vunpack.c.h.b16 %v5060
  %v5372 = vunpack.c.l.b16 %v5061
  %v5373 = vunpack.c.h.b16 %v5061
  %v5374 = vunpack.c.l.b16 %v5062
  %v5375 = vunpack.c.h.b16 %v5062
  %v5376 = vunpack.c.l.b16 %v5063
  %v5377 = vunpack.c.h.b16 %v5063
  %v5378 = vunpack.c.l.b16 %v5064
  %v5379 = vunpack.c.h.b16 %v5064
  %v5380 = vunpack.c.l.b16 %v5065
  %v5381 = vunpack.c.h.b16 %v5065
  %v5382 = vunpack.c.l.b16 %v5066
  %v5383 = vunpack.c.h.b16 %v5066
  %v5384 = vunpack.c.l.b16 %v5067
  %v5385 = vunpack.c.h.b16 %v5067
  %v5386 = vunpack.c.l.b16 %v5068
  %v5387 = vunpack.c.h.b16 %v5068
  %v5388 = vunpack.c.l.b16 %v5069
  %v5389 = vunpack.c.h.b16 %v5069
  %v5390 = vunpack.c.l.b16 %v5070
  %v5391 = vunpack.c.h.b16 %v5070
  %v5392 = vunpack.c.l.b16 %v5071
  %v5393 = vunpack.c.h.b16 %v5071
  %v5394 = vunpack.c.l.b16 %v5072
  %v5395 = vunpack.c.h.b16 %v5072
  %v5396 = vunpack.c.l.b16 %v5073
  %v5397 = vunpack.c.h.b16 %v5073
  %v5398 = vunpack.c.l.b16 %v5074
  %v5399 = vunpack.c.h.b16 %v5074
  %v5400 = vunpack.c.l.b16 %v5075
  %v5401 = vunpack.c.h.b16 %v5075
  %v5402 = vunpack.c.l.b16 %v5076
  %v5403 = vunpack.c.h.b16 %v5076
  %v5404 = vunpack.c.l.b16 %v5077
  %v5405 = vunpack.c.h.b16 %v5077
  %v5406 = vunpack.c.l.b16 %v5078
  %v5407 = vunpack.c.h.b16 %v5078
  %v5408 = vunpack.c.l.b16 %v5079
  %v5409 = vunpack.c.h.b16 %v5079
  %v5410 = vunpack.c.l.b16 %v5080
  %v5411 = vunpack.c.h.b16 %v5080
  %v5412 = vunpack.c.l.b16 %v5081
  %v5413 = vunpack.c.h.b16 %v5081
  %v5414 = vunpack.c.l.b16 %v5082
  %v5415 = vunpack.c.h.b16 %v5082
  %v5416 = vunpack.c.l.b16 %v5083
  %v5417 = vunpack.c.h.b16 %v5083
  %v5418 = vunpack.c.l.b16 %v5084
  %v5419 = vunpack.c.h.b16 %v5084
  %v5420 = vunpack.c.l.b16 %v5085
  %v5421 = vunpack.c.h.b16 %v5085
  %v5422 = vunpack.c.l.b16 %v5086
  %v5423 = vunpack.c.h.b16 %v5086
  %v5424 = vunpack.c.l.b16 %v5087
  %v5425 = vunpack.c.h.b16 %v5087
  %v5426 = vunpack.c.l.b16 %v5088
  %v5427 = vunpack.c.h.b16 %v5088
  %v5428 = vunpack.c.l.b16 %v5089
  %v5429 = vunpack.c.h.b16 %v5089
  %v5430 = vunpack.c.l.b16 %v5090
  %v5431 = vunpack.c.h.b16 %v5090
  %v5432 = vunpack.c.l.b16 %v5091
  %v5433 = vunpack.c.h.b16 %v5091
  %v5434 = vunpack.c.l.b16 %v5092
  %v5435 = vunpack.c.h.b16 %v5092
  %v5436 = vunpack.c.l.b16 %v5093
  %v5437 = vunpack.c.h.b16 %v5093
  %v5438 = vunpack.c.l.b16 %v5094
  %v5439 = vunpack.c.h.b16 %v5094
  %v5440 = vunpack.c.l.b16 %v5095
  %v5441 = vunpack.c.h.b16 %v5095
  %v5442 = vunpack.c.l.b16 %v5096
  %v5443 = vunpack.c.h.b16 %v5096
  %v5444 = vunpack.c.l.b16 %v5097
  %v5445 = vunpack.c.h.b16 %v5097
  %v5446 = vunpack.c.l.b16 %v5098
  %v5447 = vunpack.c.h.b16 %v5098
  %v5448 = vunpack.c.l.b16 %v5099
  %v5449 = vunpack.c.h.b16 %v5099
  %v5450 = vunpack.c.l.b16 %v5100
  %v5451 = vunpack.c.h.b16 %v5100
  %v5452 = vunpack.c.l.b16 %v5101
  %v5453 = vunpack.c.h.b16 %v5101
  %v5454 = vunpack.c.l.b16 %v5102
  %v5455 = vunpack.c.h.b16 %v5102
  %v5456 = vunpack.c.l.b16 %v5103
  %v5457 = vunpack.c.h.b16 %v5103
  %v5458 = vunpack.c.l.b16 %v5104
  %v5459 = vunpack.c.h.b16 %v5104
  %v5460 = vunpack.c.l.b16 %v5105
  %v5461 = vunpack.c.h.b16 %v5105
  %v5462 = vunpack.c.l.b16 %v5106
  %v5463 = vunpack.c.h.b16 %v5106
  %v5464 = vunpack.c.l.b16 %v5107
  %v5465 = vunpack.c.h.b16 %v5107
  %v5466 = vunpack.c.l.b16 %v5108
  %v5467 = vunpack.c.h.b16 %v5108
  %v5468 = vunpack.c.l.b16 %v5109
  %v5469 = vunpack.c.h.b16 %v5109
  %v5470 = vunpack.c.l.b16 %v5110
  %v5471 = vunpack.c.h.b16 %v5110
  %v5472 = vunpack.c.l.b16 %v5111
  %v5473 = vunpack.c.h.b16 %v5111
  %v5474 = vunpack.c.l.b16 %v5112
  %v5475 = vunpack.c.h.b16 %v5112
  %v5476 = vunpack.c.l.b16 %v5113
  %v5477 = vunpack.c.h.b16 %v5113
  %v5478 = vunpack.c.l.b16 %v5114
  %v5479 = vunpack.c.h.b16 %v5114
  %v5480 = vunpack.c.l.b16 %v5115
  %v5481 = vunpack.c.h.b16 %v5115
  %v5482 = vunpack.c.l.b16 %v5116
  %v5483 = vunpack.c.h.b16 %v5116
  %v5484 = vunpack.c.l.b16 %v5117
  %v5485 = vunpack.c.h.b16 %v5117
  %v5486 = vunpack.c.l.b16 %v5118
  %v5487 = vunpack.c.h.b16 %v5118
  %v5488 = vunpack.c.l.b16 %v5119
  %v5489 = vunpack.c.h.b16 %v5119
  %v5490 = vunpack.c.l.b16 %v5120
  %v5491 = vunpack.c.h.b16 %v5120
  %v5492 = vunpack.c.l.b16 %v5121
  %v5493 = vunpack.c.h.b16 %v5121
  %v5494 = vunpack.c.l.b16 %v5122
  %v5495 = vunpack.c.h.b16 %v5122
  %v5496 = vunpack.c.l.b16 %v5123
  %v5497 = vunpack.c.h.b16 %v5123
  %v5498 = vunpack.c.l.b16 %v5124
  %v5499 = vunpack.c.h.b16 %v5124
  %v5500 = vunpack.c.l.b16 %v5125
  %v5501 = vunpack.c.h.b16 %v5125
  %v5502 = vunpack.c.l.b16 %v5126
  %v5503 = vunpack.c.h.b16 %v5126
  %v5504 = vunpack.c.l.b16 %v5127
  %v5505 = vunpack.c.h.b16 %v5127
  %v5506 = vunpack.c.l.b16 %v5128
  %v5507 = vunpack.c.h.b16 %v5128
  %v5508 = vunpack.c.l.b16 %v5129
  %v5509 = vunpack.c.h.b16 %v5129
  %v5510 = vunpack.c.l.b16 %v5130
  %v5511 = vunpack.c.h.b16 %v5130
  %v5512 = vunpack.c.l.b16 %v5131
  %v5513 = vunpack.c.h.b16 %v5131
  %v5514 = vunpack.c.l.b16 %v5132
  %v5515 = vunpack.c.h.b16 %v5132
  %v5516 = vunpack.c.l.b16 %v5133
  %v5517 = vunpack.c.h.b16 %v5133
  %v5518 = vpack.c.b16 %v5270, %v5262
  %v5519 = vpack.c.b16 %v5271, %v5263
  %v5520 = vpack.c.b16 %v5272, %v5264
  %v5521 = vpack.c.b16 %v5273, %v5265
  %v5522 = vpack.c.b16 %v5274, %v5266
  %v5523 = vpack.c.b16 %v5275, %v5267
  %v5524 = vpack.c.b16 %v5276, %v5268
  %v5525 = vpack.c.b16 %v5277, %v5269
  %v5526 = vpack.c.b16 %v5286, %v5278
  %v5527 = vpack.c.b16 %v5287, %v5279
  %v5528 = vpack.c.b16 %v5288, %v5280
  %v5529 = vpack.c.b16 %v5289, %v5281
  %v5530 = vpack.c.b16 %v5290, %v5282
  %v5531 = vpack.c.b16 %v5291, %v5283
  %v5532 = vpack.c.b16 %v5292, %v5284
  %v5533 = vpack.c.b16 %v5293, %v5285
  %v5534 = vpack.c.b16 %v5302, %v5294
  %v5535 = vpack.c.b16 %v5303, %v5295
  %v5536 = vpack.c.b16 %v5304, %v5296
  %v5537 = vpack.c.b16 %v5305, %v5297
  %v5538 = vpack.c.b16 %v5306, %v5298
  %v5539 = vpack.c.b16 %v5307, %v5299
  %v5540 = vpack.c.b16 %v5308, %v5300
  %v5541 = vpack.c.b16 %v5309, %v5301
  %v5542 = vpack.c.b16 %v5318, %v5310
  %v5543 = vpack.c.b16 %v5319, %v5311
  %v5544 = vpack.c.b16 %v5320, %v5312
  %v5545 = vpack.c.b16 %v5321, %v5313
  %v5546 = vpack.c.b16 %v5322, %v5314
  %v5547 = vpack.c.b16 %v5323, %v5315
  %v5548 = vpack.c.b16 %v5324, %v5316
  %v5549 = vpack.c.b16 %v5325, %v5317
  %v5550 = vpack.c.b16 %v5334, %v5326
  %v5551 = vpack.c.b16 %v5335, %v5327
  %v5552 = vpack.c.b16 %v5336, %v5328
  %v5553 = vpack.c.b16 %v5337, %v5329
  %v5554 = vpack.c.b16 %v5338, %v5330
  %v5555 = vpack.c.b16 %v5339, %v5331
  %v5556 = vpack.c.b16 %v5340, %v5332
  %v5557 = vpack.c.b16 %v5341, %v5333
  %v5558 = vpack.c.b16 %v5350, %v5342
  %v5559 = vpack.c.b16 %v5351, %v5343
  %v5560 = vpack.c.b16 %v5352, %v5344
  %v5561 = vpack.c.b16 %v5353, %v5345
  %v5562 = vpack.c.b16 %v5354, %v5346
  %v5563 = vpack.c.b16 %v5355, %v5347
  %v5564 = vpack.c.b16 %v5356, %v5348
  %v5565 = vpack.c.b16 %v5357, %v5349
  %v5566 = vpack.c.b16 %v5366, %v5358
  %v5567 = vpack.c.b16 %v5367, %v5359
  %v5568 = vpack.c.b16 %v5368, %v5360
  %v5569 = vpack.c.b16 %v5369, %v5361
  %v5570 = vpack.c.b16 %v5370, %v5362
  %v5571 = vpack.c.b16 %v5371, %v5363
  %v5572 = vpack.c.b16 %v5372, %v5364
  %v5573 = vpack.c.b16 %v5373, %v5365
  %v5574 = vpack.c.b16 %v5382, %v5374
  %v5575 = vpack.c.b16 %v5383, %v5375
  %v5576 = vpack.c.b16 %v5384, %v5376
  %v5577 = vpack.c.b16 %v5385, %v5377
  %v5578 = vpack.c.b16 %v5386, %v5378
  %v5579 = vpack.c.b16 %v5387, %v5379
  %v5580 = vpack.c.b16 %v5388, %v5380
  %v5581 = vpack.c.b16 %v5389, %v5381
  %v5582 = vpack.c.b16 %v5398, %v5390
  %v5583 = vpack.c.b16 %v5399, %v5391
  %v5584 = vpack.c.b16 %v5400, %v5392
  %v5585 = vpack.c.b16 %v5401, %v5393
  %v5586 = vpack.c.b16 %v5402, %v5394
  %v5587 = vpack.c.b16 %v5403, %v5395
  %v5588 = vpack.c.b16 %v5404, %v5396
  %v5589 = vpack.c.b16 %v5405, %v5397
  %v5590 = vpack.c.b16 %v5414, %v5406
  %v5591 = vpack.c.b16 %v5415, %v5407
  %v5592 = vpack.c.b16 %v5416, %v5408
  %v5593 = vpack.c.b16 %v5417, %v5409
  %v5594 = vpack.c.b16 %v5418, %v5410
  %v5595 = vpack.c.b16 %v5419, %v5411
  %v5596 = vpack.c.b16 %v5420, %v5412
  %v5597 = vpack.c.b16 %v5421, %v5413
  %v5598 = vpack.c.b16 %v5430, %v5422
  %v5599 = vpack.c.b16 %v5431, %v5423
  %v5600 = vpack.c.b16 %v5432, %v5424
  %v5601 = vpack.c.b16 %v5433, %v5425
  %v5602 = vpack.c.b16 %v5434, %v5426
  %v5603 = vpack.c.b16 %v5435, %v5427
  %v5604 = vpack.c.b16 %v5436, %v5428
  %v5605 = vpack.c.b16 %v5437, %v5429
  %v5606 = vpack.c.b16 %v5446, %v5438
  %v5607 = vpack.c.b16 %v5447, %v5439
  %v5608 = vpack.c.b16 %v5448, %v5440
  %v5609 = vpack.c.b16 %v5449, %v5441
  %v5610 = vpack.c.b16 %v5450, %v5442
  %v5611 = vpack.c.b16 %v5451, %v5443
  %v5612 = vpack.c.b16 %v5452, %v5444
  %v5613 = vpack.c.b16 %v5453, %v5445
  %v5614 = vpack.c.b16 %v5462, %v5454
  %v5615 = vpack.c.b16 %v5463, %v5455
  %v5616 = vpack.c.b16 %v5464, %v5456
  %v5617 = vpack.c.b16 %v5465, %v5457
  %v5618 = vpack.c.b16 %v5466, %v5458
  %v5619 = vpack.c.b16 %v5467, %v5459
  %v5620 = vpack.c.b16 %v5468, %v5460
  %v5621 = vpack.c.b16 %v5469, %v5461
  %v5622 = vpack.c.b16 %v5478, %v5470
  %v5623 = vpack.c.b16 %v5479, %v5471
  %v5624 = vpack.c.b16 %v5480, %v5472
  %v5625 = vpack.c.b16 %v5481, %v5473
  %v5626 = vpack.c.b16 %v5482, %v5474
  %v5627 = vpack.c.b16 %v5483, %v5475
  %v5628 = vpack.c.b16 %v5484, %v5476
  %v5629 = vpack.c.b16 %v5485, %v5477
  %v5630 = vpack.c.b16 %v5494, %v5486
  %v5631 = vpack.c.b16 %v5495, %v5487
  %v5632 = vpack.c.b16 %v5496, %v5488
  %v5633 = vpack.c.b16 %v5497, %v5489
  %v5634 = vpack.c.b16 %v5498, %v5490
  %v5635 = vpack.c.b16 %v5499, %v5491
  %v5636 = vpack.c.b16 %v5500, %v5492
  %v5637 = vpack.c.b16 %v5501, %v5493
  %v5638 = vpack.c.b16 %v5510, %v5502
  %v5639 = vpack.c.b16 %v5511, %v5503
  %v5640 = vpack.c.b16 %v5512, %v5504
  %v5641 = vpack.c.b16 %v5513, %v5505
  %v5642 = vpack.c.b16 %v5514, %v5506
  %v5643 = vpack.c.b16 %v5515, %v5507
  %v5644 = vpack.c.b16 %v5516, %v5508
  %v5645 = vpack.c.b16 %v5517, %v5509
  %5774 = vmatpush.bf16.msra.mxu0 %v5574
  %5775 = vmatpush.bf16.msra.mxu0 %v5566
  %5776 = vmatpush.bf16.msra.mxu0 %v5558
  %5777 = vmatpush.bf16.msra.mxu0 %v5550
  %5778 = vmatpush.bf16.msra.mxu0 %v5542
  %5779 = vmatpush.bf16.msra.mxu0 %v5534
  %5780 = vmatpush.bf16.msra.mxu0 %v5526
  %5781 = vmatpush.bf16.msra.mxu0 %v5518
  %5782 = vmatmul.bf16.gmra.mxu0 %v5004
  %v5783 = vpop.f32.mrf.mxu0
  %v5784 = vadd.f32 0.0, %v5783
  %v5785 = vpop.f32.mrf.mxu0
  %5786 = vdwg.mxu0
  %5787 = vmatpush.bf16.msra.mxu0 %v5638
  %5788 = vmatpush.bf16.msra.mxu0 %v5630
  %5789 = vmatpush.bf16.msra.mxu0 %v5622
  %5790 = vmatpush.bf16.msra.mxu0 %v5614
  %5791 = vmatpush.bf16.msra.mxu0 %v5606
  %5792 = vmatpush.bf16.msra.mxu0 %v5598
  %5793 = vmatpush.bf16.msra.mxu0 %v5590
  %5794 = vmatpush.bf16.msra.mxu0 %v5582
  %5795 = vmatmul.bf16.gmra.mxu0 %v5005
  %v5796 = vpop.f32.mrf.mxu0
  %v5797 = vadd.f32 %v5784, %v5796
  %v5798 = vpop.f32.mrf.mxu0
  %5799 = vdwg.mxu0
  %5800 = vmatpush.bf16.msra.mxu0 %v5575
  %5801 = vmatpush.bf16.msra.mxu0 %v5567
  %5802 = vmatpush.bf16.msra.mxu0 %v5559
  %5803 = vmatpush.bf16.msra.mxu0 %v5551
  %5804 = vmatpush.bf16.msra.mxu0 %v5543
  %5805 = vmatpush.bf16.msra.mxu0 %v5535
  %5806 = vmatpush.bf16.msra.mxu0 %v5527
  %5807 = vmatpush.bf16.msra.mxu0 %v5519
  %5808 = vmatmul.bf16.gmra.mxu0 %v5004
  %v5809 = vpop.f32.mrf.mxu0
  %v5810 = vadd.f32 0.0, %v5809
  %v5811 = vpop.f32.mrf.mxu0
  %5812 = vdwg.mxu0
  %5813 = vmatpush.bf16.msra.mxu0 %v5639
  %5814 = vmatpush.bf16.msra.mxu0 %v5631
  %5815 = vmatpush.bf16.msra.mxu0 %v5623
  %5816 = vmatpush.bf16.msra.mxu0 %v5615
  %5817 = vmatpush.bf16.msra.mxu0 %v5607
  %5818 = vmatpush.bf16.msra.mxu0 %v5599
  %5819 = vmatpush.bf16.msra.mxu0 %v5591
  %5820 = vmatpush.bf16.msra.mxu0 %v5583
  %5821 = vmatmul.bf16.gmra.mxu0 %v5005
  %v5822 = vpop.f32.mrf.mxu0
  %v5823 = vadd.f32 %v5810, %v5822
  %v5824 = vpop.f32.mrf.mxu0
  %5825 = vdwg.mxu0
  %5826 = vmatpush.bf16.msra.mxu0 %v5576
  %5827 = vmatpush.bf16.msra.mxu0 %v5568
  %5828 = vmatpush.bf16.msra.mxu0 %v5560
  %5829 = vmatpush.bf16.msra.mxu0 %v5552
  %5830 = vmatpush.bf16.msra.mxu0 %v5544
  %5831 = vmatpush.bf16.msra.mxu0 %v5536
  %5832 = vmatpush.bf16.msra.mxu0 %v5528
  %5833 = vmatpush.bf16.msra.mxu0 %v5520
  %5834 = vmatmul.bf16.gmra.mxu0 %v5004
  %v5835 = vpop.f32.mrf.mxu0
  %v5836 = vadd.f32 0.0, %v5835
  %v5837 = vpop.f32.mrf.mxu0
  %5838 = vdwg.mxu0
  %5839 = vmatpush.bf16.msra.mxu0 %v5640
  %5840 = vmatpush.bf16.msra.mxu0 %v5632
  %5841 = vmatpush.bf16.msra.mxu0 %v5624
  %5842 = vmatpush.bf16.msra.mxu0 %v5616
  %5843 = vmatpush.bf16.msra.mxu0 %v5608
  %5844 = vmatpush.bf16.msra.mxu0 %v5600
  %5845 = vmatpush.bf16.msra.mxu0 %v5592
  %5846 = vmatpush.bf16.msra.mxu0 %v5584
  %5847 = vmatmul.bf16.gmra.mxu0 %v5005
  %v5848 = vpop.f32.mrf.mxu0
  %v5849 = vadd.f32 %v5836, %v5848
  %v5850 = vpop.f32.mrf.mxu0
  %5851 = vdwg.mxu0
  %5852 = vmatpush.bf16.msra.mxu0 %v5577
  %5853 = vmatpush.bf16.msra.mxu0 %v5569
  %5854 = vmatpush.bf16.msra.mxu0 %v5561
  %5855 = vmatpush.bf16.msra.mxu0 %v5553
  %5856 = vmatpush.bf16.msra.mxu0 %v5545
  %5857 = vmatpush.bf16.msra.mxu0 %v5537
  %5858 = vmatpush.bf16.msra.mxu0 %v5529
  %5859 = vmatpush.bf16.msra.mxu0 %v5521
  %5860 = vmatmul.bf16.gmra.mxu0 %v5004
  %v5861 = vpop.f32.mrf.mxu0
  %v5862 = vadd.f32 0.0, %v5861
  %v5863 = vpop.f32.mrf.mxu0
  %5864 = vdwg.mxu0
  %5865 = vmatpush.bf16.msra.mxu0 %v5641
  %5866 = vmatpush.bf16.msra.mxu0 %v5633
  %5867 = vmatpush.bf16.msra.mxu0 %v5625
  %5868 = vmatpush.bf16.msra.mxu0 %v5617
  %5869 = vmatpush.bf16.msra.mxu0 %v5609
  %5870 = vmatpush.bf16.msra.mxu0 %v5601
  %5871 = vmatpush.bf16.msra.mxu0 %v5593
  %5872 = vmatpush.bf16.msra.mxu0 %v5585
  %5873 = vmatmul.bf16.gmra.mxu0 %v5005
  %v5874 = vpop.f32.mrf.mxu0
  %v5875 = vadd.f32 %v5862, %v5874
  %v5876 = vpop.f32.mrf.mxu0
  %5877 = vdwg.mxu0
  %5878 = vmatpush.bf16.msra.mxu0 %v5578
  %5879 = vmatpush.bf16.msra.mxu0 %v5570
  %5880 = vmatpush.bf16.msra.mxu0 %v5562
  %5881 = vmatpush.bf16.msra.mxu0 %v5554
  %5882 = vmatpush.bf16.msra.mxu0 %v5546
  %5883 = vmatpush.bf16.msra.mxu0 %v5538
  %5884 = vmatpush.bf16.msra.mxu0 %v5530
  %5885 = vmatpush.bf16.msra.mxu0 %v5522
  %5886 = vmatmul.bf16.gmra.mxu0 %v5004
  %v5887 = vpop.f32.mrf.mxu0
  %v5888 = vadd.f32 0.0, %v5887
  %v5889 = vpop.f32.mrf.mxu0
  %5890 = vdwg.mxu0
  %5891 = vmatpush.bf16.msra.mxu0 %v5642
  %5892 = vmatpush.bf16.msra.mxu0 %v5634
  %5893 = vmatpush.bf16.msra.mxu0 %v5626
  %5894 = vmatpush.bf16.msra.mxu0 %v5618
  %5895 = vmatpush.bf16.msra.mxu0 %v5610
  %5896 = vmatpush.bf16.msra.mxu0 %v5602
  %5897 = vmatpush.bf16.msra.mxu0 %v5594
  %5898 = vmatpush.bf16.msra.mxu0 %v5586
  %5899 = vmatmul.bf16.gmra.mxu0 %v5005
  %v5900 = vpop.f32.mrf.mxu0
  %v5901 = vadd.f32 %v5888, %v5900
  %v5902 = vpop.f32.mrf.mxu0
  %5903 = vdwg.mxu0
  %5904 = vmatpush.bf16.msra.mxu0 %v5579
  %5905 = vmatpush.bf16.msra.mxu0 %v5571
  %5906 = vmatpush.bf16.msra.mxu0 %v5563
  %5907 = vmatpush.bf16.msra.mxu0 %v5555
  %5908 = vmatpush.bf16.msra.mxu0 %v5547
  %5909 = vmatpush.bf16.msra.mxu0 %v5539
  %5910 = vmatpush.bf16.msra.mxu0 %v5531
  %5911 = vmatpush.bf16.msra.mxu0 %v5523
  %5912 = vmatmul.bf16.gmra.mxu0 %v5004
  %v5913 = vpop.f32.mrf.mxu0
  %v5914 = vadd.f32 0.0, %v5913
  %v5915 = vpop.f32.mrf.mxu0
  %5916 = vdwg.mxu0
  %5917 = vmatpush.bf16.msra.mxu0 %v5643
  %5918 = vmatpush.bf16.msra.mxu0 %v5635
  %5919 = vmatpush.bf16.msra.mxu0 %v5627
  %5920 = vmatpush.bf16.msra.mxu0 %v5619
  %5921 = vmatpush.bf16.msra.mxu0 %v5611
  %5922 = vmatpush.bf16.msra.mxu0 %v5603
  %5923 = vmatpush.bf16.msra.mxu0 %v5595
  %5924 = vmatpush.bf16.msra.mxu0 %v5587
  %5925 = vmatmul.bf16.gmra.mxu0 %v5005
  %v5926 = vpop.f32.mrf.mxu0
  %v5927 = vadd.f32 %v5914, %v5926
  %v5928 = vpop.f32.mrf.mxu0
  %5929 = vdwg.mxu0
  %5930 = vmatpush.bf16.msra.mxu0 %v5580
  %5931 = vmatpush.bf16.msra.mxu0 %v5572
  %5932 = vmatpush.bf16.msra.mxu0 %v5564
  %5933 = vmatpush.bf16.msra.mxu0 %v5556
  %5934 = vmatpush.bf16.msra.mxu0 %v5548
  %5935 = vmatpush.bf16.msra.mxu0 %v5540
  %5936 = vmatpush.bf16.msra.mxu0 %v5532
  %5937 = vmatpush.bf16.msra.mxu0 %v5524
  %5938 = vmatmul.bf16.gmra.mxu0 %v5004
  %v5939 = vpop.f32.mrf.mxu0
  %v5940 = vadd.f32 0.0, %v5939
  %v5941 = vpop.f32.mrf.mxu0
  %5942 = vdwg.mxu0
  %5943 = vmatpush.bf16.msra.mxu0 %v5644
  %5944 = vmatpush.bf16.msra.mxu0 %v5636
  %5945 = vmatpush.bf16.msra.mxu0 %v5628
  %5946 = vmatpush.bf16.msra.mxu0 %v5620
  %5947 = vmatpush.bf16.msra.mxu0 %v5612
  %5948 = vmatpush.bf16.msra.mxu0 %v5604
  %5949 = vmatpush.bf16.msra.mxu0 %v5596
  %5950 = vmatpush.bf16.msra.mxu0 %v5588
  %5951 = vmatmul.bf16.gmra.mxu0 %v5005
  %v5952 = vpop.f32.mrf.mxu0
  %v5953 = vadd.f32 %v5940, %v5952
  %v5954 = vpop.f32.mrf.mxu0
  %5955 = vdwg.mxu0
  %5956 = vmatpush.bf16.msra.mxu0 %v5581
  %5957 = vmatpush.bf16.msra.mxu0 %v5573
  %5958 = vmatpush.bf16.msra.mxu0 %v5565
  %5959 = vmatpush.bf16.msra.mxu0 %v5557
  %5960 = vmatpush.bf16.msra.mxu0 %v5549
  %5961 = vmatpush.bf16.msra.mxu0 %v5541
  %5962 = vmatpush.bf16.msra.mxu0 %v5533
  %5963 = vmatpush.bf16.msra.mxu0 %v5525
  %5964 = vmatmul.bf16.gmra.mxu0 %v5004
  %v5965 = vpop.f32.mrf.mxu0
  %v5966 = vadd.f32 0.0, %v5965
  %v5967 = vpop.f32.mrf.mxu0
  %5968 = vdwg.mxu0
  %5969 = vmatpush.bf16.msra.mxu0 %v5645
  %5970 = vmatpush.bf16.msra.mxu0 %v5637
  %5971 = vmatpush.bf16.msra.mxu0 %v5629
  %5972 = vmatpush.bf16.msra.mxu0 %v5621
  %5973 = vmatpush.bf16.msra.mxu0 %v5613
  %5974 = vmatpush.bf16.msra.mxu0 %v5605
  %5975 = vmatpush.bf16.msra.mxu0 %v5597
  %5976 = vmatpush.bf16.msra.mxu0 %v5589
  %5977 = vmatmul.bf16.gmra.mxu0 %v5005
  %v5978 = vpop.f32.mrf.mxu0
  %v5979 = vadd.f32 %v5966, %v5978
  %v5980 = vpop.f32.mrf.mxu0
  %5981 = vdwg.mxu0
  %v5982 = vadd.f32 %v4998, %v5797
  %v5983 = vadd.f32 %v4999, %v5823
  %v5984 = vadd.f32 %v5000, %v5849
  %v5985 = vadd.f32 %v5001, %v5875
  %v5986 = vadd.f32 %v5901, %v440
  %v5987 = vadd.f32 %v5927, %v441
  %v5988 = vadd.f32 %v5953, %v442
  %v5989 = vadd.f32 %v5979, %v443
  %v5990 = vxor.u32 %v5986, 2147483648
  %v5991 = vmul.f32 %v5990, 1.442695
  %v5992 = vpow.pop %v5991
  %v5993 = vadd.f32 %v5992, 1.0
  %v5994 = vrcp.pop %v5993
  %v5995 = vmul.f32 %v5993, %v5994
  %v5996 = vsub.f32 1.0, %v5995
  %v5997 = vmul.f32 %v5994, %v5996
  %v5998 = vadd.f32 %v5994, %v5997
  %vm5999 = vweird.f32 %v5993
  %vm6000 = vweird.f32 %v5994
  %vm6001 = vmor %vm5999, %vm6000
  %v6002 = vsel %vm6001, %v5994, %v5998
  %v6003 = vand.u32 2147483647, %v5993
  %vm6004 = vcmp.eq.f32.partialorder %v6003, 8.507059e+37
  %v6005 = vand.u32 %v5993, 2147483648
  %v6006 = vor.u32 1.1754944e-38, %v6005
  %v6007 = vsel %vm6004, %v6006, %v6002
  %v6008 = vmul.f32 1.0, %v6007
  %v6009 = vxor.u32 %v5987, 2147483648
  %v6010 = vmul.f32 %v6009, 1.442695
  %v6011 = vpow.pop %v6010
  %v6012 = vadd.f32 %v6011, 1.0
  %v6013 = vrcp.pop %v6012
  %v6014 = vmul.f32 %v6012, %v6013
  %v6015 = vsub.f32 1.0, %v6014
  %v6016 = vmul.f32 %v6013, %v6015
  %v6017 = vadd.f32 %v6013, %v6016
  %vm6018 = vweird.f32 %v6012
  %vm6019 = vweird.f32 %v6013
  %vm6020 = vmor %vm6018, %vm6019
  %v6021 = vsel %vm6020, %v6013, %v6017
  %v6022 = vand.u32 2147483647, %v6012
  %vm6023 = vcmp.eq.f32.partialorder %v6022, 8.507059e+37
  %v6024 = vand.u32 %v6012, 2147483648
  %v6025 = vor.u32 1.1754944e-38, %v6024
  %v6026 = vsel %vm6023, %v6025, %v6021
  %v6027 = vmul.f32 1.0, %v6026
  %v6028 = vtanh.pop %v5988
  %v6029 = vxor.u32 %v5989, 2147483648
  %v6030 = vmul.f32 %v6029, 1.442695
  %v6031 = vpow.pop %v6030
  %v6032 = vadd.f32 %v6031, 1.0
  %v6033 = vrcp.pop %v6032
  %v6034 = vmul.f32 %v6032, %v6033
  %v6035 = vsub.f32 1.0, %v6034
  %v6036 = vmul.f32 %v6033, %v6035
  %v6037 = vadd.f32 %v6033, %v6036
  %vm6038 = vweird.f32 %v6032
  %vm6039 = vweird.f32 %v6033
  %vm6040 = vmor %vm6038, %vm6039
  %v6041 = vsel %vm6040, %v6033, %v6037
  %v6042 = vand.u32 2147483647, %v6032
  %vm6043 = vcmp.eq.f32.partialorder %v6042, 8.507059e+37
  %v6044 = vand.u32 %v6032, 2147483648
  %v6045 = vor.u32 1.1754944e-38, %v6044
  %v6046 = vsel %vm6043, %v6045, %v6041
  %v6047 = vmul.f32 1.0, %v6046
  %v6048 = vmul.f32 %v6027, %v4930
  %v6049 = vmul.f32 %v6008, %v6028
  %v6050 = vadd.f32 %v6048, %v6049
  %v6051 = vtanh.pop %v6050
  %v6052 = vmul.f32 %v6047, %v6051
  %6053 = vst [vmem:[#allocation3 + $0x8] sm:$0xff] %v6052
  %v6054 = vxor.u32 %v5982, 2147483648
  %v6055 = vmul.f32 %v6054, 1.442695
  %v6056 = vpow.pop %v6055
  %v6057 = vadd.f32 %v6056, 1.0
  %v6058 = vrcp.pop %v6057
  %v6059 = vmul.f32 %v6057, %v6058
  %v6060 = vsub.f32 1.0, %v6059
  %v6061 = vmul.f32 %v6058, %v6060
  %v6062 = vadd.f32 %v6058, %v6061
  %vm6063 = vweird.f32 %v6057
  %vm6064 = vweird.f32 %v6058
  %vm6065 = vmor %vm6063, %vm6064
  %v6066 = vsel %vm6065, %v6058, %v6062
  %v6067 = vand.u32 2147483647, %v6057
  %vm6068 = vcmp.eq.f32.partialorder %v6067, 8.507059e+37
  %v6069 = vand.u32 %v6057, 2147483648
  %v6070 = vor.u32 1.1754944e-38, %v6069
  %v6071 = vsel %vm6068, %v6070, %v6066
  %v6072 = vmul.f32 1.0, %v6071
  %v6073 = vxor.u32 %v5983, 2147483648
  %v6074 = vmul.f32 %v6073, 1.442695
  %v6075 = vpow.pop %v6074
  %v6076 = vadd.f32 %v6075, 1.0
  %v6077 = vrcp.pop %v6076
  %v6078 = vmul.f32 %v6076, %v6077
  %v6079 = vsub.f32 1.0, %v6078
  %v6080 = vmul.f32 %v6077, %v6079
  %v6081 = vadd.f32 %v6077, %v6080
  %vm6082 = vweird.f32 %v6076
  %vm6083 = vweird.f32 %v6077
  %vm6084 = vmor %vm6082, %vm6083
  %v6085 = vsel %vm6084, %v6077, %v6081
  %v6086 = vand.u32 2147483647, %v6076
  %vm6087 = vcmp.eq.f32.partialorder %v6086, 8.507059e+37
  %v6088 = vand.u32 %v6076, 2147483648
  %v6089 = vor.u32 1.1754944e-38, %v6088
  %v6090 = vsel %vm6087, %v6089, %v6085
  %v6091 = vmul.f32 1.0, %v6090
  %v6092 = vtanh.pop %v5984
  %v6093 = vxor.u32 %v5985, 2147483648
  %v6094 = vmul.f32 %v6093, 1.442695
  %v6095 = vpow.pop %v6094
  %v6096 = vadd.f32 %v6095, 1.0
  %v6097 = vrcp.pop %v6096
  %v6098 = vmul.f32 %v6096, %v6097
  %v6099 = vsub.f32 1.0, %v6098
  %v6100 = vmul.f32 %v6097, %v6099
  %v6101 = vadd.f32 %v6097, %v6100
  %vm6102 = vweird.f32 %v6096
  %vm6103 = vweird.f32 %v6097
  %vm6104 = vmor %vm6102, %vm6103
  %v6105 = vsel %vm6104, %v6097, %v6101
  %v6106 = vand.u32 2147483647, %v6096
  %vm6107 = vcmp.eq.f32.partialorder %v6106, 8.507059e+37
  %v6108 = vand.u32 %v6096, 2147483648
  %v6109 = vor.u32 1.1754944e-38, %v6108
  %v6110 = vsel %vm6107, %v6109, %v6105
  %v6111 = vmul.f32 1.0, %v6110
  %v6112 = vmul.f32 %v6091, %v4994
  %v6113 = vmul.f32 %v6072, %v6092
  %v6114 = vadd.f32 %v6112, %v6113
  %v6115 = vtanh.pop %v6114
  %v6116 = vmul.f32 %v6111, %v6115
  %6117 = vst [vmem:[#allocation3] sm:$0xff] %v6116
  %v6118 = vld [vmem:[#allocation2 + $0xc0] sm:$0xff]
  %v6119 = vld [vmem:[#allocation2 + $0xc8] sm:$0xff]
  %v6120 = vld [vmem:[#allocation2 + $0xd0] sm:$0xff]
  %v6121 = vld [vmem:[#allocation2 + $0xd8] sm:$0xff]
  %v6122 = vld [vmem:[#allocation3] sm:$0xff]
  %v6123 = vld [vmem:[#allocation3 + $0x8] sm:$0xff]
  %v6124 = vpack.c.bf16 %v6122, %v6122
  %v6125 = vpack.c.bf16 %v6123, %v6123
  %v6126 = vld [vmem:[%s3] sm:$0xff]
  %v6127 = vld [vmem:[%s3 + $0x8] sm:$0xff]
  %v6128 = vld [vmem:[%s3 + $0x10] sm:$0xff]
  %v6129 = vld [vmem:[%s3 + $0x18] sm:$0xff]
  %v6130 = vld [vmem:[%s3 + $0x20] sm:$0xff]
  %v6131 = vld [vmem:[%s3 + $0x28] sm:$0xff]
  %v6132 = vld [vmem:[%s3 + $0x30] sm:$0xff]
  %v6133 = vld [vmem:[%s3 + $0x38] sm:$0xff]
  %v6134 = vld [vmem:[%s3 + $0x40] sm:$0xff]
  %v6135 = vld [vmem:[%s3 + $0x48] sm:$0xff]
  %v6136 = vld [vmem:[%s3 + $0x50] sm:$0xff]
  %v6137 = vld [vmem:[%s3 + $0x58] sm:$0xff]
  %v6138 = vld [vmem:[%s3 + $0x60] sm:$0xff]
  %v6139 = vld [vmem:[%s3 + $0x68] sm:$0xff]
  %v6140 = vld [vmem:[%s3 + $0x70] sm:$0xff]
  %v6141 = vld [vmem:[%s3 + $0x78] sm:$0xff]
  %v6142 = vld [vmem:[%s3 + $0x80] sm:$0xff]
  %v6143 = vld [vmem:[%s3 + $0x88] sm:$0xff]
  %v6144 = vld [vmem:[%s3 + $0x90] sm:$0xff]
  %v6145 = vld [vmem:[%s3 + $0x98] sm:$0xff]
  %v6146 = vld [vmem:[%s3 + $0xa0] sm:$0xff]
  %v6147 = vld [vmem:[%s3 + $0xa8] sm:$0xff]
  %v6148 = vld [vmem:[%s3 + $0xb0] sm:$0xff]
  %v6149 = vld [vmem:[%s3 + $0xb8] sm:$0xff]
  %v6150 = vld [vmem:[%s3 + $0xc0] sm:$0xff]
  %v6151 = vld [vmem:[%s3 + $0xc8] sm:$0xff]
  %v6152 = vld [vmem:[%s3 + $0xd0] sm:$0xff]
  %v6153 = vld [vmem:[%s3 + $0xd8] sm:$0xff]
  %v6154 = vld [vmem:[%s3 + $0xe0] sm:$0xff]
  %v6155 = vld [vmem:[%s3 + $0xe8] sm:$0xff]
  %v6156 = vld [vmem:[%s3 + $0xf0] sm:$0xff]
  %v6157 = vld [vmem:[%s3 + $0xf8] sm:$0xff]
  %v6158 = vld [vmem:[%s3 + $0x100] sm:$0xff]
  %v6159 = vld [vmem:[%s3 + $0x108] sm:$0xff]
  %v6160 = vld [vmem:[%s3 + $0x110] sm:$0xff]
  %v6161 = vld [vmem:[%s3 + $0x118] sm:$0xff]
  %v6162 = vld [vmem:[%s3 + $0x120] sm:$0xff]
  %v6163 = vld [vmem:[%s3 + $0x128] sm:$0xff]
  %v6164 = vld [vmem:[%s3 + $0x130] sm:$0xff]
  %v6165 = vld [vmem:[%s3 + $0x138] sm:$0xff]
  %v6166 = vld [vmem:[%s3 + $0x140] sm:$0xff]
  %v6167 = vld [vmem:[%s3 + $0x148] sm:$0xff]
  %v6168 = vld [vmem:[%s3 + $0x150] sm:$0xff]
  %v6169 = vld [vmem:[%s3 + $0x158] sm:$0xff]
  %v6170 = vld [vmem:[%s3 + $0x160] sm:$0xff]
  %v6171 = vld [vmem:[%s3 + $0x168] sm:$0xff]
  %v6172 = vld [vmem:[%s3 + $0x170] sm:$0xff]
  %v6173 = vld [vmem:[%s3 + $0x178] sm:$0xff]
  %v6174 = vld [vmem:[%s3 + $0x180] sm:$0xff]
  %v6175 = vld [vmem:[%s3 + $0x188] sm:$0xff]
  %v6176 = vld [vmem:[%s3 + $0x190] sm:$0xff]
  %v6177 = vld [vmem:[%s3 + $0x198] sm:$0xff]
  %v6178 = vld [vmem:[%s3 + $0x1a0] sm:$0xff]
  %v6179 = vld [vmem:[%s3 + $0x1a8] sm:$0xff]
  %v6180 = vld [vmem:[%s3 + $0x1b0] sm:$0xff]
  %v6181 = vld [vmem:[%s3 + $0x1b8] sm:$0xff]
  %v6182 = vld [vmem:[%s3 + $0x1c0] sm:$0xff]
  %v6183 = vld [vmem:[%s3 + $0x1c8] sm:$0xff]
  %v6184 = vld [vmem:[%s3 + $0x1d0] sm:$0xff]
  %v6185 = vld [vmem:[%s3 + $0x1d8] sm:$0xff]
  %v6186 = vld [vmem:[%s3 + $0x1e0] sm:$0xff]
  %v6187 = vld [vmem:[%s3 + $0x1e8] sm:$0xff]
  %v6188 = vld [vmem:[%s3 + $0x1f0] sm:$0xff]
  %v6189 = vld [vmem:[%s3 + $0x1f8] sm:$0xff]
  %v6190 = vld [vmem:[%s3 + $0x200] sm:$0xff]
  %v6191 = vld [vmem:[%s3 + $0x208] sm:$0xff]
  %v6192 = vld [vmem:[%s3 + $0x210] sm:$0xff]
  %v6193 = vld [vmem:[%s3 + $0x218] sm:$0xff]
  %v6194 = vld [vmem:[%s3 + $0x220] sm:$0xff]
  %v6195 = vld [vmem:[%s3 + $0x228] sm:$0xff]
  %v6196 = vld [vmem:[%s3 + $0x230] sm:$0xff]
  %v6197 = vld [vmem:[%s3 + $0x238] sm:$0xff]
  %v6198 = vld [vmem:[%s3 + $0x240] sm:$0xff]
  %v6199 = vld [vmem:[%s3 + $0x248] sm:$0xff]
  %v6200 = vld [vmem:[%s3 + $0x250] sm:$0xff]
  %v6201 = vld [vmem:[%s3 + $0x258] sm:$0xff]
  %v6202 = vld [vmem:[%s3 + $0x260] sm:$0xff]
  %v6203 = vld [vmem:[%s3 + $0x268] sm:$0xff]
  %v6204 = vld [vmem:[%s3 + $0x270] sm:$0xff]
  %v6205 = vld [vmem:[%s3 + $0x278] sm:$0xff]
  %v6206 = vld [vmem:[%s3 + $0x280] sm:$0xff]
  %v6207 = vld [vmem:[%s3 + $0x288] sm:$0xff]
  %v6208 = vld [vmem:[%s3 + $0x290] sm:$0xff]
  %v6209 = vld [vmem:[%s3 + $0x298] sm:$0xff]
  %v6210 = vld [vmem:[%s3 + $0x2a0] sm:$0xff]
  %v6211 = vld [vmem:[%s3 + $0x2a8] sm:$0xff]
  %v6212 = vld [vmem:[%s3 + $0x2b0] sm:$0xff]
  %v6213 = vld [vmem:[%s3 + $0x2b8] sm:$0xff]
  %v6214 = vld [vmem:[%s3 + $0x2c0] sm:$0xff]
  %v6215 = vld [vmem:[%s3 + $0x2c8] sm:$0xff]
  %v6216 = vld [vmem:[%s3 + $0x2d0] sm:$0xff]
  %v6217 = vld [vmem:[%s3 + $0x2d8] sm:$0xff]
  %v6218 = vld [vmem:[%s3 + $0x2e0] sm:$0xff]
  %v6219 = vld [vmem:[%s3 + $0x2e8] sm:$0xff]
  %v6220 = vld [vmem:[%s3 + $0x2f0] sm:$0xff]
  %v6221 = vld [vmem:[%s3 + $0x2f8] sm:$0xff]
  %v6222 = vld [vmem:[%s3 + $0x300] sm:$0xff]
  %v6223 = vld [vmem:[%s3 + $0x308] sm:$0xff]
  %v6224 = vld [vmem:[%s3 + $0x310] sm:$0xff]
  %v6225 = vld [vmem:[%s3 + $0x318] sm:$0xff]
  %v6226 = vld [vmem:[%s3 + $0x320] sm:$0xff]
  %v6227 = vld [vmem:[%s3 + $0x328] sm:$0xff]
  %v6228 = vld [vmem:[%s3 + $0x330] sm:$0xff]
  %v6229 = vld [vmem:[%s3 + $0x338] sm:$0xff]
  %v6230 = vld [vmem:[%s3 + $0x340] sm:$0xff]
  %v6231 = vld [vmem:[%s3 + $0x348] sm:$0xff]
  %v6232 = vld [vmem:[%s3 + $0x350] sm:$0xff]
  %v6233 = vld [vmem:[%s3 + $0x358] sm:$0xff]
  %v6234 = vld [vmem:[%s3 + $0x360] sm:$0xff]
  %v6235 = vld [vmem:[%s3 + $0x368] sm:$0xff]
  %v6236 = vld [vmem:[%s3 + $0x370] sm:$0xff]
  %v6237 = vld [vmem:[%s3 + $0x378] sm:$0xff]
  %v6238 = vld [vmem:[%s3 + $0x380] sm:$0xff]
  %v6239 = vld [vmem:[%s3 + $0x388] sm:$0xff]
  %v6240 = vld [vmem:[%s3 + $0x390] sm:$0xff]
  %v6241 = vld [vmem:[%s3 + $0x398] sm:$0xff]
  %v6242 = vld [vmem:[%s3 + $0x3a0] sm:$0xff]
  %v6243 = vld [vmem:[%s3 + $0x3a8] sm:$0xff]
  %v6244 = vld [vmem:[%s3 + $0x3b0] sm:$0xff]
  %v6245 = vld [vmem:[%s3 + $0x3b8] sm:$0xff]
  %v6246 = vld [vmem:[%s3 + $0x3c0] sm:$0xff]
  %v6247 = vld [vmem:[%s3 + $0x3c8] sm:$0xff]
  %v6248 = vld [vmem:[%s3 + $0x3d0] sm:$0xff]
  %v6249 = vld [vmem:[%s3 + $0x3d8] sm:$0xff]
  %v6250 = vld [vmem:[%s3 + $0x3e0] sm:$0xff]
  %v6251 = vld [vmem:[%s3 + $0x3e8] sm:$0xff]
  %v6252 = vld [vmem:[%s3 + $0x3f0] sm:$0xff]
  %v6253 = vld [vmem:[%s3 + $0x3f8] sm:$0xff]
  %v6382 = vunpack.c.l.b16 %v6126
  %v6383 = vunpack.c.h.b16 %v6126
  %v6384 = vunpack.c.l.b16 %v6127
  %v6385 = vunpack.c.h.b16 %v6127
  %v6386 = vunpack.c.l.b16 %v6128
  %v6387 = vunpack.c.h.b16 %v6128
  %v6388 = vunpack.c.l.b16 %v6129
  %v6389 = vunpack.c.h.b16 %v6129
  %v6390 = vunpack.c.l.b16 %v6130
  %v6391 = vunpack.c.h.b16 %v6130
  %v6392 = vunpack.c.l.b16 %v6131
  %v6393 = vunpack.c.h.b16 %v6131
  %v6394 = vunpack.c.l.b16 %v6132
  %v6395 = vunpack.c.h.b16 %v6132
  %v6396 = vunpack.c.l.b16 %v6133
  %v6397 = vunpack.c.h.b16 %v6133
  %v6398 = vunpack.c.l.b16 %v6134
  %v6399 = vunpack.c.h.b16 %v6134
  %v6400 = vunpack.c.l.b16 %v6135
  %v6401 = vunpack.c.h.b16 %v6135
  %v6402 = vunpack.c.l.b16 %v6136
  %v6403 = vunpack.c.h.b16 %v6136
  %v6404 = vunpack.c.l.b16 %v6137
  %v6405 = vunpack.c.h.b16 %v6137
  %v6406 = vunpack.c.l.b16 %v6138
  %v6407 = vunpack.c.h.b16 %v6138
  %v6408 = vunpack.c.l.b16 %v6139
  %v6409 = vunpack.c.h.b16 %v6139
  %v6410 = vunpack.c.l.b16 %v6140
  %v6411 = vunpack.c.h.b16 %v6140
  %v6412 = vunpack.c.l.b16 %v6141
  %v6413 = vunpack.c.h.b16 %v6141
  %v6414 = vunpack.c.l.b16 %v6142
  %v6415 = vunpack.c.h.b16 %v6142
  %v6416 = vunpack.c.l.b16 %v6143
  %v6417 = vunpack.c.h.b16 %v6143
  %v6418 = vunpack.c.l.b16 %v6144
  %v6419 = vunpack.c.h.b16 %v6144
  %v6420 = vunpack.c.l.b16 %v6145
  %v6421 = vunpack.c.h.b16 %v6145
  %v6422 = vunpack.c.l.b16 %v6146
  %v6423 = vunpack.c.h.b16 %v6146
  %v6424 = vunpack.c.l.b16 %v6147
  %v6425 = vunpack.c.h.b16 %v6147
  %v6426 = vunpack.c.l.b16 %v6148
  %v6427 = vunpack.c.h.b16 %v6148
  %v6428 = vunpack.c.l.b16 %v6149
  %v6429 = vunpack.c.h.b16 %v6149
  %v6430 = vunpack.c.l.b16 %v6150
  %v6431 = vunpack.c.h.b16 %v6150
  %v6432 = vunpack.c.l.b16 %v6151
  %v6433 = vunpack.c.h.b16 %v6151
  %v6434 = vunpack.c.l.b16 %v6152
  %v6435 = vunpack.c.h.b16 %v6152
  %v6436 = vunpack.c.l.b16 %v6153
  %v6437 = vunpack.c.h.b16 %v6153
  %v6438 = vunpack.c.l.b16 %v6154
  %v6439 = vunpack.c.h.b16 %v6154
  %v6440 = vunpack.c.l.b16 %v6155
  %v6441 = vunpack.c.h.b16 %v6155
  %v6442 = vunpack.c.l.b16 %v6156
  %v6443 = vunpack.c.h.b16 %v6156
  %v6444 = vunpack.c.l.b16 %v6157
  %v6445 = vunpack.c.h.b16 %v6157
  %v6446 = vunpack.c.l.b16 %v6158
  %v6447 = vunpack.c.h.b16 %v6158
  %v6448 = vunpack.c.l.b16 %v6159
  %v6449 = vunpack.c.h.b16 %v6159
  %v6450 = vunpack.c.l.b16 %v6160
  %v6451 = vunpack.c.h.b16 %v6160
  %v6452 = vunpack.c.l.b16 %v6161
  %v6453 = vunpack.c.h.b16 %v6161
  %v6454 = vunpack.c.l.b16 %v6162
  %v6455 = vunpack.c.h.b16 %v6162
  %v6456 = vunpack.c.l.b16 %v6163
  %v6457 = vunpack.c.h.b16 %v6163
  %v6458 = vunpack.c.l.b16 %v6164
  %v6459 = vunpack.c.h.b16 %v6164
  %v6460 = vunpack.c.l.b16 %v6165
  %v6461 = vunpack.c.h.b16 %v6165
  %v6462 = vunpack.c.l.b16 %v6166
  %v6463 = vunpack.c.h.b16 %v6166
  %v6464 = vunpack.c.l.b16 %v6167
  %v6465 = vunpack.c.h.b16 %v6167
  %v6466 = vunpack.c.l.b16 %v6168
  %v6467 = vunpack.c.h.b16 %v6168
  %v6468 = vunpack.c.l.b16 %v6169
  %v6469 = vunpack.c.h.b16 %v6169
  %v6470 = vunpack.c.l.b16 %v6170
  %v6471 = vunpack.c.h.b16 %v6170
  %v6472 = vunpack.c.l.b16 %v6171
  %v6473 = vunpack.c.h.b16 %v6171
  %v6474 = vunpack.c.l.b16 %v6172
  %v6475 = vunpack.c.h.b16 %v6172
  %v6476 = vunpack.c.l.b16 %v6173
  %v6477 = vunpack.c.h.b16 %v6173
  %v6478 = vunpack.c.l.b16 %v6174
  %v6479 = vunpack.c.h.b16 %v6174
  %v6480 = vunpack.c.l.b16 %v6175
  %v6481 = vunpack.c.h.b16 %v6175
  %v6482 = vunpack.c.l.b16 %v6176
  %v6483 = vunpack.c.h.b16 %v6176
  %v6484 = vunpack.c.l.b16 %v6177
  %v6485 = vunpack.c.h.b16 %v6177
  %v6486 = vunpack.c.l.b16 %v6178
  %v6487 = vunpack.c.h.b16 %v6178
  %v6488 = vunpack.c.l.b16 %v6179
  %v6489 = vunpack.c.h.b16 %v6179
  %v6490 = vunpack.c.l.b16 %v6180
  %v6491 = vunpack.c.h.b16 %v6180
  %v6492 = vunpack.c.l.b16 %v6181
  %v6493 = vunpack.c.h.b16 %v6181
  %v6494 = vunpack.c.l.b16 %v6182
  %v6495 = vunpack.c.h.b16 %v6182
  %v6496 = vunpack.c.l.b16 %v6183
  %v6497 = vunpack.c.h.b16 %v6183
  %v6498 = vunpack.c.l.b16 %v6184
  %v6499 = vunpack.c.h.b16 %v6184
  %v6500 = vunpack.c.l.b16 %v6185
  %v6501 = vunpack.c.h.b16 %v6185
  %v6502 = vunpack.c.l.b16 %v6186
  %v6503 = vunpack.c.h.b16 %v6186
  %v6504 = vunpack.c.l.b16 %v6187
  %v6505 = vunpack.c.h.b16 %v6187
  %v6506 = vunpack.c.l.b16 %v6188
  %v6507 = vunpack.c.h.b16 %v6188
  %v6508 = vunpack.c.l.b16 %v6189
  %v6509 = vunpack.c.h.b16 %v6189
  %v6510 = vunpack.c.l.b16 %v6190
  %v6511 = vunpack.c.h.b16 %v6190
  %v6512 = vunpack.c.l.b16 %v6191
  %v6513 = vunpack.c.h.b16 %v6191
  %v6514 = vunpack.c.l.b16 %v6192
  %v6515 = vunpack.c.h.b16 %v6192
  %v6516 = vunpack.c.l.b16 %v6193
  %v6517 = vunpack.c.h.b16 %v6193
  %v6518 = vunpack.c.l.b16 %v6194
  %v6519 = vunpack.c.h.b16 %v6194
  %v6520 = vunpack.c.l.b16 %v6195
  %v6521 = vunpack.c.h.b16 %v6195
  %v6522 = vunpack.c.l.b16 %v6196
  %v6523 = vunpack.c.h.b16 %v6196
  %v6524 = vunpack.c.l.b16 %v6197
  %v6525 = vunpack.c.h.b16 %v6197
  %v6526 = vunpack.c.l.b16 %v6198
  %v6527 = vunpack.c.h.b16 %v6198
  %v6528 = vunpack.c.l.b16 %v6199
  %v6529 = vunpack.c.h.b16 %v6199
  %v6530 = vunpack.c.l.b16 %v6200
  %v6531 = vunpack.c.h.b16 %v6200
  %v6532 = vunpack.c.l.b16 %v6201
  %v6533 = vunpack.c.h.b16 %v6201
  %v6534 = vunpack.c.l.b16 %v6202
  %v6535 = vunpack.c.h.b16 %v6202
  %v6536 = vunpack.c.l.b16 %v6203
  %v6537 = vunpack.c.h.b16 %v6203
  %v6538 = vunpack.c.l.b16 %v6204
  %v6539 = vunpack.c.h.b16 %v6204
  %v6540 = vunpack.c.l.b16 %v6205
  %v6541 = vunpack.c.h.b16 %v6205
  %v6542 = vunpack.c.l.b16 %v6206
  %v6543 = vunpack.c.h.b16 %v6206
  %v6544 = vunpack.c.l.b16 %v6207
  %v6545 = vunpack.c.h.b16 %v6207
  %v6546 = vunpack.c.l.b16 %v6208
  %v6547 = vunpack.c.h.b16 %v6208
  %v6548 = vunpack.c.l.b16 %v6209
  %v6549 = vunpack.c.h.b16 %v6209
  %v6550 = vunpack.c.l.b16 %v6210
  %v6551 = vunpack.c.h.b16 %v6210
  %v6552 = vunpack.c.l.b16 %v6211
  %v6553 = vunpack.c.h.b16 %v6211
  %v6554 = vunpack.c.l.b16 %v6212
  %v6555 = vunpack.c.h.b16 %v6212
  %v6556 = vunpack.c.l.b16 %v6213
  %v6557 = vunpack.c.h.b16 %v6213
  %v6558 = vunpack.c.l.b16 %v6214
  %v6559 = vunpack.c.h.b16 %v6214
  %v6560 = vunpack.c.l.b16 %v6215
  %v6561 = vunpack.c.h.b16 %v6215
  %v6562 = vunpack.c.l.b16 %v6216
  %v6563 = vunpack.c.h.b16 %v6216
  %v6564 = vunpack.c.l.b16 %v6217
  %v6565 = vunpack.c.h.b16 %v6217
  %v6566 = vunpack.c.l.b16 %v6218
  %v6567 = vunpack.c.h.b16 %v6218
  %v6568 = vunpack.c.l.b16 %v6219
  %v6569 = vunpack.c.h.b16 %v6219
  %v6570 = vunpack.c.l.b16 %v6220
  %v6571 = vunpack.c.h.b16 %v6220
  %v6572 = vunpack.c.l.b16 %v6221
  %v6573 = vunpack.c.h.b16 %v6221
  %v6574 = vunpack.c.l.b16 %v6222
  %v6575 = vunpack.c.h.b16 %v6222
  %v6576 = vunpack.c.l.b16 %v6223
  %v6577 = vunpack.c.h.b16 %v6223
  %v6578 = vunpack.c.l.b16 %v6224
  %v6579 = vunpack.c.h.b16 %v6224
  %v6580 = vunpack.c.l.b16 %v6225
  %v6581 = vunpack.c.h.b16 %v6225
  %v6582 = vunpack.c.l.b16 %v6226
  %v6583 = vunpack.c.h.b16 %v6226
  %v6584 = vunpack.c.l.b16 %v6227
  %v6585 = vunpack.c.h.b16 %v6227
  %v6586 = vunpack.c.l.b16 %v6228
  %v6587 = vunpack.c.h.b16 %v6228
  %v6588 = vunpack.c.l.b16 %v6229
  %v6589 = vunpack.c.h.b16 %v6229
  %v6590 = vunpack.c.l.b16 %v6230
  %v6591 = vunpack.c.h.b16 %v6230
  %v6592 = vunpack.c.l.b16 %v6231
  %v6593 = vunpack.c.h.b16 %v6231
  %v6594 = vunpack.c.l.b16 %v6232
  %v6595 = vunpack.c.h.b16 %v6232
  %v6596 = vunpack.c.l.b16 %v6233
  %v6597 = vunpack.c.h.b16 %v6233
  %v6598 = vunpack.c.l.b16 %v6234
  %v6599 = vunpack.c.h.b16 %v6234
  %v6600 = vunpack.c.l.b16 %v6235
  %v6601 = vunpack.c.h.b16 %v6235
  %v6602 = vunpack.c.l.b16 %v6236
  %v6603 = vunpack.c.h.b16 %v6236
  %v6604 = vunpack.c.l.b16 %v6237
  %v6605 = vunpack.c.h.b16 %v6237
  %v6606 = vunpack.c.l.b16 %v6238
  %v6607 = vunpack.c.h.b16 %v6238
  %v6608 = vunpack.c.l.b16 %v6239
  %v6609 = vunpack.c.h.b16 %v6239
  %v6610 = vunpack.c.l.b16 %v6240
  %v6611 = vunpack.c.h.b16 %v6240
  %v6612 = vunpack.c.l.b16 %v6241
  %v6613 = vunpack.c.h.b16 %v6241
  %v6614 = vunpack.c.l.b16 %v6242
  %v6615 = vunpack.c.h.b16 %v6242
  %v6616 = vunpack.c.l.b16 %v6243
  %v6617 = vunpack.c.h.b16 %v6243
  %v6618 = vunpack.c.l.b16 %v6244
  %v6619 = vunpack.c.h.b16 %v6244
  %v6620 = vunpack.c.l.b16 %v6245
  %v6621 = vunpack.c.h.b16 %v6245
  %v6622 = vunpack.c.l.b16 %v6246
  %v6623 = vunpack.c.h.b16 %v6246
  %v6624 = vunpack.c.l.b16 %v6247
  %v6625 = vunpack.c.h.b16 %v6247
  %v6626 = vunpack.c.l.b16 %v6248
  %v6627 = vunpack.c.h.b16 %v6248
  %v6628 = vunpack.c.l.b16 %v6249
  %v6629 = vunpack.c.h.b16 %v6249
  %v6630 = vunpack.c.l.b16 %v6250
  %v6631 = vunpack.c.h.b16 %v6250
  %v6632 = vunpack.c.l.b16 %v6251
  %v6633 = vunpack.c.h.b16 %v6251
  %v6634 = vunpack.c.l.b16 %v6252
  %v6635 = vunpack.c.h.b16 %v6252
  %v6636 = vunpack.c.l.b16 %v6253
  %v6637 = vunpack.c.h.b16 %v6253
  %v6638 = vpack.c.b16 %v6390, %v6382
  %v6639 = vpack.c.b16 %v6391, %v6383
  %v6640 = vpack.c.b16 %v6392, %v6384
  %v6641 = vpack.c.b16 %v6393, %v6385
  %v6642 = vpack.c.b16 %v6394, %v6386
  %v6643 = vpack.c.b16 %v6395, %v6387
  %v6644 = vpack.c.b16 %v6396, %v6388
  %v6645 = vpack.c.b16 %v6397, %v6389
  %v6646 = vpack.c.b16 %v6406, %v6398
  %v6647 = vpack.c.b16 %v6407, %v6399
  %v6648 = vpack.c.b16 %v6408, %v6400
  %v6649 = vpack.c.b16 %v6409, %v6401
  %v6650 = vpack.c.b16 %v6410, %v6402
  %v6651 = vpack.c.b16 %v6411, %v6403
  %v6652 = vpack.c.b16 %v6412, %v6404
  %v6653 = vpack.c.b16 %v6413, %v6405
  %v6654 = vpack.c.b16 %v6422, %v6414
  %v6655 = vpack.c.b16 %v6423, %v6415
  %v6656 = vpack.c.b16 %v6424, %v6416
  %v6657 = vpack.c.b16 %v6425, %v6417
  %v6658 = vpack.c.b16 %v6426, %v6418
  %v6659 = vpack.c.b16 %v6427, %v6419
  %v6660 = vpack.c.b16 %v6428, %v6420
  %v6661 = vpack.c.b16 %v6429, %v6421
  %v6662 = vpack.c.b16 %v6438, %v6430
  %v6663 = vpack.c.b16 %v6439, %v6431
  %v6664 = vpack.c.b16 %v6440, %v6432
  %v6665 = vpack.c.b16 %v6441, %v6433
  %v6666 = vpack.c.b16 %v6442, %v6434
  %v6667 = vpack.c.b16 %v6443, %v6435
  %v6668 = vpack.c.b16 %v6444, %v6436
  %v6669 = vpack.c.b16 %v6445, %v6437
  %v6670 = vpack.c.b16 %v6454, %v6446
  %v6671 = vpack.c.b16 %v6455, %v6447
  %v6672 = vpack.c.b16 %v6456, %v6448
  %v6673 = vpack.c.b16 %v6457, %v6449
  %v6674 = vpack.c.b16 %v6458, %v6450
  %v6675 = vpack.c.b16 %v6459, %v6451
  %v6676 = vpack.c.b16 %v6460, %v6452
  %v6677 = vpack.c.b16 %v6461, %v6453
  %v6678 = vpack.c.b16 %v6470, %v6462
  %v6679 = vpack.c.b16 %v6471, %v6463
  %v6680 = vpack.c.b16 %v6472, %v6464
  %v6681 = vpack.c.b16 %v6473, %v6465
  %v6682 = vpack.c.b16 %v6474, %v6466
  %v6683 = vpack.c.b16 %v6475, %v6467
  %v6684 = vpack.c.b16 %v6476, %v6468
  %v6685 = vpack.c.b16 %v6477, %v6469
  %v6686 = vpack.c.b16 %v6486, %v6478
  %v6687 = vpack.c.b16 %v6487, %v6479
  %v6688 = vpack.c.b16 %v6488, %v6480
  %v6689 = vpack.c.b16 %v6489, %v6481
  %v6690 = vpack.c.b16 %v6490, %v6482
  %v6691 = vpack.c.b16 %v6491, %v6483
  %v6692 = vpack.c.b16 %v6492, %v6484
  %v6693 = vpack.c.b16 %v6493, %v6485
  %v6694 = vpack.c.b16 %v6502, %v6494
  %v6695 = vpack.c.b16 %v6503, %v6495
  %v6696 = vpack.c.b16 %v6504, %v6496
  %v6697 = vpack.c.b16 %v6505, %v6497
  %v6698 = vpack.c.b16 %v6506, %v6498
  %v6699 = vpack.c.b16 %v6507, %v6499
  %v6700 = vpack.c.b16 %v6508, %v6500
  %v6701 = vpack.c.b16 %v6509, %v6501
  %v6702 = vpack.c.b16 %v6518, %v6510
  %v6703 = vpack.c.b16 %v6519, %v6511
  %v6704 = vpack.c.b16 %v6520, %v6512
  %v6705 = vpack.c.b16 %v6521, %v6513
  %v6706 = vpack.c.b16 %v6522, %v6514
  %v6707 = vpack.c.b16 %v6523, %v6515
  %v6708 = vpack.c.b16 %v6524, %v6516
  %v6709 = vpack.c.b16 %v6525, %v6517
  %v6710 = vpack.c.b16 %v6534, %v6526
  %v6711 = vpack.c.b16 %v6535, %v6527
  %v6712 = vpack.c.b16 %v6536, %v6528
  %v6713 = vpack.c.b16 %v6537, %v6529
  %v6714 = vpack.c.b16 %v6538, %v6530
  %v6715 = vpack.c.b16 %v6539, %v6531
  %v6716 = vpack.c.b16 %v6540, %v6532
  %v6717 = vpack.c.b16 %v6541, %v6533
  %v6718 = vpack.c.b16 %v6550, %v6542
  %v6719 = vpack.c.b16 %v6551, %v6543
  %v6720 = vpack.c.b16 %v6552, %v6544
  %v6721 = vpack.c.b16 %v6553, %v6545
  %v6722 = vpack.c.b16 %v6554, %v6546
  %v6723 = vpack.c.b16 %v6555, %v6547
  %v6724 = vpack.c.b16 %v6556, %v6548
  %v6725 = vpack.c.b16 %v6557, %v6549
  %v6726 = vpack.c.b16 %v6566, %v6558
  %v6727 = vpack.c.b16 %v6567, %v6559
  %v6728 = vpack.c.b16 %v6568, %v6560
  %v6729 = vpack.c.b16 %v6569, %v6561
  %v6730 = vpack.c.b16 %v6570, %v6562
  %v6731 = vpack.c.b16 %v6571, %v6563
  %v6732 = vpack.c.b16 %v6572, %v6564
  %v6733 = vpack.c.b16 %v6573, %v6565
  %v6734 = vpack.c.b16 %v6582, %v6574
  %v6735 = vpack.c.b16 %v6583, %v6575
  %v6736 = vpack.c.b16 %v6584, %v6576
  %v6737 = vpack.c.b16 %v6585, %v6577
  %v6738 = vpack.c.b16 %v6586, %v6578
  %v6739 = vpack.c.b16 %v6587, %v6579
  %v6740 = vpack.c.b16 %v6588, %v6580
  %v6741 = vpack.c.b16 %v6589, %v6581
  %v6742 = vpack.c.b16 %v6598, %v6590
  %v6743 = vpack.c.b16 %v6599, %v6591
  %v6744 = vpack.c.b16 %v6600, %v6592
  %v6745 = vpack.c.b16 %v6601, %v6593
  %v6746 = vpack.c.b16 %v6602, %v6594
  %v6747 = vpack.c.b16 %v6603, %v6595
  %v6748 = vpack.c.b16 %v6604, %v6596
  %v6749 = vpack.c.b16 %v6605, %v6597
  %v6750 = vpack.c.b16 %v6614, %v6606
  %v6751 = vpack.c.b16 %v6615, %v6607
  %v6752 = vpack.c.b16 %v6616, %v6608
  %v6753 = vpack.c.b16 %v6617, %v6609
  %v6754 = vpack.c.b16 %v6618, %v6610
  %v6755 = vpack.c.b16 %v6619, %v6611
  %v6756 = vpack.c.b16 %v6620, %v6612
  %v6757 = vpack.c.b16 %v6621, %v6613
  %v6758 = vpack.c.b16 %v6630, %v6622
  %v6759 = vpack.c.b16 %v6631, %v6623
  %v6760 = vpack.c.b16 %v6632, %v6624
  %v6761 = vpack.c.b16 %v6633, %v6625
  %v6762 = vpack.c.b16 %v6634, %v6626
  %v6763 = vpack.c.b16 %v6635, %v6627
  %v6764 = vpack.c.b16 %v6636, %v6628
  %v6765 = vpack.c.b16 %v6637, %v6629
  %6894 = vmatpush.bf16.msra.mxu0 %v6694
  %6895 = vmatpush.bf16.msra.mxu0 %v6686
  %6896 = vmatpush.bf16.msra.mxu0 %v6678
  %6897 = vmatpush.bf16.msra.mxu0 %v6670
  %6898 = vmatpush.bf16.msra.mxu0 %v6662
  %6899 = vmatpush.bf16.msra.mxu0 %v6654
  %6900 = vmatpush.bf16.msra.mxu0 %v6646
  %6901 = vmatpush.bf16.msra.mxu0 %v6638
  %6902 = vmatmul.bf16.gmra.mxu0 %v6124
  %v6903 = vpop.f32.mrf.mxu0
  %v6904 = vadd.f32 0.0, %v6903
  %v6905 = vpop.f32.mrf.mxu0
  %6906 = vdwg.mxu0
  %6907 = vmatpush.bf16.msra.mxu0 %v6758
  %6908 = vmatpush.bf16.msra.mxu0 %v6750
  %6909 = vmatpush.bf16.msra.mxu0 %v6742
  %6910 = vmatpush.bf16.msra.mxu0 %v6734
  %6911 = vmatpush.bf16.msra.mxu0 %v6726
  %6912 = vmatpush.bf16.msra.mxu0 %v6718
  %6913 = vmatpush.bf16.msra.mxu0 %v6710
  %6914 = vmatpush.bf16.msra.mxu0 %v6702
  %6915 = vmatmul.bf16.gmra.mxu0 %v6125
  %v6916 = vpop.f32.mrf.mxu0
  %v6917 = vadd.f32 %v6904, %v6916
  %v6918 = vpop.f32.mrf.mxu0
  %6919 = vdwg.mxu0
  %6920 = vmatpush.bf16.msra.mxu0 %v6695
  %6921 = vmatpush.bf16.msra.mxu0 %v6687
  %6922 = vmatpush.bf16.msra.mxu0 %v6679
  %6923 = vmatpush.bf16.msra.mxu0 %v6671
  %6924 = vmatpush.bf16.msra.mxu0 %v6663
  %6925 = vmatpush.bf16.msra.mxu0 %v6655
  %6926 = vmatpush.bf16.msra.mxu0 %v6647
  %6927 = vmatpush.bf16.msra.mxu0 %v6639
  %6928 = vmatmul.bf16.gmra.mxu0 %v6124
  %v6929 = vpop.f32.mrf.mxu0
  %v6930 = vadd.f32 0.0, %v6929
  %v6931 = vpop.f32.mrf.mxu0
  %6932 = vdwg.mxu0
  %6933 = vmatpush.bf16.msra.mxu0 %v6759
  %6934 = vmatpush.bf16.msra.mxu0 %v6751
  %6935 = vmatpush.bf16.msra.mxu0 %v6743
  %6936 = vmatpush.bf16.msra.mxu0 %v6735
  %6937 = vmatpush.bf16.msra.mxu0 %v6727
  %6938 = vmatpush.bf16.msra.mxu0 %v6719
  %6939 = vmatpush.bf16.msra.mxu0 %v6711
  %6940 = vmatpush.bf16.msra.mxu0 %v6703
  %6941 = vmatmul.bf16.gmra.mxu0 %v6125
  %v6942 = vpop.f32.mrf.mxu0
  %v6943 = vadd.f32 %v6930, %v6942
  %v6944 = vpop.f32.mrf.mxu0
  %6945 = vdwg.mxu0
  %6946 = vmatpush.bf16.msra.mxu0 %v6696
  %6947 = vmatpush.bf16.msra.mxu0 %v6688
  %6948 = vmatpush.bf16.msra.mxu0 %v6680
  %6949 = vmatpush.bf16.msra.mxu0 %v6672
  %6950 = vmatpush.bf16.msra.mxu0 %v6664
  %6951 = vmatpush.bf16.msra.mxu0 %v6656
  %6952 = vmatpush.bf16.msra.mxu0 %v6648
  %6953 = vmatpush.bf16.msra.mxu0 %v6640
  %6954 = vmatmul.bf16.gmra.mxu0 %v6124
  %v6955 = vpop.f32.mrf.mxu0
  %v6956 = vadd.f32 0.0, %v6955
  %v6957 = vpop.f32.mrf.mxu0
  %6958 = vdwg.mxu0
  %6959 = vmatpush.bf16.msra.mxu0 %v6760
  %6960 = vmatpush.bf16.msra.mxu0 %v6752
  %6961 = vmatpush.bf16.msra.mxu0 %v6744
  %6962 = vmatpush.bf16.msra.mxu0 %v6736
  %6963 = vmatpush.bf16.msra.mxu0 %v6728
  %6964 = vmatpush.bf16.msra.mxu0 %v6720
  %6965 = vmatpush.bf16.msra.mxu0 %v6712
  %6966 = vmatpush.bf16.msra.mxu0 %v6704
  %6967 = vmatmul.bf16.gmra.mxu0 %v6125
  %v6968 = vpop.f32.mrf.mxu0
  %v6969 = vadd.f32 %v6956, %v6968
  %v6970 = vpop.f32.mrf.mxu0
  %6971 = vdwg.mxu0
  %6972 = vmatpush.bf16.msra.mxu0 %v6697
  %6973 = vmatpush.bf16.msra.mxu0 %v6689
  %6974 = vmatpush.bf16.msra.mxu0 %v6681
  %6975 = vmatpush.bf16.msra.mxu0 %v6673
  %6976 = vmatpush.bf16.msra.mxu0 %v6665
  %6977 = vmatpush.bf16.msra.mxu0 %v6657
  %6978 = vmatpush.bf16.msra.mxu0 %v6649
  %6979 = vmatpush.bf16.msra.mxu0 %v6641
  %6980 = vmatmul.bf16.gmra.mxu0 %v6124
  %v6981 = vpop.f32.mrf.mxu0
  %v6982 = vadd.f32 0.0, %v6981
  %v6983 = vpop.f32.mrf.mxu0
  %6984 = vdwg.mxu0
  %6985 = vmatpush.bf16.msra.mxu0 %v6761
  %6986 = vmatpush.bf16.msra.mxu0 %v6753
  %6987 = vmatpush.bf16.msra.mxu0 %v6745
  %6988 = vmatpush.bf16.msra.mxu0 %v6737
  %6989 = vmatpush.bf16.msra.mxu0 %v6729
  %6990 = vmatpush.bf16.msra.mxu0 %v6721
  %6991 = vmatpush.bf16.msra.mxu0 %v6713
  %6992 = vmatpush.bf16.msra.mxu0 %v6705
  %6993 = vmatmul.bf16.gmra.mxu0 %v6125
  %v6994 = vpop.f32.mrf.mxu0
  %v6995 = vadd.f32 %v6982, %v6994
  %v6996 = vpop.f32.mrf.mxu0
  %6997 = vdwg.mxu0
  %6998 = vmatpush.bf16.msra.mxu0 %v6698
  %6999 = vmatpush.bf16.msra.mxu0 %v6690
  %7000 = vmatpush.bf16.msra.mxu0 %v6682
  %7001 = vmatpush.bf16.msra.mxu0 %v6674
  %7002 = vmatpush.bf16.msra.mxu0 %v6666
  %7003 = vmatpush.bf16.msra.mxu0 %v6658
  %7004 = vmatpush.bf16.msra.mxu0 %v6650
  %7005 = vmatpush.bf16.msra.mxu0 %v6642
  %7006 = vmatmul.bf16.gmra.mxu0 %v6124
  %v7007 = vpop.f32.mrf.mxu0
  %v7008 = vadd.f32 0.0, %v7007
  %v7009 = vpop.f32.mrf.mxu0
  %7010 = vdwg.mxu0
  %7011 = vmatpush.bf16.msra.mxu0 %v6762
  %7012 = vmatpush.bf16.msra.mxu0 %v6754
  %7013 = vmatpush.bf16.msra.mxu0 %v6746
  %7014 = vmatpush.bf16.msra.mxu0 %v6738
  %7015 = vmatpush.bf16.msra.mxu0 %v6730
  %7016 = vmatpush.bf16.msra.mxu0 %v6722
  %7017 = vmatpush.bf16.msra.mxu0 %v6714
  %7018 = vmatpush.bf16.msra.mxu0 %v6706
  %7019 = vmatmul.bf16.gmra.mxu0 %v6125
  %v7020 = vpop.f32.mrf.mxu0
  %v7021 = vadd.f32 %v7008, %v7020
  %v7022 = vpop.f32.mrf.mxu0
  %7023 = vdwg.mxu0
  %7024 = vmatpush.bf16.msra.mxu0 %v6699
  %7025 = vmatpush.bf16.msra.mxu0 %v6691
  %7026 = vmatpush.bf16.msra.mxu0 %v6683
  %7027 = vmatpush.bf16.msra.mxu0 %v6675
  %7028 = vmatpush.bf16.msra.mxu0 %v6667
  %7029 = vmatpush.bf16.msra.mxu0 %v6659
  %7030 = vmatpush.bf16.msra.mxu0 %v6651
  %7031 = vmatpush.bf16.msra.mxu0 %v6643
  %7032 = vmatmul.bf16.gmra.mxu0 %v6124
  %v7033 = vpop.f32.mrf.mxu0
  %v7034 = vadd.f32 0.0, %v7033
  %v7035 = vpop.f32.mrf.mxu0
  %7036 = vdwg.mxu0
  %7037 = vmatpush.bf16.msra.mxu0 %v6763
  %7038 = vmatpush.bf16.msra.mxu0 %v6755
  %7039 = vmatpush.bf16.msra.mxu0 %v6747
  %7040 = vmatpush.bf16.msra.mxu0 %v6739
  %7041 = vmatpush.bf16.msra.mxu0 %v6731
  %7042 = vmatpush.bf16.msra.mxu0 %v6723
  %7043 = vmatpush.bf16.msra.mxu0 %v6715
  %7044 = vmatpush.bf16.msra.mxu0 %v6707
  %7045 = vmatmul.bf16.gmra.mxu0 %v6125
  %v7046 = vpop.f32.mrf.mxu0
  %v7047 = vadd.f32 %v7034, %v7046
  %v7048 = vpop.f32.mrf.mxu0
  %7049 = vdwg.mxu0
  %7050 = vmatpush.bf16.msra.mxu0 %v6700
  %7051 = vmatpush.bf16.msra.mxu0 %v6692
  %7052 = vmatpush.bf16.msra.mxu0 %v6684
  %7053 = vmatpush.bf16.msra.mxu0 %v6676
  %7054 = vmatpush.bf16.msra.mxu0 %v6668
  %7055 = vmatpush.bf16.msra.mxu0 %v6660
  %7056 = vmatpush.bf16.msra.mxu0 %v6652
  %7057 = vmatpush.bf16.msra.mxu0 %v6644
  %7058 = vmatmul.bf16.gmra.mxu0 %v6124
  %v7059 = vpop.f32.mrf.mxu0
  %v7060 = vadd.f32 0.0, %v7059
  %v7061 = vpop.f32.mrf.mxu0
  %7062 = vdwg.mxu0
  %7063 = vmatpush.bf16.msra.mxu0 %v6764
  %7064 = vmatpush.bf16.msra.mxu0 %v6756
  %7065 = vmatpush.bf16.msra.mxu0 %v6748
  %7066 = vmatpush.bf16.msra.mxu0 %v6740
  %7067 = vmatpush.bf16.msra.mxu0 %v6732
  %7068 = vmatpush.bf16.msra.mxu0 %v6724
  %7069 = vmatpush.bf16.msra.mxu0 %v6716
  %7070 = vmatpush.bf16.msra.mxu0 %v6708
  %7071 = vmatmul.bf16.gmra.mxu0 %v6125
  %v7072 = vpop.f32.mrf.mxu0
  %v7073 = vadd.f32 %v7060, %v7072
  %v7074 = vpop.f32.mrf.mxu0
  %7075 = vdwg.mxu0
  %7076 = vmatpush.bf16.msra.mxu0 %v6701
  %7077 = vmatpush.bf16.msra.mxu0 %v6693
  %7078 = vmatpush.bf16.msra.mxu0 %v6685
  %7079 = vmatpush.bf16.msra.mxu0 %v6677
  %7080 = vmatpush.bf16.msra.mxu0 %v6669
  %7081 = vmatpush.bf16.msra.mxu0 %v6661
  %7082 = vmatpush.bf16.msra.mxu0 %v6653
  %7083 = vmatpush.bf16.msra.mxu0 %v6645
  %7084 = vmatmul.bf16.gmra.mxu0 %v6124
  %v7085 = vpop.f32.mrf.mxu0
  %v7086 = vadd.f32 0.0, %v7085
  %v7087 = vpop.f32.mrf.mxu0
  %7088 = vdwg.mxu0
  %7089 = vmatpush.bf16.msra.mxu0 %v6765
  %7090 = vmatpush.bf16.msra.mxu0 %v6757
  %7091 = vmatpush.bf16.msra.mxu0 %v6749
  %7092 = vmatpush.bf16.msra.mxu0 %v6741
  %7093 = vmatpush.bf16.msra.mxu0 %v6733
  %7094 = vmatpush.bf16.msra.mxu0 %v6725
  %7095 = vmatpush.bf16.msra.mxu0 %v6717
  %7096 = vmatpush.bf16.msra.mxu0 %v6709
  %7097 = vmatmul.bf16.gmra.mxu0 %v6125
  %v7098 = vpop.f32.mrf.mxu0
  %v7099 = vadd.f32 %v7086, %v7098
  %v7100 = vpop.f32.mrf.mxu0
  %7101 = vdwg.mxu0
  %v7102 = vadd.f32 %v6118, %v6917
  %v7103 = vadd.f32 %v6119, %v6943
  %v7104 = vadd.f32 %v6120, %v6969
  %v7105 = vadd.f32 %v6121, %v6995
  %v7106 = vadd.f32 %v7021, %v440
  %v7107 = vadd.f32 %v7047, %v441
  %v7108 = vadd.f32 %v7073, %v442
  %v7109 = vadd.f32 %v7099, %v443
  %v7110 = vxor.u32 %v7106, 2147483648
  %v7111 = vmul.f32 %v7110, 1.442695
  %v7112 = vpow.pop %v7111
  %v7113 = vadd.f32 %v7112, 1.0
  %v7114 = vrcp.pop %v7113
  %v7115 = vmul.f32 %v7113, %v7114
  %v7116 = vsub.f32 1.0, %v7115
  %v7117 = vmul.f32 %v7114, %v7116
  %v7118 = vadd.f32 %v7114, %v7117
  %vm7119 = vweird.f32 %v7113
  %vm7120 = vweird.f32 %v7114
  %vm7121 = vmor %vm7119, %vm7120
  %v7122 = vsel %vm7121, %v7114, %v7118
  %v7123 = vand.u32 2147483647, %v7113
  %vm7124 = vcmp.eq.f32.partialorder %v7123, 8.507059e+37
  %v7125 = vand.u32 %v7113, 2147483648
  %v7126 = vor.u32 1.1754944e-38, %v7125
  %v7127 = vsel %vm7124, %v7126, %v7122
  %v7128 = vmul.f32 1.0, %v7127
  %v7129 = vxor.u32 %v7107, 2147483648
  %v7130 = vmul.f32 %v7129, 1.442695
  %v7131 = vpow.pop %v7130
  %v7132 = vadd.f32 %v7131, 1.0
  %v7133 = vrcp.pop %v7132
  %v7134 = vmul.f32 %v7132, %v7133
  %v7135 = vsub.f32 1.0, %v7134
  %v7136 = vmul.f32 %v7133, %v7135
  %v7137 = vadd.f32 %v7133, %v7136
  %vm7138 = vweird.f32 %v7132
  %vm7139 = vweird.f32 %v7133
  %vm7140 = vmor %vm7138, %vm7139
  %v7141 = vsel %vm7140, %v7133, %v7137
  %v7142 = vand.u32 2147483647, %v7132
  %vm7143 = vcmp.eq.f32.partialorder %v7142, 8.507059e+37
  %v7144 = vand.u32 %v7132, 2147483648
  %v7145 = vor.u32 1.1754944e-38, %v7144
  %v7146 = vsel %vm7143, %v7145, %v7141
  %v7147 = vmul.f32 1.0, %v7146
  %v7148 = vtanh.pop %v7108
  %v7149 = vxor.u32 %v7109, 2147483648
  %v7150 = vmul.f32 %v7149, 1.442695
  %v7151 = vpow.pop %v7150
  %v7152 = vadd.f32 %v7151, 1.0
  %v7153 = vrcp.pop %v7152
  %v7154 = vmul.f32 %v7152, %v7153
  %v7155 = vsub.f32 1.0, %v7154
  %v7156 = vmul.f32 %v7153, %v7155
  %v7157 = vadd.f32 %v7153, %v7156
  %vm7158 = vweird.f32 %v7152
  %vm7159 = vweird.f32 %v7153
  %vm7160 = vmor %vm7158, %vm7159
  %v7161 = vsel %vm7160, %v7153, %v7157
  %v7162 = vand.u32 2147483647, %v7152
  %vm7163 = vcmp.eq.f32.partialorder %v7162, 8.507059e+37
  %v7164 = vand.u32 %v7152, 2147483648
  %v7165 = vor.u32 1.1754944e-38, %v7164
  %v7166 = vsel %vm7163, %v7165, %v7161
  %v7167 = vmul.f32 1.0, %v7166
  %v7168 = vmul.f32 %v7147, %v6050
  %v7169 = vmul.f32 %v7128, %v7148
  %v7170 = vadd.f32 %v7168, %v7169
  %v7171 = vtanh.pop %v7170
  %v7172 = vmul.f32 %v7167, %v7171
  %7173 = vst [vmem:[#allocation3 + $0x8] sm:$0xff] %v7172
  %v7174 = vxor.u32 %v7102, 2147483648
  %v7175 = vmul.f32 %v7174, 1.442695
  %v7176 = vpow.pop %v7175
  %v7177 = vadd.f32 %v7176, 1.0
  %v7178 = vrcp.pop %v7177
  %v7179 = vmul.f32 %v7177, %v7178
  %v7180 = vsub.f32 1.0, %v7179
  %v7181 = vmul.f32 %v7178, %v7180
  %v7182 = vadd.f32 %v7178, %v7181
  %vm7183 = vweird.f32 %v7177
  %vm7184 = vweird.f32 %v7178
  %vm7185 = vmor %vm7183, %vm7184
  %v7186 = vsel %vm7185, %v7178, %v7182
  %v7187 = vand.u32 2147483647, %v7177
  %vm7188 = vcmp.eq.f32.partialorder %v7187, 8.507059e+37
  %v7189 = vand.u32 %v7177, 2147483648
  %v7190 = vor.u32 1.1754944e-38, %v7189
  %v7191 = vsel %vm7188, %v7190, %v7186
  %v7192 = vmul.f32 1.0, %v7191
  %v7193 = vxor.u32 %v7103, 2147483648
  %v7194 = vmul.f32 %v7193, 1.442695
  %v7195 = vpow.pop %v7194
  %v7196 = vadd.f32 %v7195, 1.0
  %v7197 = vrcp.pop %v7196
  %v7198 = vmul.f32 %v7196, %v7197
  %v7199 = vsub.f32 1.0, %v7198
  %v7200 = vmul.f32 %v7197, %v7199
  %v7201 = vadd.f32 %v7197, %v7200
  %vm7202 = vweird.f32 %v7196
  %vm7203 = vweird.f32 %v7197
  %vm7204 = vmor %vm7202, %vm7203
  %v7205 = vsel %vm7204, %v7197, %v7201
  %v7206 = vand.u32 2147483647, %v7196
  %vm7207 = vcmp.eq.f32.partialorder %v7206, 8.507059e+37
  %v7208 = vand.u32 %v7196, 2147483648
  %v7209 = vor.u32 1.1754944e-38, %v7208
  %v7210 = vsel %vm7207, %v7209, %v7205
  %v7211 = vmul.f32 1.0, %v7210
  %v7212 = vtanh.pop %v7104
  %v7213 = vxor.u32 %v7105, 2147483648
  %v7214 = vmul.f32 %v7213, 1.442695
  %v7215 = vpow.pop %v7214
  %v7216 = vadd.f32 %v7215, 1.0
  %v7217 = vrcp.pop %v7216
  %v7218 = vmul.f32 %v7216, %v7217
  %v7219 = vsub.f32 1.0, %v7218
  %v7220 = vmul.f32 %v7217, %v7219
  %v7221 = vadd.f32 %v7217, %v7220
  %vm7222 = vweird.f32 %v7216
  %vm7223 = vweird.f32 %v7217
  %vm7224 = vmor %vm7222, %vm7223
  %v7225 = vsel %vm7224, %v7217, %v7221
  %v7226 = vand.u32 2147483647, %v7216
  %vm7227 = vcmp.eq.f32.partialorder %v7226, 8.507059e+37
  %v7228 = vand.u32 %v7216, 2147483648
  %v7229 = vor.u32 1.1754944e-38, %v7228
  %v7230 = vsel %vm7227, %v7229, %v7225
  %v7231 = vmul.f32 1.0, %v7230
  %v7232 = vmul.f32 %v7211, %v6114
  %v7233 = vmul.f32 %v7192, %v7212
  %v7234 = vadd.f32 %v7232, %v7233
  %v7235 = vtanh.pop %v7234
  %v7236 = vmul.f32 %v7231, %v7235
  %7237 = vst [vmem:[#allocation3] sm:$0xff] %v7236
  %v7238 = vld [vmem:[#allocation2 + $0xe0] sm:$0xff]
  %v7239 = vld [vmem:[#allocation2 + $0xe8] sm:$0xff]
  %v7240 = vld [vmem:[#allocation2 + $0xf0] sm:$0xff]
  %v7241 = vld [vmem:[#allocation2 + $0xf8] sm:$0xff]
  %v7242 = vld [vmem:[#allocation3] sm:$0xff]
  %v7243 = vld [vmem:[#allocation3 + $0x8] sm:$0xff]
  %v7244 = vpack.c.bf16 %v7242, %v7242
  %v7245 = vpack.c.bf16 %v7243, %v7243
  %v7246 = vld [vmem:[%s3] sm:$0xff]
  %v7247 = vld [vmem:[%s3 + $0x8] sm:$0xff]
  %v7248 = vld [vmem:[%s3 + $0x10] sm:$0xff]
  %v7249 = vld [vmem:[%s3 + $0x18] sm:$0xff]
  %v7250 = vld [vmem:[%s3 + $0x20] sm:$0xff]
  %v7251 = vld [vmem:[%s3 + $0x28] sm:$0xff]
  %v7252 = vld [vmem:[%s3 + $0x30] sm:$0xff]
  %v7253 = vld [vmem:[%s3 + $0x38] sm:$0xff]
  %v7254 = vld [vmem:[%s3 + $0x40] sm:$0xff]
  %v7255 = vld [vmem:[%s3 + $0x48] sm:$0xff]
  %v7256 = vld [vmem:[%s3 + $0x50] sm:$0xff]
  %v7257 = vld [vmem:[%s3 + $0x58] sm:$0xff]
  %v7258 = vld [vmem:[%s3 + $0x60] sm:$0xff]
  %v7259 = vld [vmem:[%s3 + $0x68] sm:$0xff]
  %v7260 = vld [vmem:[%s3 + $0x70] sm:$0xff]
  %v7261 = vld [vmem:[%s3 + $0x78] sm:$0xff]
  %v7262 = vld [vmem:[%s3 + $0x80] sm:$0xff]
  %v7263 = vld [vmem:[%s3 + $0x88] sm:$0xff]
  %v7264 = vld [vmem:[%s3 + $0x90] sm:$0xff]
  %v7265 = vld [vmem:[%s3 + $0x98] sm:$0xff]
  %v7266 = vld [vmem:[%s3 + $0xa0] sm:$0xff]
  %v7267 = vld [vmem:[%s3 + $0xa8] sm:$0xff]
  %v7268 = vld [vmem:[%s3 + $0xb0] sm:$0xff]
  %v7269 = vld [vmem:[%s3 + $0xb8] sm:$0xff]
  %v7270 = vld [vmem:[%s3 + $0xc0] sm:$0xff]
  %v7271 = vld [vmem:[%s3 + $0xc8] sm:$0xff]
  %v7272 = vld [vmem:[%s3 + $0xd0] sm:$0xff]
  %v7273 = vld [vmem:[%s3 + $0xd8] sm:$0xff]
  %v7274 = vld [vmem:[%s3 + $0xe0] sm:$0xff]
  %v7275 = vld [vmem:[%s3 + $0xe8] sm:$0xff]
  %v7276 = vld [vmem:[%s3 + $0xf0] sm:$0xff]
  %v7277 = vld [vmem:[%s3 + $0xf8] sm:$0xff]
  %v7278 = vld [vmem:[%s3 + $0x100] sm:$0xff]
  %v7279 = vld [vmem:[%s3 + $0x108] sm:$0xff]
  %v7280 = vld [vmem:[%s3 + $0x110] sm:$0xff]
  %v7281 = vld [vmem:[%s3 + $0x118] sm:$0xff]
  %v7282 = vld [vmem:[%s3 + $0x120] sm:$0xff]
  %v7283 = vld [vmem:[%s3 + $0x128] sm:$0xff]
  %v7284 = vld [vmem:[%s3 + $0x130] sm:$0xff]
  %v7285 = vld [vmem:[%s3 + $0x138] sm:$0xff]
  %v7286 = vld [vmem:[%s3 + $0x140] sm:$0xff]
  %v7287 = vld [vmem:[%s3 + $0x148] sm:$0xff]
  %v7288 = vld [vmem:[%s3 + $0x150] sm:$0xff]
  %v7289 = vld [vmem:[%s3 + $0x158] sm:$0xff]
  %v7290 = vld [vmem:[%s3 + $0x160] sm:$0xff]
  %v7291 = vld [vmem:[%s3 + $0x168] sm:$0xff]
  %v7292 = vld [vmem:[%s3 + $0x170] sm:$0xff]
  %v7293 = vld [vmem:[%s3 + $0x178] sm:$0xff]
  %v7294 = vld [vmem:[%s3 + $0x180] sm:$0xff]
  %v7295 = vld [vmem:[%s3 + $0x188] sm:$0xff]
  %v7296 = vld [vmem:[%s3 + $0x190] sm:$0xff]
  %v7297 = vld [vmem:[%s3 + $0x198] sm:$0xff]
  %v7298 = vld [vmem:[%s3 + $0x1a0] sm:$0xff]
  %v7299 = vld [vmem:[%s3 + $0x1a8] sm:$0xff]
  %v7300 = vld [vmem:[%s3 + $0x1b0] sm:$0xff]
  %v7301 = vld [vmem:[%s3 + $0x1b8] sm:$0xff]
  %v7302 = vld [vmem:[%s3 + $0x1c0] sm:$0xff]
  %v7303 = vld [vmem:[%s3 + $0x1c8] sm:$0xff]
  %v7304 = vld [vmem:[%s3 + $0x1d0] sm:$0xff]
  %v7305 = vld [vmem:[%s3 + $0x1d8] sm:$0xff]
  %v7306 = vld [vmem:[%s3 + $0x1e0] sm:$0xff]
  %v7307 = vld [vmem:[%s3 + $0x1e8] sm:$0xff]
  %v7308 = vld [vmem:[%s3 + $0x1f0] sm:$0xff]
  %v7309 = vld [vmem:[%s3 + $0x1f8] sm:$0xff]
  %v7310 = vld [vmem:[%s3 + $0x200] sm:$0xff]
  %v7311 = vld [vmem:[%s3 + $0x208] sm:$0xff]
  %v7312 = vld [vmem:[%s3 + $0x210] sm:$0xff]
  %v7313 = vld [vmem:[%s3 + $0x218] sm:$0xff]
  %v7314 = vld [vmem:[%s3 + $0x220] sm:$0xff]
  %v7315 = vld [vmem:[%s3 + $0x228] sm:$0xff]
  %v7316 = vld [vmem:[%s3 + $0x230] sm:$0xff]
  %v7317 = vld [vmem:[%s3 + $0x238] sm:$0xff]
  %v7318 = vld [vmem:[%s3 + $0x240] sm:$0xff]
  %v7319 = vld [vmem:[%s3 + $0x248] sm:$0xff]
  %v7320 = vld [vmem:[%s3 + $0x250] sm:$0xff]
  %v7321 = vld [vmem:[%s3 + $0x258] sm:$0xff]
  %v7322 = vld [vmem:[%s3 + $0x260] sm:$0xff]
  %v7323 = vld [vmem:[%s3 + $0x268] sm:$0xff]
  %v7324 = vld [vmem:[%s3 + $0x270] sm:$0xff]
  %v7325 = vld [vmem:[%s3 + $0x278] sm:$0xff]
  %v7326 = vld [vmem:[%s3 + $0x280] sm:$0xff]
  %v7327 = vld [vmem:[%s3 + $0x288] sm:$0xff]
  %v7328 = vld [vmem:[%s3 + $0x290] sm:$0xff]
  %v7329 = vld [vmem:[%s3 + $0x298] sm:$0xff]
  %v7330 = vld [vmem:[%s3 + $0x2a0] sm:$0xff]
  %v7331 = vld [vmem:[%s3 + $0x2a8] sm:$0xff]
  %v7332 = vld [vmem:[%s3 + $0x2b0] sm:$0xff]
  %v7333 = vld [vmem:[%s3 + $0x2b8] sm:$0xff]
  %v7334 = vld [vmem:[%s3 + $0x2c0] sm:$0xff]
  %v7335 = vld [vmem:[%s3 + $0x2c8] sm:$0xff]
  %v7336 = vld [vmem:[%s3 + $0x2d0] sm:$0xff]
  %v7337 = vld [vmem:[%s3 + $0x2d8] sm:$0xff]
  %v7338 = vld [vmem:[%s3 + $0x2e0] sm:$0xff]
  %v7339 = vld [vmem:[%s3 + $0x2e8] sm:$0xff]
  %v7340 = vld [vmem:[%s3 + $0x2f0] sm:$0xff]
  %v7341 = vld [vmem:[%s3 + $0x2f8] sm:$0xff]
  %v7342 = vld [vmem:[%s3 + $0x300] sm:$0xff]
  %v7343 = vld [vmem:[%s3 + $0x308] sm:$0xff]
  %v7344 = vld [vmem:[%s3 + $0x310] sm:$0xff]
  %v7345 = vld [vmem:[%s3 + $0x318] sm:$0xff]
  %v7346 = vld [vmem:[%s3 + $0x320] sm:$0xff]
  %v7347 = vld [vmem:[%s3 + $0x328] sm:$0xff]
  %v7348 = vld [vmem:[%s3 + $0x330] sm:$0xff]
  %v7349 = vld [vmem:[%s3 + $0x338] sm:$0xff]
  %v7350 = vld [vmem:[%s3 + $0x340] sm:$0xff]
  %v7351 = vld [vmem:[%s3 + $0x348] sm:$0xff]
  %v7352 = vld [vmem:[%s3 + $0x350] sm:$0xff]
  %v7353 = vld [vmem:[%s3 + $0x358] sm:$0xff]
  %v7354 = vld [vmem:[%s3 + $0x360] sm:$0xff]
  %v7355 = vld [vmem:[%s3 + $0x368] sm:$0xff]
  %v7356 = vld [vmem:[%s3 + $0x370] sm:$0xff]
  %v7357 = vld [vmem:[%s3 + $0x378] sm:$0xff]
  %v7358 = vld [vmem:[%s3 + $0x380] sm:$0xff]
  %v7359 = vld [vmem:[%s3 + $0x388] sm:$0xff]
  %v7360 = vld [vmem:[%s3 + $0x390] sm:$0xff]
  %v7361 = vld [vmem:[%s3 + $0x398] sm:$0xff]
  %v7362 = vld [vmem:[%s3 + $0x3a0] sm:$0xff]
  %v7363 = vld [vmem:[%s3 + $0x3a8] sm:$0xff]
  %v7364 = vld [vmem:[%s3 + $0x3b0] sm:$0xff]
  %v7365 = vld [vmem:[%s3 + $0x3b8] sm:$0xff]
  %v7366 = vld [vmem:[%s3 + $0x3c0] sm:$0xff]
  %v7367 = vld [vmem:[%s3 + $0x3c8] sm:$0xff]
  %v7368 = vld [vmem:[%s3 + $0x3d0] sm:$0xff]
  %v7369 = vld [vmem:[%s3 + $0x3d8] sm:$0xff]
  %v7370 = vld [vmem:[%s3 + $0x3e0] sm:$0xff]
  %v7371 = vld [vmem:[%s3 + $0x3e8] sm:$0xff]
  %v7372 = vld [vmem:[%s3 + $0x3f0] sm:$0xff]
  %v7373 = vld [vmem:[%s3 + $0x3f8] sm:$0xff]
  %v7502 = vunpack.c.l.b16 %v7246
  %v7503 = vunpack.c.h.b16 %v7246
  %v7504 = vunpack.c.l.b16 %v7247
  %v7505 = vunpack.c.h.b16 %v7247
  %v7506 = vunpack.c.l.b16 %v7248
  %v7507 = vunpack.c.h.b16 %v7248
  %v7508 = vunpack.c.l.b16 %v7249
  %v7509 = vunpack.c.h.b16 %v7249
  %v7510 = vunpack.c.l.b16 %v7250
  %v7511 = vunpack.c.h.b16 %v7250
  %v7512 = vunpack.c.l.b16 %v7251
  %v7513 = vunpack.c.h.b16 %v7251
  %v7514 = vunpack.c.l.b16 %v7252
  %v7515 = vunpack.c.h.b16 %v7252
  %v7516 = vunpack.c.l.b16 %v7253
  %v7517 = vunpack.c.h.b16 %v7253
  %v7518 = vunpack.c.l.b16 %v7254
  %v7519 = vunpack.c.h.b16 %v7254
  %v7520 = vunpack.c.l.b16 %v7255
  %v7521 = vunpack.c.h.b16 %v7255
  %v7522 = vunpack.c.l.b16 %v7256
  %v7523 = vunpack.c.h.b16 %v7256
  %v7524 = vunpack.c.l.b16 %v7257
  %v7525 = vunpack.c.h.b16 %v7257
  %v7526 = vunpack.c.l.b16 %v7258
  %v7527 = vunpack.c.h.b16 %v7258
  %v7528 = vunpack.c.l.b16 %v7259
  %v7529 = vunpack.c.h.b16 %v7259
  %v7530 = vunpack.c.l.b16 %v7260
  %v7531 = vunpack.c.h.b16 %v7260
  %v7532 = vunpack.c.l.b16 %v7261
  %v7533 = vunpack.c.h.b16 %v7261
  %v7534 = vunpack.c.l.b16 %v7262
  %v7535 = vunpack.c.h.b16 %v7262
  %v7536 = vunpack.c.l.b16 %v7263
  %v7537 = vunpack.c.h.b16 %v7263
  %v7538 = vunpack.c.l.b16 %v7264
  %v7539 = vunpack.c.h.b16 %v7264
  %v7540 = vunpack.c.l.b16 %v7265
  %v7541 = vunpack.c.h.b16 %v7265
  %v7542 = vunpack.c.l.b16 %v7266
  %v7543 = vunpack.c.h.b16 %v7266
  %v7544 = vunpack.c.l.b16 %v7267
  %v7545 = vunpack.c.h.b16 %v7267
  %v7546 = vunpack.c.l.b16 %v7268
  %v7547 = vunpack.c.h.b16 %v7268
  %v7548 = vunpack.c.l.b16 %v7269
  %v7549 = vunpack.c.h.b16 %v7269
  %v7550 = vunpack.c.l.b16 %v7270
  %v7551 = vunpack.c.h.b16 %v7270
  %v7552 = vunpack.c.l.b16 %v7271
  %v7553 = vunpack.c.h.b16 %v7271
  %v7554 = vunpack.c.l.b16 %v7272
  %v7555 = vunpack.c.h.b16 %v7272
  %v7556 = vunpack.c.l.b16 %v7273
  %v7557 = vunpack.c.h.b16 %v7273
  %v7558 = vunpack.c.l.b16 %v7274
  %v7559 = vunpack.c.h.b16 %v7274
  %v7560 = vunpack.c.l.b16 %v7275
  %v7561 = vunpack.c.h.b16 %v7275
  %v7562 = vunpack.c.l.b16 %v7276
  %v7563 = vunpack.c.h.b16 %v7276
  %v7564 = vunpack.c.l.b16 %v7277
  %v7565 = vunpack.c.h.b16 %v7277
  %v7566 = vunpack.c.l.b16 %v7278
  %v7567 = vunpack.c.h.b16 %v7278
  %v7568 = vunpack.c.l.b16 %v7279
  %v7569 = vunpack.c.h.b16 %v7279
  %v7570 = vunpack.c.l.b16 %v7280
  %v7571 = vunpack.c.h.b16 %v7280
  %v7572 = vunpack.c.l.b16 %v7281
  %v7573 = vunpack.c.h.b16 %v7281
  %v7574 = vunpack.c.l.b16 %v7282
  %v7575 = vunpack.c.h.b16 %v7282
  %v7576 = vunpack.c.l.b16 %v7283
  %v7577 = vunpack.c.h.b16 %v7283
  %v7578 = vunpack.c.l.b16 %v7284
  %v7579 = vunpack.c.h.b16 %v7284
  %v7580 = vunpack.c.l.b16 %v7285
  %v7581 = vunpack.c.h.b16 %v7285
  %v7582 = vunpack.c.l.b16 %v7286
  %v7583 = vunpack.c.h.b16 %v7286
  %v7584 = vunpack.c.l.b16 %v7287
  %v7585 = vunpack.c.h.b16 %v7287
  %v7586 = vunpack.c.l.b16 %v7288
  %v7587 = vunpack.c.h.b16 %v7288
  %v7588 = vunpack.c.l.b16 %v7289
  %v7589 = vunpack.c.h.b16 %v7289
  %v7590 = vunpack.c.l.b16 %v7290
  %v7591 = vunpack.c.h.b16 %v7290
  %v7592 = vunpack.c.l.b16 %v7291
  %v7593 = vunpack.c.h.b16 %v7291
  %v7594 = vunpack.c.l.b16 %v7292
  %v7595 = vunpack.c.h.b16 %v7292
  %v7596 = vunpack.c.l.b16 %v7293
  %v7597 = vunpack.c.h.b16 %v7293
  %v7598 = vunpack.c.l.b16 %v7294
  %v7599 = vunpack.c.h.b16 %v7294
  %v7600 = vunpack.c.l.b16 %v7295
  %v7601 = vunpack.c.h.b16 %v7295
  %v7602 = vunpack.c.l.b16 %v7296
  %v7603 = vunpack.c.h.b16 %v7296
  %v7604 = vunpack.c.l.b16 %v7297
  %v7605 = vunpack.c.h.b16 %v7297
  %v7606 = vunpack.c.l.b16 %v7298
  %v7607 = vunpack.c.h.b16 %v7298
  %v7608 = vunpack.c.l.b16 %v7299
  %v7609 = vunpack.c.h.b16 %v7299
  %v7610 = vunpack.c.l.b16 %v7300
  %v7611 = vunpack.c.h.b16 %v7300
  %v7612 = vunpack.c.l.b16 %v7301
  %v7613 = vunpack.c.h.b16 %v7301
  %v7614 = vunpack.c.l.b16 %v7302
  %v7615 = vunpack.c.h.b16 %v7302
  %v7616 = vunpack.c.l.b16 %v7303
  %v7617 = vunpack.c.h.b16 %v7303
  %v7618 = vunpack.c.l.b16 %v7304
  %v7619 = vunpack.c.h.b16 %v7304
  %v7620 = vunpack.c.l.b16 %v7305
  %v7621 = vunpack.c.h.b16 %v7305
  %v7622 = vunpack.c.l.b16 %v7306
  %v7623 = vunpack.c.h.b16 %v7306
  %v7624 = vunpack.c.l.b16 %v7307
  %v7625 = vunpack.c.h.b16 %v7307
  %v7626 = vunpack.c.l.b16 %v7308
  %v7627 = vunpack.c.h.b16 %v7308
  %v7628 = vunpack.c.l.b16 %v7309
  %v7629 = vunpack.c.h.b16 %v7309
  %v7630 = vunpack.c.l.b16 %v7310
  %v7631 = vunpack.c.h.b16 %v7310
  %v7632 = vunpack.c.l.b16 %v7311
  %v7633 = vunpack.c.h.b16 %v7311
  %v7634 = vunpack.c.l.b16 %v7312
  %v7635 = vunpack.c.h.b16 %v7312
  %v7636 = vunpack.c.l.b16 %v7313
  %v7637 = vunpack.c.h.b16 %v7313
  %v7638 = vunpack.c.l.b16 %v7314
  %v7639 = vunpack.c.h.b16 %v7314
  %v7640 = vunpack.c.l.b16 %v7315
  %v7641 = vunpack.c.h.b16 %v7315
  %v7642 = vunpack.c.l.b16 %v7316
  %v7643 = vunpack.c.h.b16 %v7316
  %v7644 = vunpack.c.l.b16 %v7317
  %v7645 = vunpack.c.h.b16 %v7317
  %v7646 = vunpack.c.l.b16 %v7318
  %v7647 = vunpack.c.h.b16 %v7318
  %v7648 = vunpack.c.l.b16 %v7319
  %v7649 = vunpack.c.h.b16 %v7319
  %v7650 = vunpack.c.l.b16 %v7320
  %v7651 = vunpack.c.h.b16 %v7320
  %v7652 = vunpack.c.l.b16 %v7321
  %v7653 = vunpack.c.h.b16 %v7321
  %v7654 = vunpack.c.l.b16 %v7322
  %v7655 = vunpack.c.h.b16 %v7322
  %v7656 = vunpack.c.l.b16 %v7323
  %v7657 = vunpack.c.h.b16 %v7323
  %v7658 = vunpack.c.l.b16 %v7324
  %v7659 = vunpack.c.h.b16 %v7324
  %v7660 = vunpack.c.l.b16 %v7325
  %v7661 = vunpack.c.h.b16 %v7325
  %v7662 = vunpack.c.l.b16 %v7326
  %v7663 = vunpack.c.h.b16 %v7326
  %v7664 = vunpack.c.l.b16 %v7327
  %v7665 = vunpack.c.h.b16 %v7327
  %v7666 = vunpack.c.l.b16 %v7328
  %v7667 = vunpack.c.h.b16 %v7328
  %v7668 = vunpack.c.l.b16 %v7329
  %v7669 = vunpack.c.h.b16 %v7329
  %v7670 = vunpack.c.l.b16 %v7330
  %v7671 = vunpack.c.h.b16 %v7330
  %v7672 = vunpack.c.l.b16 %v7331
  %v7673 = vunpack.c.h.b16 %v7331
  %v7674 = vunpack.c.l.b16 %v7332
  %v7675 = vunpack.c.h.b16 %v7332
  %v7676 = vunpack.c.l.b16 %v7333
  %v7677 = vunpack.c.h.b16 %v7333
  %v7678 = vunpack.c.l.b16 %v7334
  %v7679 = vunpack.c.h.b16 %v7334
  %v7680 = vunpack.c.l.b16 %v7335
  %v7681 = vunpack.c.h.b16 %v7335
  %v7682 = vunpack.c.l.b16 %v7336
  %v7683 = vunpack.c.h.b16 %v7336
  %v7684 = vunpack.c.l.b16 %v7337
  %v7685 = vunpack.c.h.b16 %v7337
  %v7686 = vunpack.c.l.b16 %v7338
  %v7687 = vunpack.c.h.b16 %v7338
  %v7688 = vunpack.c.l.b16 %v7339
  %v7689 = vunpack.c.h.b16 %v7339
  %v7690 = vunpack.c.l.b16 %v7340
  %v7691 = vunpack.c.h.b16 %v7340
  %v7692 = vunpack.c.l.b16 %v7341
  %v7693 = vunpack.c.h.b16 %v7341
  %v7694 = vunpack.c.l.b16 %v7342
  %v7695 = vunpack.c.h.b16 %v7342
  %v7696 = vunpack.c.l.b16 %v7343
  %v7697 = vunpack.c.h.b16 %v7343
  %v7698 = vunpack.c.l.b16 %v7344
  %v7699 = vunpack.c.h.b16 %v7344
  %v7700 = vunpack.c.l.b16 %v7345
  %v7701 = vunpack.c.h.b16 %v7345
  %v7702 = vunpack.c.l.b16 %v7346
  %v7703 = vunpack.c.h.b16 %v7346
  %v7704 = vunpack.c.l.b16 %v7347
  %v7705 = vunpack.c.h.b16 %v7347
  %v7706 = vunpack.c.l.b16 %v7348
  %v7707 = vunpack.c.h.b16 %v7348
  %v7708 = vunpack.c.l.b16 %v7349
  %v7709 = vunpack.c.h.b16 %v7349
  %v7710 = vunpack.c.l.b16 %v7350
  %v7711 = vunpack.c.h.b16 %v7350
  %v7712 = vunpack.c.l.b16 %v7351
  %v7713 = vunpack.c.h.b16 %v7351
  %v7714 = vunpack.c.l.b16 %v7352
  %v7715 = vunpack.c.h.b16 %v7352
  %v7716 = vunpack.c.l.b16 %v7353
  %v7717 = vunpack.c.h.b16 %v7353
  %v7718 = vunpack.c.l.b16 %v7354
  %v7719 = vunpack.c.h.b16 %v7354
  %v7720 = vunpack.c.l.b16 %v7355
  %v7721 = vunpack.c.h.b16 %v7355
  %v7722 = vunpack.c.l.b16 %v7356
  %v7723 = vunpack.c.h.b16 %v7356
  %v7724 = vunpack.c.l.b16 %v7357
  %v7725 = vunpack.c.h.b16 %v7357
  %v7726 = vunpack.c.l.b16 %v7358
  %v7727 = vunpack.c.h.b16 %v7358
  %v7728 = vunpack.c.l.b16 %v7359
  %v7729 = vunpack.c.h.b16 %v7359
  %v7730 = vunpack.c.l.b16 %v7360
  %v7731 = vunpack.c.h.b16 %v7360
  %v7732 = vunpack.c.l.b16 %v7361
  %v7733 = vunpack.c.h.b16 %v7361
  %v7734 = vunpack.c.l.b16 %v7362
  %v7735 = vunpack.c.h.b16 %v7362
  %v7736 = vunpack.c.l.b16 %v7363
  %v7737 = vunpack.c.h.b16 %v7363
  %v7738 = vunpack.c.l.b16 %v7364
  %v7739 = vunpack.c.h.b16 %v7364
  %v7740 = vunpack.c.l.b16 %v7365
  %v7741 = vunpack.c.h.b16 %v7365
  %v7742 = vunpack.c.l.b16 %v7366
  %v7743 = vunpack.c.h.b16 %v7366
  %v7744 = vunpack.c.l.b16 %v7367
  %v7745 = vunpack.c.h.b16 %v7367
  %v7746 = vunpack.c.l.b16 %v7368
  %v7747 = vunpack.c.h.b16 %v7368
  %v7748 = vunpack.c.l.b16 %v7369
  %v7749 = vunpack.c.h.b16 %v7369
  %v7750 = vunpack.c.l.b16 %v7370
  %v7751 = vunpack.c.h.b16 %v7370
  %v7752 = vunpack.c.l.b16 %v7371
  %v7753 = vunpack.c.h.b16 %v7371
  %v7754 = vunpack.c.l.b16 %v7372
  %v7755 = vunpack.c.h.b16 %v7372
  %v7756 = vunpack.c.l.b16 %v7373
  %v7757 = vunpack.c.h.b16 %v7373
  %v7758 = vpack.c.b16 %v7510, %v7502
  %v7759 = vpack.c.b16 %v7511, %v7503
  %v7760 = vpack.c.b16 %v7512, %v7504
  %v7761 = vpack.c.b16 %v7513, %v7505
  %v7762 = vpack.c.b16 %v7514, %v7506
  %v7763 = vpack.c.b16 %v7515, %v7507
  %v7764 = vpack.c.b16 %v7516, %v7508
  %v7765 = vpack.c.b16 %v7517, %v7509
  %v7766 = vpack.c.b16 %v7526, %v7518
  %v7767 = vpack.c.b16 %v7527, %v7519
  %v7768 = vpack.c.b16 %v7528, %v7520
  %v7769 = vpack.c.b16 %v7529, %v7521
  %v7770 = vpack.c.b16 %v7530, %v7522
  %v7771 = vpack.c.b16 %v7531, %v7523
  %v7772 = vpack.c.b16 %v7532, %v7524
  %v7773 = vpack.c.b16 %v7533, %v7525
  %v7774 = vpack.c.b16 %v7542, %v7534
  %v7775 = vpack.c.b16 %v7543, %v7535
  %v7776 = vpack.c.b16 %v7544, %v7536
  %v7777 = vpack.c.b16 %v7545, %v7537
  %v7778 = vpack.c.b16 %v7546, %v7538
  %v7779 = vpack.c.b16 %v7547, %v7539
  %v7780 = vpack.c.b16 %v7548, %v7540
  %v7781 = vpack.c.b16 %v7549, %v7541
  %v7782 = vpack.c.b16 %v7558, %v7550
  %v7783 = vpack.c.b16 %v7559, %v7551
  %v7784 = vpack.c.b16 %v7560, %v7552
  %v7785 = vpack.c.b16 %v7561, %v7553
  %v7786 = vpack.c.b16 %v7562, %v7554
  %v7787 = vpack.c.b16 %v7563, %v7555
  %v7788 = vpack.c.b16 %v7564, %v7556
  %v7789 = vpack.c.b16 %v7565, %v7557
  %v7790 = vpack.c.b16 %v7574, %v7566
  %v7791 = vpack.c.b16 %v7575, %v7567
  %v7792 = vpack.c.b16 %v7576, %v7568
  %v7793 = vpack.c.b16 %v7577, %v7569
  %v7794 = vpack.c.b16 %v7578, %v7570
  %v7795 = vpack.c.b16 %v7579, %v7571
  %v7796 = vpack.c.b16 %v7580, %v7572
  %v7797 = vpack.c.b16 %v7581, %v7573
  %v7798 = vpack.c.b16 %v7590, %v7582
  %v7799 = vpack.c.b16 %v7591, %v7583
  %v7800 = vpack.c.b16 %v7592, %v7584
  %v7801 = vpack.c.b16 %v7593, %v7585
  %v7802 = vpack.c.b16 %v7594, %v7586
  %v7803 = vpack.c.b16 %v7595, %v7587
  %v7804 = vpack.c.b16 %v7596, %v7588
  %v7805 = vpack.c.b16 %v7597, %v7589
  %v7806 = vpack.c.b16 %v7606, %v7598
  %v7807 = vpack.c.b16 %v7607, %v7599
  %v7808 = vpack.c.b16 %v7608, %v7600
  %v7809 = vpack.c.b16 %v7609, %v7601
  %v7810 = vpack.c.b16 %v7610, %v7602
  %v7811 = vpack.c.b16 %v7611, %v7603
  %v7812 = vpack.c.b16 %v7612, %v7604
  %v7813 = vpack.c.b16 %v7613, %v7605
  %v7814 = vpack.c.b16 %v7622, %v7614
  %v7815 = vpack.c.b16 %v7623, %v7615
  %v7816 = vpack.c.b16 %v7624, %v7616
  %v7817 = vpack.c.b16 %v7625, %v7617
  %v7818 = vpack.c.b16 %v7626, %v7618
  %v7819 = vpack.c.b16 %v7627, %v7619
  %v7820 = vpack.c.b16 %v7628, %v7620
  %v7821 = vpack.c.b16 %v7629, %v7621
  %v7822 = vpack.c.b16 %v7638, %v7630
  %v7823 = vpack.c.b16 %v7639, %v7631
  %v7824 = vpack.c.b16 %v7640, %v7632
  %v7825 = vpack.c.b16 %v7641, %v7633
  %v7826 = vpack.c.b16 %v7642, %v7634
  %v7827 = vpack.c.b16 %v7643, %v7635
  %v7828 = vpack.c.b16 %v7644, %v7636
  %v7829 = vpack.c.b16 %v7645, %v7637
  %v7830 = vpack.c.b16 %v7654, %v7646
  %v7831 = vpack.c.b16 %v7655, %v7647
  %v7832 = vpack.c.b16 %v7656, %v7648
  %v7833 = vpack.c.b16 %v7657, %v7649
  %v7834 = vpack.c.b16 %v7658, %v7650
  %v7835 = vpack.c.b16 %v7659, %v7651
  %v7836 = vpack.c.b16 %v7660, %v7652
  %v7837 = vpack.c.b16 %v7661, %v7653
  %v7838 = vpack.c.b16 %v7670, %v7662
  %v7839 = vpack.c.b16 %v7671, %v7663
  %v7840 = vpack.c.b16 %v7672, %v7664
  %v7841 = vpack.c.b16 %v7673, %v7665
  %v7842 = vpack.c.b16 %v7674, %v7666
  %v7843 = vpack.c.b16 %v7675, %v7667
  %v7844 = vpack.c.b16 %v7676, %v7668
  %v7845 = vpack.c.b16 %v7677, %v7669
  %v7846 = vpack.c.b16 %v7686, %v7678
  %v7847 = vpack.c.b16 %v7687, %v7679
  %v7848 = vpack.c.b16 %v7688, %v7680
  %v7849 = vpack.c.b16 %v7689, %v7681
  %v7850 = vpack.c.b16 %v7690, %v7682
  %v7851 = vpack.c.b16 %v7691, %v7683
  %v7852 = vpack.c.b16 %v7692, %v7684
  %v7853 = vpack.c.b16 %v7693, %v7685
  %v7854 = vpack.c.b16 %v7702, %v7694
  %v7855 = vpack.c.b16 %v7703, %v7695
  %v7856 = vpack.c.b16 %v7704, %v7696
  %v7857 = vpack.c.b16 %v7705, %v7697
  %v7858 = vpack.c.b16 %v7706, %v7698
  %v7859 = vpack.c.b16 %v7707, %v7699
  %v7860 = vpack.c.b16 %v7708, %v7700
  %v7861 = vpack.c.b16 %v7709, %v7701
  %v7862 = vpack.c.b16 %v7718, %v7710
  %v7863 = vpack.c.b16 %v7719, %v7711
  %v7864 = vpack.c.b16 %v7720, %v7712
  %v7865 = vpack.c.b16 %v7721, %v7713
  %v7866 = vpack.c.b16 %v7722, %v7714
  %v7867 = vpack.c.b16 %v7723, %v7715
  %v7868 = vpack.c.b16 %v7724, %v7716
  %v7869 = vpack.c.b16 %v7725, %v7717
  %v7870 = vpack.c.b16 %v7734, %v7726
  %v7871 = vpack.c.b16 %v7735, %v7727
  %v7872 = vpack.c.b16 %v7736, %v7728
  %v7873 = vpack.c.b16 %v7737, %v7729
  %v7874 = vpack.c.b16 %v7738, %v7730
  %v7875 = vpack.c.b16 %v7739, %v7731
  %v7876 = vpack.c.b16 %v7740, %v7732
  %v7877 = vpack.c.b16 %v7741, %v7733
  %v7878 = vpack.c.b16 %v7750, %v7742
  %v7879 = vpack.c.b16 %v7751, %v7743
  %v7880 = vpack.c.b16 %v7752, %v7744
  %v7881 = vpack.c.b16 %v7753, %v7745
  %v7882 = vpack.c.b16 %v7754, %v7746
  %v7883 = vpack.c.b16 %v7755, %v7747
  %v7884 = vpack.c.b16 %v7756, %v7748
  %v7885 = vpack.c.b16 %v7757, %v7749
  %8014 = vmatpush.bf16.msra.mxu0 %v7814
  %8015 = vmatpush.bf16.msra.mxu0 %v7806
  %8016 = vmatpush.bf16.msra.mxu0 %v7798
  %8017 = vmatpush.bf16.msra.mxu0 %v7790
  %8018 = vmatpush.bf16.msra.mxu0 %v7782
  %8019 = vmatpush.bf16.msra.mxu0 %v7774
  %8020 = vmatpush.bf16.msra.mxu0 %v7766
  %8021 = vmatpush.bf16.msra.mxu0 %v7758
  %8022 = vmatmul.bf16.gmra.mxu0 %v7244
  %v8023 = vpop.f32.mrf.mxu0
  %v8024 = vadd.f32 0.0, %v8023
  %v8025 = vpop.f32.mrf.mxu0
  %8026 = vdwg.mxu0
  %8027 = vmatpush.bf16.msra.mxu0 %v7878
  %8028 = vmatpush.bf16.msra.mxu0 %v7870
  %8029 = vmatpush.bf16.msra.mxu0 %v7862
  %8030 = vmatpush.bf16.msra.mxu0 %v7854
  %8031 = vmatpush.bf16.msra.mxu0 %v7846
  %8032 = vmatpush.bf16.msra.mxu0 %v7838
  %8033 = vmatpush.bf16.msra.mxu0 %v7830
  %8034 = vmatpush.bf16.msra.mxu0 %v7822
  %8035 = vmatmul.bf16.gmra.mxu0 %v7245
  %v8036 = vpop.f32.mrf.mxu0
  %v8037 = vadd.f32 %v8024, %v8036
  %v8038 = vpop.f32.mrf.mxu0
  %8039 = vdwg.mxu0
  %8040 = vmatpush.bf16.msra.mxu0 %v7815
  %8041 = vmatpush.bf16.msra.mxu0 %v7807
  %8042 = vmatpush.bf16.msra.mxu0 %v7799
  %8043 = vmatpush.bf16.msra.mxu0 %v7791
  %8044 = vmatpush.bf16.msra.mxu0 %v7783
  %8045 = vmatpush.bf16.msra.mxu0 %v7775
  %8046 = vmatpush.bf16.msra.mxu0 %v7767
  %8047 = vmatpush.bf16.msra.mxu0 %v7759
  %8048 = vmatmul.bf16.gmra.mxu0 %v7244
  %v8049 = vpop.f32.mrf.mxu0
  %v8050 = vadd.f32 0.0, %v8049
  %v8051 = vpop.f32.mrf.mxu0
  %8052 = vdwg.mxu0
  %8053 = vmatpush.bf16.msra.mxu0 %v7879
  %8054 = vmatpush.bf16.msra.mxu0 %v7871
  %8055 = vmatpush.bf16.msra.mxu0 %v7863
  %8056 = vmatpush.bf16.msra.mxu0 %v7855
  %8057 = vmatpush.bf16.msra.mxu0 %v7847
  %8058 = vmatpush.bf16.msra.mxu0 %v7839
  %8059 = vmatpush.bf16.msra.mxu0 %v7831
  %8060 = vmatpush.bf16.msra.mxu0 %v7823
  %8061 = vmatmul.bf16.gmra.mxu0 %v7245
  %v8062 = vpop.f32.mrf.mxu0
  %v8063 = vadd.f32 %v8050, %v8062
  %v8064 = vpop.f32.mrf.mxu0
  %8065 = vdwg.mxu0
  %8066 = vmatpush.bf16.msra.mxu0 %v7816
  %8067 = vmatpush.bf16.msra.mxu0 %v7808
  %8068 = vmatpush.bf16.msra.mxu0 %v7800
  %8069 = vmatpush.bf16.msra.mxu0 %v7792
  %8070 = vmatpush.bf16.msra.mxu0 %v7784
  %8071 = vmatpush.bf16.msra.mxu0 %v7776
  %8072 = vmatpush.bf16.msra.mxu0 %v7768
  %8073 = vmatpush.bf16.msra.mxu0 %v7760
  %8074 = vmatmul.bf16.gmra.mxu0 %v7244
  %v8075 = vpop.f32.mrf.mxu0
  %v8076 = vadd.f32 0.0, %v8075
  %v8077 = vpop.f32.mrf.mxu0
  %8078 = vdwg.mxu0
  %8079 = vmatpush.bf16.msra.mxu0 %v7880
  %8080 = vmatpush.bf16.msra.mxu0 %v7872
  %8081 = vmatpush.bf16.msra.mxu0 %v7864
  %8082 = vmatpush.bf16.msra.mxu0 %v7856
  %8083 = vmatpush.bf16.msra.mxu0 %v7848
  %8084 = vmatpush.bf16.msra.mxu0 %v7840
  %8085 = vmatpush.bf16.msra.mxu0 %v7832
  %8086 = vmatpush.bf16.msra.mxu0 %v7824
  %8087 = vmatmul.bf16.gmra.mxu0 %v7245
  %v8088 = vpop.f32.mrf.mxu0
  %v8089 = vadd.f32 %v8076, %v8088
  %v8090 = vpop.f32.mrf.mxu0
  %8091 = vdwg.mxu0
  %8092 = vmatpush.bf16.msra.mxu0 %v7817
  %8093 = vmatpush.bf16.msra.mxu0 %v7809
  %8094 = vmatpush.bf16.msra.mxu0 %v7801
  %8095 = vmatpush.bf16.msra.mxu0 %v7793
  %8096 = vmatpush.bf16.msra.mxu0 %v7785
  %8097 = vmatpush.bf16.msra.mxu0 %v7777
  %8098 = vmatpush.bf16.msra.mxu0 %v7769
  %8099 = vmatpush.bf16.msra.mxu0 %v7761
  %8100 = vmatmul.bf16.gmra.mxu0 %v7244
  %v8101 = vpop.f32.mrf.mxu0
  %v8102 = vadd.f32 0.0, %v8101
  %v8103 = vpop.f32.mrf.mxu0
  %8104 = vdwg.mxu0
  %8105 = vmatpush.bf16.msra.mxu0 %v7881
  %8106 = vmatpush.bf16.msra.mxu0 %v7873
  %8107 = vmatpush.bf16.msra.mxu0 %v7865
  %8108 = vmatpush.bf16.msra.mxu0 %v7857
  %8109 = vmatpush.bf16.msra.mxu0 %v7849
  %8110 = vmatpush.bf16.msra.mxu0 %v7841
  %8111 = vmatpush.bf16.msra.mxu0 %v7833
  %8112 = vmatpush.bf16.msra.mxu0 %v7825
  %8113 = vmatmul.bf16.gmra.mxu0 %v7245
  %v8114 = vpop.f32.mrf.mxu0
  %v8115 = vadd.f32 %v8102, %v8114
  %v8116 = vpop.f32.mrf.mxu0
  %8117 = vdwg.mxu0
  %8118 = vmatpush.bf16.msra.mxu0 %v7818
  %8119 = vmatpush.bf16.msra.mxu0 %v7810
  %8120 = vmatpush.bf16.msra.mxu0 %v7802
  %8121 = vmatpush.bf16.msra.mxu0 %v7794
  %8122 = vmatpush.bf16.msra.mxu0 %v7786
  %8123 = vmatpush.bf16.msra.mxu0 %v7778
  %8124 = vmatpush.bf16.msra.mxu0 %v7770
  %8125 = vmatpush.bf16.msra.mxu0 %v7762
  %8126 = vmatmul.bf16.gmra.mxu0 %v7244
  %v8127 = vpop.f32.mrf.mxu0
  %v8128 = vadd.f32 0.0, %v8127
  %v8129 = vpop.f32.mrf.mxu0
  %8130 = vdwg.mxu0
  %8131 = vmatpush.bf16.msra.mxu0 %v7882
  %8132 = vmatpush.bf16.msra.mxu0 %v7874
  %8133 = vmatpush.bf16.msra.mxu0 %v7866
  %8134 = vmatpush.bf16.msra.mxu0 %v7858
  %8135 = vmatpush.bf16.msra.mxu0 %v7850
  %8136 = vmatpush.bf16.msra.mxu0 %v7842
  %8137 = vmatpush.bf16.msra.mxu0 %v7834
  %8138 = vmatpush.bf16.msra.mxu0 %v7826
  %8139 = vmatmul.bf16.gmra.mxu0 %v7245
  %v8140 = vpop.f32.mrf.mxu0
  %v8141 = vadd.f32 %v8128, %v8140
  %v8142 = vpop.f32.mrf.mxu0
  %8143 = vdwg.mxu0
  %8144 = vmatpush.bf16.msra.mxu0 %v7819
  %8145 = vmatpush.bf16.msra.mxu0 %v7811
  %8146 = vmatpush.bf16.msra.mxu0 %v7803
  %8147 = vmatpush.bf16.msra.mxu0 %v7795
  %8148 = vmatpush.bf16.msra.mxu0 %v7787
  %8149 = vmatpush.bf16.msra.mxu0 %v7779
  %8150 = vmatpush.bf16.msra.mxu0 %v7771
  %8151 = vmatpush.bf16.msra.mxu0 %v7763
  %8152 = vmatmul.bf16.gmra.mxu0 %v7244
  %v8153 = vpop.f32.mrf.mxu0
  %v8154 = vadd.f32 0.0, %v8153
  %v8155 = vpop.f32.mrf.mxu0
  %8156 = vdwg.mxu0
  %8157 = vmatpush.bf16.msra.mxu0 %v7883
  %8158 = vmatpush.bf16.msra.mxu0 %v7875
  %8159 = vmatpush.bf16.msra.mxu0 %v7867
  %8160 = vmatpush.bf16.msra.mxu0 %v7859
  %8161 = vmatpush.bf16.msra.mxu0 %v7851
  %8162 = vmatpush.bf16.msra.mxu0 %v7843
  %8163 = vmatpush.bf16.msra.mxu0 %v7835
  %8164 = vmatpush.bf16.msra.mxu0 %v7827
  %8165 = vmatmul.bf16.gmra.mxu0 %v7245
  %v8166 = vpop.f32.mrf.mxu0
  %v8167 = vadd.f32 %v8154, %v8166
  %v8168 = vpop.f32.mrf.mxu0
  %8169 = vdwg.mxu0
  %8170 = vmatpush.bf16.msra.mxu0 %v7820
  %8171 = vmatpush.bf16.msra.mxu0 %v7812
  %8172 = vmatpush.bf16.msra.mxu0 %v7804
  %8173 = vmatpush.bf16.msra.mxu0 %v7796
  %8174 = vmatpush.bf16.msra.mxu0 %v7788
  %8175 = vmatpush.bf16.msra.mxu0 %v7780
  %8176 = vmatpush.bf16.msra.mxu0 %v7772
  %8177 = vmatpush.bf16.msra.mxu0 %v7764
  %8178 = vmatmul.bf16.gmra.mxu0 %v7244
  %v8179 = vpop.f32.mrf.mxu0
  %v8180 = vadd.f32 0.0, %v8179
  %v8181 = vpop.f32.mrf.mxu0
  %8182 = vdwg.mxu0
  %8183 = vmatpush.bf16.msra.mxu0 %v7884
  %8184 = vmatpush.bf16.msra.mxu0 %v7876
  %8185 = vmatpush.bf16.msra.mxu0 %v7868
  %8186 = vmatpush.bf16.msra.mxu0 %v7860
  %8187 = vmatpush.bf16.msra.mxu0 %v7852
  %8188 = vmatpush.bf16.msra.mxu0 %v7844
  %8189 = vmatpush.bf16.msra.mxu0 %v7836
  %8190 = vmatpush.bf16.msra.mxu0 %v7828
  %8191 = vmatmul.bf16.gmra.mxu0 %v7245
  %v8192 = vpop.f32.mrf.mxu0
  %v8193 = vadd.f32 %v8180, %v8192
  %v8194 = vpop.f32.mrf.mxu0
  %8195 = vdwg.mxu0
  %8196 = vmatpush.bf16.msra.mxu0 %v7821
  %8197 = vmatpush.bf16.msra.mxu0 %v7813
  %8198 = vmatpush.bf16.msra.mxu0 %v7805
  %8199 = vmatpush.bf16.msra.mxu0 %v7797
  %8200 = vmatpush.bf16.msra.mxu0 %v7789
  %8201 = vmatpush.bf16.msra.mxu0 %v7781
  %8202 = vmatpush.bf16.msra.mxu0 %v7773
  %8203 = vmatpush.bf16.msra.mxu0 %v7765
  %8204 = vmatmul.bf16.gmra.mxu0 %v7244
  %v8205 = vpop.f32.mrf.mxu0
  %v8206 = vadd.f32 0.0, %v8205
  %v8207 = vpop.f32.mrf.mxu0
  %8208 = vdwg.mxu0
  %8209 = vmatpush.bf16.msra.mxu0 %v7885
  %8210 = vmatpush.bf16.msra.mxu0 %v7877
  %8211 = vmatpush.bf16.msra.mxu0 %v7869
  %8212 = vmatpush.bf16.msra.mxu0 %v7861
  %8213 = vmatpush.bf16.msra.mxu0 %v7853
  %8214 = vmatpush.bf16.msra.mxu0 %v7845
  %8215 = vmatpush.bf16.msra.mxu0 %v7837
  %8216 = vmatpush.bf16.msra.mxu0 %v7829
  %8217 = vmatmul.bf16.gmra.mxu0 %v7245
  %v8218 = vpop.f32.mrf.mxu0
  %v8219 = vadd.f32 %v8206, %v8218
  %v8220 = vpop.f32.mrf.mxu0
  %8221 = vdwg.mxu0
  %v8222 = vadd.f32 %v7238, %v8037
  %v8223 = vadd.f32 %v7239, %v8063
  %v8224 = vadd.f32 %v7240, %v8089
  %v8225 = vadd.f32 %v7241, %v8115
  %v8226 = vadd.f32 %v8141, %v440
  %v8227 = vadd.f32 %v8167, %v441
  %v8228 = vadd.f32 %v8193, %v442
  %v8229 = vadd.f32 %v8219, %v443
  %v8230 = vxor.u32 %v8226, 2147483648
  %v8231 = vmul.f32 %v8230, 1.442695
  %v8232 = vpow.pop %v8231
  %v8233 = vadd.f32 %v8232, 1.0
  %v8234 = vrcp.pop %v8233
  %v8235 = vmul.f32 %v8233, %v8234
  %v8236 = vsub.f32 1.0, %v8235
  %v8237 = vmul.f32 %v8234, %v8236
  %v8238 = vadd.f32 %v8234, %v8237
  %vm8239 = vweird.f32 %v8233
  %vm8240 = vweird.f32 %v8234
  %vm8241 = vmor %vm8239, %vm8240
  %v8242 = vsel %vm8241, %v8234, %v8238
  %v8243 = vand.u32 2147483647, %v8233
  %vm8244 = vcmp.eq.f32.partialorder %v8243, 8.507059e+37
  %v8245 = vand.u32 %v8233, 2147483648
  %v8246 = vor.u32 1.1754944e-38, %v8245
  %v8247 = vsel %vm8244, %v8246, %v8242
  %v8248 = vmul.f32 1.0, %v8247
  %v8249 = vxor.u32 %v8227, 2147483648
  %v8250 = vmul.f32 %v8249, 1.442695
  %v8251 = vpow.pop %v8250
  %v8252 = vadd.f32 %v8251, 1.0
  %v8253 = vrcp.pop %v8252
  %v8254 = vmul.f32 %v8252, %v8253
  %v8255 = vsub.f32 1.0, %v8254
  %v8256 = vmul.f32 %v8253, %v8255
  %v8257 = vadd.f32 %v8253, %v8256
  %vm8258 = vweird.f32 %v8252
  %vm8259 = vweird.f32 %v8253
  %vm8260 = vmor %vm8258, %vm8259
  %v8261 = vsel %vm8260, %v8253, %v8257
  %v8262 = vand.u32 2147483647, %v8252
  %vm8263 = vcmp.eq.f32.partialorder %v8262, 8.507059e+37
  %v8264 = vand.u32 %v8252, 2147483648
  %v8265 = vor.u32 1.1754944e-38, %v8264
  %v8266 = vsel %vm8263, %v8265, %v8261
  %v8267 = vmul.f32 1.0, %v8266
  %v8268 = vtanh.pop %v8228
  %v8269 = vxor.u32 %v8229, 2147483648
  %v8270 = vmul.f32 %v8269, 1.442695
  %v8271 = vpow.pop %v8270
  %v8272 = vadd.f32 %v8271, 1.0
  %v8273 = vrcp.pop %v8272
  %v8274 = vmul.f32 %v8272, %v8273
  %v8275 = vsub.f32 1.0, %v8274
  %v8276 = vmul.f32 %v8273, %v8275
  %v8277 = vadd.f32 %v8273, %v8276
  %vm8278 = vweird.f32 %v8272
  %vm8279 = vweird.f32 %v8273
  %vm8280 = vmor %vm8278, %vm8279
  %v8281 = vsel %vm8280, %v8273, %v8277
  %v8282 = vand.u32 2147483647, %v8272
  %vm8283 = vcmp.eq.f32.partialorder %v8282, 8.507059e+37
  %v8284 = vand.u32 %v8272, 2147483648
  %v8285 = vor.u32 1.1754944e-38, %v8284
  %v8286 = vsel %vm8283, %v8285, %v8281
  %v8287 = vmul.f32 1.0, %v8286
  %v8288 = vmul.f32 %v8267, %v7170
  %v8289 = vmul.f32 %v8248, %v8268
  %v8290 = vadd.f32 %v8288, %v8289
  %v8291 = vtanh.pop %v8290
  %v8292 = vmul.f32 %v8287, %v8291
  %8293 = vst [vmem:[#allocation3 + $0x8] sm:$0xff] %v8292
  %v8294 = vxor.u32 %v8222, 2147483648
  %v8295 = vmul.f32 %v8294, 1.442695
  %v8296 = vpow.pop %v8295
  %v8297 = vadd.f32 %v8296, 1.0
  %v8298 = vrcp.pop %v8297
  %v8299 = vmul.f32 %v8297, %v8298
  %v8300 = vsub.f32 1.0, %v8299
  %v8301 = vmul.f32 %v8298, %v8300
  %v8302 = vadd.f32 %v8298, %v8301
  %vm8303 = vweird.f32 %v8297
  %vm8304 = vweird.f32 %v8298
  %vm8305 = vmor %vm8303, %vm8304
  %v8306 = vsel %vm8305, %v8298, %v8302
  %v8307 = vand.u32 2147483647, %v8297
  %vm8308 = vcmp.eq.f32.partialorder %v8307, 8.507059e+37
  %v8309 = vand.u32 %v8297, 2147483648
  %v8310 = vor.u32 1.1754944e-38, %v8309
  %v8311 = vsel %vm8308, %v8310, %v8306
  %v8312 = vmul.f32 1.0, %v8311
  %v8313 = vxor.u32 %v8223, 2147483648
  %v8314 = vmul.f32 %v8313, 1.442695
  %v8315 = vpow.pop %v8314
  %v8316 = vadd.f32 %v8315, 1.0
  %v8317 = vrcp.pop %v8316
  %v8318 = vmul.f32 %v8316, %v8317
  %v8319 = vsub.f32 1.0, %v8318
  %v8320 = vmul.f32 %v8317, %v8319
  %v8321 = vadd.f32 %v8317, %v8320
  %vm8322 = vweird.f32 %v8316
  %vm8323 = vweird.f32 %v8317
  %vm8324 = vmor %vm8322, %vm8323
  %v8325 = vsel %vm8324, %v8317, %v8321
  %v8326 = vand.u32 2147483647, %v8316
  %vm8327 = vcmp.eq.f32.partialorder %v8326, 8.507059e+37
  %v8328 = vand.u32 %v8316, 2147483648
  %v8329 = vor.u32 1.1754944e-38, %v8328
  %v8330 = vsel %vm8327, %v8329, %v8325
  %v8331 = vmul.f32 1.0, %v8330
  %v8332 = vtanh.pop %v8224
  %v8333 = vxor.u32 %v8225, 2147483648
  %v8334 = vmul.f32 %v8333, 1.442695
  %v8335 = vpow.pop %v8334
  %v8336 = vadd.f32 %v8335, 1.0
  %v8337 = vrcp.pop %v8336
  %v8338 = vmul.f32 %v8336, %v8337
  %v8339 = vsub.f32 1.0, %v8338
  %v8340 = vmul.f32 %v8337, %v8339
  %v8341 = vadd.f32 %v8337, %v8340
  %vm8342 = vweird.f32 %v8336
  %vm8343 = vweird.f32 %v8337
  %vm8344 = vmor %vm8342, %vm8343
  %v8345 = vsel %vm8344, %v8337, %v8341
  %v8346 = vand.u32 2147483647, %v8336
  %vm8347 = vcmp.eq.f32.partialorder %v8346, 8.507059e+37
  %v8348 = vand.u32 %v8336, 2147483648
  %v8349 = vor.u32 1.1754944e-38, %v8348
  %v8350 = vsel %vm8347, %v8349, %v8345
  %v8351 = vmul.f32 1.0, %v8350
  %v8352 = vmul.f32 %v8331, %v7234
  %v8353 = vmul.f32 %v8312, %v8332
  %v8354 = vadd.f32 %v8352, %v8353
  %v8355 = vtanh.pop %v8354
  %v8356 = vmul.f32 %v8351, %v8355
  %8357 = vst [vmem:[#allocation3] sm:$0xff] %v8356
  %v8358 = vld [vmem:[#allocation3] sm:$0xff]
  %v8359 = vld [vmem:[#allocation3 + $0x8] sm:$0xff]
  %v8360 = vpack.c.bf16 %v8358, %v8358
  %v8361 = vpack.c.bf16 %v8359, %v8359
  %v8362 = vld [vmem:[%s3 + $0x10] sm:$0xff]
  %v8363 = vld [vmem:[%s3 + $0x18] sm:$0xff]
  %v8364 = vld [vmem:[%s3 + $0x30] sm:$0xff]
  %v8365 = vld [vmem:[%s3 + $0x38] sm:$0xff]
  %v8366 = vld [vmem:[%s3 + $0x50] sm:$0xff]
  %v8367 = vld [vmem:[%s3 + $0x58] sm:$0xff]
  %v8368 = vld [vmem:[%s3 + $0x70] sm:$0xff]
  %v8369 = vld [vmem:[%s3 + $0x78] sm:$0xff]
  %v8370 = vld [vmem:[%s3 + $0x90] sm:$0xff]
  %v8371 = vld [vmem:[%s3 + $0x98] sm:$0xff]
  %v8372 = vld [vmem:[%s3 + $0xb0] sm:$0xff]
  %v8373 = vld [vmem:[%s3 + $0xb8] sm:$0xff]
  %v8374 = vld [vmem:[%s3 + $0xd0] sm:$0xff]
  %v8375 = vld [vmem:[%s3 + $0xd8] sm:$0xff]
  %v8376 = vld [vmem:[%s3 + $0xf0] sm:$0xff]
  %v8377 = vld [vmem:[%s3 + $0xf8] sm:$0xff]
  %v8378 = vld [vmem:[%s3 + $0x110] sm:$0xff]
  %v8379 = vld [vmem:[%s3 + $0x118] sm:$0xff]
  %v8380 = vld [vmem:[%s3 + $0x130] sm:$0xff]
  %v8381 = vld [vmem:[%s3 + $0x138] sm:$0xff]
  %v8382 = vld [vmem:[%s3 + $0x150] sm:$0xff]
  %v8383 = vld [vmem:[%s3 + $0x158] sm:$0xff]
  %v8384 = vld [vmem:[%s3 + $0x170] sm:$0xff]
  %v8385 = vld [vmem:[%s3 + $0x178] sm:$0xff]
  %v8386 = vld [vmem:[%s3 + $0x190] sm:$0xff]
  %v8387 = vld [vmem:[%s3 + $0x198] sm:$0xff]
  %v8388 = vld [vmem:[%s3 + $0x1b0] sm:$0xff]
  %v8389 = vld [vmem:[%s3 + $0x1b8] sm:$0xff]
  %v8390 = vld [vmem:[%s3 + $0x1d0] sm:$0xff]
  %v8391 = vld [vmem:[%s3 + $0x1d8] sm:$0xff]
  %v8392 = vld [vmem:[%s3 + $0x1f0] sm:$0xff]
  %v8393 = vld [vmem:[%s3 + $0x1f8] sm:$0xff]
  %v8394 = vld [vmem:[%s3 + $0x210] sm:$0xff]
  %v8395 = vld [vmem:[%s3 + $0x218] sm:$0xff]
  %v8396 = vld [vmem:[%s3 + $0x230] sm:$0xff]
  %v8397 = vld [vmem:[%s3 + $0x238] sm:$0xff]
  %v8398 = vld [vmem:[%s3 + $0x250] sm:$0xff]
  %v8399 = vld [vmem:[%s3 + $0x258] sm:$0xff]
  %v8400 = vld [vmem:[%s3 + $0x270] sm:$0xff]
  %v8401 = vld [vmem:[%s3 + $0x278] sm:$0xff]
  %v8402 = vld [vmem:[%s3 + $0x290] sm:$0xff]
  %v8403 = vld [vmem:[%s3 + $0x298] sm:$0xff]
  %v8404 = vld [vmem:[%s3 + $0x2b0] sm:$0xff]
  %v8405 = vld [vmem:[%s3 + $0x2b8] sm:$0xff]
  %v8406 = vld [vmem:[%s3 + $0x2d0] sm:$0xff]
  %v8407 = vld [vmem:[%s3 + $0x2d8] sm:$0xff]
  %v8408 = vld [vmem:[%s3 + $0x2f0] sm:$0xff]
  %v8409 = vld [vmem:[%s3 + $0x2f8] sm:$0xff]
  %v8410 = vld [vmem:[%s3 + $0x310] sm:$0xff]
  %v8411 = vld [vmem:[%s3 + $0x318] sm:$0xff]
  %v8412 = vld [vmem:[%s3 + $0x330] sm:$0xff]
  %v8413 = vld [vmem:[%s3 + $0x338] sm:$0xff]
  %v8414 = vld [vmem:[%s3 + $0x350] sm:$0xff]
  %v8415 = vld [vmem:[%s3 + $0x358] sm:$0xff]
  %v8416 = vld [vmem:[%s3 + $0x370] sm:$0xff]
  %v8417 = vld [vmem:[%s3 + $0x378] sm:$0xff]
  %v8418 = vld [vmem:[%s3 + $0x390] sm:$0xff]
  %v8419 = vld [vmem:[%s3 + $0x398] sm:$0xff]
  %v8420 = vld [vmem:[%s3 + $0x3b0] sm:$0xff]
  %v8421 = vld [vmem:[%s3 + $0x3b8] sm:$0xff]
  %v8422 = vld [vmem:[%s3 + $0x3d0] sm:$0xff]
  %v8423 = vld [vmem:[%s3 + $0x3d8] sm:$0xff]
  %v8424 = vld [vmem:[%s3 + $0x3f0] sm:$0xff]
  %v8425 = vld [vmem:[%s3 + $0x3f8] sm:$0xff]
  %v8490 = vunpack.c.l.b16 %v8362
  %v8491 = vunpack.c.h.b16 %v8362
  %v8492 = vunpack.c.l.b16 %v8363
  %v8493 = vunpack.c.h.b16 %v8363
  %v8494 = vunpack.c.l.b16 %v8364
  %v8495 = vunpack.c.h.b16 %v8364
  %v8496 = vunpack.c.l.b16 %v8365
  %v8497 = vunpack.c.h.b16 %v8365
  %v8498 = vunpack.c.l.b16 %v8366
  %v8499 = vunpack.c.h.b16 %v8366
  %v8500 = vunpack.c.l.b16 %v8367
  %v8501 = vunpack.c.h.b16 %v8367
  %v8502 = vunpack.c.l.b16 %v8368
  %v8503 = vunpack.c.h.b16 %v8368
  %v8504 = vunpack.c.l.b16 %v8369
  %v8505 = vunpack.c.h.b16 %v8369
  %v8506 = vunpack.c.l.b16 %v8370
  %v8507 = vunpack.c.h.b16 %v8370
  %v8508 = vunpack.c.l.b16 %v8371
  %v8509 = vunpack.c.h.b16 %v8371
  %v8510 = vunpack.c.l.b16 %v8372
  %v8511 = vunpack.c.h.b16 %v8372
  %v8512 = vunpack.c.l.b16 %v8373
  %v8513 = vunpack.c.h.b16 %v8373
  %v8514 = vunpack.c.l.b16 %v8374
  %v8515 = vunpack.c.h.b16 %v8374
  %v8516 = vunpack.c.l.b16 %v8375
  %v8517 = vunpack.c.h.b16 %v8375
  %v8518 = vunpack.c.l.b16 %v8376
  %v8519 = vunpack.c.h.b16 %v8376
  %v8520 = vunpack.c.l.b16 %v8377
  %v8521 = vunpack.c.h.b16 %v8377
  %v8522 = vunpack.c.l.b16 %v8378
  %v8523 = vunpack.c.h.b16 %v8378
  %v8524 = vunpack.c.l.b16 %v8379
  %v8525 = vunpack.c.h.b16 %v8379
  %v8526 = vunpack.c.l.b16 %v8380
  %v8527 = vunpack.c.h.b16 %v8380
  %v8528 = vunpack.c.l.b16 %v8381
  %v8529 = vunpack.c.h.b16 %v8381
  %v8530 = vunpack.c.l.b16 %v8382
  %v8531 = vunpack.c.h.b16 %v8382
  %v8532 = vunpack.c.l.b16 %v8383
  %v8533 = vunpack.c.h.b16 %v8383
  %v8534 = vunpack.c.l.b16 %v8384
  %v8535 = vunpack.c.h.b16 %v8384
  %v8536 = vunpack.c.l.b16 %v8385
  %v8537 = vunpack.c.h.b16 %v8385
  %v8538 = vunpack.c.l.b16 %v8386
  %v8539 = vunpack.c.h.b16 %v8386
  %v8540 = vunpack.c.l.b16 %v8387
  %v8541 = vunpack.c.h.b16 %v8387
  %v8542 = vunpack.c.l.b16 %v8388
  %v8543 = vunpack.c.h.b16 %v8388
  %v8544 = vunpack.c.l.b16 %v8389
  %v8545 = vunpack.c.h.b16 %v8389
  %v8546 = vunpack.c.l.b16 %v8390
  %v8547 = vunpack.c.h.b16 %v8390
  %v8548 = vunpack.c.l.b16 %v8391
  %v8549 = vunpack.c.h.b16 %v8391
  %v8550 = vunpack.c.l.b16 %v8392
  %v8551 = vunpack.c.h.b16 %v8392
  %v8552 = vunpack.c.l.b16 %v8393
  %v8553 = vunpack.c.h.b16 %v8393
  %v8554 = vunpack.c.l.b16 %v8394
  %v8555 = vunpack.c.h.b16 %v8394
  %v8556 = vunpack.c.l.b16 %v8395
  %v8557 = vunpack.c.h.b16 %v8395
  %v8558 = vunpack.c.l.b16 %v8396
  %v8559 = vunpack.c.h.b16 %v8396
  %v8560 = vunpack.c.l.b16 %v8397
  %v8561 = vunpack.c.h.b16 %v8397
  %v8562 = vunpack.c.l.b16 %v8398
  %v8563 = vunpack.c.h.b16 %v8398
  %v8564 = vunpack.c.l.b16 %v8399
  %v8565 = vunpack.c.h.b16 %v8399
  %v8566 = vunpack.c.l.b16 %v8400
  %v8567 = vunpack.c.h.b16 %v8400
  %v8568 = vunpack.c.l.b16 %v8401
  %v8569 = vunpack.c.h.b16 %v8401
  %v8570 = vunpack.c.l.b16 %v8402
  %v8571 = vunpack.c.h.b16 %v8402
  %v8572 = vunpack.c.l.b16 %v8403
  %v8573 = vunpack.c.h.b16 %v8403
  %v8574 = vunpack.c.l.b16 %v8404
  %v8575 = vunpack.c.h.b16 %v8404
  %v8576 = vunpack.c.l.b16 %v8405
  %v8577 = vunpack.c.h.b16 %v8405
  %v8578 = vunpack.c.l.b16 %v8406
  %v8579 = vunpack.c.h.b16 %v8406
  %v8580 = vunpack.c.l.b16 %v8407
  %v8581 = vunpack.c.h.b16 %v8407
  %v8582 = vunpack.c.l.b16 %v8408
  %v8583 = vunpack.c.h.b16 %v8408
  %v8584 = vunpack.c.l.b16 %v8409
  %v8585 = vunpack.c.h.b16 %v8409
  %v8586 = vunpack.c.l.b16 %v8410
  %v8587 = vunpack.c.h.b16 %v8410
  %v8588 = vunpack.c.l.b16 %v8411
  %v8589 = vunpack.c.h.b16 %v8411
  %v8590 = vunpack.c.l.b16 %v8412
  %v8591 = vunpack.c.h.b16 %v8412
  %v8592 = vunpack.c.l.b16 %v8413
  %v8593 = vunpack.c.h.b16 %v8413
  %v8594 = vunpack.c.l.b16 %v8414
  %v8595 = vunpack.c.h.b16 %v8414
  %v8596 = vunpack.c.l.b16 %v8415
  %v8597 = vunpack.c.h.b16 %v8415
  %v8598 = vunpack.c.l.b16 %v8416
  %v8599 = vunpack.c.h.b16 %v8416
  %v8600 = vunpack.c.l.b16 %v8417
  %v8601 = vunpack.c.h.b16 %v8417
  %v8602 = vunpack.c.l.b16 %v8418
  %v8603 = vunpack.c.h.b16 %v8418
  %v8604 = vunpack.c.l.b16 %v8419
  %v8605 = vunpack.c.h.b16 %v8419
  %v8606 = vunpack.c.l.b16 %v8420
  %v8607 = vunpack.c.h.b16 %v8420
  %v8608 = vunpack.c.l.b16 %v8421
  %v8609 = vunpack.c.h.b16 %v8421
  %v8610 = vunpack.c.l.b16 %v8422
  %v8611 = vunpack.c.h.b16 %v8422
  %v8612 = vunpack.c.l.b16 %v8423
  %v8613 = vunpack.c.h.b16 %v8423
  %v8614 = vunpack.c.l.b16 %v8424
  %v8615 = vunpack.c.h.b16 %v8424
  %v8616 = vunpack.c.l.b16 %v8425
  %v8617 = vunpack.c.h.b16 %v8425
  %v8618 = vpack.c.b16 %v8494, %v8490
  %v8619 = vpack.c.b16 %v8495, %v8491
  %v8620 = vpack.c.b16 %v8496, %v8492
  %v8621 = vpack.c.b16 %v8497, %v8493
  %v8622 = vpack.c.b16 %v8502, %v8498
  %v8623 = vpack.c.b16 %v8503, %v8499
  %v8624 = vpack.c.b16 %v8504, %v8500
  %v8625 = vpack.c.b16 %v8505, %v8501
  %v8626 = vpack.c.b16 %v8510, %v8506
  %v8627 = vpack.c.b16 %v8511, %v8507
  %v8628 = vpack.c.b16 %v8512, %v8508
  %v8629 = vpack.c.b16 %v8513, %v8509
  %v8630 = vpack.c.b16 %v8518, %v8514
  %v8631 = vpack.c.b16 %v8519, %v8515
  %v8632 = vpack.c.b16 %v8520, %v8516
  %v8633 = vpack.c.b16 %v8521, %v8517
  %v8634 = vpack.c.b16 %v8526, %v8522
  %v8635 = vpack.c.b16 %v8527, %v8523
  %v8636 = vpack.c.b16 %v8528, %v8524
  %v8637 = vpack.c.b16 %v8529, %v8525
  %v8638 = vpack.c.b16 %v8534, %v8530
  %v8639 = vpack.c.b16 %v8535, %v8531
  %v8640 = vpack.c.b16 %v8536, %v8532
  %v8641 = vpack.c.b16 %v8537, %v8533
  %v8642 = vpack.c.b16 %v8542, %v8538
  %v8643 = vpack.c.b16 %v8543, %v8539
  %v8644 = vpack.c.b16 %v8544, %v8540
  %v8645 = vpack.c.b16 %v8545, %v8541
  %v8646 = vpack.c.b16 %v8550, %v8546
  %v8647 = vpack.c.b16 %v8551, %v8547
  %v8648 = vpack.c.b16 %v8552, %v8548
  %v8649 = vpack.c.b16 %v8553, %v8549
  %v8650 = vpack.c.b16 %v8558, %v8554
  %v8651 = vpack.c.b16 %v8559, %v8555
  %v8652 = vpack.c.b16 %v8560, %v8556
  %v8653 = vpack.c.b16 %v8561, %v8557
  %v8654 = vpack.c.b16 %v8566, %v8562
  %v8655 = vpack.c.b16 %v8567, %v8563
  %v8656 = vpack.c.b16 %v8568, %v8564
  %v8657 = vpack.c.b16 %v8569, %v8565
  %v8658 = vpack.c.b16 %v8574, %v8570
  %v8659 = vpack.c.b16 %v8575, %v8571
  %v8660 = vpack.c.b16 %v8576, %v8572
  %v8661 = vpack.c.b16 %v8577, %v8573
  %v8662 = vpack.c.b16 %v8582, %v8578
  %v8663 = vpack.c.b16 %v8583, %v8579
  %v8664 = vpack.c.b16 %v8584, %v8580
  %v8665 = vpack.c.b16 %v8585, %v8581
  %v8666 = vpack.c.b16 %v8590, %v8586
  %v8667 = vpack.c.b16 %v8591, %v8587
  %v8668 = vpack.c.b16 %v8592, %v8588
  %v8669 = vpack.c.b16 %v8593, %v8589
  %v8670 = vpack.c.b16 %v8598, %v8594
  %v8671 = vpack.c.b16 %v8599, %v8595
  %v8672 = vpack.c.b16 %v8600, %v8596
  %v8673 = vpack.c.b16 %v8601, %v8597
  %v8674 = vpack.c.b16 %v8606, %v8602
  %v8675 = vpack.c.b16 %v8607, %v8603
  %v8676 = vpack.c.b16 %v8608, %v8604
  %v8677 = vpack.c.b16 %v8609, %v8605
  %v8678 = vpack.c.b16 %v8614, %v8610
  %v8679 = vpack.c.b16 %v8615, %v8611
  %v8680 = vpack.c.b16 %v8616, %v8612
  %v8681 = vpack.c.b16 %v8617, %v8613
  %8746 = vmatpush.bf16.msra.mxu0 %v8646
  %8747 = vmatpush.bf16.msra.mxu0 %v8642
  %8748 = vmatpush.bf16.msra.mxu0 %v8638
  %8749 = vmatpush.bf16.msra.mxu0 %v8634
  %8750 = vmatpush.bf16.msra.mxu0 %v8630
  %8751 = vmatpush.bf16.msra.mxu0 %v8626
  %8752 = vmatpush.bf16.msra.mxu0 %v8622
  %8753 = vmatpush.bf16.msra.mxu0 %v8618
  %8754 = vmatmul.bf16.gmra.mxu0 %v8360
  %v8755 = vpop.f32.mrf.mxu0
  %v8756 = vadd.f32 %v440, %v8755
  %v8757 = vpop.f32.mrf.mxu0
  %8758 = vdwg.mxu0
  %8759 = vmatpush.bf16.msra.mxu0 %v8678
  %8760 = vmatpush.bf16.msra.mxu0 %v8674
  %8761 = vmatpush.bf16.msra.mxu0 %v8670
  %8762 = vmatpush.bf16.msra.mxu0 %v8666
  %8763 = vmatpush.bf16.msra.mxu0 %v8662
  %8764 = vmatpush.bf16.msra.mxu0 %v8658
  %8765 = vmatpush.bf16.msra.mxu0 %v8654
  %8766 = vmatpush.bf16.msra.mxu0 %v8650
  %8767 = vmatmul.bf16.gmra.mxu0 %v8361
  %v8768 = vpop.f32.mrf.mxu0
  %v8769 = vadd.f32 %v8756, %v8768
  %v8770 = vpop.f32.mrf.mxu0
  %8771 = vdwg.mxu0
  %8772 = vmatpush.bf16.msra.mxu0 %v8647
  %8773 = vmatpush.bf16.msra.mxu0 %v8643
  %8774 = vmatpush.bf16.msra.mxu0 %v8639
  %8775 = vmatpush.bf16.msra.mxu0 %v8635
  %8776 = vmatpush.bf16.msra.mxu0 %v8631
  %8777 = vmatpush.bf16.msra.mxu0 %v8627
  %8778 = vmatpush.bf16.msra.mxu0 %v8623
  %8779 = vmatpush.bf16.msra.mxu0 %v8619
  %8780 = vmatmul.bf16.gmra.mxu0 %v8360
  %v8781 = vpop.f32.mrf.mxu0
  %v8782 = vadd.f32 %v441, %v8781
  %v8783 = vpop.f32.mrf.mxu0
  %8784 = vdwg.mxu0
  %8785 = vmatpush.bf16.msra.mxu0 %v8679
  %8786 = vmatpush.bf16.msra.mxu0 %v8675
  %8787 = vmatpush.bf16.msra.mxu0 %v8671
  %8788 = vmatpush.bf16.msra.mxu0 %v8667
  %8789 = vmatpush.bf16.msra.mxu0 %v8663
  %8790 = vmatpush.bf16.msra.mxu0 %v8659
  %8791 = vmatpush.bf16.msra.mxu0 %v8655
  %8792 = vmatpush.bf16.msra.mxu0 %v8651
  %8793 = vmatmul.bf16.gmra.mxu0 %v8361
  %v8794 = vpop.f32.mrf.mxu0
  %v8795 = vadd.f32 %v8782, %v8794
  %v8796 = vpop.f32.mrf.mxu0
  %8797 = vdwg.mxu0
  %8798 = vmatpush.bf16.msra.mxu0 %v8648
  %8799 = vmatpush.bf16.msra.mxu0 %v8644
  %8800 = vmatpush.bf16.msra.mxu0 %v8640
  %8801 = vmatpush.bf16.msra.mxu0 %v8636
  %8802 = vmatpush.bf16.msra.mxu0 %v8632
  %8803 = vmatpush.bf16.msra.mxu0 %v8628
  %8804 = vmatpush.bf16.msra.mxu0 %v8624
  %8805 = vmatpush.bf16.msra.mxu0 %v8620
  %8806 = vmatmul.bf16.gmra.mxu0 %v8360
  %v8807 = vpop.f32.mrf.mxu0
  %v8808 = vadd.f32 %v442, %v8807
  %v8809 = vpop.f32.mrf.mxu0
  %8810 = vdwg.mxu0
  %8811 = vmatpush.bf16.msra.mxu0 %v8680
  %8812 = vmatpush.bf16.msra.mxu0 %v8676
  %8813 = vmatpush.bf16.msra.mxu0 %v8672
  %8814 = vmatpush.bf16.msra.mxu0 %v8668
  %8815 = vmatpush.bf16.msra.mxu0 %v8664
  %8816 = vmatpush.bf16.msra.mxu0 %v8660
  %8817 = vmatpush.bf16.msra.mxu0 %v8656
  %8818 = vmatpush.bf16.msra.mxu0 %v8652
  %8819 = vmatmul.bf16.gmra.mxu0 %v8361
  %v8820 = vpop.f32.mrf.mxu0
  %v8821 = vadd.f32 %v8808, %v8820
  %v8822 = vpop.f32.mrf.mxu0
  %8823 = vdwg.mxu0
  %8824 = vmatpush.bf16.msra.mxu0 %v8649
  %8825 = vmatpush.bf16.msra.mxu0 %v8645
  %8826 = vmatpush.bf16.msra.mxu0 %v8641
  %8827 = vmatpush.bf16.msra.mxu0 %v8637
  %8828 = vmatpush.bf16.msra.mxu0 %v8633
  %8829 = vmatpush.bf16.msra.mxu0 %v8629
  %8830 = vmatpush.bf16.msra.mxu0 %v8625
  %8831 = vmatpush.bf16.msra.mxu0 %v8621
  %8832 = vmatmul.bf16.gmra.mxu0 %v8360
  %v8833 = vpop.f32.mrf.mxu0
  %v8834 = vadd.f32 %v443, %v8833
  %v8835 = vpop.f32.mrf.mxu0
  %8836 = vdwg.mxu0
  %8837 = vmatpush.bf16.msra.mxu0 %v8681
  %8838 = vmatpush.bf16.msra.mxu0 %v8677
  %8839 = vmatpush.bf16.msra.mxu0 %v8673
  %8840 = vmatpush.bf16.msra.mxu0 %v8669
  %8841 = vmatpush.bf16.msra.mxu0 %v8665
  %8842 = vmatpush.bf16.msra.mxu0 %v8661
  %8843 = vmatpush.bf16.msra.mxu0 %v8657
  %8844 = vmatpush.bf16.msra.mxu0 %v8653
  %8845 = vmatmul.bf16.gmra.mxu0 %v8361
  %v8846 = vpop.f32.mrf.mxu0
  %v8847 = vadd.f32 %v8834, %v8846
  %v8848 = vpop.f32.mrf.mxu0
  %8849 = vdwg.mxu0
  %v8850 = vxor.u32 %v8769, 2147483648
  %v8851 = vmul.f32 %v8850, 1.442695
  %v8852 = vpow.pop %v8851
  %v8853 = vadd.f32 %v8852, 1.0
  %v8854 = vrcp.pop %v8853
  %v8855 = vmul.f32 %v8853, %v8854
  %v8856 = vsub.f32 1.0, %v8855
  %v8857 = vmul.f32 %v8854, %v8856
  %v8858 = vadd.f32 %v8854, %v8857
  %vm8859 = vweird.f32 %v8853
  %vm8860 = vweird.f32 %v8854
  %vm8861 = vmor %vm8859, %vm8860
  %v8862 = vsel %vm8861, %v8854, %v8858
  %v8863 = vand.u32 2147483647, %v8853
  %vm8864 = vcmp.eq.f32.partialorder %v8863, 8.507059e+37
  %v8865 = vand.u32 %v8853, 2147483648
  %v8866 = vor.u32 1.1754944e-38, %v8865
  %v8867 = vsel %vm8864, %v8866, %v8862
  %v8868 = vmul.f32 1.0, %v8867
  %v8869 = vxor.u32 %v8795, 2147483648
  %v8870 = vmul.f32 %v8869, 1.442695
  %v8871 = vpow.pop %v8870
  %v8872 = vadd.f32 %v8871, 1.0
  %v8873 = vrcp.pop %v8872
  %v8874 = vmul.f32 %v8872, %v8873
  %v8875 = vsub.f32 1.0, %v8874
  %v8876 = vmul.f32 %v8873, %v8875
  %v8877 = vadd.f32 %v8873, %v8876
  %vm8878 = vweird.f32 %v8872
  %vm8879 = vweird.f32 %v8873
  %vm8880 = vmor %vm8878, %vm8879
  %v8881 = vsel %vm8880, %v8873, %v8877
  %v8882 = vand.u32 2147483647, %v8872
  %vm8883 = vcmp.eq.f32.partialorder %v8882, 8.507059e+37
  %v8884 = vand.u32 %v8872, 2147483648
  %v8885 = vor.u32 1.1754944e-38, %v8884
  %v8886 = vsel %vm8883, %v8885, %v8881
  %v8887 = vmul.f32 1.0, %v8886
  %v8888 = vtanh.pop %v8821
  %v8889 = vxor.u32 %v8847, 2147483648
  %v8890 = vmul.f32 %v8889, 1.442695
  %v8891 = vpow.pop %v8890
  %v8892 = vadd.f32 %v8891, 1.0
  %v8893 = vrcp.pop %v8892
  %v8894 = vmul.f32 %v8892, %v8893
  %v8895 = vsub.f32 1.0, %v8894
  %v8896 = vmul.f32 %v8893, %v8895
  %v8897 = vadd.f32 %v8893, %v8896
  %vm8898 = vweird.f32 %v8892
  %vm8899 = vweird.f32 %v8893
  %vm8900 = vmor %vm8898, %vm8899
  %v8901 = vsel %vm8900, %v8893, %v8897
  %v8902 = vand.u32 2147483647, %v8892
  %vm8903 = vcmp.eq.f32.partialorder %v8902, 8.507059e+37
  %v8904 = vand.u32 %v8892, 2147483648
  %v8905 = vor.u32 1.1754944e-38, %v8904
  %v8906 = vsel %vm8903, %v8905, %v8901
  %v8907 = vmul.f32 1.0, %v8906
  %v8908 = vmul.f32 %v8887, %v8290
  %v8909 = vmul.f32 %v8868, %v8888
  %v8910 = vadd.f32 %v8908, %v8909
  %v8911 = vtanh.pop %v8910
  %v8912 = vmul.f32 %v8907, %v8911
  %v8913 = vld [vmem:[%s5] sm:$0xff]
  %v8914 = vld [vmem:[%s5 + $0x8] sm:$0xff]
  %v8915 = vld [vmem:[%s5 + $0x10] sm:$0xff]
  %v8916 = vld [vmem:[%s5 + $0x18] sm:$0xff]
  %v8917 = vld [vmem:[%s5 + $0x20] sm:$0xff]
  %v8918 = vld [vmem:[%s5 + $0x28] sm:$0xff]
  %v8919 = vld [vmem:[%s5 + $0x30] sm:$0xff]
  %v8920 = vld [vmem:[%s5 + $0x38] sm:$0xff]
  %v8921 = vld [vmem:[%s5 + $0x40] sm:$0xff]
  %v8922 = vld [vmem:[%s5 + $0x48] sm:$0xff]
  %v8923 = vld [vmem:[%s5 + $0x50] sm:$0xff]
  %v8924 = vld [vmem:[%s5 + $0x58] sm:$0xff]
  %v8925 = vld [vmem:[%s5 + $0x60] sm:$0xff]
  %v8926 = vld [vmem:[%s5 + $0x68] sm:$0xff]
  %v8927 = vld [vmem:[%s5 + $0x70] sm:$0xff]
  %v8928 = vld [vmem:[%s5 + $0x78] sm:$0xff]
  %v8929 = vld [vmem:[%s6] sm:$0x1]
  %v8931 = vperm.slane %v8929, 0
  %8933 = vmatpush.msra.mxu0 %v8928
  %8934 = vmatpush.msra.mxu0 %v8927
  %8935 = vmatpush.msra.mxu0 %v8926
  %8936 = vmatpush.msra.mxu0 %v8925
  %8937 = vmatpush.msra.mxu0 %v8924
  %8938 = vmatpush.msra.mxu0 %v8923
  %8939 = vmatpush.msra.mxu0 %v8922
  %8940 = vmatpush.msra.mxu0 %v8921
  %8941 = vmatpush.msra.mxu0 %v8920
  %8942 = vmatpush.msra.mxu0 %v8919
  %8943 = vmatpush.msra.mxu0 %v8918
  %8944 = vmatpush.msra.mxu0 %v8917
  %8945 = vmatpush.msra.mxu0 %v8916
  %8946 = vmatpush.msra.mxu0 %v8915
  %8947 = vmatpush.msra.mxu0 %v8914
  %8948 = vmatpush.msra.mxu0 %v8913
  %8949 = vmatmul.f32.gmra.mxu0 %v8912
  %v8950 = vpop.f32.mrf.mxu0
  %v8951 = vadd.f32 %v8931, %v8950
  %8952 = vdwg.mxu0
  %8953 = vst [vmem:[%s7] sm:$0xff] %v8951
  // Predicated region
  $region30: #{char_lstm_forward.1} parent=0 // pred_check
    _
  $region31: #{char_lstm_forward.1} parent=0 // pred_check_branch
    %8955 = sbr.rel (0) target = $region33
  $region32: #{char_lstm_forward.1} parent=0 // pred_region
    _
  $region33: #{char_lstm_forward.1} parent=0 // pred_fallthru
    _
  // Predicated region
  $region34: #{char_lstm_forward.1} parent=0 // pred_check
    _
  $region35: #{char_lstm_forward.1} parent=0 // pred_check_branch
    %8957 = sbr.rel (0) target = $region37
  $region36: #{char_lstm_forward.1} parent=0 // pred_region
    _
  $region37: #{char_lstm_forward.1} parent=0 // pred_fallthru
    _

</llo_original>
